<compile_context>
chip_gen: v6e
topology: v6e:2x2x1
jax: 0.10.0
libtpu: 0.0.40
codegen_flags: <defaults>
</compile_context>

<pallas_src>
import functools

import jax
import jax.numpy as jnp
from jax import lax
from jax.experimental import pallas as pl
from jax.experimental.pallas import tpu as pltpu

A = 4
D = 76 * 144          # 10944
H = 200

D_PAD = 11008         # 86 * 128  (lane-aligned, only 64 zero columns of waste)
H_PAD = 208           # 13 * 16   (sublane-aligned for bf16; w1 stored transposed)


def _round_up(x, m):
    return (x + m - 1) // m * m


def _mlp_softmax_kernel(x_ref, w1t_ref, b1_ref, w2_ref, b2_ref, out_ref):
    # x_ref:   [TB, D_PAD]    bf16   (batch tile, pipelined)
    # w1t_ref: [H_PAD, D_PAD] bf16   (transposed weight, resident in VMEM)
    # Layer 1 on the MXU: contract the last dim of both operands, accumulate in f32.
    h = lax.dot_general(
        x_ref[...], w1t_ref[...],
        dimension_numbers=(((1,), (1,)), ((), ())),
        preferred_element_type=jnp.float32)                       # [TB, H_PAD] f32
    h = jnp.maximum(h + b1_ref[...], 0.0)                         # bias + ReLU
    logits = jnp.dot(h, w2_ref[...],
                     preferred_element_type=jnp.float32) + b2_ref[...]   # [TB, A]
    # Numerically stable softmax over the action dim.
    m = jnp.max(logits, axis=-1, keepdims=True)
    e = jnp.exp(logits - m)
    denom = jnp.sum(e, axis=-1, keepdims=True)
    out_ref[...] = (e * pl.reciprocal(denom, approx=False)).astype(out_ref.dtype)


def prepare_params(w1, b1, w2, b2):
    """One-time weight prep: transpose + zero-pad w1 to (H_PAD, D_PAD) bf16."""
    w1t = jnp.zeros((H_PAD, D_PAD), jnp.bfloat16).at[:H, :D].set(
        w1.T.astype(jnp.bfloat16))
    b1p = jnp.zeros((1, H_PAD), jnp.float32).at[:, :H].set(b1.astype(jnp.float32))
    w2p = jnp.zeros((H_PAD, A), jnp.float32).at[:H, :].set(w2.astype(jnp.float32))
    b2p = b2.astype(jnp.float32).reshape(1, A)
    return w1t, b1p, w2p, b2p


@functools.partial(jax.jit, static_argnames=("tb",))
def mlp_softmax(x, w1t, b1p, w2p, b2p, *, tb=256):
    """x: [B, D] f32 -> [B, A] f32 softmax probabilities."""
    B = x.shape[0]
    # Batch tile: 256 feeds the full MXU on v6e/v7x (pass tb=128 on v5e); small
    # batches just round up to a sublane multiple.
    TB = tb if B > tb else _round_up(max(B, 1), 8)
    B_pad = _round_up(B, TB)
    nb = B_pad // TB

    # Pad & cast activations to bf16 inside the same jit as the kernel (fused, one
    # dispatch, no extra HBM round trip).
    x_p = jnp.zeros((B_pad, D_PAD), jnp.bfloat16).at[:B, :D].set(
        x.astype(jnp.bfloat16))

    cost = pl.CostEstimate(
        flops=2 * B_pad * D_PAD * H_PAD + 2 * B_pad * H_PAD * A,
        transcendentals=B_pad * A,
        bytes_accessed=(x_p.size * 2 + w1t.size * 2 + b1p.size * 4
                        + w2p.size * 4 + b2p.size * 4 + B_pad * A * 4),
    )

    out = pl.pallas_call(
        _mlp_softmax_kernel,
        out_shape=jax.ShapeDtypeStruct((B_pad, A), jnp.float32),
        grid_spec=pltpu.PrefetchScalarGridSpec(
            num_scalar_prefetch=0,
            grid=(nb,),                                          # batch tiles only
            in_specs=[
                pl.BlockSpec((TB, D_PAD), lambda b: (b, 0)),     # x tile (pipelined)
                pl.BlockSpec((H_PAD, D_PAD), lambda b: (0, 0)),  # w1^T resident (~4.6 MB)
                pl.BlockSpec((1, H_PAD), lambda b: (0, 0)),      # b1 (resident)
                pl.BlockSpec((H_PAD, A), lambda b: (0, 0)),      # w2 (resident)
                pl.BlockSpec((1, A), lambda b: (0, 0)),          # b2 (resident)
            ],
            out_specs=pl.BlockSpec((TB, A), lambda b: (b, 0)),
        ),
        compiler_params=pltpu.CompilerParams(
            dimension_semantics=("parallel",),   # independent batch tiles (megacore on v7x)
            vmem_limit_bytes=48 << 20,           # worst case (tb=256) ~26 MB incl. buffers
        ),
        cost_estimate=cost,
    )(x_p, w1t, b1p, w2p, b2p)
    # TODO(synk): for tiny batches on v7x, use both TensorCores by splitting the D
    # reduction across a leading "parallel" core axis and combining the [B, H_PAD]
    # partial sums BEFORE the nonlinear bias/ReLU/softmax epilogue.
    return out[:B]


def init_params(key):
    """PyTorch-default-like Linear init (U[-1/sqrt(fan_in), +1/sqrt(fan_in)]), f32."""
    k1, k2, k3, k4 = jax.random.split(key, 4)
    bound1 = 1.0 / jnp.sqrt(jnp.float32(D))
    bound2 = 1.0 / jnp.sqrt(jnp.float32(H))
    w1 = jax.random.uniform(k1, (D, H), jnp.float32, -bound1, bound1)
    b1 = jax.random.uniform(k2, (1, H), jnp.float32, -bound1, bound1)
    w2 = jax.random.uniform(k3, (H, A), jnp.float32, -bound2, bound2)
    b2 = jax.random.uniform(k4, (1, A), jnp.float32, -bound2, bound2)
    return w1, b1, w2, b2


def reference(x, w1, b1, w2, b2):
    h = jnp.maximum(x @ w1 + b1, 0.0)
    logits = h @ w2 + b2
    return jax.nn.softmax(logits, axis=-1)


if __name__ == "__main__":
    key = jax.random.PRNGKey(0)
    kx, kp = jax.random.split(key)

    B = 2  # small batch
    x = jax.random.normal(kx, (B, D), jnp.float32)
    w1, b1, w2, b2 = init_params(kp)
    w1t, b1p, w2p, b2p = prepare_params(w1, b1, w2, b2)

    out = jax.block_until_ready(mlp_softmax(x, w1t, b1p, w2p, b2p))

    # Reference with the same bf16 quantization of x/w1 (kernel streams them in bf16).
    x_q = x.astype(jnp.bfloat16).astype(jnp.float32)
    w1_q = w1.astype(jnp.bfloat16).astype(jnp.float32)
    ref_q = reference(x_q, w1_q, b1, w2, b2)
    ref_f32 = reference(x, w1, b1, w2, b2)

    assert out.shape == (B, A)
    assert jnp.allclose(out, ref_q, atol=2e-3, rtol=2e-3), "mismatch vs bf16-cast reference"
    assert jnp.allclose(out, ref_f32, atol=3e-2, rtol=3e-2), "mismatch vs f32 reference"
    assert jnp.allclose(jnp.sum(out, axis=-1), 1.0, atol=1e-5), "probs must sum to 1"

    print("KERNEL_OK")
</pallas_src>

<mosaic_0001>
module attributes {stable_mosaic.version = 11 : i64} {
  func.func @_mlp_softmax_kernel(%arg0: i32, %arg1: memref<8x11008xbf16, #tpu.memory_space<vmem>>, %arg2: memref<208x11008xbf16, #tpu.memory_space<vmem>>, %arg3: memref<1x208xf32, #tpu.memory_space<vmem>>, %arg4: memref<208x4xf32, #tpu.memory_space<vmem>>, %arg5: memref<1x4xf32, #tpu.memory_space<vmem>>, %arg6: memref<8x4xf32, #tpu.memory_space<vmem>>) attributes {dimension_semantics = [#tpu.dimension_semantics<parallel>], iteration_bounds = array<i64: 1>, scalar_prefetch = 0 : i64, scratch_operands = 0 : i64, tpu.core_type = #tpu.core_type<tc>, window_params = [{transform_indices = @transform_0, window_bounds = array<i64: 8, 11008>}, {pipeline_mode = #tpu.pipeline_mode<synchronous>, transform_indices = @transform_1, window_bounds = array<i64: 208, 11008>}, {pipeline_mode = #tpu.pipeline_mode<synchronous>, transform_indices = @transform_2, window_bounds = array<i64: 1, 208>}, {pipeline_mode = #tpu.pipeline_mode<synchronous>, transform_indices = @transform_3, window_bounds = array<i64: 208, 4>}, {pipeline_mode = #tpu.pipeline_mode<synchronous>, transform_indices = @transform_4, window_bounds = array<i64: 1, 4>}, {transform_indices = @transform_5, window_bounds = array<i64: 8, 4>}]} {
    %c0 = arith.constant 0 : index
    %c0_0 = arith.constant 0 : index
    %0 = vector.load %arg1[%c0, %c0_0] : memref<8x11008xbf16, #tpu.memory_space<vmem>>, vector<8x11008xbf16>
    %c0_1 = arith.constant 0 : index
    %c0_2 = arith.constant 0 : index
    %1 = vector.load %arg2[%c0_1, %c0_2] : memref<208x11008xbf16, #tpu.memory_space<vmem>>, vector<208x11008xbf16>
    %cst = arith.constant dense<0.000000e+00> : vector<8x208xf32>
    %2 = tpu.matmul %0, %1, %cst {dimension_numbers = #tpu.dot_dimension_numbers<[1], [1], [0], [0], [0, 0, 1, 0], [], []>} : vector<8x11008xbf16>, vector<208x11008xbf16>, vector<8x208xf32> -> vector<8x208xf32>
    %c0_3 = arith.constant 0 : index
    %c0_4 = arith.constant 0 : index
    %3 = vector.load %arg3[%c0_3, %c0_4] : memref<1x208xf32, #tpu.memory_space<vmem>>, vector<1x208xf32>
    %4 = vector.broadcast %3 : vector<1x208xf32> to vector<8x208xf32>
    %5 = arith.addf %2, %4 : vector<8x208xf32>
    %cst_5 = arith.constant 0.000000e+00 : f32
    %6 = vector.broadcast %cst_5 : f32 to vector<8x208xf32>
    %7 = arith.maximumf %5, %6 : vector<8x208xf32>
    %c0_6 = arith.constant 0 : index
    %c0_7 = arith.constant 0 : index
    %8 = vector.load %arg4[%c0_6, %c0_7] : memref<208x4xf32, #tpu.memory_space<vmem>>, vector<208x4xf32>
    %cst_8 = arith.constant dense<0.000000e+00> : vector<8x4xf32>
    %9 = tpu.matmul %7, %8, %cst_8 {dimension_numbers = #tpu.dot_dimension_numbers<[1], [0], [0], [1], [0, 0, 1, 1], [], []>} : vector<8x208xf32>, vector<208x4xf32>, vector<8x4xf32> -> vector<8x4xf32>
    %c0_9 = arith.constant 0 : index
    %c0_10 = arith.constant 0 : index
    %10 = vector.load %arg5[%c0_9, %c0_10] : memref<1x4xf32, #tpu.memory_space<vmem>>, vector<1x4xf32>
    %11 = vector.broadcast %10 : vector<1x4xf32> to vector<8x4xf32>
    %12 = arith.addf %9, %11 : vector<8x4xf32>
    %cst_11 = arith.constant dense<0xFF800000> : vector<8xf32>
    %13 = vector.multi_reduction <maximumf>, %12, %cst_11 [1] : vector<8x4xf32> to vector<8xf32>
    %14 = vector.shape_cast %13 : vector<8xf32> to vector<8x1xf32>
    %15 = vector.broadcast %14 : vector<8x1xf32> to vector<8x4xf32>
    %16 = arith.subf %12, %15 : vector<8x4xf32>
    %17 = math.exp %16 : vector<8x4xf32>
    %cst_12 = arith.constant dense<0.000000e+00> : vector<8xf32>
    %18 = vector.multi_reduction <add>, %17, %cst_12 [1] : vector<8x4xf32> to vector<8xf32>
    %19 = vector.shape_cast %18 : vector<8xf32> to vector<8x1xf32>
    %20 = tpu.reciprocal %19 : vector<8x1xf32> -> vector<8x1xf32>
    %21 = vector.broadcast %20 : vector<8x1xf32> to vector<8x4xf32>
    %22 = arith.mulf %17, %21 : vector<8x4xf32>
    %c0_13 = arith.constant 0 : index
    %c0_14 = arith.constant 0 : index
    %23 = vector.load %arg6[%c0_13, %c0_14] : memref<8x4xf32, #tpu.memory_space<vmem>>, vector<8x4xf32>
    tpu.vector_store %arg6[%c0_13, %c0_14], %22 {strides = array<i32>} : memref<8x4xf32, #tpu.memory_space<vmem>>, vector<8x4xf32>,
    return
  }
  func.func @transform_0(%arg0: i32) -> (i32, i32) {
    %c0_i32 = arith.constant 0 : i32
    %c0_i32_0 = arith.constant 0 : i32
    return %arg0, %c0_i32 : i32, i32
  }
  func.func @transform_1(%arg0: i32) -> (i32, i32) {
    %c0_i32 = arith.constant 0 : i32
    %c0_i32_0 = arith.constant 0 : i32
    %c0_i32_1 = arith.constant 0 : i32
    return %c0_i32, %c0_i32_0 : i32, i32
  }
  func.func @transform_2(%arg0: i32) -> (i32, i32) {
    %c0_i32 = arith.constant 0 : i32
    %c0_i32_0 = arith.constant 0 : i32
    %c0_i32_1 = arith.constant 0 : i32
    return %c0_i32, %c0_i32_0 : i32, i32
  }
  func.func @transform_3(%arg0: i32) -> (i32, i32) {
    %c0_i32 = arith.constant 0 : i32
    %c0_i32_0 = arith.constant 0 : i32
    %c0_i32_1 = arith.constant 0 : i32
    return %c0_i32, %c0_i32_0 : i32, i32
  }
  func.func @transform_4(%arg0: i32) -> (i32, i32) {
    %c0_i32 = arith.constant 0 : i32
    %c0_i32_0 = arith.constant 0 : i32
    %c0_i32_1 = arith.constant 0 : i32
    return %c0_i32, %c0_i32_0 : i32, i32
  }
  func.func @transform_5(%arg0: i32) -> (i32, i32) {
    %c0_i32 = arith.constant 0 : i32
    %c0_i32_0 = arith.constant 0 : i32
    return %arg0, %c0_i32 : i32, i32
  }
}

</mosaic_0001>

<llo_original>
// kernel: mlp_softmax.1
$region0: #{mlp_softmax.1}
  #allocation0 [shape = 'u32[]', space=smem, size = 0x4, offset = 0x4, fixed_abs, tag = 'smem constant byte address 0x4 - core index']
  #allocation1 [shape = 'u32[144,128]{1,0:T(1,128)}', space=vmem, size = 0x12000, scoped, tag = 'internal scratch']
  %s0 = inlined_call_operand.vmem [shape: bf16[8,11008], index: 0, kind: input, shape index: {}]
  %s1 = inlined_call_operand.hbm [shape: bf16[208,11008], index: 1, kind: input, shape index: {}]
  %s2 = inlined_call_operand.hbm [shape: f32[1,208], index: 2, kind: input, shape index: {}]
  %s3 = inlined_call_operand.vmem [shape: f32[208,4], index: 3, kind: input, shape index: {}]
  %s4 = inlined_call_operand.hbm [shape: f32[1,4], index: 4, kind: input, shape index: {}]
  %s5 = inlined_call_operand.vmem [shape: f32[8,4], index: 5, kind: output, shape index: {}]
  %s6 = sld [smem:[#allocation0]]
  $region42: #{mlp_softmax.1} parent=0
    _
  %s8 = ssub.s32 1, %s6
  %s9 = scalar_select 0, %s8, %s6
  $region1: #{mlp_softmax.1} parent=0
    #allocation2 [shape = 'u8[4579328]{0}', space=vmem, size = 0x45e000, scoped, tag = 'input window, operand 1, single buffered']
    #allocation3 [shape = 's32[1]{0}', space=sflag, size = 0x4, scoped, tag = 'scoped memory for mlp_softmax.1']
    #allocation4 [shape = 'u8[1024]{0}', space=vmem, size = 0x400, scoped, tag = 'input window, operand 2, single buffered']
    #allocation5 [shape = 's32[1]{0}', space=sflag, size = 0x4, scoped, tag = 'scoped memory for mlp_softmax.1']
    #allocation6 [shape = 'u8[512]{0}', space=vmem, size = 0x400, scoped, tag = 'input window, operand 4, single buffered']
    %10 = vsyncpa [#allocation3], 0
    %11 = vsyncpa [#allocation5], 0
    // Predicated region
    $region2: #{mlp_softmax.1} parent=1 // pred_check
      _
    $region3: #{mlp_softmax.1} parent=1 // pred_check_branch
      %13 = sbr.rel (0) target = $region5
    $region4: #{mlp_softmax.1} parent=1 // pred_region
      _
    $region5: #{mlp_softmax.1} parent=1 // pred_fallthru
      _
    // Predicated region
    $region6: #{mlp_softmax.1} parent=1 // pred_check
      _
    $region7: #{mlp_softmax.1} parent=1 // pred_check_branch
      %15 = sbr.rel (0) target = $region9
    $region8: #{mlp_softmax.1} parent=1 // pred_region
      %s17 = ssub.s32 143104, 143104
      %18 = vsyncadd [#allocation3], %s17
      %s19 = sshll.u32 [#allocation2], 4
      %s20 = int_to_ptr.vmem [resolvable:$true] %s19
      %25 = dma.hbm_to_vmem [thread:$0]  %s1, 143104, %s20, [#allocation3], 5504, 5504, 344
    $region9: #{mlp_softmax.1} parent=1 // pred_fallthru
      _
    // Predicated region
    $region10: #{mlp_softmax.1} parent=1 // pred_check
      _
    $region11: #{mlp_softmax.1} parent=1 // pred_check_branch
      %27 = sbr.rel (0) target = $region13
    $region12: #{mlp_softmax.1} parent=1 // pred_region
      %s29 = ssub.s32 32, 32
      %30 = vsyncadd [#allocation5], %s29
      %s32 = sshll.u32 [#allocation4], 4
      %s33 = int_to_ptr.vmem [resolvable:$true] %s32
      %35 = dma.hbm_to_vmem [thread:$0]  %s2, 32, %s33, [#allocation5]
    $region13: #{mlp_softmax.1} parent=1 // pred_fallthru
      _
    // Predicated region
    $region14: #{mlp_softmax.1} parent=1 // pred_check
      _
    $region15: #{mlp_softmax.1} parent=1 // pred_check_branch
      %37 = sbr.rel (0) target = $region17
    $region16: #{mlp_softmax.1} parent=1 // pred_region
      _
    $region17: #{mlp_softmax.1} parent=1 // pred_fallthru
      _
    // Predicated region
    $region18: #{mlp_softmax.1} parent=1 // pred_check
      _
    $region19: #{mlp_softmax.1} parent=1 // pred_check_branch
      %39 = sbr.rel (0) target = $region21
    $region20: #{mlp_softmax.1} parent=1 // pred_region
      %s41 = ssub.s32 16, 16
      %42 = vsyncadd [#allocation5], %s41
      %s44 = sshll.u32 [#allocation6], 4
      %s45 = int_to_ptr.vmem [resolvable:$true] %s44
      %47 = dma.hbm_to_vmem [thread:$0]  %s4, 16, %s45, [#allocation5]
    $region21: #{mlp_softmax.1} parent=1 // pred_fallthru
      _
    // Predicated region
    $region22: #{mlp_softmax.1} parent=1 // pred_check
      _
    $region23: #{mlp_softmax.1} parent=1 // pred_check_branch
      %49 = sbr.rel (0) target = $region25
    $region24: #{mlp_softmax.1} parent=1 // pred_region
      %50 = dma.done [#allocation3], 143104
    $region25: #{mlp_softmax.1} parent=1 // pred_fallthru
      _
    // Predicated region
    $region26: #{mlp_softmax.1} parent=1 // pred_check
      _
    $region27: #{mlp_softmax.1} parent=1 // pred_check_branch
      %52 = sbr.rel (0) target = $region29
    $region28: #{mlp_softmax.1} parent=1 // pred_region
      %53 = dma.done [#allocation5], 32
    $region29: #{mlp_softmax.1} parent=1 // pred_fallthru
      _
    // Predicated region
    $region30: #{mlp_softmax.1} parent=1 // pred_check
      _
    $region31: #{mlp_softmax.1} parent=1 // pred_check_branch
      %55 = sbr.rel (0) target = $region33
    $region32: #{mlp_softmax.1} parent=1 // pred_region
      %56 = dma.done [#allocation5], 16
    $region33: #{mlp_softmax.1} parent=1 // pred_fallthru
      _
    %v58 = vld [vmem:[%s0] sm:$0xff]
    %v59 = vld [vmem:[%s0 + $0x8] sm:$0xff]
    %v60 = vld [vmem:[%s0 + $0x10] sm:$0xff]
    %v61 = vld [vmem:[%s0 + $0x18] sm:$0xff]
    %v62 = vld [vmem:[%s0 + $0x20] sm:$0xff]
    %v63 = vld [vmem:[%s0 + $0x28] sm:$0xff]
    %v64 = vld [vmem:[%s0 + $0x30] sm:$0xff]
    %v65 = vld [vmem:[%s0 + $0x38] sm:$0xff]
    %v66 = vld [vmem:[%s0 + $0x40] sm:$0xff]
    %v67 = vld [vmem:[%s0 + $0x48] sm:$0xff]
    %v68 = vld [vmem:[%s0 + $0x50] sm:$0xff]
    %v69 = vld [vmem:[%s0 + $0x58] sm:$0xff]
    %v70 = vld [vmem:[%s0 + $0x60] sm:$0xff]
    %v71 = vld [vmem:[%s0 + $0x68] sm:$0xff]
    %v72 = vld [vmem:[%s0 + $0x70] sm:$0xff]
    %v73 = vld [vmem:[%s0 + $0x78] sm:$0xff]
    %v74 = vld [vmem:[%s0 + $0x80] sm:$0xff]
    %v75 = vld [vmem:[%s0 + $0x88] sm:$0xff]
    %v76 = vld [vmem:[%s0 + $0x90] sm:$0xff]
    %v77 = vld [vmem:[%s0 + $0x98] sm:$0xff]
    %v78 = vld [vmem:[%s0 + $0xa0] sm:$0xff]
    %v79 = vld [vmem:[%s0 + $0xa8] sm:$0xff]
    %v80 = vld [vmem:[%s0 + $0xb0] sm:$0xff]
    %v81 = vld [vmem:[%s0 + $0xb8] sm:$0xff]
    %v82 = vld [vmem:[%s0 + $0xc0] sm:$0xff]
    %v83 = vld [vmem:[%s0 + $0xc8] sm:$0xff]
    %v84 = vld [vmem:[%s0 + $0xd0] sm:$0xff]
    %v85 = vld [vmem:[%s0 + $0xd8] sm:$0xff]
    %v86 = vld [vmem:[%s0 + $0xe0] sm:$0xff]
    %v87 = vld [vmem:[%s0 + $0xe8] sm:$0xff]
    %v88 = vld [vmem:[%s0 + $0xf0] sm:$0xff]
    %v89 = vld [vmem:[%s0 + $0xf8] sm:$0xff]
    %v90 = vld [vmem:[%s0 + $0x100] sm:$0xff]
    %v91 = vld [vmem:[%s0 + $0x108] sm:$0xff]
    %v92 = vld [vmem:[%s0 + $0x110] sm:$0xff]
    %v93 = vld [vmem:[%s0 + $0x118] sm:$0xff]
    %v94 = vld [vmem:[%s0 + $0x120] sm:$0xff]
    %v95 = vld [vmem:[%s0 + $0x128] sm:$0xff]
    %v96 = vld [vmem:[%s0 + $0x130] sm:$0xff]
    %v97 = vld [vmem:[%s0 + $0x138] sm:$0xff]
    %v98 = vld [vmem:[%s0 + $0x140] sm:$0xff]
    %v99 = vld [vmem:[%s0 + $0x148] sm:$0xff]
    %v100 = vld [vmem:[%s0 + $0x150] sm:$0xff]
    %v101 = vld [vmem:[#allocation2] sm:$0xff]
    %v102 = vld [vmem:[#allocation2 + $0x8] sm:$0xff]
    %v103 = vld [vmem:[#allocation2 + $0x10] sm:$0xff]
    %v104 = vld [vmem:[#allocation2 + $0x18] sm:$0xff]
    %v105 = vld [vmem:[#allocation2 + $0x20] sm:$0xff]
    %v106 = vld [vmem:[#allocation2 + $0x28] sm:$0xff]
    %v107 = vld [vmem:[#allocation2 + $0x30] sm:$0xff]
    %v108 = vld [vmem:[#allocation2 + $0x38] sm:$0xff]
    %v109 = vld [vmem:[#allocation2 + $0x40] sm:$0xff]
    %v110 = vld [vmem:[#allocation2 + $0x48] sm:$0xff]
    %v111 = vld [vmem:[#allocation2 + $0x50] sm:$0xff]
    %v112 = vld [vmem:[#allocation2 + $0x58] sm:$0xff]
    %v113 = vld [vmem:[#allocation2 + $0x60] sm:$0xff]
    %v114 = vld [vmem:[#allocation2 + $0x68] sm:$0xff]
    %v115 = vld [vmem:[#allocation2 + $0x70] sm:$0xff]
    %v116 = vld [vmem:[#allocation2 + $0x78] sm:$0xff]
    %v117 = vld [vmem:[#allocation2 + $0x80] sm:$0xff]
    %v118 = vld [vmem:[#allocation2 + $0x88] sm:$0xff]
    %v119 = vld [vmem:[#allocation2 + $0x90] sm:$0xff]
    %v120 = vld [vmem:[#allocation2 + $0x98] sm:$0xff]
    %v121 = vld [vmem:[#allocation2 + $0xa0] sm:$0xff]
    %v122 = vld [vmem:[#allocation2 + $0xa8] sm:$0xff]
    %v123 = vld [vmem:[#allocation2 + $0xb0] sm:$0xff]
    %v124 = vld [vmem:[#allocation2 + $0xb8] sm:$0xff]
    %v125 = vld [vmem:[#allocation2 + $0xc0] sm:$0xff]
    %v126 = vld [vmem:[#allocation2 + $0xc8] sm:$0xff]
    %v127 = vld [vmem:[#allocation2 + $0xd0] sm:$0xff]
    %v128 = vld [vmem:[#allocation2 + $0xd8] sm:$0xff]
    %v129 = vld [vmem:[#allocation2 + $0xe0] sm:$0xff]
    %v130 = vld [vmem:[#allocation2 + $0xe8] sm:$0xff]
    %v131 = vld [vmem:[#allocation2 + $0xf0] sm:$0xff]
    %v132 = vld [vmem:[#allocation2 + $0xf8] sm:$0xff]
    %v133 = vld [vmem:[#allocation2 + $0x100] sm:$0xff]
    %v134 = vld [vmem:[#allocation2 + $0x108] sm:$0xff]
    %v135 = vld [vmem:[#allocation2 + $0x110] sm:$0xff]
    %v136 = vld [vmem:[#allocation2 + $0x118] sm:$0xff]
    %v137 = vld [vmem:[#allocation2 + $0x120] sm:$0xff]
    %v138 = vld [vmem:[#allocation2 + $0x128] sm:$0xff]
    %v139 = vld [vmem:[#allocation2 + $0x130] sm:$0xff]
    %v140 = vld [vmem:[#allocation2 + $0x138] sm:$0xff]
    %v141 = vld [vmem:[#allocation2 + $0x140] sm:$0xff]
    %v142 = vld [vmem:[#allocation2 + $0x148] sm:$0xff]
    %v143 = vld [vmem:[#allocation2 + $0x150] sm:$0xff]
    %v144 = vld [vmem:[#allocation2 + $0x158] sm:$0xff]
    %v145 = vld [vmem:[#allocation2 + $0x160] sm:$0xff]
    %v146 = vld [vmem:[#allocation2 + $0x168] sm:$0xff]
    %v147 = vld [vmem:[#allocation2 + $0x170] sm:$0xff]
    %v148 = vld [vmem:[#allocation2 + $0x178] sm:$0xff]
    %v149 = vld [vmem:[#allocation2 + $0x180] sm:$0xff]
    %v150 = vld [vmem:[#allocation2 + $0x188] sm:$0xff]
    %v151 = vld [vmem:[#allocation2 + $0x190] sm:$0xff]
    %v152 = vld [vmem:[#allocation2 + $0x198] sm:$0xff]
    %v153 = vld [vmem:[#allocation2 + $0x1a0] sm:$0xff]
    %v154 = vld [vmem:[#allocation2 + $0x1a8] sm:$0xff]
    %v155 = vld [vmem:[#allocation2 + $0x1b0] sm:$0xff]
    %v156 = vld [vmem:[#allocation2 + $0x1b8] sm:$0xff]
    %v157 = vld [vmem:[#allocation2 + $0x1c0] sm:$0xff]
    %v158 = vld [vmem:[#allocation2 + $0x1c8] sm:$0xff]
    %v159 = vld [vmem:[#allocation2 + $0x1d0] sm:$0xff]
    %v160 = vld [vmem:[#allocation2 + $0x1d8] sm:$0xff]
    %v161 = vld [vmem:[#allocation2 + $0x1e0] sm:$0xff]
    %v162 = vld [vmem:[#allocation2 + $0x1e8] sm:$0xff]
    %v163 = vld [vmem:[#allocation2 + $0x1f0] sm:$0xff]
    %v164 = vld [vmem:[#allocation2 + $0x1f8] sm:$0xff]
    %v165 = vld [vmem:[#allocation2 + $0x200] sm:$0xff]
    %v166 = vld [vmem:[#allocation2 + $0x208] sm:$0xff]
    %v167 = vld [vmem:[#allocation2 + $0x210] sm:$0xff]
    %v168 = vld [vmem:[#allocation2 + $0x218] sm:$0xff]
    %v169 = vld [vmem:[#allocation2 + $0x220] sm:$0xff]
    %v170 = vld [vmem:[#allocation2 + $0x228] sm:$0xff]
    %v171 = vld [vmem:[#allocation2 + $0x230] sm:$0xff]
    %v172 = vld [vmem:[#allocation2 + $0x238] sm:$0xff]
    %v173 = vld [vmem:[#allocation2 + $0x240] sm:$0xff]
    %v174 = vld [vmem:[#allocation2 + $0x248] sm:$0xff]
    %v175 = vld [vmem:[#allocation2 + $0x250] sm:$0xff]
    %v176 = vld [vmem:[#allocation2 + $0x258] sm:$0xff]
    %v177 = vld [vmem:[#allocation2 + $0x260] sm:$0xff]
    %v178 = vld [vmem:[#allocation2 + $0x268] sm:$0xff]
    %v179 = vld [vmem:[#allocation2 + $0x270] sm:$0xff]
    %v180 = vld [vmem:[#allocation2 + $0x278] sm:$0xff]
    %v181 = vld [vmem:[#allocation2 + $0x280] sm:$0xff]
    %v182 = vld [vmem:[#allocation2 + $0x288] sm:$0xff]
    %v183 = vld [vmem:[#allocation2 + $0x290] sm:$0xff]
    %v184 = vld [vmem:[#allocation2 + $0x298] sm:$0xff]
    %v185 = vld [vmem:[#allocation2 + $0x2a0] sm:$0xff]
    %v186 = vld [vmem:[#allocation2 + $0x2a8] sm:$0xff]
    %v187 = vld [vmem:[#allocation2 + $0x2b0] sm:$0xff]
    %v188 = vld [vmem:[#allocation2 + $0x2b8] sm:$0xff]
    %v189 = vld [vmem:[#allocation2 + $0x2c0] sm:$0xff]
    %v190 = vld [vmem:[#allocation2 + $0x2c8] sm:$0xff]
    %v191 = vld [vmem:[#allocation2 + $0x2d0] sm:$0xff]
    %v192 = vld [vmem:[#allocation2 + $0x2d8] sm:$0xff]
    %v193 = vld [vmem:[#allocation2 + $0x2e0] sm:$0xff]
    %v194 = vld [vmem:[#allocation2 + $0x2e8] sm:$0xff]
    %v195 = vld [vmem:[#allocation2 + $0x2f0] sm:$0xff]
    %v196 = vld [vmem:[#allocation2 + $0x2f8] sm:$0xff]
    %v197 = vld [vmem:[#allocation2 + $0x300] sm:$0xff]
    %v198 = vld [vmem:[#allocation2 + $0x308] sm:$0xff]
    %v199 = vld [vmem:[#allocation2 + $0x310] sm:$0xff]
    %v200 = vld [vmem:[#allocation2 + $0x318] sm:$0xff]
    %v201 = vld [vmem:[#allocation2 + $0x320] sm:$0xff]
    %v202 = vld [vmem:[#allocation2 + $0x328] sm:$0xff]
    %v203 = vld [vmem:[#allocation2 + $0x330] sm:$0xff]
    %v204 = vld [vmem:[#allocation2 + $0x338] sm:$0xff]
    %v205 = vld [vmem:[#allocation2 + $0x340] sm:$0xff]
    %v206 = vld [vmem:[#allocation2 + $0x348] sm:$0xff]
    %v207 = vld [vmem:[#allocation2 + $0x350] sm:$0xff]
    %v208 = vld [vmem:[#allocation2 + $0x358] sm:$0xff]
    %v209 = vld [vmem:[#allocation2 + $0x360] sm:$0xff]
    %v210 = vld [vmem:[#allocation2 + $0x368] sm:$0xff]
    %v211 = vld [vmem:[#allocation2 + $0x370] sm:$0xff]
    %v212 = vld [vmem:[#allocation2 + $0x378] sm:$0xff]
    %v213 = vld [vmem:[#allocation2 + $0x380] sm:$0xff]
    %v214 = vld [vmem:[#allocation2 + $0x388] sm:$0xff]
    %v215 = vld [vmem:[#allocation2 + $0x390] sm:$0xff]
    %v216 = vld [vmem:[#allocation2 + $0x398] sm:$0xff]
    %v217 = vld [vmem:[#allocation2 + $0x3a0] sm:$0xff]
    %v218 = vld [vmem:[#allocation2 + $0x3a8] sm:$0xff]
    %v219 = vld [vmem:[#allocation2 + $0x3b0] sm:$0xff]
    %v220 = vld [vmem:[#allocation2 + $0x3b8] sm:$0xff]
    %v221 = vld [vmem:[#allocation2 + $0x3c0] sm:$0xff]
    %v222 = vld [vmem:[#allocation2 + $0x3c8] sm:$0xff]
    %v223 = vld [vmem:[#allocation2 + $0x3d0] sm:$0xff]
    %v224 = vld [vmem:[#allocation2 + $0x3d8] sm:$0xff]
    %v225 = vld [vmem:[#allocation2 + $0x3e0] sm:$0xff]
    %v226 = vld [vmem:[#allocation2 + $0x3e8] sm:$0xff]
    %v227 = vld [vmem:[#allocation2 + $0x3f0] sm:$0xff]
    %v228 = vld [vmem:[#allocation2 + $0x3f8] sm:$0xff]
    %v229 = vld [vmem:[#allocation2 + $0x400] sm:$0xff]
    %v230 = vld [vmem:[#allocation2 + $0x408] sm:$0xff]
    %v231 = vld [vmem:[#allocation2 + $0x410] sm:$0xff]
    %v232 = vld [vmem:[#allocation2 + $0x418] sm:$0xff]
    %v233 = vld [vmem:[#allocation2 + $0x420] sm:$0xff]
    %v234 = vld [vmem:[#allocation2 + $0x428] sm:$0xff]
    %v235 = vld [vmem:[#allocation2 + $0x430] sm:$0xff]
    %v236 = vld [vmem:[#allocation2 + $0x438] sm:$0xff]
    %v237 = vld [vmem:[#allocation2 + $0x440] sm:$0xff]
    %v238 = vld [vmem:[#allocation2 + $0x448] sm:$0xff]
    %v239 = vld [vmem:[#allocation2 + $0x450] sm:$0xff]
    %v240 = vld [vmem:[#allocation2 + $0x458] sm:$0xff]
    %v241 = vld [vmem:[#allocation2 + $0x460] sm:$0xff]
    %v242 = vld [vmem:[#allocation2 + $0x468] sm:$0xff]
    %v243 = vld [vmem:[#allocation2 + $0x470] sm:$0xff]
    %v244 = vld [vmem:[#allocation2 + $0x478] sm:$0xff]
    %v245 = vld [vmem:[#allocation2 + $0x480] sm:$0xff]
    %v246 = vld [vmem:[#allocation2 + $0x488] sm:$0xff]
    %v247 = vld [vmem:[#allocation2 + $0x490] sm:$0xff]
    %v248 = vld [vmem:[#allocation2 + $0x498] sm:$0xff]
    %v249 = vld [vmem:[#allocation2 + $0x4a0] sm:$0xff]
    %v250 = vld [vmem:[#allocation2 + $0x4a8] sm:$0xff]
    %v251 = vld [vmem:[#allocation2 + $0x4b0] sm:$0xff]
    %v252 = vld [vmem:[#allocation2 + $0x4b8] sm:$0xff]
    %v253 = vld [vmem:[#allocation2 + $0x4c0] sm:$0xff]
    %v254 = vld [vmem:[#allocation2 + $0x4c8] sm:$0xff]
    %v255 = vld [vmem:[#allocation2 + $0x4d0] sm:$0xff]
    %v256 = vld [vmem:[#allocation2 + $0x4d8] sm:$0xff]
    %v257 = vld [vmem:[#allocation2 + $0x4e0] sm:$0xff]
    %v258 = vld [vmem:[#allocation2 + $0x4e8] sm:$0xff]
    %v259 = vld [vmem:[#allocation2 + $0x4f0] sm:$0xff]
    %v260 = vld [vmem:[#allocation2 + $0x4f8] sm:$0xff]
    %v261 = vld [vmem:[#allocation2 + $0x500] sm:$0xff]
    %v262 = vld [vmem:[#allocation2 + $0x508] sm:$0xff]
    %v263 = vld [vmem:[#allocation2 + $0x510] sm:$0xff]
    %v264 = vld [vmem:[#allocation2 + $0x518] sm:$0xff]
    %v265 = vld [vmem:[#allocation2 + $0x520] sm:$0xff]
    %v266 = vld [vmem:[#allocation2 + $0x528] sm:$0xff]
    %v267 = vld [vmem:[#allocation2 + $0x530] sm:$0xff]
    %v268 = vld [vmem:[#allocation2 + $0x538] sm:$0xff]
    %v269 = vld [vmem:[#allocation2 + $0x540] sm:$0xff]
    %v270 = vld [vmem:[#allocation2 + $0x548] sm:$0xff]
    %v271 = vld [vmem:[#allocation2 + $0x550] sm:$0xff]
    %v272 = vld [vmem:[#allocation2 + $0x558] sm:$0xff]
    %v273 = vld [vmem:[#allocation2 + $0x560] sm:$0xff]
    %v274 = vld [vmem:[#allocation2 + $0x568] sm:$0xff]
    %v275 = vld [vmem:[#allocation2 + $0x570] sm:$0xff]
    %v276 = vld [vmem:[#allocation2 + $0x578] sm:$0xff]
    %v277 = vld [vmem:[#allocation2 + $0x580] sm:$0xff]
    %v278 = vld [vmem:[#allocation2 + $0x588] sm:$0xff]
    %v279 = vld [vmem:[#allocation2 + $0x590] sm:$0xff]
    %v280 = vld [vmem:[#allocation2 + $0x598] sm:$0xff]
    %v281 = vld [vmem:[#allocation2 + $0x5a0] sm:$0xff]
    %v282 = vld [vmem:[#allocation2 + $0x5a8] sm:$0xff]
    %v283 = vld [vmem:[#allocation2 + $0x5b0] sm:$0xff]
    %v284 = vld [vmem:[#allocation2 + $0x5b8] sm:$0xff]
    %v285 = vld [vmem:[#allocation2 + $0x5c0] sm:$0xff]
    %v286 = vld [vmem:[#allocation2 + $0x5c8] sm:$0xff]
    %v287 = vld [vmem:[#allocation2 + $0x5d0] sm:$0xff]
    %v288 = vld [vmem:[#allocation2 + $0x5d8] sm:$0xff]
    %v289 = vld [vmem:[#allocation2 + $0x5e0] sm:$0xff]
    %v290 = vld [vmem:[#allocation2 + $0x5e8] sm:$0xff]
    %v291 = vld [vmem:[#allocation2 + $0x5f0] sm:$0xff]
    %v292 = vld [vmem:[#allocation2 + $0x5f8] sm:$0xff]
    %v293 = vld [vmem:[#allocation2 + $0x600] sm:$0xff]
    %v294 = vld [vmem:[#allocation2 + $0x608] sm:$0xff]
    %v295 = vld [vmem:[#allocation2 + $0x610] sm:$0xff]
    %v296 = vld [vmem:[#allocation2 + $0x618] sm:$0xff]
    %v297 = vld [vmem:[#allocation2 + $0x620] sm:$0xff]
    %v298 = vld [vmem:[#allocation2 + $0x628] sm:$0xff]
    %v299 = vld [vmem:[#allocation2 + $0x630] sm:$0xff]
    %v300 = vld [vmem:[#allocation2 + $0x638] sm:$0xff]
    %v301 = vld [vmem:[#allocation2 + $0x640] sm:$0xff]
    %v302 = vld [vmem:[#allocation2 + $0x648] sm:$0xff]
    %v303 = vld [vmem:[#allocation2 + $0x650] sm:$0xff]
    %v304 = vld [vmem:[#allocation2 + $0x658] sm:$0xff]
    %v305 = vld [vmem:[#allocation2 + $0x660] sm:$0xff]
    %v306 = vld [vmem:[#allocation2 + $0x668] sm:$0xff]
    %v307 = vld [vmem:[#allocation2 + $0x670] sm:$0xff]
    %v308 = vld [vmem:[#allocation2 + $0x678] sm:$0xff]
    %v309 = vld [vmem:[#allocation2 + $0x680] sm:$0xff]
    %v310 = vld [vmem:[#allocation2 + $0x688] sm:$0xff]
    %v311 = vld [vmem:[#allocation2 + $0x690] sm:$0xff]
    %v312 = vld [vmem:[#allocation2 + $0x698] sm:$0xff]
    %v313 = vld [vmem:[#allocation2 + $0x6a0] sm:$0xff]
    %v314 = vld [vmem:[#allocation2 + $0x6a8] sm:$0xff]
    %v315 = vld [vmem:[#allocation2 + $0x6b0] sm:$0xff]
    %v316 = vld [vmem:[#allocation2 + $0x6b8] sm:$0xff]
    %v317 = vld [vmem:[#allocation2 + $0x6c0] sm:$0xff]
    %v318 = vld [vmem:[#allocation2 + $0x6c8] sm:$0xff]
    %v319 = vld [vmem:[#allocation2 + $0x6d0] sm:$0xff]
    %v320 = vld [vmem:[#allocation2 + $0x6d8] sm:$0xff]
    %v321 = vld [vmem:[#allocation2 + $0x6e0] sm:$0xff]
    %v322 = vld [vmem:[#allocation2 + $0x6e8] sm:$0xff]
    %v323 = vld [vmem:[#allocation2 + $0x6f0] sm:$0xff]
    %v324 = vld [vmem:[#allocation2 + $0x6f8] sm:$0xff]
    %v325 = vld [vmem:[#allocation2 + $0x700] sm:$0xff]
    %v326 = vld [vmem:[#allocation2 + $0x708] sm:$0xff]
    %v327 = vld [vmem:[#allocation2 + $0x710] sm:$0xff]
    %v328 = vld [vmem:[#allocation2 + $0x718] sm:$0xff]
    %v329 = vld [vmem:[#allocation2 + $0x720] sm:$0xff]
    %v330 = vld [vmem:[#allocation2 + $0x728] sm:$0xff]
    %v331 = vld [vmem:[#allocation2 + $0x730] sm:$0xff]
    %v332 = vld [vmem:[#allocation2 + $0x738] sm:$0xff]
    %v333 = vld [vmem:[#allocation2 + $0x740] sm:$0xff]
    %v334 = vld [vmem:[#allocation2 + $0x748] sm:$0xff]
    %v335 = vld [vmem:[#allocation2 + $0x750] sm:$0xff]
    %v336 = vld [vmem:[#allocation2 + $0x758] sm:$0xff]
    %v337 = vld [vmem:[#allocation2 + $0x760] sm:$0xff]
    %v338 = vld [vmem:[#allocation2 + $0x768] sm:$0xff]
    %v339 = vld [vmem:[#allocation2 + $0x770] sm:$0xff]
    %v340 = vld [vmem:[#allocation2 + $0x778] sm:$0xff]
    %v341 = vld [vmem:[#allocation2 + $0x780] sm:$0xff]
    %v342 = vld [vmem:[#allocation2 + $0x788] sm:$0xff]
    %v343 = vld [vmem:[#allocation2 + $0x790] sm:$0xff]
    %v344 = vld [vmem:[#allocation2 + $0x798] sm:$0xff]
    %v345 = vld [vmem:[#allocation2 + $0x7a0] sm:$0xff]
    %v346 = vld [vmem:[#allocation2 + $0x7a8] sm:$0xff]
    %v347 = vld [vmem:[#allocation2 + $0x7b0] sm:$0xff]
    %v348 = vld [vmem:[#allocation2 + $0x7b8] sm:$0xff]
    %v349 = vld [vmem:[#allocation2 + $0x7c0] sm:$0xff]
    %v350 = vld [vmem:[#allocation2 + $0x7c8] sm:$0xff]
    %v351 = vld [vmem:[#allocation2 + $0x7d0] sm:$0xff]
    %v352 = vld [vmem:[#allocation2 + $0x7d8] sm:$0xff]
    %v353 = vld [vmem:[#allocation2 + $0x7e0] sm:$0xff]
    %v354 = vld [vmem:[#allocation2 + $0x7e8] sm:$0xff]
    %v355 = vld [vmem:[#allocation2 + $0x7f0] sm:$0xff]
    %v356 = vld [vmem:[#allocation2 + $0x7f8] sm:$0xff]
    %v357 = vld [vmem:[#allocation2 + $0x800] sm:$0xff]
    %v358 = vld [vmem:[#allocation2 + $0x808] sm:$0xff]
    %v359 = vld [vmem:[#allocation2 + $0x810] sm:$0xff]
    %v360 = vld [vmem:[#allocation2 + $0x818] sm:$0xff]
    %v361 = vld [vmem:[#allocation2 + $0x820] sm:$0xff]
    %v362 = vld [vmem:[#allocation2 + $0x828] sm:$0xff]
    %v363 = vld [vmem:[#allocation2 + $0x830] sm:$0xff]
    %v364 = vld [vmem:[#allocation2 + $0x838] sm:$0xff]
    %v365 = vld [vmem:[#allocation2 + $0x840] sm:$0xff]
    %v366 = vld [vmem:[#allocation2 + $0x848] sm:$0xff]
    %v367 = vld [vmem:[#allocation2 + $0x850] sm:$0xff]
    %v368 = vld [vmem:[#allocation2 + $0x858] sm:$0xff]
    %v369 = vld [vmem:[#allocation2 + $0x860] sm:$0xff]
    %v370 = vld [vmem:[#allocation2 + $0x868] sm:$0xff]
    %v371 = vld [vmem:[#allocation2 + $0x870] sm:$0xff]
    %v372 = vld [vmem:[#allocation2 + $0x878] sm:$0xff]
    %v373 = vld [vmem:[#allocation2 + $0x880] sm:$0xff]
    %v374 = vld [vmem:[#allocation2 + $0x888] sm:$0xff]
    %v375 = vld [vmem:[#allocation2 + $0x890] sm:$0xff]
    %v376 = vld [vmem:[#allocation2 + $0x898] sm:$0xff]
    %v377 = vld [vmem:[#allocation2 + $0x8a0] sm:$0xff]
    %v378 = vld [vmem:[#allocation2 + $0x8a8] sm:$0xff]
    %v379 = vld [vmem:[#allocation2 + $0x8b0] sm:$0xff]
    %v380 = vld [vmem:[#allocation2 + $0x8b8] sm:$0xff]
    %v381 = vld [vmem:[#allocation2 + $0x8c0] sm:$0xff]
    %v382 = vld [vmem:[#allocation2 + $0x8c8] sm:$0xff]
    %v383 = vld [vmem:[#allocation2 + $0x8d0] sm:$0xff]
    %v384 = vld [vmem:[#allocation2 + $0x8d8] sm:$0xff]
    %v385 = vld [vmem:[#allocation2 + $0x8e0] sm:$0xff]
    %v386 = vld [vmem:[#allocation2 + $0x8e8] sm:$0xff]
    %v387 = vld [vmem:[#allocation2 + $0x8f0] sm:$0xff]
    %v388 = vld [vmem:[#allocation2 + $0x8f8] sm:$0xff]
    %v389 = vld [vmem:[#allocation2 + $0x900] sm:$0xff]
    %v390 = vld [vmem:[#allocation2 + $0x908] sm:$0xff]
    %v391 = vld [vmem:[#allocation2 + $0x910] sm:$0xff]
    %v392 = vld [vmem:[#allocation2 + $0x918] sm:$0xff]
    %v393 = vld [vmem:[#allocation2 + $0x920] sm:$0xff]
    %v394 = vld [vmem:[#allocation2 + $0x928] sm:$0xff]
    %v395 = vld [vmem:[#allocation2 + $0x930] sm:$0xff]
    %v396 = vld [vmem:[#allocation2 + $0x938] sm:$0xff]
    %v397 = vld [vmem:[#allocation2 + $0x940] sm:$0xff]
    %v398 = vld [vmem:[#allocation2 + $0x948] sm:$0xff]
    %v399 = vld [vmem:[#allocation2 + $0x950] sm:$0xff]
    %v400 = vld [vmem:[#allocation2 + $0x958] sm:$0xff]
    %v401 = vld [vmem:[#allocation2 + $0x960] sm:$0xff]
    %v402 = vld [vmem:[#allocation2 + $0x968] sm:$0xff]
    %v403 = vld [vmem:[#allocation2 + $0x970] sm:$0xff]
    %v404 = vld [vmem:[#allocation2 + $0x978] sm:$0xff]
    %v405 = vld [vmem:[#allocation2 + $0x980] sm:$0xff]
    %v406 = vld [vmem:[#allocation2 + $0x988] sm:$0xff]
    %v407 = vld [vmem:[#allocation2 + $0x990] sm:$0xff]
    %v408 = vld [vmem:[#allocation2 + $0x998] sm:$0xff]
    %v409 = vld [vmem:[#allocation2 + $0x9a0] sm:$0xff]
    %v410 = vld [vmem:[#allocation2 + $0x9a8] sm:$0xff]
    %v411 = vld [vmem:[#allocation2 + $0x9b0] sm:$0xff]
    %v412 = vld [vmem:[#allocation2 + $0x9b8] sm:$0xff]
    %v413 = vld [vmem:[#allocation2 + $0x9c0] sm:$0xff]
    %v414 = vld [vmem:[#allocation2 + $0x9c8] sm:$0xff]
    %v415 = vld [vmem:[#allocation2 + $0x9d0] sm:$0xff]
    %v416 = vld [vmem:[#allocation2 + $0x9d8] sm:$0xff]
    %v417 = vld [vmem:[#allocation2 + $0x9e0] sm:$0xff]
    %v418 = vld [vmem:[#allocation2 + $0x9e8] sm:$0xff]
    %v419 = vld [vmem:[#allocation2 + $0x9f0] sm:$0xff]
    %v420 = vld [vmem:[#allocation2 + $0x9f8] sm:$0xff]
    %v421 = vld [vmem:[#allocation2 + $0xa00] sm:$0xff]
    %v422 = vld [vmem:[#allocation2 + $0xa08] sm:$0xff]
    %v423 = vld [vmem:[#allocation2 + $0xa10] sm:$0xff]
    %v424 = vld [vmem:[#allocation2 + $0xa18] sm:$0xff]
    %v425 = vld [vmem:[#allocation2 + $0xa20] sm:$0xff]
    %v426 = vld [vmem:[#allocation2 + $0xa28] sm:$0xff]
    %v427 = vld [vmem:[#allocation2 + $0xa30] sm:$0xff]
    %v428 = vld [vmem:[#allocation2 + $0xa38] sm:$0xff]
    %v429 = vld [vmem:[#allocation2 + $0xa40] sm:$0xff]
    %v430 = vld [vmem:[#allocation2 + $0xa48] sm:$0xff]
    %v431 = vld [vmem:[#allocation2 + $0xa50] sm:$0xff]
    %v432 = vld [vmem:[#allocation2 + $0xa58] sm:$0xff]
    %v433 = vld [vmem:[#allocation2 + $0xa60] sm:$0xff]
    %v434 = vld [vmem:[#allocation2 + $0xa68] sm:$0xff]
    %v435 = vld [vmem:[#allocation2 + $0xa70] sm:$0xff]
    %v436 = vld [vmem:[#allocation2 + $0xa78] sm:$0xff]
    %v437 = vld [vmem:[#allocation2 + $0xa80] sm:$0xff]
    %v438 = vld [vmem:[#allocation2 + $0xa88] sm:$0xff]
    %v439 = vld [vmem:[#allocation2 + $0xa90] sm:$0xff]
    %v440 = vld [vmem:[#allocation2 + $0xa98] sm:$0xff]
    %v441 = vld [vmem:[#allocation2 + $0xaa0] sm:$0xff]
    %v442 = vld [vmem:[#allocation2 + $0xaa8] sm:$0xff]
    %v443 = vld [vmem:[#allocation2 + $0xab0] sm:$0xff]
    %v444 = vld [vmem:[#allocation2 + $0xab8] sm:$0xff]
    %v445 = vld [vmem:[#allocation2 + $0xac0] sm:$0xff]
    %v446 = vld [vmem:[#allocation2 + $0xac8] sm:$0xff]
    %v447 = vld [vmem:[#allocation2 + $0xad0] sm:$0xff]
    %v448 = vld [vmem:[#allocation2 + $0xad8] sm:$0xff]
    %v449 = vld [vmem:[#allocation2 + $0xae0] sm:$0xff]
    %v450 = vld [vmem:[#allocation2 + $0xae8] sm:$0xff]
    %v451 = vld [vmem:[#allocation2 + $0xaf0] sm:$0xff]
    %v452 = vld [vmem:[#allocation2 + $0xaf8] sm:$0xff]
    %v453 = vld [vmem:[#allocation2 + $0xb00] sm:$0xff]
    %v454 = vld [vmem:[#allocation2 + $0xb08] sm:$0xff]
    %v455 = vld [vmem:[#allocation2 + $0xb10] sm:$0xff]
    %v456 = vld [vmem:[#allocation2 + $0xb18] sm:$0xff]
    %v457 = vld [vmem:[#allocation2 + $0xb20] sm:$0xff]
    %v458 = vld [vmem:[#allocation2 + $0xb28] sm:$0xff]
    %v459 = vld [vmem:[#allocation2 + $0xb30] sm:$0xff]
    %v460 = vld [vmem:[#allocation2 + $0xb38] sm:$0xff]
    %v461 = vld [vmem:[#allocation2 + $0xb40] sm:$0xff]
    %v462 = vld [vmem:[#allocation2 + $0xb48] sm:$0xff]
    %v463 = vld [vmem:[#allocation2 + $0xb50] sm:$0xff]
    %v464 = vld [vmem:[#allocation2 + $0xb58] sm:$0xff]
    %v465 = vld [vmem:[#allocation2 + $0xb60] sm:$0xff]
    %v466 = vld [vmem:[#allocation2 + $0xb68] sm:$0xff]
    %v467 = vld [vmem:[#allocation2 + $0xb70] sm:$0xff]
    %v468 = vld [vmem:[#allocation2 + $0xb78] sm:$0xff]
    %v469 = vld [vmem:[#allocation2 + $0xb80] sm:$0xff]
    %v470 = vld [vmem:[#allocation2 + $0xb88] sm:$0xff]
    %v471 = vld [vmem:[#allocation2 + $0xb90] sm:$0xff]
    %v472 = vld [vmem:[#allocation2 + $0xb98] sm:$0xff]
    %v473 = vld [vmem:[#allocation2 + $0xba0] sm:$0xff]
    %v474 = vld [vmem:[#allocation2 + $0xba8] sm:$0xff]
    %v475 = vld [vmem:[#allocation2 + $0xbb0] sm:$0xff]
    %v476 = vld [vmem:[#allocation2 + $0xbb8] sm:$0xff]
    %v477 = vld [vmem:[#allocation2 + $0xbc0] sm:$0xff]
    %v478 = vld [vmem:[#allocation2 + $0xbc8] sm:$0xff]
    %v479 = vld [vmem:[#allocation2 + $0xbd0] sm:$0xff]
    %v480 = vld [vmem:[#allocation2 + $0xbd8] sm:$0xff]
    %v481 = vld [vmem:[#allocation2 + $0xbe0] sm:$0xff]
    %v482 = vld [vmem:[#allocation2 + $0xbe8] sm:$0xff]
    %v483 = vld [vmem:[#allocation2 + $0xbf0] sm:$0xff]
    %v484 = vld [vmem:[#allocation2 + $0xbf8] sm:$0xff]
    %v485 = vld [vmem:[#allocation2 + $0xc00] sm:$0xff]
    %v486 = vld [vmem:[#allocation2 + $0xc08] sm:$0xff]
    %v487 = vld [vmem:[#allocation2 + $0xc10] sm:$0xff]
    %v488 = vld [vmem:[#allocation2 + $0xc18] sm:$0xff]
    %v489 = vld [vmem:[#allocation2 + $0xc20] sm:$0xff]
    %v490 = vld [vmem:[#allocation2 + $0xc28] sm:$0xff]
    %v491 = vld [vmem:[#allocation2 + $0xc30] sm:$0xff]
    %v492 = vld [vmem:[#allocation2 + $0xc38] sm:$0xff]
    %v493 = vld [vmem:[#allocation2 + $0xc40] sm:$0xff]
    %v494 = vld [vmem:[#allocation2 + $0xc48] sm:$0xff]
    %v495 = vld [vmem:[#allocation2 + $0xc50] sm:$0xff]
    %v496 = vld [vmem:[#allocation2 + $0xc58] sm:$0xff]
    %v497 = vld [vmem:[#allocation2 + $0xc60] sm:$0xff]
    %v498 = vld [vmem:[#allocation2 + $0xc68] sm:$0xff]
    %v499 = vld [vmem:[#allocation2 + $0xc70] sm:$0xff]
    %v500 = vld [vmem:[#allocation2 + $0xc78] sm:$0xff]
    %v501 = vld [vmem:[#allocation2 + $0xc80] sm:$0xff]
    %v502 = vld [vmem:[#allocation2 + $0xc88] sm:$0xff]
    %v503 = vld [vmem:[#allocation2 + $0xc90] sm:$0xff]
    %v504 = vld [vmem:[#allocation2 + $0xc98] sm:$0xff]
    %v505 = vld [vmem:[#allocation2 + $0xca0] sm:$0xff]
    %v506 = vld [vmem:[#allocation2 + $0xca8] sm:$0xff]
    %v507 = vld [vmem:[#allocation2 + $0xcb0] sm:$0xff]
    %v508 = vld [vmem:[#allocation2 + $0xcb8] sm:$0xff]
    %v509 = vld [vmem:[#allocation2 + $0xcc0] sm:$0xff]
    %v510 = vld [vmem:[#allocation2 + $0xcc8] sm:$0xff]
    %v511 = vld [vmem:[#allocation2 + $0xcd0] sm:$0xff]
    %v512 = vld [vmem:[#allocation2 + $0xcd8] sm:$0xff]
    %v513 = vld [vmem:[#allocation2 + $0xce0] sm:$0xff]
    %v514 = vld [vmem:[#allocation2 + $0xce8] sm:$0xff]
    %v515 = vld [vmem:[#allocation2 + $0xcf0] sm:$0xff]
    %v516 = vld [vmem:[#allocation2 + $0xcf8] sm:$0xff]
    %v517 = vld [vmem:[#allocation2 + $0xd00] sm:$0xff]
    %v518 = vld [vmem:[#allocation2 + $0xd08] sm:$0xff]
    %v519 = vld [vmem:[#allocation2 + $0xd10] sm:$0xff]
    %v520 = vld [vmem:[#allocation2 + $0xd18] sm:$0xff]
    %v521 = vld [vmem:[#allocation2 + $0xd20] sm:$0xff]
    %v522 = vld [vmem:[#allocation2 + $0xd28] sm:$0xff]
    %v523 = vld [vmem:[#allocation2 + $0xd30] sm:$0xff]
    %v524 = vld [vmem:[#allocation2 + $0xd38] sm:$0xff]
    %v525 = vld [vmem:[#allocation2 + $0xd40] sm:$0xff]
    %v526 = vld [vmem:[#allocation2 + $0xd48] sm:$0xff]
    %v527 = vld [vmem:[#allocation2 + $0xd50] sm:$0xff]
    %v528 = vld [vmem:[#allocation2 + $0xd58] sm:$0xff]
    %v529 = vld [vmem:[#allocation2 + $0xd60] sm:$0xff]
    %v530 = vld [vmem:[#allocation2 + $0xd68] sm:$0xff]
    %v531 = vld [vmem:[#allocation2 + $0xd70] sm:$0xff]
    %v532 = vld [vmem:[#allocation2 + $0xd78] sm:$0xff]
    %v533 = vld [vmem:[#allocation2 + $0xd80] sm:$0xff]
    %v534 = vld [vmem:[#allocation2 + $0xd88] sm:$0xff]
    %v535 = vld [vmem:[#allocation2 + $0xd90] sm:$0xff]
    %v536 = vld [vmem:[#allocation2 + $0xd98] sm:$0xff]
    %v537 = vld [vmem:[#allocation2 + $0xda0] sm:$0xff]
    %v538 = vld [vmem:[#allocation2 + $0xda8] sm:$0xff]
    %v539 = vld [vmem:[#allocation2 + $0xdb0] sm:$0xff]
    %v540 = vld [vmem:[#allocation2 + $0xdb8] sm:$0xff]
    %v541 = vld [vmem:[#allocation2 + $0xdc0] sm:$0xff]
    %v542 = vld [vmem:[#allocation2 + $0xdc8] sm:$0xff]
    %v543 = vld [vmem:[#allocation2 + $0xdd0] sm:$0xff]
    %v544 = vld [vmem:[#allocation2 + $0xdd8] sm:$0xff]
    %v545 = vld [vmem:[#allocation2 + $0xde0] sm:$0xff]
    %v546 = vld [vmem:[#allocation2 + $0xde8] sm:$0xff]
    %v547 = vld [vmem:[#allocation2 + $0xdf0] sm:$0xff]
    %v548 = vld [vmem:[#allocation2 + $0xdf8] sm:$0xff]
    %v549 = vld [vmem:[#allocation2 + $0xe00] sm:$0xff]
    %v550 = vld [vmem:[#allocation2 + $0xe08] sm:$0xff]
    %v551 = vld [vmem:[#allocation2 + $0xe10] sm:$0xff]
    %v552 = vld [vmem:[#allocation2 + $0xe18] sm:$0xff]
    %v553 = vld [vmem:[#allocation2 + $0xe20] sm:$0xff]
    %v554 = vld [vmem:[#allocation2 + $0xe28] sm:$0xff]
    %v555 = vld [vmem:[#allocation2 + $0xe30] sm:$0xff]
    %v556 = vld [vmem:[#allocation2 + $0xe38] sm:$0xff]
    %v557 = vld [vmem:[#allocation2 + $0xe40] sm:$0xff]
    %v558 = vld [vmem:[#allocation2 + $0xe48] sm:$0xff]
    %v559 = vld [vmem:[#allocation2 + $0xe50] sm:$0xff]
    %v560 = vld [vmem:[#allocation2 + $0xe58] sm:$0xff]
    %v561 = vld [vmem:[#allocation2 + $0xe60] sm:$0xff]
    %v562 = vld [vmem:[#allocation2 + $0xe68] sm:$0xff]
    %v563 = vld [vmem:[#allocation2 + $0xe70] sm:$0xff]
    %v564 = vld [vmem:[#allocation2 + $0xe78] sm:$0xff]
    %v565 = vld [vmem:[#allocation2 + $0xe80] sm:$0xff]
    %v566 = vld [vmem:[#allocation2 + $0xe88] sm:$0xff]
    %v567 = vld [vmem:[#allocation2 + $0xe90] sm:$0xff]
    %v568 = vld [vmem:[#allocation2 + $0xe98] sm:$0xff]
    %v569 = vld [vmem:[#allocation2 + $0xea0] sm:$0xff]
    %v570 = vld [vmem:[#allocation2 + $0xea8] sm:$0xff]
    %v571 = vld [vmem:[#allocation2 + $0xeb0] sm:$0xff]
    %v572 = vld [vmem:[#allocation2 + $0xeb8] sm:$0xff]
    %v573 = vld [vmem:[#allocation2 + $0xec0] sm:$0xff]
    %v574 = vld [vmem:[#allocation2 + $0xec8] sm:$0xff]
    %v575 = vld [vmem:[#allocation2 + $0xed0] sm:$0xff]
    %v576 = vld [vmem:[#allocation2 + $0xed8] sm:$0xff]
    %v577 = vld [vmem:[#allocation2 + $0xee0] sm:$0xff]
    %v578 = vld [vmem:[#allocation2 + $0xee8] sm:$0xff]
    %v579 = vld [vmem:[#allocation2 + $0xef0] sm:$0xff]
    %v580 = vld [vmem:[#allocation2 + $0xef8] sm:$0xff]
    %v581 = vld [vmem:[#allocation2 + $0xf00] sm:$0xff]
    %v582 = vld [vmem:[#allocation2 + $0xf08] sm:$0xff]
    %v583 = vld [vmem:[#allocation2 + $0xf10] sm:$0xff]
    %v584 = vld [vmem:[#allocation2 + $0xf18] sm:$0xff]
    %v585 = vld [vmem:[#allocation2 + $0xf20] sm:$0xff]
    %v586 = vld [vmem:[#allocation2 + $0xf28] sm:$0xff]
    %v587 = vld [vmem:[#allocation2 + $0xf30] sm:$0xff]
    %v588 = vld [vmem:[#allocation2 + $0xf38] sm:$0xff]
    %v589 = vld [vmem:[#allocation2 + $0xf40] sm:$0xff]
    %v590 = vld [vmem:[#allocation2 + $0xf48] sm:$0xff]
    %v591 = vld [vmem:[#allocation2 + $0xf50] sm:$0xff]
    %v592 = vld [vmem:[#allocation2 + $0xf58] sm:$0xff]
    %v593 = vld [vmem:[#allocation2 + $0xf60] sm:$0xff]
    %v594 = vld [vmem:[#allocation2 + $0xf68] sm:$0xff]
    %v595 = vld [vmem:[#allocation2 + $0xf70] sm:$0xff]
    %v596 = vld [vmem:[#allocation2 + $0xf78] sm:$0xff]
    %v597 = vld [vmem:[#allocation2 + $0xf80] sm:$0xff]
    %v598 = vld [vmem:[#allocation2 + $0xf88] sm:$0xff]
    %v599 = vld [vmem:[#allocation2 + $0xf90] sm:$0xff]
    %v600 = vld [vmem:[#allocation2 + $0xf98] sm:$0xff]
    %v601 = vld [vmem:[#allocation2 + $0xfa0] sm:$0xff]
    %v602 = vld [vmem:[#allocation2 + $0xfa8] sm:$0xff]
    %v603 = vld [vmem:[#allocation2 + $0xfb0] sm:$0xff]
    %v604 = vld [vmem:[#allocation2 + $0xfb8] sm:$0xff]
    %v605 = vld [vmem:[#allocation2 + $0xfc0] sm:$0xff]
    %v606 = vld [vmem:[#allocation2 + $0xfc8] sm:$0xff]
    %v607 = vld [vmem:[#allocation2 + $0xfd0] sm:$0xff]
    %v608 = vld [vmem:[#allocation2 + $0xfd8] sm:$0xff]
    %v609 = vld [vmem:[#allocation2 + $0xfe0] sm:$0xff]
    %v610 = vld [vmem:[#allocation2 + $0xfe8] sm:$0xff]
    %v611 = vld [vmem:[#allocation2 + $0xff0] sm:$0xff]
    %v612 = vld [vmem:[#allocation2 + $0xff8] sm:$0xff]
    %v613 = vld [vmem:[#allocation2 + $0x1000] sm:$0xff]
    %v614 = vld [vmem:[#allocation2 + $0x1008] sm:$0xff]
    %v615 = vld [vmem:[#allocation2 + $0x1010] sm:$0xff]
    %v616 = vld [vmem:[#allocation2 + $0x1018] sm:$0xff]
    %v617 = vld [vmem:[#allocation2 + $0x1020] sm:$0xff]
    %v618 = vld [vmem:[#allocation2 + $0x1028] sm:$0xff]
    %v619 = vld [vmem:[#allocation2 + $0x1030] sm:$0xff]
    %v620 = vld [vmem:[#allocation2 + $0x1038] sm:$0xff]
    %v621 = vld [vmem:[#allocation2 + $0x1040] sm:$0xff]
    %v622 = vld [vmem:[#allocation2 + $0x1048] sm:$0xff]
    %v623 = vld [vmem:[#allocation2 + $0x1050] sm:$0xff]
    %v624 = vld [vmem:[#allocation2 + $0x1058] sm:$0xff]
    %v625 = vld [vmem:[#allocation2 + $0x1060] sm:$0xff]
    %v626 = vld [vmem:[#allocation2 + $0x1068] sm:$0xff]
    %v627 = vld [vmem:[#allocation2 + $0x1070] sm:$0xff]
    %v628 = vld [vmem:[#allocation2 + $0x1078] sm:$0xff]
    %v629 = vld [vmem:[#allocation2 + $0x1080] sm:$0xff]
    %v630 = vld [vmem:[#allocation2 + $0x1088] sm:$0xff]
    %v631 = vld [vmem:[#allocation2 + $0x1090] sm:$0xff]
    %v632 = vld [vmem:[#allocation2 + $0x1098] sm:$0xff]
    %v633 = vld [vmem:[#allocation2 + $0x10a0] sm:$0xff]
    %v634 = vld [vmem:[#allocation2 + $0x10a8] sm:$0xff]
    %v635 = vld [vmem:[#allocation2 + $0x10b0] sm:$0xff]
    %v636 = vld [vmem:[#allocation2 + $0x10b8] sm:$0xff]
    %v637 = vld [vmem:[#allocation2 + $0x10c0] sm:$0xff]
    %v638 = vld [vmem:[#allocation2 + $0x10c8] sm:$0xff]
    %v639 = vld [vmem:[#allocation2 + $0x10d0] sm:$0xff]
    %v640 = vld [vmem:[#allocation2 + $0x10d8] sm:$0xff]
    %v641 = vld [vmem:[#allocation2 + $0x10e0] sm:$0xff]
    %v642 = vld [vmem:[#allocation2 + $0x10e8] sm:$0xff]
    %v643 = vld [vmem:[#allocation2 + $0x10f0] sm:$0xff]
    %v644 = vld [vmem:[#allocation2 + $0x10f8] sm:$0xff]
    %v645 = vld [vmem:[#allocation2 + $0x1100] sm:$0xff]
    %v646 = vld [vmem:[#allocation2 + $0x1108] sm:$0xff]
    %v647 = vld [vmem:[#allocation2 + $0x1110] sm:$0xff]
    %v648 = vld [vmem:[#allocation2 + $0x1118] sm:$0xff]
    %v649 = vld [vmem:[#allocation2 + $0x1120] sm:$0xff]
    %v650 = vld [vmem:[#allocation2 + $0x1128] sm:$0xff]
    %v651 = vld [vmem:[#allocation2 + $0x1130] sm:$0xff]
    %v652 = vld [vmem:[#allocation2 + $0x1138] sm:$0xff]
    %v653 = vld [vmem:[#allocation2 + $0x1140] sm:$0xff]
    %v654 = vld [vmem:[#allocation2 + $0x1148] sm:$0xff]
    %v655 = vld [vmem:[#allocation2 + $0x1150] sm:$0xff]
    %v656 = vld [vmem:[#allocation2 + $0x1158] sm:$0xff]
    %v657 = vld [vmem:[#allocation2 + $0x1160] sm:$0xff]
    %v658 = vld [vmem:[#allocation2 + $0x1168] sm:$0xff]
    %v659 = vld [vmem:[#allocation2 + $0x1170] sm:$0xff]
    %v660 = vld [vmem:[#allocation2 + $0x1178] sm:$0xff]
    %v661 = vld [vmem:[#allocation2 + $0x1180] sm:$0xff]
    %v662 = vld [vmem:[#allocation2 + $0x1188] sm:$0xff]
    %v663 = vld [vmem:[#allocation2 + $0x1190] sm:$0xff]
    %v664 = vld [vmem:[#allocation2 + $0x1198] sm:$0xff]
    %v665 = vld [vmem:[#allocation2 + $0x11a0] sm:$0xff]
    %v666 = vld [vmem:[#allocation2 + $0x11a8] sm:$0xff]
    %v667 = vld [vmem:[#allocation2 + $0x11b0] sm:$0xff]
    %v668 = vld [vmem:[#allocation2 + $0x11b8] sm:$0xff]
    %v669 = vld [vmem:[#allocation2 + $0x11c0] sm:$0xff]
    %v670 = vld [vmem:[#allocation2 + $0x11c8] sm:$0xff]
    %v671 = vld [vmem:[#allocation2 + $0x11d0] sm:$0xff]
    %v672 = vld [vmem:[#allocation2 + $0x11d8] sm:$0xff]
    %v673 = vld [vmem:[#allocation2 + $0x11e0] sm:$0xff]
    %v674 = vld [vmem:[#allocation2 + $0x11e8] sm:$0xff]
    %v675 = vld [vmem:[#allocation2 + $0x11f0] sm:$0xff]
    %v676 = vld [vmem:[#allocation2 + $0x11f8] sm:$0xff]
    %v677 = vld [vmem:[#allocation2 + $0x1200] sm:$0xff]
    %v678 = vld [vmem:[#allocation2 + $0x1208] sm:$0xff]
    %v679 = vld [vmem:[#allocation2 + $0x1210] sm:$0xff]
    %v680 = vld [vmem:[#allocation2 + $0x1218] sm:$0xff]
    %v681 = vld [vmem:[#allocation2 + $0x1220] sm:$0xff]
    %v682 = vld [vmem:[#allocation2 + $0x1228] sm:$0xff]
    %v683 = vld [vmem:[#allocation2 + $0x1230] sm:$0xff]
    %v684 = vld [vmem:[#allocation2 + $0x1238] sm:$0xff]
    %v685 = vld [vmem:[#allocation2 + $0x1240] sm:$0xff]
    %v686 = vld [vmem:[#allocation2 + $0x1248] sm:$0xff]
    %v687 = vld [vmem:[#allocation2 + $0x1250] sm:$0xff]
    %v688 = vld [vmem:[#allocation2 + $0x1258] sm:$0xff]
    %v689 = vld [vmem:[#allocation2 + $0x1260] sm:$0xff]
    %v690 = vld [vmem:[#allocation2 + $0x1268] sm:$0xff]
    %v691 = vld [vmem:[#allocation2 + $0x1270] sm:$0xff]
    %v692 = vld [vmem:[#allocation2 + $0x1278] sm:$0xff]
    %v693 = vld [vmem:[#allocation2 + $0x1280] sm:$0xff]
    %v694 = vld [vmem:[#allocation2 + $0x1288] sm:$0xff]
    %v695 = vld [vmem:[#allocation2 + $0x1290] sm:$0xff]
    %v696 = vld [vmem:[#allocation2 + $0x1298] sm:$0xff]
    %v697 = vld [vmem:[#allocation2 + $0x12a0] sm:$0xff]
    %v698 = vld [vmem:[#allocation2 + $0x12a8] sm:$0xff]
    %v699 = vld [vmem:[#allocation2 + $0x12b0] sm:$0xff]
    %v700 = vld [vmem:[#allocation2 + $0x12b8] sm:$0xff]
    %v701 = vld [vmem:[#allocation2 + $0x12c0] sm:$0xff]
    %v702 = vld [vmem:[#allocation2 + $0x12c8] sm:$0xff]
    %v703 = vld [vmem:[#allocation2 + $0x12d0] sm:$0xff]
    %v704 = vld [vmem:[#allocation2 + $0x12d8] sm:$0xff]
    %v705 = vld [vmem:[#allocation2 + $0x12e0] sm:$0xff]
    %v706 = vld [vmem:[#allocation2 + $0x12e8] sm:$0xff]
    %v707 = vld [vmem:[#allocation2 + $0x12f0] sm:$0xff]
    %v708 = vld [vmem:[#allocation2 + $0x12f8] sm:$0xff]
    %v709 = vld [vmem:[#allocation2 + $0x1300] sm:$0xff]
    %v710 = vld [vmem:[#allocation2 + $0x1308] sm:$0xff]
    %v711 = vld [vmem:[#allocation2 + $0x1310] sm:$0xff]
    %v712 = vld [vmem:[#allocation2 + $0x1318] sm:$0xff]
    %v713 = vld [vmem:[#allocation2 + $0x1320] sm:$0xff]
    %v714 = vld [vmem:[#allocation2 + $0x1328] sm:$0xff]
    %v715 = vld [vmem:[#allocation2 + $0x1330] sm:$0xff]
    %v716 = vld [vmem:[#allocation2 + $0x1338] sm:$0xff]
    %v717 = vld [vmem:[#allocation2 + $0x1340] sm:$0xff]
    %v718 = vld [vmem:[#allocation2 + $0x1348] sm:$0xff]
    %v719 = vld [vmem:[#allocation2 + $0x1350] sm:$0xff]
    %v720 = vld [vmem:[#allocation2 + $0x1358] sm:$0xff]
    %v721 = vld [vmem:[#allocation2 + $0x1360] sm:$0xff]
    %v722 = vld [vmem:[#allocation2 + $0x1368] sm:$0xff]
    %v723 = vld [vmem:[#allocation2 + $0x1370] sm:$0xff]
    %v724 = vld [vmem:[#allocation2 + $0x1378] sm:$0xff]
    %v725 = vld [vmem:[#allocation2 + $0x1380] sm:$0xff]
    %v726 = vld [vmem:[#allocation2 + $0x1388] sm:$0xff]
    %v727 = vld [vmem:[#allocation2 + $0x1390] sm:$0xff]
    %v728 = vld [vmem:[#allocation2 + $0x1398] sm:$0xff]
    %v729 = vld [vmem:[#allocation2 + $0x13a0] sm:$0xff]
    %v730 = vld [vmem:[#allocation2 + $0x13a8] sm:$0xff]
    %v731 = vld [vmem:[#allocation2 + $0x13b0] sm:$0xff]
    %v732 = vld [vmem:[#allocation2 + $0x13b8] sm:$0xff]
    %v733 = vld [vmem:[#allocation2 + $0x13c0] sm:$0xff]
    %v734 = vld [vmem:[#allocation2 + $0x13c8] sm:$0xff]
    %v735 = vld [vmem:[#allocation2 + $0x13d0] sm:$0xff]
    %v736 = vld [vmem:[#allocation2 + $0x13d8] sm:$0xff]
    %v737 = vld [vmem:[#allocation2 + $0x13e0] sm:$0xff]
    %v738 = vld [vmem:[#allocation2 + $0x13e8] sm:$0xff]
    %v739 = vld [vmem:[#allocation2 + $0x13f0] sm:$0xff]
    %v740 = vld [vmem:[#allocation2 + $0x13f8] sm:$0xff]
    %v741 = vld [vmem:[#allocation2 + $0x1400] sm:$0xff]
    %v742 = vld [vmem:[#allocation2 + $0x1408] sm:$0xff]
    %v743 = vld [vmem:[#allocation2 + $0x1410] sm:$0xff]
    %v744 = vld [vmem:[#allocation2 + $0x1418] sm:$0xff]
    %v745 = vld [vmem:[#allocation2 + $0x1420] sm:$0xff]
    %v746 = vld [vmem:[#allocation2 + $0x1428] sm:$0xff]
    %v747 = vld [vmem:[#allocation2 + $0x1430] sm:$0xff]
    %v748 = vld [vmem:[#allocation2 + $0x1438] sm:$0xff]
    %v749 = vld [vmem:[#allocation2 + $0x1440] sm:$0xff]
    %v750 = vld [vmem:[#allocation2 + $0x1448] sm:$0xff]
    %v751 = vld [vmem:[#allocation2 + $0x1450] sm:$0xff]
    %v752 = vld [vmem:[#allocation2 + $0x1458] sm:$0xff]
    %v753 = vld [vmem:[#allocation2 + $0x1460] sm:$0xff]
    %v754 = vld [vmem:[#allocation2 + $0x1468] sm:$0xff]
    %v755 = vld [vmem:[#allocation2 + $0x1470] sm:$0xff]
    %v756 = vld [vmem:[#allocation2 + $0x1478] sm:$0xff]
    %v757 = vld [vmem:[#allocation2 + $0x1480] sm:$0xff]
    %v758 = vld [vmem:[#allocation2 + $0x1488] sm:$0xff]
    %v759 = vld [vmem:[#allocation2 + $0x1490] sm:$0xff]
    %v760 = vld [vmem:[#allocation2 + $0x1498] sm:$0xff]
    %v761 = vld [vmem:[#allocation2 + $0x14a0] sm:$0xff]
    %v762 = vld [vmem:[#allocation2 + $0x14a8] sm:$0xff]
    %v763 = vld [vmem:[#allocation2 + $0x14b0] sm:$0xff]
    %v764 = vld [vmem:[#allocation2 + $0x14b8] sm:$0xff]
    %v765 = vld [vmem:[#allocation2 + $0x14c0] sm:$0xff]
    %v766 = vld [vmem:[#allocation2 + $0x14c8] sm:$0xff]
    %v767 = vld [vmem:[#allocation2 + $0x14d0] sm:$0xff]
    %v768 = vld [vmem:[#allocation2 + $0x14d8] sm:$0xff]
    %v769 = vld [vmem:[#allocation2 + $0x14e0] sm:$0xff]
    %v770 = vld [vmem:[#allocation2 + $0x14e8] sm:$0xff]
    %v771 = vld [vmem:[#allocation2 + $0x14f0] sm:$0xff]
    %v772 = vld [vmem:[#allocation2 + $0x14f8] sm:$0xff]
    %v773 = vld [vmem:[#allocation2 + $0x1500] sm:$0xff]
    %v774 = vld [vmem:[#allocation2 + $0x1508] sm:$0xff]
    %v775 = vld [vmem:[#allocation2 + $0x1510] sm:$0xff]
    %v776 = vld [vmem:[#allocation2 + $0x1518] sm:$0xff]
    %v777 = vld [vmem:[#allocation2 + $0x1520] sm:$0xff]
    %v778 = vld [vmem:[#allocation2 + $0x1528] sm:$0xff]
    %v779 = vld [vmem:[#allocation2 + $0x1530] sm:$0xff]
    %v780 = vld [vmem:[#allocation2 + $0x1538] sm:$0xff]
    %v781 = vld [vmem:[#allocation2 + $0x1540] sm:$0xff]
    %v782 = vld [vmem:[#allocation2 + $0x1548] sm:$0xff]
    %v783 = vld [vmem:[#allocation2 + $0x1550] sm:$0xff]
    %v784 = vld [vmem:[#allocation2 + $0x1558] sm:$0xff]
    %v785 = vld [vmem:[#allocation2 + $0x1560] sm:$0xff]
    %v786 = vld [vmem:[#allocation2 + $0x1568] sm:$0xff]
    %v787 = vld [vmem:[#allocation2 + $0x1570] sm:$0xff]
    %v788 = vld [vmem:[#allocation2 + $0x1578] sm:$0xff]
    %v789 = vld [vmem:[#allocation2 + $0x1580] sm:$0xff]
    %v790 = vld [vmem:[#allocation2 + $0x1588] sm:$0xff]
    %v791 = vld [vmem:[#allocation2 + $0x1590] sm:$0xff]
    %v792 = vld [vmem:[#allocation2 + $0x1598] sm:$0xff]
    %v793 = vld [vmem:[#allocation2 + $0x15a0] sm:$0xff]
    %v794 = vld [vmem:[#allocation2 + $0x15a8] sm:$0xff]
    %v795 = vld [vmem:[#allocation2 + $0x15b0] sm:$0xff]
    %v796 = vld [vmem:[#allocation2 + $0x15b8] sm:$0xff]
    %v797 = vld [vmem:[#allocation2 + $0x15c0] sm:$0xff]
    %v798 = vld [vmem:[#allocation2 + $0x15c8] sm:$0xff]
    %v799 = vld [vmem:[#allocation2 + $0x15d0] sm:$0xff]
    %v800 = vld [vmem:[#allocation2 + $0x15d8] sm:$0xff]
    %v801 = vld [vmem:[#allocation2 + $0x15e0] sm:$0xff]
    %v802 = vld [vmem:[#allocation2 + $0x15e8] sm:$0xff]
    %v803 = vld [vmem:[#allocation2 + $0x15f0] sm:$0xff]
    %v804 = vld [vmem:[#allocation2 + $0x15f8] sm:$0xff]
    %v805 = vld [vmem:[#allocation2 + $0x1600] sm:$0xff]
    %v806 = vld [vmem:[#allocation2 + $0x1608] sm:$0xff]
    %v807 = vld [vmem:[#allocation2 + $0x1610] sm:$0xff]
    %v808 = vld [vmem:[#allocation2 + $0x1618] sm:$0xff]
    %v809 = vld [vmem:[#allocation2 + $0x1620] sm:$0xff]
    %v810 = vld [vmem:[#allocation2 + $0x1628] sm:$0xff]
    %v811 = vld [vmem:[#allocation2 + $0x1630] sm:$0xff]
    %v812 = vld [vmem:[#allocation2 + $0x1638] sm:$0xff]
    %v813 = vld [vmem:[#allocation2 + $0x1640] sm:$0xff]
    %v814 = vld [vmem:[#allocation2 + $0x1648] sm:$0xff]
    %v815 = vld [vmem:[#allocation2 + $0x1650] sm:$0xff]
    %v816 = vld [vmem:[#allocation2 + $0x1658] sm:$0xff]
    %v817 = vld [vmem:[#allocation2 + $0x1660] sm:$0xff]
    %v818 = vld [vmem:[#allocation2 + $0x1668] sm:$0xff]
    %v819 = vld [vmem:[#allocation2 + $0x1670] sm:$0xff]
    %v820 = vld [vmem:[#allocation2 + $0x1678] sm:$0xff]
    %v821 = vld [vmem:[#allocation2 + $0x1680] sm:$0xff]
    %v822 = vld [vmem:[#allocation2 + $0x1688] sm:$0xff]
    %v823 = vld [vmem:[#allocation2 + $0x1690] sm:$0xff]
    %v824 = vld [vmem:[#allocation2 + $0x1698] sm:$0xff]
    %v825 = vld [vmem:[#allocation2 + $0x16a0] sm:$0xff]
    %v826 = vld [vmem:[#allocation2 + $0x16a8] sm:$0xff]
    %v827 = vld [vmem:[#allocation2 + $0x16b0] sm:$0xff]
    %v828 = vld [vmem:[#allocation2 + $0x16b8] sm:$0xff]
    %v829 = vld [vmem:[#allocation2 + $0x16c0] sm:$0xff]
    %v830 = vld [vmem:[#allocation2 + $0x16c8] sm:$0xff]
    %v831 = vld [vmem:[#allocation2 + $0x16d0] sm:$0xff]
    %v832 = vld [vmem:[#allocation2 + $0x16d8] sm:$0xff]
    %v833 = vld [vmem:[#allocation2 + $0x16e0] sm:$0xff]
    %v834 = vld [vmem:[#allocation2 + $0x16e8] sm:$0xff]
    %v835 = vld [vmem:[#allocation2 + $0x16f0] sm:$0xff]
    %v836 = vld [vmem:[#allocation2 + $0x16f8] sm:$0xff]
    %v837 = vld [vmem:[#allocation2 + $0x1700] sm:$0xff]
    %v838 = vld [vmem:[#allocation2 + $0x1708] sm:$0xff]
    %v839 = vld [vmem:[#allocation2 + $0x1710] sm:$0xff]
    %v840 = vld [vmem:[#allocation2 + $0x1718] sm:$0xff]
    %v841 = vld [vmem:[#allocation2 + $0x1720] sm:$0xff]
    %v842 = vld [vmem:[#allocation2 + $0x1728] sm:$0xff]
    %v843 = vld [vmem:[#allocation2 + $0x1730] sm:$0xff]
    %v844 = vld [vmem:[#allocation2 + $0x1738] sm:$0xff]
    %v845 = vld [vmem:[#allocation2 + $0x1740] sm:$0xff]
    %v846 = vld [vmem:[#allocation2 + $0x1748] sm:$0xff]
    %v847 = vld [vmem:[#allocation2 + $0x1750] sm:$0xff]
    %v848 = vld [vmem:[#allocation2 + $0x1758] sm:$0xff]
    %v849 = vld [vmem:[#allocation2 + $0x1760] sm:$0xff]
    %v850 = vld [vmem:[#allocation2 + $0x1768] sm:$0xff]
    %v851 = vld [vmem:[#allocation2 + $0x1770] sm:$0xff]
    %v852 = vld [vmem:[#allocation2 + $0x1778] sm:$0xff]
    %v853 = vld [vmem:[#allocation2 + $0x1780] sm:$0xff]
    %v854 = vld [vmem:[#allocation2 + $0x1788] sm:$0xff]
    %v855 = vld [vmem:[#allocation2 + $0x1790] sm:$0xff]
    %v856 = vld [vmem:[#allocation2 + $0x1798] sm:$0xff]
    %v857 = vld [vmem:[#allocation2 + $0x17a0] sm:$0xff]
    %v858 = vld [vmem:[#allocation2 + $0x17a8] sm:$0xff]
    %v859 = vld [vmem:[#allocation2 + $0x17b0] sm:$0xff]
    %v860 = vld [vmem:[#allocation2 + $0x17b8] sm:$0xff]
    %v861 = vld [vmem:[#allocation2 + $0x17c0] sm:$0xff]
    %v862 = vld [vmem:[#allocation2 + $0x17c8] sm:$0xff]
    %v863 = vld [vmem:[#allocation2 + $0x17d0] sm:$0xff]
    %v864 = vld [vmem:[#allocation2 + $0x17d8] sm:$0xff]
    %v865 = vld [vmem:[#allocation2 + $0x17e0] sm:$0xff]
    %v866 = vld [vmem:[#allocation2 + $0x17e8] sm:$0xff]
    %v867 = vld [vmem:[#allocation2 + $0x17f0] sm:$0xff]
    %v868 = vld [vmem:[#allocation2 + $0x17f8] sm:$0xff]
    %v869 = vld [vmem:[#allocation2 + $0x1800] sm:$0xff]
    %v870 = vld [vmem:[#allocation2 + $0x1808] sm:$0xff]
    %v871 = vld [vmem:[#allocation2 + $0x1810] sm:$0xff]
    %v872 = vld [vmem:[#allocation2 + $0x1818] sm:$0xff]
    %v873 = vld [vmem:[#allocation2 + $0x1820] sm:$0xff]
    %v874 = vld [vmem:[#allocation2 + $0x1828] sm:$0xff]
    %v875 = vld [vmem:[#allocation2 + $0x1830] sm:$0xff]
    %v876 = vld [vmem:[#allocation2 + $0x1838] sm:$0xff]
    %v877 = vld [vmem:[#allocation2 + $0x1840] sm:$0xff]
    %v878 = vld [vmem:[#allocation2 + $0x1848] sm:$0xff]
    %v879 = vld [vmem:[#allocation2 + $0x1850] sm:$0xff]
    %v880 = vld [vmem:[#allocation2 + $0x1858] sm:$0xff]
    %v881 = vld [vmem:[#allocation2 + $0x1860] sm:$0xff]
    %v882 = vld [vmem:[#allocation2 + $0x1868] sm:$0xff]
    %v883 = vld [vmem:[#allocation2 + $0x1870] sm:$0xff]
    %v884 = vld [vmem:[#allocation2 + $0x1878] sm:$0xff]
    %v885 = vld [vmem:[#allocation2 + $0x1880] sm:$0xff]
    %v886 = vld [vmem:[#allocation2 + $0x1888] sm:$0xff]
    %v887 = vld [vmem:[#allocation2 + $0x1890] sm:$0xff]
    %v888 = vld [vmem:[#allocation2 + $0x1898] sm:$0xff]
    %v889 = vld [vmem:[#allocation2 + $0x18a0] sm:$0xff]
    %v890 = vld [vmem:[#allocation2 + $0x18a8] sm:$0xff]
    %v891 = vld [vmem:[#allocation2 + $0x18b0] sm:$0xff]
    %v892 = vld [vmem:[#allocation2 + $0x18b8] sm:$0xff]
    %v893 = vld [vmem:[#allocation2 + $0x18c0] sm:$0xff]
    %v894 = vld [vmem:[#allocation2 + $0x18c8] sm:$0xff]
    %v895 = vld [vmem:[#allocation2 + $0x18d0] sm:$0xff]
    %v896 = vld [vmem:[#allocation2 + $0x18d8] sm:$0xff]
    %v897 = vld [vmem:[#allocation2 + $0x18e0] sm:$0xff]
    %v898 = vld [vmem:[#allocation2 + $0x18e8] sm:$0xff]
    %v899 = vld [vmem:[#allocation2 + $0x18f0] sm:$0xff]
    %v900 = vld [vmem:[#allocation2 + $0x18f8] sm:$0xff]
    %v901 = vld [vmem:[#allocation2 + $0x1900] sm:$0xff]
    %v902 = vld [vmem:[#allocation2 + $0x1908] sm:$0xff]
    %v903 = vld [vmem:[#allocation2 + $0x1910] sm:$0xff]
    %v904 = vld [vmem:[#allocation2 + $0x1918] sm:$0xff]
    %v905 = vld [vmem:[#allocation2 + $0x1920] sm:$0xff]
    %v906 = vld [vmem:[#allocation2 + $0x1928] sm:$0xff]
    %v907 = vld [vmem:[#allocation2 + $0x1930] sm:$0xff]
    %v908 = vld [vmem:[#allocation2 + $0x1938] sm:$0xff]
    %v909 = vld [vmem:[#allocation2 + $0x1940] sm:$0xff]
    %v910 = vld [vmem:[#allocation2 + $0x1948] sm:$0xff]
    %v911 = vld [vmem:[#allocation2 + $0x1950] sm:$0xff]
    %v912 = vld [vmem:[#allocation2 + $0x1958] sm:$0xff]
    %v913 = vld [vmem:[#allocation2 + $0x1960] sm:$0xff]
    %v914 = vld [vmem:[#allocation2 + $0x1968] sm:$0xff]
    %v915 = vld [vmem:[#allocation2 + $0x1970] sm:$0xff]
    %v916 = vld [vmem:[#allocation2 + $0x1978] sm:$0xff]
    %v917 = vld [vmem:[#allocation2 + $0x1980] sm:$0xff]
    %v918 = vld [vmem:[#allocation2 + $0x1988] sm:$0xff]
    %v919 = vld [vmem:[#allocation2 + $0x1990] sm:$0xff]
    %v920 = vld [vmem:[#allocation2 + $0x1998] sm:$0xff]
    %v921 = vld [vmem:[#allocation2 + $0x19a0] sm:$0xff]
    %v922 = vld [vmem:[#allocation2 + $0x19a8] sm:$0xff]
    %v923 = vld [vmem:[#allocation2 + $0x19b0] sm:$0xff]
    %v924 = vld [vmem:[#allocation2 + $0x19b8] sm:$0xff]
    %v925 = vld [vmem:[#allocation2 + $0x19c0] sm:$0xff]
    %v926 = vld [vmem:[#allocation2 + $0x19c8] sm:$0xff]
    %v927 = vld [vmem:[#allocation2 + $0x19d0] sm:$0xff]
    %v928 = vld [vmem:[#allocation2 + $0x19d8] sm:$0xff]
    %v929 = vld [vmem:[#allocation2 + $0x19e0] sm:$0xff]
    %v930 = vld [vmem:[#allocation2 + $0x19e8] sm:$0xff]
    %v931 = vld [vmem:[#allocation2 + $0x19f0] sm:$0xff]
    %v932 = vld [vmem:[#allocation2 + $0x19f8] sm:$0xff]
    %v933 = vld [vmem:[#allocation2 + $0x1a00] sm:$0xff]
    %v934 = vld [vmem:[#allocation2 + $0x1a08] sm:$0xff]
    %v935 = vld [vmem:[#allocation2 + $0x1a10] sm:$0xff]
    %v936 = vld [vmem:[#allocation2 + $0x1a18] sm:$0xff]
    %v937 = vld [vmem:[#allocation2 + $0x1a20] sm:$0xff]
    %v938 = vld [vmem:[#allocation2 + $0x1a28] sm:$0xff]
    %v939 = vld [vmem:[#allocation2 + $0x1a30] sm:$0xff]
    %v940 = vld [vmem:[#allocation2 + $0x1a38] sm:$0xff]
    %v941 = vld [vmem:[#allocation2 + $0x1a40] sm:$0xff]
    %v942 = vld [vmem:[#allocation2 + $0x1a48] sm:$0xff]
    %v943 = vld [vmem:[#allocation2 + $0x1a50] sm:$0xff]
    %v944 = vld [vmem:[#allocation2 + $0x1a58] sm:$0xff]
    %v945 = vld [vmem:[#allocation2 + $0x1a60] sm:$0xff]
    %v946 = vld [vmem:[#allocation2 + $0x1a68] sm:$0xff]
    %v947 = vld [vmem:[#allocation2 + $0x1a70] sm:$0xff]
    %v948 = vld [vmem:[#allocation2 + $0x1a78] sm:$0xff]
    %v949 = vld [vmem:[#allocation2 + $0x1a80] sm:$0xff]
    %v950 = vld [vmem:[#allocation2 + $0x1a88] sm:$0xff]
    %v951 = vld [vmem:[#allocation2 + $0x1a90] sm:$0xff]
    %v952 = vld [vmem:[#allocation2 + $0x1a98] sm:$0xff]
    %v953 = vld [vmem:[#allocation2 + $0x1aa0] sm:$0xff]
    %v954 = vld [vmem:[#allocation2 + $0x1aa8] sm:$0xff]
    %v955 = vld [vmem:[#allocation2 + $0x1ab0] sm:$0xff]
    %v956 = vld [vmem:[#allocation2 + $0x1ab8] sm:$0xff]
    %v957 = vld [vmem:[#allocation2 + $0x1ac0] sm:$0xff]
    %v958 = vld [vmem:[#allocation2 + $0x1ac8] sm:$0xff]
    %v959 = vld [vmem:[#allocation2 + $0x1ad0] sm:$0xff]
    %v960 = vld [vmem:[#allocation2 + $0x1ad8] sm:$0xff]
    %v961 = vld [vmem:[#allocation2 + $0x1ae0] sm:$0xff]
    %v962 = vld [vmem:[#allocation2 + $0x1ae8] sm:$0xff]
    %v963 = vld [vmem:[#allocation2 + $0x1af0] sm:$0xff]
    %v964 = vld [vmem:[#allocation2 + $0x1af8] sm:$0xff]
    %v965 = vld [vmem:[#allocation2 + $0x1b00] sm:$0xff]
    %v966 = vld [vmem:[#allocation2 + $0x1b08] sm:$0xff]
    %v967 = vld [vmem:[#allocation2 + $0x1b10] sm:$0xff]
    %v968 = vld [vmem:[#allocation2 + $0x1b18] sm:$0xff]
    %v969 = vld [vmem:[#allocation2 + $0x1b20] sm:$0xff]
    %v970 = vld [vmem:[#allocation2 + $0x1b28] sm:$0xff]
    %v971 = vld [vmem:[#allocation2 + $0x1b30] sm:$0xff]
    %v972 = vld [vmem:[#allocation2 + $0x1b38] sm:$0xff]
    %v973 = vld [vmem:[#allocation2 + $0x1b40] sm:$0xff]
    %v974 = vld [vmem:[#allocation2 + $0x1b48] sm:$0xff]
    %v975 = vld [vmem:[#allocation2 + $0x1b50] sm:$0xff]
    %v976 = vld [vmem:[#allocation2 + $0x1b58] sm:$0xff]
    %v977 = vld [vmem:[#allocation2 + $0x1b60] sm:$0xff]
    %v978 = vld [vmem:[#allocation2 + $0x1b68] sm:$0xff]
    %v979 = vld [vmem:[#allocation2 + $0x1b70] sm:$0xff]
    %v980 = vld [vmem:[#allocation2 + $0x1b78] sm:$0xff]
    %v981 = vld [vmem:[#allocation2 + $0x1b80] sm:$0xff]
    %v982 = vld [vmem:[#allocation2 + $0x1b88] sm:$0xff]
    %v983 = vld [vmem:[#allocation2 + $0x1b90] sm:$0xff]
    %v984 = vld [vmem:[#allocation2 + $0x1b98] sm:$0xff]
    %v985 = vld [vmem:[#allocation2 + $0x1ba0] sm:$0xff]
    %v986 = vld [vmem:[#allocation2 + $0x1ba8] sm:$0xff]
    %v987 = vld [vmem:[#allocation2 + $0x1bb0] sm:$0xff]
    %v988 = vld [vmem:[#allocation2 + $0x1bb8] sm:$0xff]
    %v989 = vld [vmem:[#allocation2 + $0x1bc0] sm:$0xff]
    %v990 = vld [vmem:[#allocation2 + $0x1bc8] sm:$0xff]
    %v991 = vld [vmem:[#allocation2 + $0x1bd0] sm:$0xff]
    %v992 = vld [vmem:[#allocation2 + $0x1bd8] sm:$0xff]
    %v993 = vld [vmem:[#allocation2 + $0x1be0] sm:$0xff]
    %v994 = vld [vmem:[#allocation2 + $0x1be8] sm:$0xff]
    %v995 = vld [vmem:[#allocation2 + $0x1bf0] sm:$0xff]
    %v996 = vld [vmem:[#allocation2 + $0x1bf8] sm:$0xff]
    %v997 = vld [vmem:[#allocation2 + $0x1c00] sm:$0xff]
    %v998 = vld [vmem:[#allocation2 + $0x1c08] sm:$0xff]
    %v999 = vld [vmem:[#allocation2 + $0x1c10] sm:$0xff]
    %v1000 = vld [vmem:[#allocation2 + $0x1c18] sm:$0xff]
    %v1001 = vld [vmem:[#allocation2 + $0x1c20] sm:$0xff]
    %v1002 = vld [vmem:[#allocation2 + $0x1c28] sm:$0xff]
    %v1003 = vld [vmem:[#allocation2 + $0x1c30] sm:$0xff]
    %v1004 = vld [vmem:[#allocation2 + $0x1c38] sm:$0xff]
    %v1005 = vld [vmem:[#allocation2 + $0x1c40] sm:$0xff]
    %v1006 = vld [vmem:[#allocation2 + $0x1c48] sm:$0xff]
    %v1007 = vld [vmem:[#allocation2 + $0x1c50] sm:$0xff]
    %v1008 = vld [vmem:[#allocation2 + $0x1c58] sm:$0xff]
    %v1009 = vld [vmem:[#allocation2 + $0x1c60] sm:$0xff]
    %v1010 = vld [vmem:[#allocation2 + $0x1c68] sm:$0xff]
    %v1011 = vld [vmem:[#allocation2 + $0x1c70] sm:$0xff]
    %v1012 = vld [vmem:[#allocation2 + $0x1c78] sm:$0xff]
    %v1013 = vld [vmem:[#allocation2 + $0x1c80] sm:$0xff]
    %v1014 = vld [vmem:[#allocation2 + $0x1c88] sm:$0xff]
    %v1015 = vld [vmem:[#allocation2 + $0x1c90] sm:$0xff]
    %v1016 = vld [vmem:[#allocation2 + $0x1c98] sm:$0xff]
    %v1017 = vld [vmem:[#allocation2 + $0x1ca0] sm:$0xff]
    %v1018 = vld [vmem:[#allocation2 + $0x1ca8] sm:$0xff]
    %v1019 = vld [vmem:[#allocation2 + $0x1cb0] sm:$0xff]
    %v1020 = vld [vmem:[#allocation2 + $0x1cb8] sm:$0xff]
    %v1021 = vld [vmem:[#allocation2 + $0x1cc0] sm:$0xff]
    %v1022 = vld [vmem:[#allocation2 + $0x1cc8] sm:$0xff]
    %v1023 = vld [vmem:[#allocation2 + $0x1cd0] sm:$0xff]
    %v1024 = vld [vmem:[#allocation2 + $0x1cd8] sm:$0xff]
    %v1025 = vld [vmem:[#allocation2 + $0x1ce0] sm:$0xff]
    %v1026 = vld [vmem:[#allocation2 + $0x1ce8] sm:$0xff]
    %v1027 = vld [vmem:[#allocation2 + $0x1cf0] sm:$0xff]
    %v1028 = vld [vmem:[#allocation2 + $0x1cf8] sm:$0xff]
    %v1029 = vld [vmem:[#allocation2 + $0x1d00] sm:$0xff]
    %v1030 = vld [vmem:[#allocation2 + $0x1d08] sm:$0xff]
    %v1031 = vld [vmem:[#allocation2 + $0x1d10] sm:$0xff]
    %v1032 = vld [vmem:[#allocation2 + $0x1d18] sm:$0xff]
    %v1033 = vld [vmem:[#allocation2 + $0x1d20] sm:$0xff]
    %v1034 = vld [vmem:[#allocation2 + $0x1d28] sm:$0xff]
    %v1035 = vld [vmem:[#allocation2 + $0x1d30] sm:$0xff]
    %v1036 = vld [vmem:[#allocation2 + $0x1d38] sm:$0xff]
    %v1037 = vld [vmem:[#allocation2 + $0x1d40] sm:$0xff]
    %v1038 = vld [vmem:[#allocation2 + $0x1d48] sm:$0xff]
    %v1039 = vld [vmem:[#allocation2 + $0x1d50] sm:$0xff]
    %v1040 = vld [vmem:[#allocation2 + $0x1d58] sm:$0xff]
    %v1041 = vld [vmem:[#allocation2 + $0x1d60] sm:$0xff]
    %v1042 = vld [vmem:[#allocation2 + $0x1d68] sm:$0xff]
    %v1043 = vld [vmem:[#allocation2 + $0x1d70] sm:$0xff]
    %v1044 = vld [vmem:[#allocation2 + $0x1d78] sm:$0xff]
    %v1045 = vld [vmem:[#allocation2 + $0x1d80] sm:$0xff]
    %v1046 = vld [vmem:[#allocation2 + $0x1d88] sm:$0xff]
    %v1047 = vld [vmem:[#allocation2 + $0x1d90] sm:$0xff]
    %v1048 = vld [vmem:[#allocation2 + $0x1d98] sm:$0xff]
    %v1049 = vld [vmem:[#allocation2 + $0x1da0] sm:$0xff]
    %v1050 = vld [vmem:[#allocation2 + $0x1da8] sm:$0xff]
    %v1051 = vld [vmem:[#allocation2 + $0x1db0] sm:$0xff]
    %v1052 = vld [vmem:[#allocation2 + $0x1db8] sm:$0xff]
    %v1053 = vld [vmem:[#allocation2 + $0x1dc0] sm:$0xff]
    %v1054 = vld [vmem:[#allocation2 + $0x1dc8] sm:$0xff]
    %v1055 = vld [vmem:[#allocation2 + $0x1dd0] sm:$0xff]
    %v1056 = vld [vmem:[#allocation2 + $0x1dd8] sm:$0xff]
    %v1057 = vld [vmem:[#allocation2 + $0x1de0] sm:$0xff]
    %v1058 = vld [vmem:[#allocation2 + $0x1de8] sm:$0xff]
    %v1059 = vld [vmem:[#allocation2 + $0x1df0] sm:$0xff]
    %v1060 = vld [vmem:[#allocation2 + $0x1df8] sm:$0xff]
    %v1061 = vld [vmem:[#allocation2 + $0x1e00] sm:$0xff]
    %v1062 = vld [vmem:[#allocation2 + $0x1e08] sm:$0xff]
    %v1063 = vld [vmem:[#allocation2 + $0x1e10] sm:$0xff]
    %v1064 = vld [vmem:[#allocation2 + $0x1e18] sm:$0xff]
    %v1065 = vld [vmem:[#allocation2 + $0x1e20] sm:$0xff]
    %v1066 = vld [vmem:[#allocation2 + $0x1e28] sm:$0xff]
    %v1067 = vld [vmem:[#allocation2 + $0x1e30] sm:$0xff]
    %v1068 = vld [vmem:[#allocation2 + $0x1e38] sm:$0xff]
    %v1069 = vld [vmem:[#allocation2 + $0x1e40] sm:$0xff]
    %v1070 = vld [vmem:[#allocation2 + $0x1e48] sm:$0xff]
    %v1071 = vld [vmem:[#allocation2 + $0x1e50] sm:$0xff]
    %v1072 = vld [vmem:[#allocation2 + $0x1e58] sm:$0xff]
    %v1073 = vld [vmem:[#allocation2 + $0x1e60] sm:$0xff]
    %v1074 = vld [vmem:[#allocation2 + $0x1e68] sm:$0xff]
    %v1075 = vld [vmem:[#allocation2 + $0x1e70] sm:$0xff]
    %v1076 = vld [vmem:[#allocation2 + $0x1e78] sm:$0xff]
    %v1077 = vld [vmem:[#allocation2 + $0x1e80] sm:$0xff]
    %v1078 = vld [vmem:[#allocation2 + $0x1e88] sm:$0xff]
    %v1079 = vld [vmem:[#allocation2 + $0x1e90] sm:$0xff]
    %v1080 = vld [vmem:[#allocation2 + $0x1e98] sm:$0xff]
    %v1081 = vld [vmem:[#allocation2 + $0x1ea0] sm:$0xff]
    %v1082 = vld [vmem:[#allocation2 + $0x1ea8] sm:$0xff]
    %v1083 = vld [vmem:[#allocation2 + $0x1eb0] sm:$0xff]
    %v1084 = vld [vmem:[#allocation2 + $0x1eb8] sm:$0xff]
    %v1085 = vld [vmem:[#allocation2 + $0x1ec0] sm:$0xff]
    %v1086 = vld [vmem:[#allocation2 + $0x1ec8] sm:$0xff]
    %v1087 = vld [vmem:[#allocation2 + $0x1ed0] sm:$0xff]
    %v1088 = vld [vmem:[#allocation2 + $0x1ed8] sm:$0xff]
    %v1089 = vld [vmem:[#allocation2 + $0x1ee0] sm:$0xff]
    %v1090 = vld [vmem:[#allocation2 + $0x1ee8] sm:$0xff]
    %v1091 = vld [vmem:[#allocation2 + $0x1ef0] sm:$0xff]
    %v1092 = vld [vmem:[#allocation2 + $0x1ef8] sm:$0xff]
    %v1093 = vld [vmem:[#allocation2 + $0x1f00] sm:$0xff]
    %v1094 = vld [vmem:[#allocation2 + $0x1f08] sm:$0xff]
    %v1095 = vld [vmem:[#allocation2 + $0x1f10] sm:$0xff]
    %v1096 = vld [vmem:[#allocation2 + $0x1f18] sm:$0xff]
    %v1097 = vld [vmem:[#allocation2 + $0x1f20] sm:$0xff]
    %v1098 = vld [vmem:[#allocation2 + $0x1f28] sm:$0xff]
    %v1099 = vld [vmem:[#allocation2 + $0x1f30] sm:$0xff]
    %v1100 = vld [vmem:[#allocation2 + $0x1f38] sm:$0xff]
    %v1101 = vld [vmem:[#allocation2 + $0x1f40] sm:$0xff]
    %v1102 = vld [vmem:[#allocation2 + $0x1f48] sm:$0xff]
    %v1103 = vld [vmem:[#allocation2 + $0x1f50] sm:$0xff]
    %v1104 = vld [vmem:[#allocation2 + $0x1f58] sm:$0xff]
    %v1105 = vld [vmem:[#allocation2 + $0x1f60] sm:$0xff]
    %v1106 = vld [vmem:[#allocation2 + $0x1f68] sm:$0xff]
    %v1107 = vld [vmem:[#allocation2 + $0x1f70] sm:$0xff]
    %v1108 = vld [vmem:[#allocation2 + $0x1f78] sm:$0xff]
    %v1109 = vld [vmem:[#allocation2 + $0x1f80] sm:$0xff]
    %v1110 = vld [vmem:[#allocation2 + $0x1f88] sm:$0xff]
    %v1111 = vld [vmem:[#allocation2 + $0x1f90] sm:$0xff]
    %v1112 = vld [vmem:[#allocation2 + $0x1f98] sm:$0xff]
    %v1113 = vld [vmem:[#allocation2 + $0x1fa0] sm:$0xff]
    %v1114 = vld [vmem:[#allocation2 + $0x1fa8] sm:$0xff]
    %v1115 = vld [vmem:[#allocation2 + $0x1fb0] sm:$0xff]
    %v1116 = vld [vmem:[#allocation2 + $0x1fb8] sm:$0xff]
    %v1117 = vld [vmem:[#allocation2 + $0x1fc0] sm:$0xff]
    %v1118 = vld [vmem:[#allocation2 + $0x1fc8] sm:$0xff]
    %v1119 = vld [vmem:[#allocation2 + $0x1fd0] sm:$0xff]
    %v1120 = vld [vmem:[#allocation2 + $0x1fd8] sm:$0xff]
    %v1121 = vld [vmem:[#allocation2 + $0x1fe0] sm:$0xff]
    %v1122 = vld [vmem:[#allocation2 + $0x1fe8] sm:$0xff]
    %v1123 = vld [vmem:[#allocation2 + $0x1ff0] sm:$0xff]
    %v1124 = vld [vmem:[#allocation2 + $0x1ff8] sm:$0xff]
    %v1125 = vld [vmem:[#allocation2 + $0x2000] sm:$0xff]
    %v1126 = vld [vmem:[#allocation2 + $0x2008] sm:$0xff]
    %v1127 = vld [vmem:[#allocation2 + $0x2010] sm:$0xff]
    %v1128 = vld [vmem:[#allocation2 + $0x2018] sm:$0xff]
    %v1129 = vld [vmem:[#allocation2 + $0x2020] sm:$0xff]
    %v1130 = vld [vmem:[#allocation2 + $0x2028] sm:$0xff]
    %v1131 = vld [vmem:[#allocation2 + $0x2030] sm:$0xff]
    %v1132 = vld [vmem:[#allocation2 + $0x2038] sm:$0xff]
    %v1133 = vld [vmem:[#allocation2 + $0x2040] sm:$0xff]
    %v1134 = vld [vmem:[#allocation2 + $0x2048] sm:$0xff]
    %v1135 = vld [vmem:[#allocation2 + $0x2050] sm:$0xff]
    %v1136 = vld [vmem:[#allocation2 + $0x2058] sm:$0xff]
    %v1137 = vld [vmem:[#allocation2 + $0x2060] sm:$0xff]
    %v1138 = vld [vmem:[#allocation2 + $0x2068] sm:$0xff]
    %v1139 = vld [vmem:[#allocation2 + $0x2070] sm:$0xff]
    %v1140 = vld [vmem:[#allocation2 + $0x2078] sm:$0xff]
    %v1141 = vld [vmem:[#allocation2 + $0x2080] sm:$0xff]
    %v1142 = vld [vmem:[#allocation2 + $0x2088] sm:$0xff]
    %v1143 = vld [vmem:[#allocation2 + $0x2090] sm:$0xff]
    %v1144 = vld [vmem:[#allocation2 + $0x2098] sm:$0xff]
    %v1145 = vld [vmem:[#allocation2 + $0x20a0] sm:$0xff]
    %v1146 = vld [vmem:[#allocation2 + $0x20a8] sm:$0xff]
    %v1147 = vld [vmem:[#allocation2 + $0x20b0] sm:$0xff]
    %v1148 = vld [vmem:[#allocation2 + $0x20b8] sm:$0xff]
    %v1149 = vld [vmem:[#allocation2 + $0x20c0] sm:$0xff]
    %v1150 = vld [vmem:[#allocation2 + $0x20c8] sm:$0xff]
    %v1151 = vld [vmem:[#allocation2 + $0x20d0] sm:$0xff]
    %v1152 = vld [vmem:[#allocation2 + $0x20d8] sm:$0xff]
    %v1153 = vld [vmem:[#allocation2 + $0x20e0] sm:$0xff]
    %v1154 = vld [vmem:[#allocation2 + $0x20e8] sm:$0xff]
    %v1155 = vld [vmem:[#allocation2 + $0x20f0] sm:$0xff]
    %v1156 = vld [vmem:[#allocation2 + $0x20f8] sm:$0xff]
    %v1157 = vld [vmem:[#allocation2 + $0x2100] sm:$0xff]
    %v1158 = vld [vmem:[#allocation2 + $0x2108] sm:$0xff]
    %v1159 = vld [vmem:[#allocation2 + $0x2110] sm:$0xff]
    %v1160 = vld [vmem:[#allocation2 + $0x2118] sm:$0xff]
    %v1161 = vld [vmem:[#allocation2 + $0x2120] sm:$0xff]
    %v1162 = vld [vmem:[#allocation2 + $0x2128] sm:$0xff]
    %v1163 = vld [vmem:[#allocation2 + $0x2130] sm:$0xff]
    %v1164 = vld [vmem:[#allocation2 + $0x2138] sm:$0xff]
    %v1165 = vld [vmem:[#allocation2 + $0x2140] sm:$0xff]
    %v1166 = vld [vmem:[#allocation2 + $0x2148] sm:$0xff]
    %v1167 = vld [vmem:[#allocation2 + $0x2150] sm:$0xff]
    %v1168 = vld [vmem:[#allocation2 + $0x2158] sm:$0xff]
    %v1169 = vld [vmem:[#allocation2 + $0x2160] sm:$0xff]
    %v1170 = vld [vmem:[#allocation2 + $0x2168] sm:$0xff]
    %v1171 = vld [vmem:[#allocation2 + $0x2170] sm:$0xff]
    %v1172 = vld [vmem:[#allocation2 + $0x2178] sm:$0xff]
    %v1173 = vld [vmem:[#allocation2 + $0x2180] sm:$0xff]
    %v1174 = vld [vmem:[#allocation2 + $0x2188] sm:$0xff]
    %v1175 = vld [vmem:[#allocation2 + $0x2190] sm:$0xff]
    %v1176 = vld [vmem:[#allocation2 + $0x2198] sm:$0xff]
    %v1177 = vld [vmem:[#allocation2 + $0x21a0] sm:$0xff]
    %v1178 = vld [vmem:[#allocation2 + $0x21a8] sm:$0xff]
    %v1179 = vld [vmem:[#allocation2 + $0x21b0] sm:$0xff]
    %v1180 = vld [vmem:[#allocation2 + $0x21b8] sm:$0xff]
    %v1181 = vld [vmem:[#allocation2 + $0x21c0] sm:$0xff]
    %v1182 = vld [vmem:[#allocation2 + $0x21c8] sm:$0xff]
    %v1183 = vld [vmem:[#allocation2 + $0x21d0] sm:$0xff]
    %v1184 = vld [vmem:[#allocation2 + $0x21d8] sm:$0xff]
    %v1185 = vld [vmem:[#allocation2 + $0x21e0] sm:$0xff]
    %v1186 = vld [vmem:[#allocation2 + $0x21e8] sm:$0xff]
    %v1187 = vld [vmem:[#allocation2 + $0x21f0] sm:$0xff]
    %v1188 = vld [vmem:[#allocation2 + $0x21f8] sm:$0xff]
    %v1189 = vld [vmem:[#allocation2 + $0x2200] sm:$0xff]
    %v1190 = vld [vmem:[#allocation2 + $0x2208] sm:$0xff]
    %v1191 = vld [vmem:[#allocation2 + $0x2210] sm:$0xff]
    %v1192 = vld [vmem:[#allocation2 + $0x2218] sm:$0xff]
    %v1193 = vld [vmem:[#allocation2 + $0x2220] sm:$0xff]
    %v1194 = vld [vmem:[#allocation2 + $0x2228] sm:$0xff]
    %v1195 = vld [vmem:[#allocation2 + $0x2230] sm:$0xff]
    %v1196 = vld [vmem:[#allocation2 + $0x2238] sm:$0xff]
    %v1197 = vld [vmem:[#allocation2 + $0x2240] sm:$0xff]
    %v1198 = vld [vmem:[#allocation2 + $0x2248] sm:$0xff]
    %v1199 = vld [vmem:[#allocation2 + $0x2250] sm:$0xff]
    %v1200 = vld [vmem:[#allocation2 + $0x2258] sm:$0xff]
    %v1201 = vld [vmem:[#allocation2 + $0x2260] sm:$0xff]
    %v1202 = vld [vmem:[#allocation2 + $0x2268] sm:$0xff]
    %v1203 = vld [vmem:[#allocation2 + $0x2270] sm:$0xff]
    %v1204 = vld [vmem:[#allocation2 + $0x2278] sm:$0xff]
    %v1205 = vld [vmem:[#allocation2 + $0x2280] sm:$0xff]
    %v1206 = vld [vmem:[#allocation2 + $0x2288] sm:$0xff]
    %v1207 = vld [vmem:[#allocation2 + $0x2290] sm:$0xff]
    %v1208 = vld [vmem:[#allocation2 + $0x2298] sm:$0xff]
    %v1209 = vld [vmem:[#allocation2 + $0x22a0] sm:$0xff]
    %v1210 = vld [vmem:[#allocation2 + $0x22a8] sm:$0xff]
    %v1211 = vld [vmem:[#allocation2 + $0x22b0] sm:$0xff]
    %v1212 = vld [vmem:[#allocation2 + $0x22b8] sm:$0xff]
    %v1213 = vld [vmem:[#allocation2 + $0x22c0] sm:$0xff]
    %v1214 = vld [vmem:[#allocation2 + $0x22c8] sm:$0xff]
    %v1215 = vld [vmem:[#allocation2 + $0x22d0] sm:$0xff]
    %v1216 = vld [vmem:[#allocation2 + $0x22d8] sm:$0xff]
    %v1217 = vld [vmem:[#allocation2 + $0x22e0] sm:$0xff]
    %v1218 = vld [vmem:[#allocation2 + $0x22e8] sm:$0xff]
    %v1219 = vld [vmem:[#allocation4] sm:$0x3]
    %v1221 = vlaneseq
    %v1222 = vshrl.u32 %v1221, 7
    %v1223 = vsub.s32 0, %v1222
    %v1224 = vrot.slane %v1219, %v1223
    %v1225 = vlaneseq
    %v1226 = vshrl.u32 %v1225, 7
    %v1227 = vsub.s32 1, %v1226
    %v1228 = vrot.slane %v1219, %v1227
    %v1274 = vunpack.c.l.b16 %v58
    %v1275 = vunpack.c.h.b16 %v58
    %v1276 = vunpack.c.l.b16 %v59
    %v1277 = vunpack.c.h.b16 %v59
    %v1278 = vunpack.c.l.b16 %v60
    %v1279 = vunpack.c.h.b16 %v60
    %v1280 = vunpack.c.l.b16 %v61
    %v1281 = vunpack.c.h.b16 %v61
    %v1282 = vunpack.c.l.b16 %v62
    %v1283 = vunpack.c.h.b16 %v62
    %v1284 = vunpack.c.l.b16 %v63
    %v1285 = vunpack.c.h.b16 %v63
    %v1286 = vunpack.c.l.b16 %v64
    %v1287 = vunpack.c.h.b16 %v64
    %v1288 = vunpack.c.l.b16 %v65
    %v1289 = vunpack.c.h.b16 %v65
    %v1290 = vunpack.c.l.b16 %v66
    %v1291 = vunpack.c.h.b16 %v66
    %v1292 = vunpack.c.l.b16 %v67
    %v1293 = vunpack.c.h.b16 %v67
    %v1294 = vunpack.c.l.b16 %v68
    %v1295 = vunpack.c.h.b16 %v68
    %v1296 = vunpack.c.l.b16 %v69
    %v1297 = vunpack.c.h.b16 %v69
    %v1298 = vunpack.c.l.b16 %v70
    %v1299 = vunpack.c.h.b16 %v70
    %v1300 = vunpack.c.l.b16 %v71
    %v1301 = vunpack.c.h.b16 %v71
    %v1302 = vunpack.c.l.b16 %v72
    %v1303 = vunpack.c.h.b16 %v72
    %v1304 = vunpack.c.l.b16 %v73
    %v1305 = vunpack.c.h.b16 %v73
    %v1306 = vunpack.c.l.b16 %v74
    %v1307 = vunpack.c.h.b16 %v74
    %v1308 = vunpack.c.l.b16 %v75
    %v1309 = vunpack.c.h.b16 %v75
    %v1310 = vunpack.c.l.b16 %v76
    %v1311 = vunpack.c.h.b16 %v76
    %v1312 = vunpack.c.l.b16 %v77
    %v1313 = vunpack.c.h.b16 %v77
    %v1314 = vunpack.c.l.b16 %v78
    %v1315 = vunpack.c.h.b16 %v78
    %v1316 = vunpack.c.l.b16 %v79
    %v1317 = vunpack.c.h.b16 %v79
    %v1318 = vunpack.c.l.b16 %v80
    %v1319 = vunpack.c.h.b16 %v80
    %v1320 = vunpack.c.l.b16 %v81
    %v1321 = vunpack.c.h.b16 %v81
    %v1322 = vunpack.c.l.b16 %v82
    %v1323 = vunpack.c.h.b16 %v82
    %v1324 = vunpack.c.l.b16 %v83
    %v1325 = vunpack.c.h.b16 %v83
    %v1326 = vunpack.c.l.b16 %v84
    %v1327 = vunpack.c.h.b16 %v84
    %v1328 = vunpack.c.l.b16 %v85
    %v1329 = vunpack.c.h.b16 %v85
    %v1330 = vunpack.c.l.b16 %v86
    %v1331 = vunpack.c.h.b16 %v86
    %v1332 = vunpack.c.l.b16 %v87
    %v1333 = vunpack.c.h.b16 %v87
    %v1334 = vunpack.c.l.b16 %v88
    %v1335 = vunpack.c.h.b16 %v88
    %v1336 = vunpack.c.l.b16 %v89
    %v1337 = vunpack.c.h.b16 %v89
    %v1338 = vunpack.c.l.b16 %v90
    %v1339 = vunpack.c.h.b16 %v90
    %v1340 = vunpack.c.l.b16 %v91
    %v1341 = vunpack.c.h.b16 %v91
    %v1342 = vunpack.c.l.b16 %v92
    %v1343 = vunpack.c.h.b16 %v92
    %v1344 = vunpack.c.l.b16 %v93
    %v1345 = vunpack.c.h.b16 %v93
    %v1346 = vunpack.c.l.b16 %v94
    %v1347 = vunpack.c.h.b16 %v94
    %v1348 = vunpack.c.l.b16 %v95
    %v1349 = vunpack.c.h.b16 %v95
    %v1350 = vunpack.c.l.b16 %v96
    %v1351 = vunpack.c.h.b16 %v96
    %v1352 = vunpack.c.l.b16 %v97
    %v1353 = vunpack.c.h.b16 %v97
    %v1354 = vunpack.c.l.b16 %v98
    %v1355 = vunpack.c.h.b16 %v98
    %v1356 = vunpack.c.l.b16 %v99
    %v1357 = vunpack.c.h.b16 %v99
    %v1358 = vunpack.c.l.b16 %v100
    %v1359 = vunpack.c.h.b16 %v100
    %v1360 = vpack.c.b16 %v1274, %v1274
    %v1361 = vpack.c.b16 %v1275, %v1275
    %v1362 = vpack.c.b16 %v1276, %v1276
    %v1363 = vpack.c.b16 %v1277, %v1277
    %v1364 = vpack.c.b16 %v1278, %v1278
    %v1365 = vpack.c.b16 %v1279, %v1279
    %v1366 = vpack.c.b16 %v1280, %v1280
    %v1367 = vpack.c.b16 %v1281, %v1281
    %v1368 = vpack.c.b16 %v1282, %v1282
    %v1369 = vpack.c.b16 %v1283, %v1283
    %v1370 = vpack.c.b16 %v1284, %v1284
    %v1371 = vpack.c.b16 %v1285, %v1285
    %v1372 = vpack.c.b16 %v1286, %v1286
    %v1373 = vpack.c.b16 %v1287, %v1287
    %v1374 = vpack.c.b16 %v1288, %v1288
    %v1375 = vpack.c.b16 %v1289, %v1289
    %v1376 = vpack.c.b16 %v1290, %v1290
    %v1377 = vpack.c.b16 %v1291, %v1291
    %v1378 = vpack.c.b16 %v1292, %v1292
    %v1379 = vpack.c.b16 %v1293, %v1293
    %v1380 = vpack.c.b16 %v1294, %v1294
    %v1381 = vpack.c.b16 %v1295, %v1295
    %v1382 = vpack.c.b16 %v1296, %v1296
    %v1383 = vpack.c.b16 %v1297, %v1297
    %v1384 = vpack.c.b16 %v1298, %v1298
    %v1385 = vpack.c.b16 %v1299, %v1299
    %v1386 = vpack.c.b16 %v1300, %v1300
    %v1387 = vpack.c.b16 %v1301, %v1301
    %v1388 = vpack.c.b16 %v1302, %v1302
    %v1389 = vpack.c.b16 %v1303, %v1303
    %v1390 = vpack.c.b16 %v1304, %v1304
    %v1391 = vpack.c.b16 %v1305, %v1305
    %v1392 = vpack.c.b16 %v1306, %v1306
    %v1393 = vpack.c.b16 %v1307, %v1307
    %v1394 = vpack.c.b16 %v1308, %v1308
    %v1395 = vpack.c.b16 %v1309, %v1309
    %v1396 = vpack.c.b16 %v1310, %v1310
    %v1397 = vpack.c.b16 %v1311, %v1311
    %v1398 = vpack.c.b16 %v1312, %v1312
    %v1399 = vpack.c.b16 %v1313, %v1313
    %v1400 = vpack.c.b16 %v1314, %v1314
    %v1401 = vpack.c.b16 %v1315, %v1315
    %v1402 = vpack.c.b16 %v1316, %v1316
    %v1403 = vpack.c.b16 %v1317, %v1317
    %v1404 = vpack.c.b16 %v1318, %v1318
    %v1405 = vpack.c.b16 %v1319, %v1319
    %v1406 = vpack.c.b16 %v1320, %v1320
    %v1407 = vpack.c.b16 %v1321, %v1321
    %v1408 = vpack.c.b16 %v1322, %v1322
    %v1409 = vpack.c.b16 %v1323, %v1323
    %v1410 = vpack.c.b16 %v1324, %v1324
    %v1411 = vpack.c.b16 %v1325, %v1325
    %v1412 = vpack.c.b16 %v1326, %v1326
    %v1413 = vpack.c.b16 %v1327, %v1327
    %v1414 = vpack.c.b16 %v1328, %v1328
    %v1415 = vpack.c.b16 %v1329, %v1329
    %v1416 = vpack.c.b16 %v1330, %v1330
    %v1417 = vpack.c.b16 %v1331, %v1331
    %v1418 = vpack.c.b16 %v1332, %v1332
    %v1419 = vpack.c.b16 %v1333, %v1333
    %v1420 = vpack.c.b16 %v1334, %v1334
    %v1421 = vpack.c.b16 %v1335, %v1335
    %v1422 = vpack.c.b16 %v1336, %v1336
    %v1423 = vpack.c.b16 %v1337, %v1337
    %v1424 = vpack.c.b16 %v1338, %v1338
    %v1425 = vpack.c.b16 %v1339, %v1339
    %v1426 = vpack.c.b16 %v1340, %v1340
    %v1427 = vpack.c.b16 %v1341, %v1341
    %v1428 = vpack.c.b16 %v1342, %v1342
    %v1429 = vpack.c.b16 %v1343, %v1343
    %v1430 = vpack.c.b16 %v1344, %v1344
    %v1431 = vpack.c.b16 %v1345, %v1345
    %v1432 = vpack.c.b16 %v1346, %v1346
    %v1433 = vpack.c.b16 %v1347, %v1347
    %v1434 = vpack.c.b16 %v1348, %v1348
    %v1435 = vpack.c.b16 %v1349, %v1349
    %v1436 = vpack.c.b16 %v1350, %v1350
    %v1437 = vpack.c.b16 %v1351, %v1351
    %v1438 = vpack.c.b16 %v1352, %v1352
    %v1439 = vpack.c.b16 %v1353, %v1353
    %v1440 = vpack.c.b16 %v1354, %v1354
    %v1441 = vpack.c.b16 %v1355, %v1355
    %v1442 = vpack.c.b16 %v1356, %v1356
    %v1443 = vpack.c.b16 %v1357, %v1357
    %v1444 = vpack.c.b16 %v1358, %v1358
    %v1445 = vpack.c.b16 %v1359, %v1359
    %v2650 = vunpack.c.l.b16 %v101
    %v2651 = vunpack.c.h.b16 %v101
    %v2652 = vunpack.c.l.b16 %v102
    %v2653 = vunpack.c.h.b16 %v102
    %v2654 = vunpack.c.l.b16 %v103
    %v2655 = vunpack.c.h.b16 %v103
    %v2656 = vunpack.c.l.b16 %v104
    %v2657 = vunpack.c.h.b16 %v104
    %v2658 = vunpack.c.l.b16 %v105
    %v2659 = vunpack.c.h.b16 %v105
    %v2660 = vunpack.c.l.b16 %v106
    %v2661 = vunpack.c.h.b16 %v106
    %v2662 = vunpack.c.l.b16 %v107
    %v2663 = vunpack.c.h.b16 %v107
    %v2664 = vunpack.c.l.b16 %v108
    %v2665 = vunpack.c.h.b16 %v108
    %v2666 = vunpack.c.l.b16 %v109
    %v2667 = vunpack.c.h.b16 %v109
    %v2668 = vunpack.c.l.b16 %v110
    %v2669 = vunpack.c.h.b16 %v110
    %v2670 = vunpack.c.l.b16 %v111
    %v2671 = vunpack.c.h.b16 %v111
    %v2672 = vunpack.c.l.b16 %v112
    %v2673 = vunpack.c.h.b16 %v112
    %v2674 = vunpack.c.l.b16 %v113
    %v2675 = vunpack.c.h.b16 %v113
    %v2676 = vunpack.c.l.b16 %v114
    %v2677 = vunpack.c.h.b16 %v114
    %v2678 = vunpack.c.l.b16 %v115
    %v2679 = vunpack.c.h.b16 %v115
    %v2680 = vunpack.c.l.b16 %v116
    %v2681 = vunpack.c.h.b16 %v116
    %v2682 = vunpack.c.l.b16 %v117
    %v2683 = vunpack.c.h.b16 %v117
    %v2684 = vunpack.c.l.b16 %v118
    %v2685 = vunpack.c.h.b16 %v118
    %v2686 = vunpack.c.l.b16 %v119
    %v2687 = vunpack.c.h.b16 %v119
    %v2688 = vunpack.c.l.b16 %v120
    %v2689 = vunpack.c.h.b16 %v120
    %v2690 = vunpack.c.l.b16 %v121
    %v2691 = vunpack.c.h.b16 %v121
    %v2692 = vunpack.c.l.b16 %v122
    %v2693 = vunpack.c.h.b16 %v122
    %v2694 = vunpack.c.l.b16 %v123
    %v2695 = vunpack.c.h.b16 %v123
    %v2696 = vunpack.c.l.b16 %v124
    %v2697 = vunpack.c.h.b16 %v124
    %v2698 = vunpack.c.l.b16 %v125
    %v2699 = vunpack.c.h.b16 %v125
    %v2700 = vunpack.c.l.b16 %v126
    %v2701 = vunpack.c.h.b16 %v126
    %v2702 = vunpack.c.l.b16 %v127
    %v2703 = vunpack.c.h.b16 %v127
    %v2704 = vunpack.c.l.b16 %v128
    %v2705 = vunpack.c.h.b16 %v128
    %v2706 = vunpack.c.l.b16 %v129
    %v2707 = vunpack.c.h.b16 %v129
    %v2708 = vunpack.c.l.b16 %v130
    %v2709 = vunpack.c.h.b16 %v130
    %v2710 = vunpack.c.l.b16 %v131
    %v2711 = vunpack.c.h.b16 %v131
    %v2712 = vunpack.c.l.b16 %v132
    %v2713 = vunpack.c.h.b16 %v132
    %v2714 = vunpack.c.l.b16 %v133
    %v2715 = vunpack.c.h.b16 %v133
    %v2716 = vunpack.c.l.b16 %v134
    %v2717 = vunpack.c.h.b16 %v134
    %v2718 = vunpack.c.l.b16 %v135
    %v2719 = vunpack.c.h.b16 %v135
    %v2720 = vunpack.c.l.b16 %v136
    %v2721 = vunpack.c.h.b16 %v136
    %v2722 = vunpack.c.l.b16 %v137
    %v2723 = vunpack.c.h.b16 %v137
    %v2724 = vunpack.c.l.b16 %v138
    %v2725 = vunpack.c.h.b16 %v138
    %v2726 = vunpack.c.l.b16 %v139
    %v2727 = vunpack.c.h.b16 %v139
    %v2728 = vunpack.c.l.b16 %v140
    %v2729 = vunpack.c.h.b16 %v140
    %v2730 = vunpack.c.l.b16 %v141
    %v2731 = vunpack.c.h.b16 %v141
    %v2732 = vunpack.c.l.b16 %v142
    %v2733 = vunpack.c.h.b16 %v142
    %v2734 = vunpack.c.l.b16 %v143
    %v2735 = vunpack.c.h.b16 %v143
    %v2736 = vunpack.c.l.b16 %v144
    %v2737 = vunpack.c.h.b16 %v144
    %v2738 = vunpack.c.l.b16 %v145
    %v2739 = vunpack.c.h.b16 %v145
    %v2740 = vunpack.c.l.b16 %v146
    %v2741 = vunpack.c.h.b16 %v146
    %v2742 = vunpack.c.l.b16 %v147
    %v2743 = vunpack.c.h.b16 %v147
    %v2744 = vunpack.c.l.b16 %v148
    %v2745 = vunpack.c.h.b16 %v148
    %v2746 = vunpack.c.l.b16 %v149
    %v2747 = vunpack.c.h.b16 %v149
    %v2748 = vunpack.c.l.b16 %v150
    %v2749 = vunpack.c.h.b16 %v150
    %v2750 = vunpack.c.l.b16 %v151
    %v2751 = vunpack.c.h.b16 %v151
    %v2752 = vunpack.c.l.b16 %v152
    %v2753 = vunpack.c.h.b16 %v152
    %v2754 = vunpack.c.l.b16 %v153
    %v2755 = vunpack.c.h.b16 %v153
    %v2756 = vunpack.c.l.b16 %v154
    %v2757 = vunpack.c.h.b16 %v154
    %v2758 = vunpack.c.l.b16 %v155
    %v2759 = vunpack.c.h.b16 %v155
    %v2760 = vunpack.c.l.b16 %v156
    %v2761 = vunpack.c.h.b16 %v156
    %v2762 = vunpack.c.l.b16 %v157
    %v2763 = vunpack.c.h.b16 %v157
    %v2764 = vunpack.c.l.b16 %v158
    %v2765 = vunpack.c.h.b16 %v158
    %v2766 = vunpack.c.l.b16 %v159
    %v2767 = vunpack.c.h.b16 %v159
    %v2768 = vunpack.c.l.b16 %v160
    %v2769 = vunpack.c.h.b16 %v160
    %v2770 = vunpack.c.l.b16 %v161
    %v2771 = vunpack.c.h.b16 %v161
    %v2772 = vunpack.c.l.b16 %v162
    %v2773 = vunpack.c.h.b16 %v162
    %v2774 = vunpack.c.l.b16 %v163
    %v2775 = vunpack.c.h.b16 %v163
    %v2776 = vunpack.c.l.b16 %v164
    %v2777 = vunpack.c.h.b16 %v164
    %v2778 = vunpack.c.l.b16 %v165
    %v2779 = vunpack.c.h.b16 %v165
    %v2780 = vunpack.c.l.b16 %v166
    %v2781 = vunpack.c.h.b16 %v166
    %v2782 = vunpack.c.l.b16 %v167
    %v2783 = vunpack.c.h.b16 %v167
    %v2784 = vunpack.c.l.b16 %v168
    %v2785 = vunpack.c.h.b16 %v168
    %v2786 = vunpack.c.l.b16 %v169
    %v2787 = vunpack.c.h.b16 %v169
    %v2788 = vunpack.c.l.b16 %v170
    %v2789 = vunpack.c.h.b16 %v170
    %v2790 = vunpack.c.l.b16 %v171
    %v2791 = vunpack.c.h.b16 %v171
    %v2792 = vunpack.c.l.b16 %v172
    %v2793 = vunpack.c.h.b16 %v172
    %v2794 = vunpack.c.l.b16 %v173
    %v2795 = vunpack.c.h.b16 %v173
    %v2796 = vunpack.c.l.b16 %v174
    %v2797 = vunpack.c.h.b16 %v174
    %v2798 = vunpack.c.l.b16 %v175
    %v2799 = vunpack.c.h.b16 %v175
    %v2800 = vunpack.c.l.b16 %v176
    %v2801 = vunpack.c.h.b16 %v176
    %v2802 = vunpack.c.l.b16 %v177
    %v2803 = vunpack.c.h.b16 %v177
    %v2804 = vunpack.c.l.b16 %v178
    %v2805 = vunpack.c.h.b16 %v178
    %v2806 = vunpack.c.l.b16 %v179
    %v2807 = vunpack.c.h.b16 %v179
    %v2808 = vunpack.c.l.b16 %v180
    %v2809 = vunpack.c.h.b16 %v180
    %v2810 = vunpack.c.l.b16 %v181
    %v2811 = vunpack.c.h.b16 %v181
    %v2812 = vunpack.c.l.b16 %v182
    %v2813 = vunpack.c.h.b16 %v182
    %v2814 = vunpack.c.l.b16 %v183
    %v2815 = vunpack.c.h.b16 %v183
    %v2816 = vunpack.c.l.b16 %v184
    %v2817 = vunpack.c.h.b16 %v184
    %v2818 = vunpack.c.l.b16 %v185
    %v2819 = vunpack.c.h.b16 %v185
    %v2820 = vunpack.c.l.b16 %v186
    %v2821 = vunpack.c.h.b16 %v186
    %v2822 = vunpack.c.l.b16 %v187
    %v2823 = vunpack.c.h.b16 %v187
    %v2824 = vunpack.c.l.b16 %v188
    %v2825 = vunpack.c.h.b16 %v188
    %v2826 = vunpack.c.l.b16 %v189
    %v2827 = vunpack.c.h.b16 %v189
    %v2828 = vunpack.c.l.b16 %v190
    %v2829 = vunpack.c.h.b16 %v190
    %v2830 = vunpack.c.l.b16 %v191
    %v2831 = vunpack.c.h.b16 %v191
    %v2832 = vunpack.c.l.b16 %v192
    %v2833 = vunpack.c.h.b16 %v192
    %v2834 = vunpack.c.l.b16 %v193
    %v2835 = vunpack.c.h.b16 %v193
    %v2836 = vunpack.c.l.b16 %v194
    %v2837 = vunpack.c.h.b16 %v194
    %v2838 = vunpack.c.l.b16 %v195
    %v2839 = vunpack.c.h.b16 %v195
    %v2840 = vunpack.c.l.b16 %v196
    %v2841 = vunpack.c.h.b16 %v196
    %v2842 = vunpack.c.l.b16 %v197
    %v2843 = vunpack.c.h.b16 %v197
    %v2844 = vunpack.c.l.b16 %v198
    %v2845 = vunpack.c.h.b16 %v198
    %v2846 = vunpack.c.l.b16 %v199
    %v2847 = vunpack.c.h.b16 %v199
    %v2848 = vunpack.c.l.b16 %v200
    %v2849 = vunpack.c.h.b16 %v200
    %v2850 = vunpack.c.l.b16 %v201
    %v2851 = vunpack.c.h.b16 %v201
    %v2852 = vunpack.c.l.b16 %v202
    %v2853 = vunpack.c.h.b16 %v202
    %v2854 = vunpack.c.l.b16 %v203
    %v2855 = vunpack.c.h.b16 %v203
    %v2856 = vunpack.c.l.b16 %v204
    %v2857 = vunpack.c.h.b16 %v204
    %v2858 = vunpack.c.l.b16 %v205
    %v2859 = vunpack.c.h.b16 %v205
    %v2860 = vunpack.c.l.b16 %v206
    %v2861 = vunpack.c.h.b16 %v206
    %v2862 = vunpack.c.l.b16 %v207
    %v2863 = vunpack.c.h.b16 %v207
    %v2864 = vunpack.c.l.b16 %v208
    %v2865 = vunpack.c.h.b16 %v208
    %v2866 = vunpack.c.l.b16 %v209
    %v2867 = vunpack.c.h.b16 %v209
    %v2868 = vunpack.c.l.b16 %v210
    %v2869 = vunpack.c.h.b16 %v210
    %v2870 = vunpack.c.l.b16 %v211
    %v2871 = vunpack.c.h.b16 %v211
    %v2872 = vunpack.c.l.b16 %v212
    %v2873 = vunpack.c.h.b16 %v212
    %v2874 = vunpack.c.l.b16 %v213
    %v2875 = vunpack.c.h.b16 %v213
    %v2876 = vunpack.c.l.b16 %v214
    %v2877 = vunpack.c.h.b16 %v214
    %v2878 = vunpack.c.l.b16 %v215
    %v2879 = vunpack.c.h.b16 %v215
    %v2880 = vunpack.c.l.b16 %v216
    %v2881 = vunpack.c.h.b16 %v216
    %v2882 = vunpack.c.l.b16 %v217
    %v2883 = vunpack.c.h.b16 %v217
    %v2884 = vunpack.c.l.b16 %v218
    %v2885 = vunpack.c.h.b16 %v218
    %v2886 = vunpack.c.l.b16 %v219
    %v2887 = vunpack.c.h.b16 %v219
    %v2888 = vunpack.c.l.b16 %v220
    %v2889 = vunpack.c.h.b16 %v220
    %v2890 = vunpack.c.l.b16 %v221
    %v2891 = vunpack.c.h.b16 %v221
    %v2892 = vunpack.c.l.b16 %v222
    %v2893 = vunpack.c.h.b16 %v222
    %v2894 = vunpack.c.l.b16 %v223
    %v2895 = vunpack.c.h.b16 %v223
    %v2896 = vunpack.c.l.b16 %v224
    %v2897 = vunpack.c.h.b16 %v224
    %v2898 = vunpack.c.l.b16 %v225
    %v2899 = vunpack.c.h.b16 %v225
    %v2900 = vunpack.c.l.b16 %v226
    %v2901 = vunpack.c.h.b16 %v226
    %v2902 = vunpack.c.l.b16 %v227
    %v2903 = vunpack.c.h.b16 %v227
    %v2904 = vunpack.c.l.b16 %v228
    %v2905 = vunpack.c.h.b16 %v228
    %v2906 = vunpack.c.l.b16 %v229
    %v2907 = vunpack.c.h.b16 %v229
    %v2908 = vunpack.c.l.b16 %v230
    %v2909 = vunpack.c.h.b16 %v230
    %v2910 = vunpack.c.l.b16 %v231
    %v2911 = vunpack.c.h.b16 %v231
    %v2912 = vunpack.c.l.b16 %v232
    %v2913 = vunpack.c.h.b16 %v232
    %v2914 = vunpack.c.l.b16 %v233
    %v2915 = vunpack.c.h.b16 %v233
    %v2916 = vunpack.c.l.b16 %v234
    %v2917 = vunpack.c.h.b16 %v234
    %v2918 = vunpack.c.l.b16 %v235
    %v2919 = vunpack.c.h.b16 %v235
    %v2920 = vunpack.c.l.b16 %v236
    %v2921 = vunpack.c.h.b16 %v236
    %v2922 = vunpack.c.l.b16 %v237
    %v2923 = vunpack.c.h.b16 %v237
    %v2924 = vunpack.c.l.b16 %v238
    %v2925 = vunpack.c.h.b16 %v238
    %v2926 = vunpack.c.l.b16 %v239
    %v2927 = vunpack.c.h.b16 %v239
    %v2928 = vunpack.c.l.b16 %v240
    %v2929 = vunpack.c.h.b16 %v240
    %v2930 = vunpack.c.l.b16 %v241
    %v2931 = vunpack.c.h.b16 %v241
    %v2932 = vunpack.c.l.b16 %v242
    %v2933 = vunpack.c.h.b16 %v242
    %v2934 = vunpack.c.l.b16 %v243
    %v2935 = vunpack.c.h.b16 %v243
    %v2936 = vunpack.c.l.b16 %v244
    %v2937 = vunpack.c.h.b16 %v244
    %v2938 = vunpack.c.l.b16 %v245
    %v2939 = vunpack.c.h.b16 %v245
    %v2940 = vunpack.c.l.b16 %v246
    %v2941 = vunpack.c.h.b16 %v246
    %v2942 = vunpack.c.l.b16 %v247
    %v2943 = vunpack.c.h.b16 %v247
    %v2944 = vunpack.c.l.b16 %v248
    %v2945 = vunpack.c.h.b16 %v248
    %v2946 = vunpack.c.l.b16 %v249
    %v2947 = vunpack.c.h.b16 %v249
    %v2948 = vunpack.c.l.b16 %v250
    %v2949 = vunpack.c.h.b16 %v250
    %v2950 = vunpack.c.l.b16 %v251
    %v2951 = vunpack.c.h.b16 %v251
    %v2952 = vunpack.c.l.b16 %v252
    %v2953 = vunpack.c.h.b16 %v252
    %v2954 = vunpack.c.l.b16 %v253
    %v2955 = vunpack.c.h.b16 %v253
    %v2956 = vunpack.c.l.b16 %v254
    %v2957 = vunpack.c.h.b16 %v254
    %v2958 = vunpack.c.l.b16 %v255
    %v2959 = vunpack.c.h.b16 %v255
    %v2960 = vunpack.c.l.b16 %v256
    %v2961 = vunpack.c.h.b16 %v256
    %v2962 = vunpack.c.l.b16 %v257
    %v2963 = vunpack.c.h.b16 %v257
    %v2964 = vunpack.c.l.b16 %v258
    %v2965 = vunpack.c.h.b16 %v258
    %v2966 = vunpack.c.l.b16 %v259
    %v2967 = vunpack.c.h.b16 %v259
    %v2968 = vunpack.c.l.b16 %v260
    %v2969 = vunpack.c.h.b16 %v260
    %v2970 = vunpack.c.l.b16 %v261
    %v2971 = vunpack.c.h.b16 %v261
    %v2972 = vunpack.c.l.b16 %v262
    %v2973 = vunpack.c.h.b16 %v262
    %v2974 = vunpack.c.l.b16 %v263
    %v2975 = vunpack.c.h.b16 %v263
    %v2976 = vunpack.c.l.b16 %v264
    %v2977 = vunpack.c.h.b16 %v264
    %v2978 = vunpack.c.l.b16 %v265
    %v2979 = vunpack.c.h.b16 %v265
    %v2980 = vunpack.c.l.b16 %v266
    %v2981 = vunpack.c.h.b16 %v266
    %v2982 = vunpack.c.l.b16 %v267
    %v2983 = vunpack.c.h.b16 %v267
    %v2984 = vunpack.c.l.b16 %v268
    %v2985 = vunpack.c.h.b16 %v268
    %v2986 = vunpack.c.l.b16 %v269
    %v2987 = vunpack.c.h.b16 %v269
    %v2988 = vunpack.c.l.b16 %v270
    %v2989 = vunpack.c.h.b16 %v270
    %v2990 = vunpack.c.l.b16 %v271
    %v2991 = vunpack.c.h.b16 %v271
    %v2992 = vunpack.c.l.b16 %v272
    %v2993 = vunpack.c.h.b16 %v272
    %v2994 = vunpack.c.l.b16 %v273
    %v2995 = vunpack.c.h.b16 %v273
    %v2996 = vunpack.c.l.b16 %v274
    %v2997 = vunpack.c.h.b16 %v274
    %v2998 = vunpack.c.l.b16 %v275
    %v2999 = vunpack.c.h.b16 %v275
    %v3000 = vunpack.c.l.b16 %v276
    %v3001 = vunpack.c.h.b16 %v276
    %v3002 = vunpack.c.l.b16 %v277
    %v3003 = vunpack.c.h.b16 %v277
    %v3004 = vunpack.c.l.b16 %v278
    %v3005 = vunpack.c.h.b16 %v278
    %v3006 = vunpack.c.l.b16 %v279
    %v3007 = vunpack.c.h.b16 %v279
    %v3008 = vunpack.c.l.b16 %v280
    %v3009 = vunpack.c.h.b16 %v280
    %v3010 = vunpack.c.l.b16 %v281
    %v3011 = vunpack.c.h.b16 %v281
    %v3012 = vunpack.c.l.b16 %v282
    %v3013 = vunpack.c.h.b16 %v282
    %v3014 = vunpack.c.l.b16 %v283
    %v3015 = vunpack.c.h.b16 %v283
    %v3016 = vunpack.c.l.b16 %v284
    %v3017 = vunpack.c.h.b16 %v284
    %v3018 = vunpack.c.l.b16 %v285
    %v3019 = vunpack.c.h.b16 %v285
    %v3020 = vunpack.c.l.b16 %v286
    %v3021 = vunpack.c.h.b16 %v286
    %v3022 = vunpack.c.l.b16 %v287
    %v3023 = vunpack.c.h.b16 %v287
    %v3024 = vunpack.c.l.b16 %v288
    %v3025 = vunpack.c.h.b16 %v288
    %v3026 = vunpack.c.l.b16 %v289
    %v3027 = vunpack.c.h.b16 %v289
    %v3028 = vunpack.c.l.b16 %v290
    %v3029 = vunpack.c.h.b16 %v290
    %v3030 = vunpack.c.l.b16 %v291
    %v3031 = vunpack.c.h.b16 %v291
    %v3032 = vunpack.c.l.b16 %v292
    %v3033 = vunpack.c.h.b16 %v292
    %v3034 = vunpack.c.l.b16 %v293
    %v3035 = vunpack.c.h.b16 %v293
    %v3036 = vunpack.c.l.b16 %v294
    %v3037 = vunpack.c.h.b16 %v294
    %v3038 = vunpack.c.l.b16 %v295
    %v3039 = vunpack.c.h.b16 %v295
    %v3040 = vunpack.c.l.b16 %v296
    %v3041 = vunpack.c.h.b16 %v296
    %v3042 = vunpack.c.l.b16 %v297
    %v3043 = vunpack.c.h.b16 %v297
    %v3044 = vunpack.c.l.b16 %v298
    %v3045 = vunpack.c.h.b16 %v298
    %v3046 = vunpack.c.l.b16 %v299
    %v3047 = vunpack.c.h.b16 %v299
    %v3048 = vunpack.c.l.b16 %v300
    %v3049 = vunpack.c.h.b16 %v300
    %v3050 = vunpack.c.l.b16 %v301
    %v3051 = vunpack.c.h.b16 %v301
    %v3052 = vunpack.c.l.b16 %v302
    %v3053 = vunpack.c.h.b16 %v302
    %v3054 = vunpack.c.l.b16 %v303
    %v3055 = vunpack.c.h.b16 %v303
    %v3056 = vunpack.c.l.b16 %v304
    %v3057 = vunpack.c.h.b16 %v304
    %v3058 = vunpack.c.l.b16 %v305
    %v3059 = vunpack.c.h.b16 %v305
    %v3060 = vunpack.c.l.b16 %v306
    %v3061 = vunpack.c.h.b16 %v306
    %v3062 = vunpack.c.l.b16 %v307
    %v3063 = vunpack.c.h.b16 %v307
    %v3064 = vunpack.c.l.b16 %v308
    %v3065 = vunpack.c.h.b16 %v308
    %v3066 = vunpack.c.l.b16 %v309
    %v3067 = vunpack.c.h.b16 %v309
    %v3068 = vunpack.c.l.b16 %v310
    %v3069 = vunpack.c.h.b16 %v310
    %v3070 = vunpack.c.l.b16 %v311
    %v3071 = vunpack.c.h.b16 %v311
    %v3072 = vunpack.c.l.b16 %v312
    %v3073 = vunpack.c.h.b16 %v312
    %v3074 = vunpack.c.l.b16 %v313
    %v3075 = vunpack.c.h.b16 %v313
    %v3076 = vunpack.c.l.b16 %v314
    %v3077 = vunpack.c.h.b16 %v314
    %v3078 = vunpack.c.l.b16 %v315
    %v3079 = vunpack.c.h.b16 %v315
    %v3080 = vunpack.c.l.b16 %v316
    %v3081 = vunpack.c.h.b16 %v316
    %v3082 = vunpack.c.l.b16 %v317
    %v3083 = vunpack.c.h.b16 %v317
    %v3084 = vunpack.c.l.b16 %v318
    %v3085 = vunpack.c.h.b16 %v318
    %v3086 = vunpack.c.l.b16 %v319
    %v3087 = vunpack.c.h.b16 %v319
    %v3088 = vunpack.c.l.b16 %v320
    %v3089 = vunpack.c.h.b16 %v320
    %v3090 = vunpack.c.l.b16 %v321
    %v3091 = vunpack.c.h.b16 %v321
    %v3092 = vunpack.c.l.b16 %v322
    %v3093 = vunpack.c.h.b16 %v322
    %v3094 = vunpack.c.l.b16 %v323
    %v3095 = vunpack.c.h.b16 %v323
    %v3096 = vunpack.c.l.b16 %v324
    %v3097 = vunpack.c.h.b16 %v324
    %v3098 = vunpack.c.l.b16 %v325
    %v3099 = vunpack.c.h.b16 %v325
    %v3100 = vunpack.c.l.b16 %v326
    %v3101 = vunpack.c.h.b16 %v326
    %v3102 = vunpack.c.l.b16 %v327
    %v3103 = vunpack.c.h.b16 %v327
    %v3104 = vunpack.c.l.b16 %v328
    %v3105 = vunpack.c.h.b16 %v328
    %v3106 = vunpack.c.l.b16 %v329
    %v3107 = vunpack.c.h.b16 %v329
    %v3108 = vunpack.c.l.b16 %v330
    %v3109 = vunpack.c.h.b16 %v330
    %v3110 = vunpack.c.l.b16 %v331
    %v3111 = vunpack.c.h.b16 %v331
    %v3112 = vunpack.c.l.b16 %v332
    %v3113 = vunpack.c.h.b16 %v332
    %v3114 = vunpack.c.l.b16 %v333
    %v3115 = vunpack.c.h.b16 %v333
    %v3116 = vunpack.c.l.b16 %v334
    %v3117 = vunpack.c.h.b16 %v334
    %v3118 = vunpack.c.l.b16 %v335
    %v3119 = vunpack.c.h.b16 %v335
    %v3120 = vunpack.c.l.b16 %v336
    %v3121 = vunpack.c.h.b16 %v336
    %v3122 = vunpack.c.l.b16 %v337
    %v3123 = vunpack.c.h.b16 %v337
    %v3124 = vunpack.c.l.b16 %v338
    %v3125 = vunpack.c.h.b16 %v338
    %v3126 = vunpack.c.l.b16 %v339
    %v3127 = vunpack.c.h.b16 %v339
    %v3128 = vunpack.c.l.b16 %v340
    %v3129 = vunpack.c.h.b16 %v340
    %v3130 = vunpack.c.l.b16 %v341
    %v3131 = vunpack.c.h.b16 %v341
    %v3132 = vunpack.c.l.b16 %v342
    %v3133 = vunpack.c.h.b16 %v342
    %v3134 = vunpack.c.l.b16 %v343
    %v3135 = vunpack.c.h.b16 %v343
    %v3136 = vunpack.c.l.b16 %v344
    %v3137 = vunpack.c.h.b16 %v344
    %v3138 = vunpack.c.l.b16 %v345
    %v3139 = vunpack.c.h.b16 %v345
    %v3140 = vunpack.c.l.b16 %v346
    %v3141 = vunpack.c.h.b16 %v346
    %v3142 = vunpack.c.l.b16 %v347
    %v3143 = vunpack.c.h.b16 %v347
    %v3144 = vunpack.c.l.b16 %v348
    %v3145 = vunpack.c.h.b16 %v348
    %v3146 = vunpack.c.l.b16 %v349
    %v3147 = vunpack.c.h.b16 %v349
    %v3148 = vunpack.c.l.b16 %v350
    %v3149 = vunpack.c.h.b16 %v350
    %v3150 = vunpack.c.l.b16 %v351
    %v3151 = vunpack.c.h.b16 %v351
    %v3152 = vunpack.c.l.b16 %v352
    %v3153 = vunpack.c.h.b16 %v352
    %v3154 = vunpack.c.l.b16 %v353
    %v3155 = vunpack.c.h.b16 %v353
    %v3156 = vunpack.c.l.b16 %v354
    %v3157 = vunpack.c.h.b16 %v354
    %v3158 = vunpack.c.l.b16 %v355
    %v3159 = vunpack.c.h.b16 %v355
    %v3160 = vunpack.c.l.b16 %v356
    %v3161 = vunpack.c.h.b16 %v356
    %v3162 = vunpack.c.l.b16 %v357
    %v3163 = vunpack.c.h.b16 %v357
    %v3164 = vunpack.c.l.b16 %v358
    %v3165 = vunpack.c.h.b16 %v358
    %v3166 = vunpack.c.l.b16 %v359
    %v3167 = vunpack.c.h.b16 %v359
    %v3168 = vunpack.c.l.b16 %v360
    %v3169 = vunpack.c.h.b16 %v360
    %v3170 = vunpack.c.l.b16 %v361
    %v3171 = vunpack.c.h.b16 %v361
    %v3172 = vunpack.c.l.b16 %v362
    %v3173 = vunpack.c.h.b16 %v362
    %v3174 = vunpack.c.l.b16 %v363
    %v3175 = vunpack.c.h.b16 %v363
    %v3176 = vunpack.c.l.b16 %v364
    %v3177 = vunpack.c.h.b16 %v364
    %v3178 = vunpack.c.l.b16 %v365
    %v3179 = vunpack.c.h.b16 %v365
    %v3180 = vunpack.c.l.b16 %v366
    %v3181 = vunpack.c.h.b16 %v366
    %v3182 = vunpack.c.l.b16 %v367
    %v3183 = vunpack.c.h.b16 %v367
    %v3184 = vunpack.c.l.b16 %v368
    %v3185 = vunpack.c.h.b16 %v368
    %v3186 = vunpack.c.l.b16 %v369
    %v3187 = vunpack.c.h.b16 %v369
    %v3188 = vunpack.c.l.b16 %v370
    %v3189 = vunpack.c.h.b16 %v370
    %v3190 = vunpack.c.l.b16 %v371
    %v3191 = vunpack.c.h.b16 %v371
    %v3192 = vunpack.c.l.b16 %v372
    %v3193 = vunpack.c.h.b16 %v372
    %v3194 = vunpack.c.l.b16 %v373
    %v3195 = vunpack.c.h.b16 %v373
    %v3196 = vunpack.c.l.b16 %v374
    %v3197 = vunpack.c.h.b16 %v374
    %v3198 = vunpack.c.l.b16 %v375
    %v3199 = vunpack.c.h.b16 %v375
    %v3200 = vunpack.c.l.b16 %v376
    %v3201 = vunpack.c.h.b16 %v376
    %v3202 = vunpack.c.l.b16 %v377
    %v3203 = vunpack.c.h.b16 %v377
    %v3204 = vunpack.c.l.b16 %v378
    %v3205 = vunpack.c.h.b16 %v378
    %v3206 = vunpack.c.l.b16 %v379
    %v3207 = vunpack.c.h.b16 %v379
    %v3208 = vunpack.c.l.b16 %v380
    %v3209 = vunpack.c.h.b16 %v380
    %v3210 = vunpack.c.l.b16 %v381
    %v3211 = vunpack.c.h.b16 %v381
    %v3212 = vunpack.c.l.b16 %v382
    %v3213 = vunpack.c.h.b16 %v382
    %v3214 = vunpack.c.l.b16 %v383
    %v3215 = vunpack.c.h.b16 %v383
    %v3216 = vunpack.c.l.b16 %v384
    %v3217 = vunpack.c.h.b16 %v384
    %v3218 = vunpack.c.l.b16 %v385
    %v3219 = vunpack.c.h.b16 %v385
    %v3220 = vunpack.c.l.b16 %v386
    %v3221 = vunpack.c.h.b16 %v386
    %v3222 = vunpack.c.l.b16 %v387
    %v3223 = vunpack.c.h.b16 %v387
    %v3224 = vunpack.c.l.b16 %v388
    %v3225 = vunpack.c.h.b16 %v388
    %v3226 = vunpack.c.l.b16 %v389
    %v3227 = vunpack.c.h.b16 %v389
    %v3228 = vunpack.c.l.b16 %v390
    %v3229 = vunpack.c.h.b16 %v390
    %v3230 = vunpack.c.l.b16 %v391
    %v3231 = vunpack.c.h.b16 %v391
    %v3232 = vunpack.c.l.b16 %v392
    %v3233 = vunpack.c.h.b16 %v392
    %v3234 = vunpack.c.l.b16 %v393
    %v3235 = vunpack.c.h.b16 %v393
    %v3236 = vunpack.c.l.b16 %v394
    %v3237 = vunpack.c.h.b16 %v394
    %v3238 = vunpack.c.l.b16 %v395
    %v3239 = vunpack.c.h.b16 %v395
    %v3240 = vunpack.c.l.b16 %v396
    %v3241 = vunpack.c.h.b16 %v396
    %v3242 = vunpack.c.l.b16 %v397
    %v3243 = vunpack.c.h.b16 %v397
    %v3244 = vunpack.c.l.b16 %v398
    %v3245 = vunpack.c.h.b16 %v398
    %v3246 = vunpack.c.l.b16 %v399
    %v3247 = vunpack.c.h.b16 %v399
    %v3248 = vunpack.c.l.b16 %v400
    %v3249 = vunpack.c.h.b16 %v400
    %v3250 = vunpack.c.l.b16 %v401
    %v3251 = vunpack.c.h.b16 %v401
    %v3252 = vunpack.c.l.b16 %v402
    %v3253 = vunpack.c.h.b16 %v402
    %v3254 = vunpack.c.l.b16 %v403
    %v3255 = vunpack.c.h.b16 %v403
    %v3256 = vunpack.c.l.b16 %v404
    %v3257 = vunpack.c.h.b16 %v404
    %v3258 = vunpack.c.l.b16 %v405
    %v3259 = vunpack.c.h.b16 %v405
    %v3260 = vunpack.c.l.b16 %v406
    %v3261 = vunpack.c.h.b16 %v406
    %v3262 = vunpack.c.l.b16 %v407
    %v3263 = vunpack.c.h.b16 %v407
    %v3264 = vunpack.c.l.b16 %v408
    %v3265 = vunpack.c.h.b16 %v408
    %v3266 = vunpack.c.l.b16 %v409
    %v3267 = vunpack.c.h.b16 %v409
    %v3268 = vunpack.c.l.b16 %v410
    %v3269 = vunpack.c.h.b16 %v410
    %v3270 = vunpack.c.l.b16 %v411
    %v3271 = vunpack.c.h.b16 %v411
    %v3272 = vunpack.c.l.b16 %v412
    %v3273 = vunpack.c.h.b16 %v412
    %v3274 = vunpack.c.l.b16 %v413
    %v3275 = vunpack.c.h.b16 %v413
    %v3276 = vunpack.c.l.b16 %v414
    %v3277 = vunpack.c.h.b16 %v414
    %v3278 = vunpack.c.l.b16 %v415
    %v3279 = vunpack.c.h.b16 %v415
    %v3280 = vunpack.c.l.b16 %v416
    %v3281 = vunpack.c.h.b16 %v416
    %v3282 = vunpack.c.l.b16 %v417
    %v3283 = vunpack.c.h.b16 %v417
    %v3284 = vunpack.c.l.b16 %v418
    %v3285 = vunpack.c.h.b16 %v418
    %v3286 = vunpack.c.l.b16 %v419
    %v3287 = vunpack.c.h.b16 %v419
    %v3288 = vunpack.c.l.b16 %v420
    %v3289 = vunpack.c.h.b16 %v420
    %v3290 = vunpack.c.l.b16 %v421
    %v3291 = vunpack.c.h.b16 %v421
    %v3292 = vunpack.c.l.b16 %v422
    %v3293 = vunpack.c.h.b16 %v422
    %v3294 = vunpack.c.l.b16 %v423
    %v3295 = vunpack.c.h.b16 %v423
    %v3296 = vunpack.c.l.b16 %v424
    %v3297 = vunpack.c.h.b16 %v424
    %v3298 = vunpack.c.l.b16 %v425
    %v3299 = vunpack.c.h.b16 %v425
    %v3300 = vunpack.c.l.b16 %v426
    %v3301 = vunpack.c.h.b16 %v426
    %v3302 = vunpack.c.l.b16 %v427
    %v3303 = vunpack.c.h.b16 %v427
    %v3304 = vunpack.c.l.b16 %v428
    %v3305 = vunpack.c.h.b16 %v428
    %v3306 = vunpack.c.l.b16 %v429
    %v3307 = vunpack.c.h.b16 %v429
    %v3308 = vunpack.c.l.b16 %v430
    %v3309 = vunpack.c.h.b16 %v430
    %v3310 = vunpack.c.l.b16 %v431
    %v3311 = vunpack.c.h.b16 %v431
    %v3312 = vunpack.c.l.b16 %v432
    %v3313 = vunpack.c.h.b16 %v432
    %v3314 = vunpack.c.l.b16 %v433
    %v3315 = vunpack.c.h.b16 %v433
    %v3316 = vunpack.c.l.b16 %v434
    %v3317 = vunpack.c.h.b16 %v434
    %v3318 = vunpack.c.l.b16 %v435
    %v3319 = vunpack.c.h.b16 %v435
    %v3320 = vunpack.c.l.b16 %v436
    %v3321 = vunpack.c.h.b16 %v436
    %v3322 = vunpack.c.l.b16 %v437
    %v3323 = vunpack.c.h.b16 %v437
    %v3324 = vunpack.c.l.b16 %v438
    %v3325 = vunpack.c.h.b16 %v438
    %v3326 = vunpack.c.l.b16 %v439
    %v3327 = vunpack.c.h.b16 %v439
    %v3328 = vunpack.c.l.b16 %v440
    %v3329 = vunpack.c.h.b16 %v440
    %v3330 = vunpack.c.l.b16 %v441
    %v3331 = vunpack.c.h.b16 %v441
    %v3332 = vunpack.c.l.b16 %v442
    %v3333 = vunpack.c.h.b16 %v442
    %v3334 = vunpack.c.l.b16 %v443
    %v3335 = vunpack.c.h.b16 %v443
    %v3336 = vunpack.c.l.b16 %v444
    %v3337 = vunpack.c.h.b16 %v444
    %v3338 = vunpack.c.l.b16 %v445
    %v3339 = vunpack.c.h.b16 %v445
    %v3340 = vunpack.c.l.b16 %v446
    %v3341 = vunpack.c.h.b16 %v446
    %v3342 = vunpack.c.l.b16 %v447
    %v3343 = vunpack.c.h.b16 %v447
    %v3344 = vunpack.c.l.b16 %v448
    %v3345 = vunpack.c.h.b16 %v448
    %v3346 = vunpack.c.l.b16 %v449
    %v3347 = vunpack.c.h.b16 %v449
    %v3348 = vunpack.c.l.b16 %v450
    %v3349 = vunpack.c.h.b16 %v450
    %v3350 = vunpack.c.l.b16 %v451
    %v3351 = vunpack.c.h.b16 %v451
    %v3352 = vunpack.c.l.b16 %v452
    %v3353 = vunpack.c.h.b16 %v452
    %v3354 = vunpack.c.l.b16 %v453
    %v3355 = vunpack.c.h.b16 %v453
    %v3356 = vunpack.c.l.b16 %v454
    %v3357 = vunpack.c.h.b16 %v454
    %v3358 = vunpack.c.l.b16 %v455
    %v3359 = vunpack.c.h.b16 %v455
    %v3360 = vunpack.c.l.b16 %v456
    %v3361 = vunpack.c.h.b16 %v456
    %v3362 = vunpack.c.l.b16 %v457
    %v3363 = vunpack.c.h.b16 %v457
    %v3364 = vunpack.c.l.b16 %v458
    %v3365 = vunpack.c.h.b16 %v458
    %v3366 = vunpack.c.l.b16 %v459
    %v3367 = vunpack.c.h.b16 %v459
    %v3368 = vunpack.c.l.b16 %v460
    %v3369 = vunpack.c.h.b16 %v460
    %v3370 = vunpack.c.l.b16 %v461
    %v3371 = vunpack.c.h.b16 %v461
    %v3372 = vunpack.c.l.b16 %v462
    %v3373 = vunpack.c.h.b16 %v462
    %v3374 = vunpack.c.l.b16 %v463
    %v3375 = vunpack.c.h.b16 %v463
    %v3376 = vunpack.c.l.b16 %v464
    %v3377 = vunpack.c.h.b16 %v464
    %v3378 = vunpack.c.l.b16 %v465
    %v3379 = vunpack.c.h.b16 %v465
    %v3380 = vunpack.c.l.b16 %v466
    %v3381 = vunpack.c.h.b16 %v466
    %v3382 = vunpack.c.l.b16 %v467
    %v3383 = vunpack.c.h.b16 %v467
    %v3384 = vunpack.c.l.b16 %v468
    %v3385 = vunpack.c.h.b16 %v468
    %v3386 = vunpack.c.l.b16 %v469
    %v3387 = vunpack.c.h.b16 %v469
    %v3388 = vunpack.c.l.b16 %v470
    %v3389 = vunpack.c.h.b16 %v470
    %v3390 = vunpack.c.l.b16 %v471
    %v3391 = vunpack.c.h.b16 %v471
    %v3392 = vunpack.c.l.b16 %v472
    %v3393 = vunpack.c.h.b16 %v472
    %v3394 = vunpack.c.l.b16 %v473
    %v3395 = vunpack.c.h.b16 %v473
    %v3396 = vunpack.c.l.b16 %v474
    %v3397 = vunpack.c.h.b16 %v474
    %v3398 = vunpack.c.l.b16 %v475
    %v3399 = vunpack.c.h.b16 %v475
    %v3400 = vunpack.c.l.b16 %v476
    %v3401 = vunpack.c.h.b16 %v476
    %v3402 = vunpack.c.l.b16 %v477
    %v3403 = vunpack.c.h.b16 %v477
    %v3404 = vunpack.c.l.b16 %v478
    %v3405 = vunpack.c.h.b16 %v478
    %v3406 = vunpack.c.l.b16 %v479
    %v3407 = vunpack.c.h.b16 %v479
    %v3408 = vunpack.c.l.b16 %v480
    %v3409 = vunpack.c.h.b16 %v480
    %v3410 = vunpack.c.l.b16 %v481
    %v3411 = vunpack.c.h.b16 %v481
    %v3412 = vunpack.c.l.b16 %v482
    %v3413 = vunpack.c.h.b16 %v482
    %v3414 = vunpack.c.l.b16 %v483
    %v3415 = vunpack.c.h.b16 %v483
    %v3416 = vunpack.c.l.b16 %v484
    %v3417 = vunpack.c.h.b16 %v484
    %v3418 = vunpack.c.l.b16 %v485
    %v3419 = vunpack.c.h.b16 %v485
    %v3420 = vunpack.c.l.b16 %v486
    %v3421 = vunpack.c.h.b16 %v486
    %v3422 = vunpack.c.l.b16 %v487
    %v3423 = vunpack.c.h.b16 %v487
    %v3424 = vunpack.c.l.b16 %v488
    %v3425 = vunpack.c.h.b16 %v488
    %v3426 = vunpack.c.l.b16 %v489
    %v3427 = vunpack.c.h.b16 %v489
    %v3428 = vunpack.c.l.b16 %v490
    %v3429 = vunpack.c.h.b16 %v490
    %v3430 = vunpack.c.l.b16 %v491
    %v3431 = vunpack.c.h.b16 %v491
    %v3432 = vunpack.c.l.b16 %v492
    %v3433 = vunpack.c.h.b16 %v492
    %v3434 = vunpack.c.l.b16 %v493
    %v3435 = vunpack.c.h.b16 %v493
    %v3436 = vunpack.c.l.b16 %v494
    %v3437 = vunpack.c.h.b16 %v494
    %v3438 = vunpack.c.l.b16 %v495
    %v3439 = vunpack.c.h.b16 %v495
    %v3440 = vunpack.c.l.b16 %v496
    %v3441 = vunpack.c.h.b16 %v496
    %v3442 = vunpack.c.l.b16 %v497
    %v3443 = vunpack.c.h.b16 %v497
    %v3444 = vunpack.c.l.b16 %v498
    %v3445 = vunpack.c.h.b16 %v498
    %v3446 = vunpack.c.l.b16 %v499
    %v3447 = vunpack.c.h.b16 %v499
    %v3448 = vunpack.c.l.b16 %v500
    %v3449 = vunpack.c.h.b16 %v500
    %v3450 = vunpack.c.l.b16 %v501
    %v3451 = vunpack.c.h.b16 %v501
    %v3452 = vunpack.c.l.b16 %v502
    %v3453 = vunpack.c.h.b16 %v502
    %v3454 = vunpack.c.l.b16 %v503
    %v3455 = vunpack.c.h.b16 %v503
    %v3456 = vunpack.c.l.b16 %v504
    %v3457 = vunpack.c.h.b16 %v504
    %v3458 = vunpack.c.l.b16 %v505
    %v3459 = vunpack.c.h.b16 %v505
    %v3460 = vunpack.c.l.b16 %v506
    %v3461 = vunpack.c.h.b16 %v506
    %v3462 = vunpack.c.l.b16 %v507
    %v3463 = vunpack.c.h.b16 %v507
    %v3464 = vunpack.c.l.b16 %v508
    %v3465 = vunpack.c.h.b16 %v508
    %v3466 = vunpack.c.l.b16 %v509
    %v3467 = vunpack.c.h.b16 %v509
    %v3468 = vunpack.c.l.b16 %v510
    %v3469 = vunpack.c.h.b16 %v510
    %v3470 = vunpack.c.l.b16 %v511
    %v3471 = vunpack.c.h.b16 %v511
    %v3472 = vunpack.c.l.b16 %v512
    %v3473 = vunpack.c.h.b16 %v512
    %v3474 = vunpack.c.l.b16 %v513
    %v3475 = vunpack.c.h.b16 %v513
    %v3476 = vunpack.c.l.b16 %v514
    %v3477 = vunpack.c.h.b16 %v514
    %v3478 = vunpack.c.l.b16 %v515
    %v3479 = vunpack.c.h.b16 %v515
    %v3480 = vunpack.c.l.b16 %v516
    %v3481 = vunpack.c.h.b16 %v516
    %v3482 = vunpack.c.l.b16 %v517
    %v3483 = vunpack.c.h.b16 %v517
    %v3484 = vunpack.c.l.b16 %v518
    %v3485 = vunpack.c.h.b16 %v518
    %v3486 = vunpack.c.l.b16 %v519
    %v3487 = vunpack.c.h.b16 %v519
    %v3488 = vunpack.c.l.b16 %v520
    %v3489 = vunpack.c.h.b16 %v520
    %v3490 = vunpack.c.l.b16 %v521
    %v3491 = vunpack.c.h.b16 %v521
    %v3492 = vunpack.c.l.b16 %v522
    %v3493 = vunpack.c.h.b16 %v522
    %v3494 = vunpack.c.l.b16 %v523
    %v3495 = vunpack.c.h.b16 %v523
    %v3496 = vunpack.c.l.b16 %v524
    %v3497 = vunpack.c.h.b16 %v524
    %v3498 = vunpack.c.l.b16 %v525
    %v3499 = vunpack.c.h.b16 %v525
    %v3500 = vunpack.c.l.b16 %v526
    %v3501 = vunpack.c.h.b16 %v526
    %v3502 = vunpack.c.l.b16 %v527
    %v3503 = vunpack.c.h.b16 %v527
    %v3504 = vunpack.c.l.b16 %v528
    %v3505 = vunpack.c.h.b16 %v528
    %v3506 = vunpack.c.l.b16 %v529
    %v3507 = vunpack.c.h.b16 %v529
    %v3508 = vunpack.c.l.b16 %v530
    %v3509 = vunpack.c.h.b16 %v530
    %v3510 = vunpack.c.l.b16 %v531
    %v3511 = vunpack.c.h.b16 %v531
    %v3512 = vunpack.c.l.b16 %v532
    %v3513 = vunpack.c.h.b16 %v532
    %v3514 = vunpack.c.l.b16 %v533
    %v3515 = vunpack.c.h.b16 %v533
    %v3516 = vunpack.c.l.b16 %v534
    %v3517 = vunpack.c.h.b16 %v534
    %v3518 = vunpack.c.l.b16 %v535
    %v3519 = vunpack.c.h.b16 %v535
    %v3520 = vunpack.c.l.b16 %v536
    %v3521 = vunpack.c.h.b16 %v536
    %v3522 = vunpack.c.l.b16 %v537
    %v3523 = vunpack.c.h.b16 %v537
    %v3524 = vunpack.c.l.b16 %v538
    %v3525 = vunpack.c.h.b16 %v538
    %v3526 = vunpack.c.l.b16 %v539
    %v3527 = vunpack.c.h.b16 %v539
    %v3528 = vunpack.c.l.b16 %v540
    %v3529 = vunpack.c.h.b16 %v540
    %v3530 = vunpack.c.l.b16 %v541
    %v3531 = vunpack.c.h.b16 %v541
    %v3532 = vunpack.c.l.b16 %v542
    %v3533 = vunpack.c.h.b16 %v542
    %v3534 = vunpack.c.l.b16 %v543
    %v3535 = vunpack.c.h.b16 %v543
    %v3536 = vunpack.c.l.b16 %v544
    %v3537 = vunpack.c.h.b16 %v544
    %v3538 = vunpack.c.l.b16 %v545
    %v3539 = vunpack.c.h.b16 %v545
    %v3540 = vunpack.c.l.b16 %v546
    %v3541 = vunpack.c.h.b16 %v546
    %v3542 = vunpack.c.l.b16 %v547
    %v3543 = vunpack.c.h.b16 %v547
    %v3544 = vunpack.c.l.b16 %v548
    %v3545 = vunpack.c.h.b16 %v548
    %v3546 = vunpack.c.l.b16 %v549
    %v3547 = vunpack.c.h.b16 %v549
    %v3548 = vunpack.c.l.b16 %v550
    %v3549 = vunpack.c.h.b16 %v550
    %v3550 = vunpack.c.l.b16 %v551
    %v3551 = vunpack.c.h.b16 %v551
    %v3552 = vunpack.c.l.b16 %v552
    %v3553 = vunpack.c.h.b16 %v552
    %v3554 = vunpack.c.l.b16 %v553
    %v3555 = vunpack.c.h.b16 %v553
    %v3556 = vunpack.c.l.b16 %v554
    %v3557 = vunpack.c.h.b16 %v554
    %v3558 = vunpack.c.l.b16 %v555
    %v3559 = vunpack.c.h.b16 %v555
    %v3560 = vunpack.c.l.b16 %v556
    %v3561 = vunpack.c.h.b16 %v556
    %v3562 = vunpack.c.l.b16 %v557
    %v3563 = vunpack.c.h.b16 %v557
    %v3564 = vunpack.c.l.b16 %v558
    %v3565 = vunpack.c.h.b16 %v558
    %v3566 = vunpack.c.l.b16 %v559
    %v3567 = vunpack.c.h.b16 %v559
    %v3568 = vunpack.c.l.b16 %v560
    %v3569 = vunpack.c.h.b16 %v560
    %v3570 = vunpack.c.l.b16 %v561
    %v3571 = vunpack.c.h.b16 %v561
    %v3572 = vunpack.c.l.b16 %v562
    %v3573 = vunpack.c.h.b16 %v562
    %v3574 = vunpack.c.l.b16 %v563
    %v3575 = vunpack.c.h.b16 %v563
    %v3576 = vunpack.c.l.b16 %v564
    %v3577 = vunpack.c.h.b16 %v564
    %v3578 = vunpack.c.l.b16 %v565
    %v3579 = vunpack.c.h.b16 %v565
    %v3580 = vunpack.c.l.b16 %v566
    %v3581 = vunpack.c.h.b16 %v566
    %v3582 = vunpack.c.l.b16 %v567
    %v3583 = vunpack.c.h.b16 %v567
    %v3584 = vunpack.c.l.b16 %v568
    %v3585 = vunpack.c.h.b16 %v568
    %v3586 = vunpack.c.l.b16 %v569
    %v3587 = vunpack.c.h.b16 %v569
    %v3588 = vunpack.c.l.b16 %v570
    %v3589 = vunpack.c.h.b16 %v570
    %v3590 = vunpack.c.l.b16 %v571
    %v3591 = vunpack.c.h.b16 %v571
    %v3592 = vunpack.c.l.b16 %v572
    %v3593 = vunpack.c.h.b16 %v572
    %v3594 = vunpack.c.l.b16 %v573
    %v3595 = vunpack.c.h.b16 %v573
    %v3596 = vunpack.c.l.b16 %v574
    %v3597 = vunpack.c.h.b16 %v574
    %v3598 = vunpack.c.l.b16 %v575
    %v3599 = vunpack.c.h.b16 %v575
    %v3600 = vunpack.c.l.b16 %v576
    %v3601 = vunpack.c.h.b16 %v576
    %v3602 = vunpack.c.l.b16 %v577
    %v3603 = vunpack.c.h.b16 %v577
    %v3604 = vunpack.c.l.b16 %v578
    %v3605 = vunpack.c.h.b16 %v578
    %v3606 = vunpack.c.l.b16 %v579
    %v3607 = vunpack.c.h.b16 %v579
    %v3608 = vunpack.c.l.b16 %v580
    %v3609 = vunpack.c.h.b16 %v580
    %v3610 = vunpack.c.l.b16 %v581
    %v3611 = vunpack.c.h.b16 %v581
    %v3612 = vunpack.c.l.b16 %v582
    %v3613 = vunpack.c.h.b16 %v582
    %v3614 = vunpack.c.l.b16 %v583
    %v3615 = vunpack.c.h.b16 %v583
    %v3616 = vunpack.c.l.b16 %v584
    %v3617 = vunpack.c.h.b16 %v584
    %v3618 = vunpack.c.l.b16 %v585
    %v3619 = vunpack.c.h.b16 %v585
    %v3620 = vunpack.c.l.b16 %v586
    %v3621 = vunpack.c.h.b16 %v586
    %v3622 = vunpack.c.l.b16 %v587
    %v3623 = vunpack.c.h.b16 %v587
    %v3624 = vunpack.c.l.b16 %v588
    %v3625 = vunpack.c.h.b16 %v588
    %v3626 = vunpack.c.l.b16 %v589
    %v3627 = vunpack.c.h.b16 %v589
    %v3628 = vunpack.c.l.b16 %v590
    %v3629 = vunpack.c.h.b16 %v590
    %v3630 = vunpack.c.l.b16 %v591
    %v3631 = vunpack.c.h.b16 %v591
    %v3632 = vunpack.c.l.b16 %v592
    %v3633 = vunpack.c.h.b16 %v592
    %v3634 = vunpack.c.l.b16 %v593
    %v3635 = vunpack.c.h.b16 %v593
    %v3636 = vunpack.c.l.b16 %v594
    %v3637 = vunpack.c.h.b16 %v594
    %v3638 = vunpack.c.l.b16 %v595
    %v3639 = vunpack.c.h.b16 %v595
    %v3640 = vunpack.c.l.b16 %v596
    %v3641 = vunpack.c.h.b16 %v596
    %v3642 = vunpack.c.l.b16 %v597
    %v3643 = vunpack.c.h.b16 %v597
    %v3644 = vunpack.c.l.b16 %v598
    %v3645 = vunpack.c.h.b16 %v598
    %v3646 = vunpack.c.l.b16 %v599
    %v3647 = vunpack.c.h.b16 %v599
    %v3648 = vunpack.c.l.b16 %v600
    %v3649 = vunpack.c.h.b16 %v600
    %v3650 = vunpack.c.l.b16 %v601
    %v3651 = vunpack.c.h.b16 %v601
    %v3652 = vunpack.c.l.b16 %v602
    %v3653 = vunpack.c.h.b16 %v602
    %v3654 = vunpack.c.l.b16 %v603
    %v3655 = vunpack.c.h.b16 %v603
    %v3656 = vunpack.c.l.b16 %v604
    %v3657 = vunpack.c.h.b16 %v604
    %v3658 = vunpack.c.l.b16 %v605
    %v3659 = vunpack.c.h.b16 %v605
    %v3660 = vunpack.c.l.b16 %v606
    %v3661 = vunpack.c.h.b16 %v606
    %v3662 = vunpack.c.l.b16 %v607
    %v3663 = vunpack.c.h.b16 %v607
    %v3664 = vunpack.c.l.b16 %v608
    %v3665 = vunpack.c.h.b16 %v608
    %v3666 = vunpack.c.l.b16 %v609
    %v3667 = vunpack.c.h.b16 %v609
    %v3668 = vunpack.c.l.b16 %v610
    %v3669 = vunpack.c.h.b16 %v610
    %v3670 = vunpack.c.l.b16 %v611
    %v3671 = vunpack.c.h.b16 %v611
    %v3672 = vunpack.c.l.b16 %v612
    %v3673 = vunpack.c.h.b16 %v612
    %v3674 = vunpack.c.l.b16 %v613
    %v3675 = vunpack.c.h.b16 %v613
    %v3676 = vunpack.c.l.b16 %v614
    %v3677 = vunpack.c.h.b16 %v614
    %v3678 = vunpack.c.l.b16 %v615
    %v3679 = vunpack.c.h.b16 %v615
    %v3680 = vunpack.c.l.b16 %v616
    %v3681 = vunpack.c.h.b16 %v616
    %v3682 = vunpack.c.l.b16 %v617
    %v3683 = vunpack.c.h.b16 %v617
    %v3684 = vunpack.c.l.b16 %v618
    %v3685 = vunpack.c.h.b16 %v618
    %v3686 = vunpack.c.l.b16 %v619
    %v3687 = vunpack.c.h.b16 %v619
    %v3688 = vunpack.c.l.b16 %v620
    %v3689 = vunpack.c.h.b16 %v620
    %v3690 = vunpack.c.l.b16 %v621
    %v3691 = vunpack.c.h.b16 %v621
    %v3692 = vunpack.c.l.b16 %v622
    %v3693 = vunpack.c.h.b16 %v622
    %v3694 = vunpack.c.l.b16 %v623
    %v3695 = vunpack.c.h.b16 %v623
    %v3696 = vunpack.c.l.b16 %v624
    %v3697 = vunpack.c.h.b16 %v624
    %v3698 = vunpack.c.l.b16 %v625
    %v3699 = vunpack.c.h.b16 %v625
    %v3700 = vunpack.c.l.b16 %v626
    %v3701 = vunpack.c.h.b16 %v626
    %v3702 = vunpack.c.l.b16 %v627
    %v3703 = vunpack.c.h.b16 %v627
    %v3704 = vunpack.c.l.b16 %v628
    %v3705 = vunpack.c.h.b16 %v628
    %v3706 = vunpack.c.l.b16 %v629
    %v3707 = vunpack.c.h.b16 %v629
    %v3708 = vunpack.c.l.b16 %v630
    %v3709 = vunpack.c.h.b16 %v630
    %v3710 = vunpack.c.l.b16 %v631
    %v3711 = vunpack.c.h.b16 %v631
    %v3712 = vunpack.c.l.b16 %v632
    %v3713 = vunpack.c.h.b16 %v632
    %v3714 = vunpack.c.l.b16 %v633
    %v3715 = vunpack.c.h.b16 %v633
    %v3716 = vunpack.c.l.b16 %v634
    %v3717 = vunpack.c.h.b16 %v634
    %v3718 = vunpack.c.l.b16 %v635
    %v3719 = vunpack.c.h.b16 %v635
    %v3720 = vunpack.c.l.b16 %v636
    %v3721 = vunpack.c.h.b16 %v636
    %v3722 = vunpack.c.l.b16 %v637
    %v3723 = vunpack.c.h.b16 %v637
    %v3724 = vunpack.c.l.b16 %v638
    %v3725 = vunpack.c.h.b16 %v638
    %v3726 = vunpack.c.l.b16 %v639
    %v3727 = vunpack.c.h.b16 %v639
    %v3728 = vunpack.c.l.b16 %v640
    %v3729 = vunpack.c.h.b16 %v640
    %v3730 = vunpack.c.l.b16 %v641
    %v3731 = vunpack.c.h.b16 %v641
    %v3732 = vunpack.c.l.b16 %v642
    %v3733 = vunpack.c.h.b16 %v642
    %v3734 = vunpack.c.l.b16 %v643
    %v3735 = vunpack.c.h.b16 %v643
    %v3736 = vunpack.c.l.b16 %v644
    %v3737 = vunpack.c.h.b16 %v644
    %v3738 = vunpack.c.l.b16 %v645
    %v3739 = vunpack.c.h.b16 %v645
    %v3740 = vunpack.c.l.b16 %v646
    %v3741 = vunpack.c.h.b16 %v646
    %v3742 = vunpack.c.l.b16 %v647
    %v3743 = vunpack.c.h.b16 %v647
    %v3744 = vunpack.c.l.b16 %v648
    %v3745 = vunpack.c.h.b16 %v648
    %v3746 = vunpack.c.l.b16 %v649
    %v3747 = vunpack.c.h.b16 %v649
    %v3748 = vunpack.c.l.b16 %v650
    %v3749 = vunpack.c.h.b16 %v650
    %v3750 = vunpack.c.l.b16 %v651
    %v3751 = vunpack.c.h.b16 %v651
    %v3752 = vunpack.c.l.b16 %v652
    %v3753 = vunpack.c.h.b16 %v652
    %v3754 = vunpack.c.l.b16 %v653
    %v3755 = vunpack.c.h.b16 %v653
    %v3756 = vunpack.c.l.b16 %v654
    %v3757 = vunpack.c.h.b16 %v654
    %v3758 = vunpack.c.l.b16 %v655
    %v3759 = vunpack.c.h.b16 %v655
    %v3760 = vunpack.c.l.b16 %v656
    %v3761 = vunpack.c.h.b16 %v656
    %v3762 = vunpack.c.l.b16 %v657
    %v3763 = vunpack.c.h.b16 %v657
    %v3764 = vunpack.c.l.b16 %v658
    %v3765 = vunpack.c.h.b16 %v658
    %v3766 = vunpack.c.l.b16 %v659
    %v3767 = vunpack.c.h.b16 %v659
    %v3768 = vunpack.c.l.b16 %v660
    %v3769 = vunpack.c.h.b16 %v660
    %v3770 = vunpack.c.l.b16 %v661
    %v3771 = vunpack.c.h.b16 %v661
    %v3772 = vunpack.c.l.b16 %v662
    %v3773 = vunpack.c.h.b16 %v662
    %v3774 = vunpack.c.l.b16 %v663
    %v3775 = vunpack.c.h.b16 %v663
    %v3776 = vunpack.c.l.b16 %v664
    %v3777 = vunpack.c.h.b16 %v664
    %v3778 = vunpack.c.l.b16 %v665
    %v3779 = vunpack.c.h.b16 %v665
    %v3780 = vunpack.c.l.b16 %v666
    %v3781 = vunpack.c.h.b16 %v666
    %v3782 = vunpack.c.l.b16 %v667
    %v3783 = vunpack.c.h.b16 %v667
    %v3784 = vunpack.c.l.b16 %v668
    %v3785 = vunpack.c.h.b16 %v668
    %v3786 = vunpack.c.l.b16 %v669
    %v3787 = vunpack.c.h.b16 %v669
    %v3788 = vunpack.c.l.b16 %v670
    %v3789 = vunpack.c.h.b16 %v670
    %v3790 = vunpack.c.l.b16 %v671
    %v3791 = vunpack.c.h.b16 %v671
    %v3792 = vunpack.c.l.b16 %v672
    %v3793 = vunpack.c.h.b16 %v672
    %v3794 = vunpack.c.l.b16 %v673
    %v3795 = vunpack.c.h.b16 %v673
    %v3796 = vunpack.c.l.b16 %v674
    %v3797 = vunpack.c.h.b16 %v674
    %v3798 = vunpack.c.l.b16 %v675
    %v3799 = vunpack.c.h.b16 %v675
    %v3800 = vunpack.c.l.b16 %v676
    %v3801 = vunpack.c.h.b16 %v676
    %v3802 = vunpack.c.l.b16 %v677
    %v3803 = vunpack.c.h.b16 %v677
    %v3804 = vunpack.c.l.b16 %v678
    %v3805 = vunpack.c.h.b16 %v678
    %v3806 = vunpack.c.l.b16 %v679
    %v3807 = vunpack.c.h.b16 %v679
    %v3808 = vunpack.c.l.b16 %v680
    %v3809 = vunpack.c.h.b16 %v680
    %v3810 = vunpack.c.l.b16 %v681
    %v3811 = vunpack.c.h.b16 %v681
    %v3812 = vunpack.c.l.b16 %v682
    %v3813 = vunpack.c.h.b16 %v682
    %v3814 = vunpack.c.l.b16 %v683
    %v3815 = vunpack.c.h.b16 %v683
    %v3816 = vunpack.c.l.b16 %v684
    %v3817 = vunpack.c.h.b16 %v684
    %v3818 = vunpack.c.l.b16 %v685
    %v3819 = vunpack.c.h.b16 %v685
    %v3820 = vunpack.c.l.b16 %v686
    %v3821 = vunpack.c.h.b16 %v686
    %v3822 = vunpack.c.l.b16 %v687
    %v3823 = vunpack.c.h.b16 %v687
    %v3824 = vunpack.c.l.b16 %v688
    %v3825 = vunpack.c.h.b16 %v688
    %v3826 = vunpack.c.l.b16 %v689
    %v3827 = vunpack.c.h.b16 %v689
    %v3828 = vunpack.c.l.b16 %v690
    %v3829 = vunpack.c.h.b16 %v690
    %v3830 = vunpack.c.l.b16 %v691
    %v3831 = vunpack.c.h.b16 %v691
    %v3832 = vunpack.c.l.b16 %v692
    %v3833 = vunpack.c.h.b16 %v692
    %v3834 = vunpack.c.l.b16 %v693
    %v3835 = vunpack.c.h.b16 %v693
    %v3836 = vunpack.c.l.b16 %v694
    %v3837 = vunpack.c.h.b16 %v694
    %v3838 = vunpack.c.l.b16 %v695
    %v3839 = vunpack.c.h.b16 %v695
    %v3840 = vunpack.c.l.b16 %v696
    %v3841 = vunpack.c.h.b16 %v696
    %v3842 = vunpack.c.l.b16 %v697
    %v3843 = vunpack.c.h.b16 %v697
    %v3844 = vunpack.c.l.b16 %v698
    %v3845 = vunpack.c.h.b16 %v698
    %v3846 = vunpack.c.l.b16 %v699
    %v3847 = vunpack.c.h.b16 %v699
    %v3848 = vunpack.c.l.b16 %v700
    %v3849 = vunpack.c.h.b16 %v700
    %v3850 = vunpack.c.l.b16 %v701
    %v3851 = vunpack.c.h.b16 %v701
    %v3852 = vunpack.c.l.b16 %v702
    %v3853 = vunpack.c.h.b16 %v702
    %v3854 = vunpack.c.l.b16 %v703
    %v3855 = vunpack.c.h.b16 %v703
    %v3856 = vunpack.c.l.b16 %v704
    %v3857 = vunpack.c.h.b16 %v704
    %v3858 = vunpack.c.l.b16 %v705
    %v3859 = vunpack.c.h.b16 %v705
    %v3860 = vunpack.c.l.b16 %v706
    %v3861 = vunpack.c.h.b16 %v706
    %v3862 = vunpack.c.l.b16 %v707
    %v3863 = vunpack.c.h.b16 %v707
    %v3864 = vunpack.c.l.b16 %v708
    %v3865 = vunpack.c.h.b16 %v708
    %v3866 = vunpack.c.l.b16 %v709
    %v3867 = vunpack.c.h.b16 %v709
    %v3868 = vunpack.c.l.b16 %v710
    %v3869 = vunpack.c.h.b16 %v710
    %v3870 = vunpack.c.l.b16 %v711
    %v3871 = vunpack.c.h.b16 %v711
    %v3872 = vunpack.c.l.b16 %v712
    %v3873 = vunpack.c.h.b16 %v712
    %v3874 = vunpack.c.l.b16 %v713
    %v3875 = vunpack.c.h.b16 %v713
    %v3876 = vunpack.c.l.b16 %v714
    %v3877 = vunpack.c.h.b16 %v714
    %v3878 = vunpack.c.l.b16 %v715
    %v3879 = vunpack.c.h.b16 %v715
    %v3880 = vunpack.c.l.b16 %v716
    %v3881 = vunpack.c.h.b16 %v716
    %v3882 = vunpack.c.l.b16 %v717
    %v3883 = vunpack.c.h.b16 %v717
    %v3884 = vunpack.c.l.b16 %v718
    %v3885 = vunpack.c.h.b16 %v718
    %v3886 = vunpack.c.l.b16 %v719
    %v3887 = vunpack.c.h.b16 %v719
    %v3888 = vunpack.c.l.b16 %v720
    %v3889 = vunpack.c.h.b16 %v720
    %v3890 = vunpack.c.l.b16 %v721
    %v3891 = vunpack.c.h.b16 %v721
    %v3892 = vunpack.c.l.b16 %v722
    %v3893 = vunpack.c.h.b16 %v722
    %v3894 = vunpack.c.l.b16 %v723
    %v3895 = vunpack.c.h.b16 %v723
    %v3896 = vunpack.c.l.b16 %v724
    %v3897 = vunpack.c.h.b16 %v724
    %v3898 = vunpack.c.l.b16 %v725
    %v3899 = vunpack.c.h.b16 %v725
    %v3900 = vunpack.c.l.b16 %v726
    %v3901 = vunpack.c.h.b16 %v726
    %v3902 = vunpack.c.l.b16 %v727
    %v3903 = vunpack.c.h.b16 %v727
    %v3904 = vunpack.c.l.b16 %v728
    %v3905 = vunpack.c.h.b16 %v728
    %v3906 = vunpack.c.l.b16 %v729
    %v3907 = vunpack.c.h.b16 %v729
    %v3908 = vunpack.c.l.b16 %v730
    %v3909 = vunpack.c.h.b16 %v730
    %v3910 = vunpack.c.l.b16 %v731
    %v3911 = vunpack.c.h.b16 %v731
    %v3912 = vunpack.c.l.b16 %v732
    %v3913 = vunpack.c.h.b16 %v732
    %v3914 = vunpack.c.l.b16 %v733
    %v3915 = vunpack.c.h.b16 %v733
    %v3916 = vunpack.c.l.b16 %v734
    %v3917 = vunpack.c.h.b16 %v734
    %v3918 = vunpack.c.l.b16 %v735
    %v3919 = vunpack.c.h.b16 %v735
    %v3920 = vunpack.c.l.b16 %v736
    %v3921 = vunpack.c.h.b16 %v736
    %v3922 = vunpack.c.l.b16 %v737
    %v3923 = vunpack.c.h.b16 %v737
    %v3924 = vunpack.c.l.b16 %v738
    %v3925 = vunpack.c.h.b16 %v738
    %v3926 = vunpack.c.l.b16 %v739
    %v3927 = vunpack.c.h.b16 %v739
    %v3928 = vunpack.c.l.b16 %v740
    %v3929 = vunpack.c.h.b16 %v740
    %v3930 = vunpack.c.l.b16 %v741
    %v3931 = vunpack.c.h.b16 %v741
    %v3932 = vunpack.c.l.b16 %v742
    %v3933 = vunpack.c.h.b16 %v742
    %v3934 = vunpack.c.l.b16 %v743
    %v3935 = vunpack.c.h.b16 %v743
    %v3936 = vunpack.c.l.b16 %v744
    %v3937 = vunpack.c.h.b16 %v744
    %v3938 = vunpack.c.l.b16 %v745
    %v3939 = vunpack.c.h.b16 %v745
    %v3940 = vunpack.c.l.b16 %v746
    %v3941 = vunpack.c.h.b16 %v746
    %v3942 = vunpack.c.l.b16 %v747
    %v3943 = vunpack.c.h.b16 %v747
    %v3944 = vunpack.c.l.b16 %v748
    %v3945 = vunpack.c.h.b16 %v748
    %v3946 = vunpack.c.l.b16 %v749
    %v3947 = vunpack.c.h.b16 %v749
    %v3948 = vunpack.c.l.b16 %v750
    %v3949 = vunpack.c.h.b16 %v750
    %v3950 = vunpack.c.l.b16 %v751
    %v3951 = vunpack.c.h.b16 %v751
    %v3952 = vunpack.c.l.b16 %v752
    %v3953 = vunpack.c.h.b16 %v752
    %v3954 = vunpack.c.l.b16 %v753
    %v3955 = vunpack.c.h.b16 %v753
    %v3956 = vunpack.c.l.b16 %v754
    %v3957 = vunpack.c.h.b16 %v754
    %v3958 = vunpack.c.l.b16 %v755
    %v3959 = vunpack.c.h.b16 %v755
    %v3960 = vunpack.c.l.b16 %v756
    %v3961 = vunpack.c.h.b16 %v756
    %v3962 = vunpack.c.l.b16 %v757
    %v3963 = vunpack.c.h.b16 %v757
    %v3964 = vunpack.c.l.b16 %v758
    %v3965 = vunpack.c.h.b16 %v758
    %v3966 = vunpack.c.l.b16 %v759
    %v3967 = vunpack.c.h.b16 %v759
    %v3968 = vunpack.c.l.b16 %v760
    %v3969 = vunpack.c.h.b16 %v760
    %v3970 = vunpack.c.l.b16 %v761
    %v3971 = vunpack.c.h.b16 %v761
    %v3972 = vunpack.c.l.b16 %v762
    %v3973 = vunpack.c.h.b16 %v762
    %v3974 = vunpack.c.l.b16 %v763
    %v3975 = vunpack.c.h.b16 %v763
    %v3976 = vunpack.c.l.b16 %v764
    %v3977 = vunpack.c.h.b16 %v764
    %v3978 = vunpack.c.l.b16 %v765
    %v3979 = vunpack.c.h.b16 %v765
    %v3980 = vunpack.c.l.b16 %v766
    %v3981 = vunpack.c.h.b16 %v766
    %v3982 = vunpack.c.l.b16 %v767
    %v3983 = vunpack.c.h.b16 %v767
    %v3984 = vunpack.c.l.b16 %v768
    %v3985 = vunpack.c.h.b16 %v768
    %v3986 = vunpack.c.l.b16 %v769
    %v3987 = vunpack.c.h.b16 %v769
    %v3988 = vunpack.c.l.b16 %v770
    %v3989 = vunpack.c.h.b16 %v770
    %v3990 = vunpack.c.l.b16 %v771
    %v3991 = vunpack.c.h.b16 %v771
    %v3992 = vunpack.c.l.b16 %v772
    %v3993 = vunpack.c.h.b16 %v772
    %v3994 = vunpack.c.l.b16 %v773
    %v3995 = vunpack.c.h.b16 %v773
    %v3996 = vunpack.c.l.b16 %v774
    %v3997 = vunpack.c.h.b16 %v774
    %v3998 = vunpack.c.l.b16 %v775
    %v3999 = vunpack.c.h.b16 %v775
    %v4000 = vunpack.c.l.b16 %v776
    %v4001 = vunpack.c.h.b16 %v776
    %v4002 = vunpack.c.l.b16 %v777
    %v4003 = vunpack.c.h.b16 %v777
    %v4004 = vunpack.c.l.b16 %v778
    %v4005 = vunpack.c.h.b16 %v778
    %v4006 = vunpack.c.l.b16 %v779
    %v4007 = vunpack.c.h.b16 %v779
    %v4008 = vunpack.c.l.b16 %v780
    %v4009 = vunpack.c.h.b16 %v780
    %v4010 = vunpack.c.l.b16 %v781
    %v4011 = vunpack.c.h.b16 %v781
    %v4012 = vunpack.c.l.b16 %v782
    %v4013 = vunpack.c.h.b16 %v782
    %v4014 = vunpack.c.l.b16 %v783
    %v4015 = vunpack.c.h.b16 %v783
    %v4016 = vunpack.c.l.b16 %v784
    %v4017 = vunpack.c.h.b16 %v784
    %v4018 = vunpack.c.l.b16 %v785
    %v4019 = vunpack.c.h.b16 %v785
    %v4020 = vunpack.c.l.b16 %v786
    %v4021 = vunpack.c.h.b16 %v786
    %v4022 = vunpack.c.l.b16 %v787
    %v4023 = vunpack.c.h.b16 %v787
    %v4024 = vunpack.c.l.b16 %v788
    %v4025 = vunpack.c.h.b16 %v788
    %v4026 = vunpack.c.l.b16 %v789
    %v4027 = vunpack.c.h.b16 %v789
    %v4028 = vunpack.c.l.b16 %v790
    %v4029 = vunpack.c.h.b16 %v790
    %v4030 = vunpack.c.l.b16 %v791
    %v4031 = vunpack.c.h.b16 %v791
    %v4032 = vunpack.c.l.b16 %v792
    %v4033 = vunpack.c.h.b16 %v792
    %v4034 = vunpack.c.l.b16 %v793
    %v4035 = vunpack.c.h.b16 %v793
    %v4036 = vunpack.c.l.b16 %v794
    %v4037 = vunpack.c.h.b16 %v794
    %v4038 = vunpack.c.l.b16 %v795
    %v4039 = vunpack.c.h.b16 %v795
    %v4040 = vunpack.c.l.b16 %v796
    %v4041 = vunpack.c.h.b16 %v796
    %v4042 = vunpack.c.l.b16 %v797
    %v4043 = vunpack.c.h.b16 %v797
    %v4044 = vunpack.c.l.b16 %v798
    %v4045 = vunpack.c.h.b16 %v798
    %v4046 = vunpack.c.l.b16 %v799
    %v4047 = vunpack.c.h.b16 %v799
    %v4048 = vunpack.c.l.b16 %v800
    %v4049 = vunpack.c.h.b16 %v800
    %v4050 = vunpack.c.l.b16 %v801
    %v4051 = vunpack.c.h.b16 %v801
    %v4052 = vunpack.c.l.b16 %v802
    %v4053 = vunpack.c.h.b16 %v802
    %v4054 = vunpack.c.l.b16 %v803
    %v4055 = vunpack.c.h.b16 %v803
    %v4056 = vunpack.c.l.b16 %v804
    %v4057 = vunpack.c.h.b16 %v804
    %v4058 = vunpack.c.l.b16 %v805
    %v4059 = vunpack.c.h.b16 %v805
    %v4060 = vunpack.c.l.b16 %v806
    %v4061 = vunpack.c.h.b16 %v806
    %v4062 = vunpack.c.l.b16 %v807
    %v4063 = vunpack.c.h.b16 %v807
    %v4064 = vunpack.c.l.b16 %v808
    %v4065 = vunpack.c.h.b16 %v808
    %v4066 = vunpack.c.l.b16 %v809
    %v4067 = vunpack.c.h.b16 %v809
    %v4068 = vunpack.c.l.b16 %v810
    %v4069 = vunpack.c.h.b16 %v810
    %v4070 = vunpack.c.l.b16 %v811
    %v4071 = vunpack.c.h.b16 %v811
    %v4072 = vunpack.c.l.b16 %v812
    %v4073 = vunpack.c.h.b16 %v812
    %v4074 = vunpack.c.l.b16 %v813
    %v4075 = vunpack.c.h.b16 %v813
    %v4076 = vunpack.c.l.b16 %v814
    %v4077 = vunpack.c.h.b16 %v814
    %v4078 = vunpack.c.l.b16 %v815
    %v4079 = vunpack.c.h.b16 %v815
    %v4080 = vunpack.c.l.b16 %v816
    %v4081 = vunpack.c.h.b16 %v816
    %v4082 = vunpack.c.l.b16 %v817
    %v4083 = vunpack.c.h.b16 %v817
    %v4084 = vunpack.c.l.b16 %v818
    %v4085 = vunpack.c.h.b16 %v818
    %v4086 = vunpack.c.l.b16 %v819
    %v4087 = vunpack.c.h.b16 %v819
    %v4088 = vunpack.c.l.b16 %v820
    %v4089 = vunpack.c.h.b16 %v820
    %v4090 = vunpack.c.l.b16 %v821
    %v4091 = vunpack.c.h.b16 %v821
    %v4092 = vunpack.c.l.b16 %v822
    %v4093 = vunpack.c.h.b16 %v822
    %v4094 = vunpack.c.l.b16 %v823
    %v4095 = vunpack.c.h.b16 %v823
    %v4096 = vunpack.c.l.b16 %v824
    %v4097 = vunpack.c.h.b16 %v824
    %v4098 = vunpack.c.l.b16 %v825
    %v4099 = vunpack.c.h.b16 %v825
    %v4100 = vunpack.c.l.b16 %v826
    %v4101 = vunpack.c.h.b16 %v826
    %v4102 = vunpack.c.l.b16 %v827
    %v4103 = vunpack.c.h.b16 %v827
    %v4104 = vunpack.c.l.b16 %v828
    %v4105 = vunpack.c.h.b16 %v828
    %v4106 = vunpack.c.l.b16 %v829
    %v4107 = vunpack.c.h.b16 %v829
    %v4108 = vunpack.c.l.b16 %v830
    %v4109 = vunpack.c.h.b16 %v830
    %v4110 = vunpack.c.l.b16 %v831
    %v4111 = vunpack.c.h.b16 %v831
    %v4112 = vunpack.c.l.b16 %v832
    %v4113 = vunpack.c.h.b16 %v832
    %v4114 = vunpack.c.l.b16 %v833
    %v4115 = vunpack.c.h.b16 %v833
    %v4116 = vunpack.c.l.b16 %v834
    %v4117 = vunpack.c.h.b16 %v834
    %v4118 = vunpack.c.l.b16 %v835
    %v4119 = vunpack.c.h.b16 %v835
    %v4120 = vunpack.c.l.b16 %v836
    %v4121 = vunpack.c.h.b16 %v836
    %v4122 = vunpack.c.l.b16 %v837
    %v4123 = vunpack.c.h.b16 %v837
    %v4124 = vunpack.c.l.b16 %v838
    %v4125 = vunpack.c.h.b16 %v838
    %v4126 = vunpack.c.l.b16 %v839
    %v4127 = vunpack.c.h.b16 %v839
    %v4128 = vunpack.c.l.b16 %v840
    %v4129 = vunpack.c.h.b16 %v840
    %v4130 = vunpack.c.l.b16 %v841
    %v4131 = vunpack.c.h.b16 %v841
    %v4132 = vunpack.c.l.b16 %v842
    %v4133 = vunpack.c.h.b16 %v842
    %v4134 = vunpack.c.l.b16 %v843
    %v4135 = vunpack.c.h.b16 %v843
    %v4136 = vunpack.c.l.b16 %v844
    %v4137 = vunpack.c.h.b16 %v844
    %v4138 = vunpack.c.l.b16 %v845
    %v4139 = vunpack.c.h.b16 %v845
    %v4140 = vunpack.c.l.b16 %v846
    %v4141 = vunpack.c.h.b16 %v846
    %v4142 = vunpack.c.l.b16 %v847
    %v4143 = vunpack.c.h.b16 %v847
    %v4144 = vunpack.c.l.b16 %v848
    %v4145 = vunpack.c.h.b16 %v848
    %v4146 = vunpack.c.l.b16 %v849
    %v4147 = vunpack.c.h.b16 %v849
    %v4148 = vunpack.c.l.b16 %v850
    %v4149 = vunpack.c.h.b16 %v850
    %v4150 = vunpack.c.l.b16 %v851
    %v4151 = vunpack.c.h.b16 %v851
    %v4152 = vunpack.c.l.b16 %v852
    %v4153 = vunpack.c.h.b16 %v852
    %v4154 = vunpack.c.l.b16 %v853
    %v4155 = vunpack.c.h.b16 %v853
    %v4156 = vunpack.c.l.b16 %v854
    %v4157 = vunpack.c.h.b16 %v854
    %v4158 = vunpack.c.l.b16 %v855
    %v4159 = vunpack.c.h.b16 %v855
    %v4160 = vunpack.c.l.b16 %v856
    %v4161 = vunpack.c.h.b16 %v856
    %v4162 = vunpack.c.l.b16 %v857
    %v4163 = vunpack.c.h.b16 %v857
    %v4164 = vunpack.c.l.b16 %v858
    %v4165 = vunpack.c.h.b16 %v858
    %v4166 = vunpack.c.l.b16 %v859
    %v4167 = vunpack.c.h.b16 %v859
    %v4168 = vunpack.c.l.b16 %v860
    %v4169 = vunpack.c.h.b16 %v860
    %v4170 = vunpack.c.l.b16 %v861
    %v4171 = vunpack.c.h.b16 %v861
    %v4172 = vunpack.c.l.b16 %v862
    %v4173 = vunpack.c.h.b16 %v862
    %v4174 = vunpack.c.l.b16 %v863
    %v4175 = vunpack.c.h.b16 %v863
    %v4176 = vunpack.c.l.b16 %v864
    %v4177 = vunpack.c.h.b16 %v864
    %v4178 = vunpack.c.l.b16 %v865
    %v4179 = vunpack.c.h.b16 %v865
    %v4180 = vunpack.c.l.b16 %v866
    %v4181 = vunpack.c.h.b16 %v866
    %v4182 = vunpack.c.l.b16 %v867
    %v4183 = vunpack.c.h.b16 %v867
    %v4184 = vunpack.c.l.b16 %v868
    %v4185 = vunpack.c.h.b16 %v868
    %v4186 = vunpack.c.l.b16 %v869
    %v4187 = vunpack.c.h.b16 %v869
    %v4188 = vunpack.c.l.b16 %v870
    %v4189 = vunpack.c.h.b16 %v870
    %v4190 = vunpack.c.l.b16 %v871
    %v4191 = vunpack.c.h.b16 %v871
    %v4192 = vunpack.c.l.b16 %v872
    %v4193 = vunpack.c.h.b16 %v872
    %v4194 = vunpack.c.l.b16 %v873
    %v4195 = vunpack.c.h.b16 %v873
    %v4196 = vunpack.c.l.b16 %v874
    %v4197 = vunpack.c.h.b16 %v874
    %v4198 = vunpack.c.l.b16 %v875
    %v4199 = vunpack.c.h.b16 %v875
    %v4200 = vunpack.c.l.b16 %v876
    %v4201 = vunpack.c.h.b16 %v876
    %v4202 = vunpack.c.l.b16 %v877
    %v4203 = vunpack.c.h.b16 %v877
    %v4204 = vunpack.c.l.b16 %v878
    %v4205 = vunpack.c.h.b16 %v878
    %v4206 = vunpack.c.l.b16 %v879
    %v4207 = vunpack.c.h.b16 %v879
    %v4208 = vunpack.c.l.b16 %v880
    %v4209 = vunpack.c.h.b16 %v880
    %v4210 = vunpack.c.l.b16 %v881
    %v4211 = vunpack.c.h.b16 %v881
    %v4212 = vunpack.c.l.b16 %v882
    %v4213 = vunpack.c.h.b16 %v882
    %v4214 = vunpack.c.l.b16 %v883
    %v4215 = vunpack.c.h.b16 %v883
    %v4216 = vunpack.c.l.b16 %v884
    %v4217 = vunpack.c.h.b16 %v884
    %v4218 = vunpack.c.l.b16 %v885
    %v4219 = vunpack.c.h.b16 %v885
    %v4220 = vunpack.c.l.b16 %v886
    %v4221 = vunpack.c.h.b16 %v886
    %v4222 = vunpack.c.l.b16 %v887
    %v4223 = vunpack.c.h.b16 %v887
    %v4224 = vunpack.c.l.b16 %v888
    %v4225 = vunpack.c.h.b16 %v888
    %v4226 = vunpack.c.l.b16 %v889
    %v4227 = vunpack.c.h.b16 %v889
    %v4228 = vunpack.c.l.b16 %v890
    %v4229 = vunpack.c.h.b16 %v890
    %v4230 = vunpack.c.l.b16 %v891
    %v4231 = vunpack.c.h.b16 %v891
    %v4232 = vunpack.c.l.b16 %v892
    %v4233 = vunpack.c.h.b16 %v892
    %v4234 = vunpack.c.l.b16 %v893
    %v4235 = vunpack.c.h.b16 %v893
    %v4236 = vunpack.c.l.b16 %v894
    %v4237 = vunpack.c.h.b16 %v894
    %v4238 = vunpack.c.l.b16 %v895
    %v4239 = vunpack.c.h.b16 %v895
    %v4240 = vunpack.c.l.b16 %v896
    %v4241 = vunpack.c.h.b16 %v896
    %v4242 = vunpack.c.l.b16 %v897
    %v4243 = vunpack.c.h.b16 %v897
    %v4244 = vunpack.c.l.b16 %v898
    %v4245 = vunpack.c.h.b16 %v898
    %v4246 = vunpack.c.l.b16 %v899
    %v4247 = vunpack.c.h.b16 %v899
    %v4248 = vunpack.c.l.b16 %v900
    %v4249 = vunpack.c.h.b16 %v900
    %v4250 = vunpack.c.l.b16 %v901
    %v4251 = vunpack.c.h.b16 %v901
    %v4252 = vunpack.c.l.b16 %v902
    %v4253 = vunpack.c.h.b16 %v902
    %v4254 = vunpack.c.l.b16 %v903
    %v4255 = vunpack.c.h.b16 %v903
    %v4256 = vunpack.c.l.b16 %v904
    %v4257 = vunpack.c.h.b16 %v904
    %v4258 = vunpack.c.l.b16 %v905
    %v4259 = vunpack.c.h.b16 %v905
    %v4260 = vunpack.c.l.b16 %v906
    %v4261 = vunpack.c.h.b16 %v906
    %v4262 = vunpack.c.l.b16 %v907
    %v4263 = vunpack.c.h.b16 %v907
    %v4264 = vunpack.c.l.b16 %v908
    %v4265 = vunpack.c.h.b16 %v908
    %v4266 = vunpack.c.l.b16 %v909
    %v4267 = vunpack.c.h.b16 %v909
    %v4268 = vunpack.c.l.b16 %v910
    %v4269 = vunpack.c.h.b16 %v910
    %v4270 = vunpack.c.l.b16 %v911
    %v4271 = vunpack.c.h.b16 %v911
    %v4272 = vunpack.c.l.b16 %v912
    %v4273 = vunpack.c.h.b16 %v912
    %v4274 = vunpack.c.l.b16 %v913
    %v4275 = vunpack.c.h.b16 %v913
    %v4276 = vunpack.c.l.b16 %v914
    %v4277 = vunpack.c.h.b16 %v914
    %v4278 = vunpack.c.l.b16 %v915
    %v4279 = vunpack.c.h.b16 %v915
    %v4280 = vunpack.c.l.b16 %v916
    %v4281 = vunpack.c.h.b16 %v916
    %v4282 = vunpack.c.l.b16 %v917
    %v4283 = vunpack.c.h.b16 %v917
    %v4284 = vunpack.c.l.b16 %v918
    %v4285 = vunpack.c.h.b16 %v918
    %v4286 = vunpack.c.l.b16 %v919
    %v4287 = vunpack.c.h.b16 %v919
    %v4288 = vunpack.c.l.b16 %v920
    %v4289 = vunpack.c.h.b16 %v920
    %v4290 = vunpack.c.l.b16 %v921
    %v4291 = vunpack.c.h.b16 %v921
    %v4292 = vunpack.c.l.b16 %v922
    %v4293 = vunpack.c.h.b16 %v922
    %v4294 = vunpack.c.l.b16 %v923
    %v4295 = vunpack.c.h.b16 %v923
    %v4296 = vunpack.c.l.b16 %v924
    %v4297 = vunpack.c.h.b16 %v924
    %v4298 = vunpack.c.l.b16 %v925
    %v4299 = vunpack.c.h.b16 %v925
    %v4300 = vunpack.c.l.b16 %v926
    %v4301 = vunpack.c.h.b16 %v926
    %v4302 = vunpack.c.l.b16 %v927
    %v4303 = vunpack.c.h.b16 %v927
    %v4304 = vunpack.c.l.b16 %v928
    %v4305 = vunpack.c.h.b16 %v928
    %v4306 = vunpack.c.l.b16 %v929
    %v4307 = vunpack.c.h.b16 %v929
    %v4308 = vunpack.c.l.b16 %v930
    %v4309 = vunpack.c.h.b16 %v930
    %v4310 = vunpack.c.l.b16 %v931
    %v4311 = vunpack.c.h.b16 %v931
    %v4312 = vunpack.c.l.b16 %v932
    %v4313 = vunpack.c.h.b16 %v932
    %v4314 = vunpack.c.l.b16 %v933
    %v4315 = vunpack.c.h.b16 %v933
    %v4316 = vunpack.c.l.b16 %v934
    %v4317 = vunpack.c.h.b16 %v934
    %v4318 = vunpack.c.l.b16 %v935
    %v4319 = vunpack.c.h.b16 %v935
    %v4320 = vunpack.c.l.b16 %v936
    %v4321 = vunpack.c.h.b16 %v936
    %v4322 = vunpack.c.l.b16 %v937
    %v4323 = vunpack.c.h.b16 %v937
    %v4324 = vunpack.c.l.b16 %v938
    %v4325 = vunpack.c.h.b16 %v938
    %v4326 = vunpack.c.l.b16 %v939
    %v4327 = vunpack.c.h.b16 %v939
    %v4328 = vunpack.c.l.b16 %v940
    %v4329 = vunpack.c.h.b16 %v940
    %v4330 = vunpack.c.l.b16 %v941
    %v4331 = vunpack.c.h.b16 %v941
    %v4332 = vunpack.c.l.b16 %v942
    %v4333 = vunpack.c.h.b16 %v942
    %v4334 = vunpack.c.l.b16 %v943
    %v4335 = vunpack.c.h.b16 %v943
    %v4336 = vunpack.c.l.b16 %v944
    %v4337 = vunpack.c.h.b16 %v944
    %v4338 = vunpack.c.l.b16 %v945
    %v4339 = vunpack.c.h.b16 %v945
    %v4340 = vunpack.c.l.b16 %v946
    %v4341 = vunpack.c.h.b16 %v946
    %v4342 = vunpack.c.l.b16 %v947
    %v4343 = vunpack.c.h.b16 %v947
    %v4344 = vunpack.c.l.b16 %v948
    %v4345 = vunpack.c.h.b16 %v948
    %v4346 = vunpack.c.l.b16 %v949
    %v4347 = vunpack.c.h.b16 %v949
    %v4348 = vunpack.c.l.b16 %v950
    %v4349 = vunpack.c.h.b16 %v950
    %v4350 = vunpack.c.l.b16 %v951
    %v4351 = vunpack.c.h.b16 %v951
    %v4352 = vunpack.c.l.b16 %v952
    %v4353 = vunpack.c.h.b16 %v952
    %v4354 = vunpack.c.l.b16 %v953
    %v4355 = vunpack.c.h.b16 %v953
    %v4356 = vunpack.c.l.b16 %v954
    %v4357 = vunpack.c.h.b16 %v954
    %v4358 = vunpack.c.l.b16 %v955
    %v4359 = vunpack.c.h.b16 %v955
    %v4360 = vunpack.c.l.b16 %v956
    %v4361 = vunpack.c.h.b16 %v956
    %v4362 = vunpack.c.l.b16 %v957
    %v4363 = vunpack.c.h.b16 %v957
    %v4364 = vunpack.c.l.b16 %v958
    %v4365 = vunpack.c.h.b16 %v958
    %v4366 = vunpack.c.l.b16 %v959
    %v4367 = vunpack.c.h.b16 %v959
    %v4368 = vunpack.c.l.b16 %v960
    %v4369 = vunpack.c.h.b16 %v960
    %v4370 = vunpack.c.l.b16 %v961
    %v4371 = vunpack.c.h.b16 %v961
    %v4372 = vunpack.c.l.b16 %v962
    %v4373 = vunpack.c.h.b16 %v962
    %v4374 = vunpack.c.l.b16 %v963
    %v4375 = vunpack.c.h.b16 %v963
    %v4376 = vunpack.c.l.b16 %v964
    %v4377 = vunpack.c.h.b16 %v964
    %v4378 = vunpack.c.l.b16 %v965
    %v4379 = vunpack.c.h.b16 %v965
    %v4380 = vunpack.c.l.b16 %v966
    %v4381 = vunpack.c.h.b16 %v966
    %v4382 = vunpack.c.l.b16 %v967
    %v4383 = vunpack.c.h.b16 %v967
    %v4384 = vunpack.c.l.b16 %v968
    %v4385 = vunpack.c.h.b16 %v968
    %v4386 = vunpack.c.l.b16 %v969
    %v4387 = vunpack.c.h.b16 %v969
    %v4388 = vunpack.c.l.b16 %v970
    %v4389 = vunpack.c.h.b16 %v970
    %v4390 = vunpack.c.l.b16 %v971
    %v4391 = vunpack.c.h.b16 %v971
    %v4392 = vunpack.c.l.b16 %v972
    %v4393 = vunpack.c.h.b16 %v972
    %v4394 = vunpack.c.l.b16 %v973
    %v4395 = vunpack.c.h.b16 %v973
    %v4396 = vunpack.c.l.b16 %v974
    %v4397 = vunpack.c.h.b16 %v974
    %v4398 = vunpack.c.l.b16 %v975
    %v4399 = vunpack.c.h.b16 %v975
    %v4400 = vunpack.c.l.b16 %v976
    %v4401 = vunpack.c.h.b16 %v976
    %v4402 = vunpack.c.l.b16 %v977
    %v4403 = vunpack.c.h.b16 %v977
    %v4404 = vunpack.c.l.b16 %v978
    %v4405 = vunpack.c.h.b16 %v978
    %v4406 = vunpack.c.l.b16 %v979
    %v4407 = vunpack.c.h.b16 %v979
    %v4408 = vunpack.c.l.b16 %v980
    %v4409 = vunpack.c.h.b16 %v980
    %v4410 = vunpack.c.l.b16 %v981
    %v4411 = vunpack.c.h.b16 %v981
    %v4412 = vunpack.c.l.b16 %v982
    %v4413 = vunpack.c.h.b16 %v982
    %v4414 = vunpack.c.l.b16 %v983
    %v4415 = vunpack.c.h.b16 %v983
    %v4416 = vunpack.c.l.b16 %v984
    %v4417 = vunpack.c.h.b16 %v984
    %v4418 = vunpack.c.l.b16 %v985
    %v4419 = vunpack.c.h.b16 %v985
    %v4420 = vunpack.c.l.b16 %v986
    %v4421 = vunpack.c.h.b16 %v986
    %v4422 = vunpack.c.l.b16 %v987
    %v4423 = vunpack.c.h.b16 %v987
    %v4424 = vunpack.c.l.b16 %v988
    %v4425 = vunpack.c.h.b16 %v988
    %v4426 = vunpack.c.l.b16 %v989
    %v4427 = vunpack.c.h.b16 %v989
    %v4428 = vunpack.c.l.b16 %v990
    %v4429 = vunpack.c.h.b16 %v990
    %v4430 = vunpack.c.l.b16 %v991
    %v4431 = vunpack.c.h.b16 %v991
    %v4432 = vunpack.c.l.b16 %v992
    %v4433 = vunpack.c.h.b16 %v992
    %v4434 = vunpack.c.l.b16 %v993
    %v4435 = vunpack.c.h.b16 %v993
    %v4436 = vunpack.c.l.b16 %v994
    %v4437 = vunpack.c.h.b16 %v994
    %v4438 = vunpack.c.l.b16 %v995
    %v4439 = vunpack.c.h.b16 %v995
    %v4440 = vunpack.c.l.b16 %v996
    %v4441 = vunpack.c.h.b16 %v996
    %v4442 = vunpack.c.l.b16 %v997
    %v4443 = vunpack.c.h.b16 %v997
    %v4444 = vunpack.c.l.b16 %v998
    %v4445 = vunpack.c.h.b16 %v998
    %v4446 = vunpack.c.l.b16 %v999
    %v4447 = vunpack.c.h.b16 %v999
    %v4448 = vunpack.c.l.b16 %v1000
    %v4449 = vunpack.c.h.b16 %v1000
    %v4450 = vunpack.c.l.b16 %v1001
    %v4451 = vunpack.c.h.b16 %v1001
    %v4452 = vunpack.c.l.b16 %v1002
    %v4453 = vunpack.c.h.b16 %v1002
    %v4454 = vunpack.c.l.b16 %v1003
    %v4455 = vunpack.c.h.b16 %v1003
    %v4456 = vunpack.c.l.b16 %v1004
    %v4457 = vunpack.c.h.b16 %v1004
    %v4458 = vunpack.c.l.b16 %v1005
    %v4459 = vunpack.c.h.b16 %v1005
    %v4460 = vunpack.c.l.b16 %v1006
    %v4461 = vunpack.c.h.b16 %v1006
    %v4462 = vunpack.c.l.b16 %v1007
    %v4463 = vunpack.c.h.b16 %v1007
    %v4464 = vunpack.c.l.b16 %v1008
    %v4465 = vunpack.c.h.b16 %v1008
    %v4466 = vunpack.c.l.b16 %v1009
    %v4467 = vunpack.c.h.b16 %v1009
    %v4468 = vunpack.c.l.b16 %v1010
    %v4469 = vunpack.c.h.b16 %v1010
    %v4470 = vunpack.c.l.b16 %v1011
    %v4471 = vunpack.c.h.b16 %v1011
    %v4472 = vunpack.c.l.b16 %v1012
    %v4473 = vunpack.c.h.b16 %v1012
    %v4474 = vunpack.c.l.b16 %v1013
    %v4475 = vunpack.c.h.b16 %v1013
    %v4476 = vunpack.c.l.b16 %v1014
    %v4477 = vunpack.c.h.b16 %v1014
    %v4478 = vunpack.c.l.b16 %v1015
    %v4479 = vunpack.c.h.b16 %v1015
    %v4480 = vunpack.c.l.b16 %v1016
    %v4481 = vunpack.c.h.b16 %v1016
    %v4482 = vunpack.c.l.b16 %v1017
    %v4483 = vunpack.c.h.b16 %v1017
    %v4484 = vunpack.c.l.b16 %v1018
    %v4485 = vunpack.c.h.b16 %v1018
    %v4486 = vunpack.c.l.b16 %v1019
    %v4487 = vunpack.c.h.b16 %v1019
    %v4488 = vunpack.c.l.b16 %v1020
    %v4489 = vunpack.c.h.b16 %v1020
    %v4490 = vunpack.c.l.b16 %v1021
    %v4491 = vunpack.c.h.b16 %v1021
    %v4492 = vunpack.c.l.b16 %v1022
    %v4493 = vunpack.c.h.b16 %v1022
    %v4494 = vunpack.c.l.b16 %v1023
    %v4495 = vunpack.c.h.b16 %v1023
    %v4496 = vunpack.c.l.b16 %v1024
    %v4497 = vunpack.c.h.b16 %v1024
    %v4498 = vunpack.c.l.b16 %v1025
    %v4499 = vunpack.c.h.b16 %v1025
    %v4500 = vunpack.c.l.b16 %v1026
    %v4501 = vunpack.c.h.b16 %v1026
    %v4502 = vunpack.c.l.b16 %v1027
    %v4503 = vunpack.c.h.b16 %v1027
    %v4504 = vunpack.c.l.b16 %v1028
    %v4505 = vunpack.c.h.b16 %v1028
    %v4506 = vunpack.c.l.b16 %v1029
    %v4507 = vunpack.c.h.b16 %v1029
    %v4508 = vunpack.c.l.b16 %v1030
    %v4509 = vunpack.c.h.b16 %v1030
    %v4510 = vunpack.c.l.b16 %v1031
    %v4511 = vunpack.c.h.b16 %v1031
    %v4512 = vunpack.c.l.b16 %v1032
    %v4513 = vunpack.c.h.b16 %v1032
    %v4514 = vunpack.c.l.b16 %v1033
    %v4515 = vunpack.c.h.b16 %v1033
    %v4516 = vunpack.c.l.b16 %v1034
    %v4517 = vunpack.c.h.b16 %v1034
    %v4518 = vunpack.c.l.b16 %v1035
    %v4519 = vunpack.c.h.b16 %v1035
    %v4520 = vunpack.c.l.b16 %v1036
    %v4521 = vunpack.c.h.b16 %v1036
    %v4522 = vunpack.c.l.b16 %v1037
    %v4523 = vunpack.c.h.b16 %v1037
    %v4524 = vunpack.c.l.b16 %v1038
    %v4525 = vunpack.c.h.b16 %v1038
    %v4526 = vunpack.c.l.b16 %v1039
    %v4527 = vunpack.c.h.b16 %v1039
    %v4528 = vunpack.c.l.b16 %v1040
    %v4529 = vunpack.c.h.b16 %v1040
    %v4530 = vunpack.c.l.b16 %v1041
    %v4531 = vunpack.c.h.b16 %v1041
    %v4532 = vunpack.c.l.b16 %v1042
    %v4533 = vunpack.c.h.b16 %v1042
    %v4534 = vunpack.c.l.b16 %v1043
    %v4535 = vunpack.c.h.b16 %v1043
    %v4536 = vunpack.c.l.b16 %v1044
    %v4537 = vunpack.c.h.b16 %v1044
    %v4538 = vunpack.c.l.b16 %v1045
    %v4539 = vunpack.c.h.b16 %v1045
    %v4540 = vunpack.c.l.b16 %v1046
    %v4541 = vunpack.c.h.b16 %v1046
    %v4542 = vunpack.c.l.b16 %v1047
    %v4543 = vunpack.c.h.b16 %v1047
    %v4544 = vunpack.c.l.b16 %v1048
    %v4545 = vunpack.c.h.b16 %v1048
    %v4546 = vunpack.c.l.b16 %v1049
    %v4547 = vunpack.c.h.b16 %v1049
    %v4548 = vunpack.c.l.b16 %v1050
    %v4549 = vunpack.c.h.b16 %v1050
    %v4550 = vunpack.c.l.b16 %v1051
    %v4551 = vunpack.c.h.b16 %v1051
    %v4552 = vunpack.c.l.b16 %v1052
    %v4553 = vunpack.c.h.b16 %v1052
    %v4554 = vunpack.c.l.b16 %v1053
    %v4555 = vunpack.c.h.b16 %v1053
    %v4556 = vunpack.c.l.b16 %v1054
    %v4557 = vunpack.c.h.b16 %v1054
    %v4558 = vunpack.c.l.b16 %v1055
    %v4559 = vunpack.c.h.b16 %v1055
    %v4560 = vunpack.c.l.b16 %v1056
    %v4561 = vunpack.c.h.b16 %v1056
    %v4562 = vunpack.c.l.b16 %v1057
    %v4563 = vunpack.c.h.b16 %v1057
    %v4564 = vunpack.c.l.b16 %v1058
    %v4565 = vunpack.c.h.b16 %v1058
    %v4566 = vunpack.c.l.b16 %v1059
    %v4567 = vunpack.c.h.b16 %v1059
    %v4568 = vunpack.c.l.b16 %v1060
    %v4569 = vunpack.c.h.b16 %v1060
    %v4570 = vunpack.c.l.b16 %v1061
    %v4571 = vunpack.c.h.b16 %v1061
    %v4572 = vunpack.c.l.b16 %v1062
    %v4573 = vunpack.c.h.b16 %v1062
    %v4574 = vunpack.c.l.b16 %v1063
    %v4575 = vunpack.c.h.b16 %v1063
    %v4576 = vunpack.c.l.b16 %v1064
    %v4577 = vunpack.c.h.b16 %v1064
    %v4578 = vunpack.c.l.b16 %v1065
    %v4579 = vunpack.c.h.b16 %v1065
    %v4580 = vunpack.c.l.b16 %v1066
    %v4581 = vunpack.c.h.b16 %v1066
    %v4582 = vunpack.c.l.b16 %v1067
    %v4583 = vunpack.c.h.b16 %v1067
    %v4584 = vunpack.c.l.b16 %v1068
    %v4585 = vunpack.c.h.b16 %v1068
    %v4586 = vunpack.c.l.b16 %v1069
    %v4587 = vunpack.c.h.b16 %v1069
    %v4588 = vunpack.c.l.b16 %v1070
    %v4589 = vunpack.c.h.b16 %v1070
    %v4590 = vunpack.c.l.b16 %v1071
    %v4591 = vunpack.c.h.b16 %v1071
    %v4592 = vunpack.c.l.b16 %v1072
    %v4593 = vunpack.c.h.b16 %v1072
    %v4594 = vunpack.c.l.b16 %v1073
    %v4595 = vunpack.c.h.b16 %v1073
    %v4596 = vunpack.c.l.b16 %v1074
    %v4597 = vunpack.c.h.b16 %v1074
    %v4598 = vunpack.c.l.b16 %v1075
    %v4599 = vunpack.c.h.b16 %v1075
    %v4600 = vunpack.c.l.b16 %v1076
    %v4601 = vunpack.c.h.b16 %v1076
    %v4602 = vunpack.c.l.b16 %v1077
    %v4603 = vunpack.c.h.b16 %v1077
    %v4604 = vunpack.c.l.b16 %v1078
    %v4605 = vunpack.c.h.b16 %v1078
    %v4606 = vunpack.c.l.b16 %v1079
    %v4607 = vunpack.c.h.b16 %v1079
    %v4608 = vunpack.c.l.b16 %v1080
    %v4609 = vunpack.c.h.b16 %v1080
    %v4610 = vunpack.c.l.b16 %v1081
    %v4611 = vunpack.c.h.b16 %v1081
    %v4612 = vunpack.c.l.b16 %v1082
    %v4613 = vunpack.c.h.b16 %v1082
    %v4614 = vunpack.c.l.b16 %v1083
    %v4615 = vunpack.c.h.b16 %v1083
    %v4616 = vunpack.c.l.b16 %v1084
    %v4617 = vunpack.c.h.b16 %v1084
    %v4618 = vunpack.c.l.b16 %v1085
    %v4619 = vunpack.c.h.b16 %v1085
    %v4620 = vunpack.c.l.b16 %v1086
    %v4621 = vunpack.c.h.b16 %v1086
    %v4622 = vunpack.c.l.b16 %v1087
    %v4623 = vunpack.c.h.b16 %v1087
    %v4624 = vunpack.c.l.b16 %v1088
    %v4625 = vunpack.c.h.b16 %v1088
    %v4626 = vunpack.c.l.b16 %v1089
    %v4627 = vunpack.c.h.b16 %v1089
    %v4628 = vunpack.c.l.b16 %v1090
    %v4629 = vunpack.c.h.b16 %v1090
    %v4630 = vunpack.c.l.b16 %v1091
    %v4631 = vunpack.c.h.b16 %v1091
    %v4632 = vunpack.c.l.b16 %v1092
    %v4633 = vunpack.c.h.b16 %v1092
    %v4634 = vunpack.c.l.b16 %v1093
    %v4635 = vunpack.c.h.b16 %v1093
    %v4636 = vunpack.c.l.b16 %v1094
    %v4637 = vunpack.c.h.b16 %v1094
    %v4638 = vunpack.c.l.b16 %v1095
    %v4639 = vunpack.c.h.b16 %v1095
    %v4640 = vunpack.c.l.b16 %v1096
    %v4641 = vunpack.c.h.b16 %v1096
    %v4642 = vunpack.c.l.b16 %v1097
    %v4643 = vunpack.c.h.b16 %v1097
    %v4644 = vunpack.c.l.b16 %v1098
    %v4645 = vunpack.c.h.b16 %v1098
    %v4646 = vunpack.c.l.b16 %v1099
    %v4647 = vunpack.c.h.b16 %v1099
    %v4648 = vunpack.c.l.b16 %v1100
    %v4649 = vunpack.c.h.b16 %v1100
    %v4650 = vunpack.c.l.b16 %v1101
    %v4651 = vunpack.c.h.b16 %v1101
    %v4652 = vunpack.c.l.b16 %v1102
    %v4653 = vunpack.c.h.b16 %v1102
    %v4654 = vunpack.c.l.b16 %v1103
    %v4655 = vunpack.c.h.b16 %v1103
    %v4656 = vunpack.c.l.b16 %v1104
    %v4657 = vunpack.c.h.b16 %v1104
    %v4658 = vunpack.c.l.b16 %v1105
    %v4659 = vunpack.c.h.b16 %v1105
    %v4660 = vunpack.c.l.b16 %v1106
    %v4661 = vunpack.c.h.b16 %v1106
    %v4662 = vunpack.c.l.b16 %v1107
    %v4663 = vunpack.c.h.b16 %v1107
    %v4664 = vunpack.c.l.b16 %v1108
    %v4665 = vunpack.c.h.b16 %v1108
    %v4666 = vunpack.c.l.b16 %v1109
    %v4667 = vunpack.c.h.b16 %v1109
    %v4668 = vunpack.c.l.b16 %v1110
    %v4669 = vunpack.c.h.b16 %v1110
    %v4670 = vunpack.c.l.b16 %v1111
    %v4671 = vunpack.c.h.b16 %v1111
    %v4672 = vunpack.c.l.b16 %v1112
    %v4673 = vunpack.c.h.b16 %v1112
    %v4674 = vunpack.c.l.b16 %v1113
    %v4675 = vunpack.c.h.b16 %v1113
    %v4676 = vunpack.c.l.b16 %v1114
    %v4677 = vunpack.c.h.b16 %v1114
    %v4678 = vunpack.c.l.b16 %v1115
    %v4679 = vunpack.c.h.b16 %v1115
    %v4680 = vunpack.c.l.b16 %v1116
    %v4681 = vunpack.c.h.b16 %v1116
    %v4682 = vunpack.c.l.b16 %v1117
    %v4683 = vunpack.c.h.b16 %v1117
    %v4684 = vunpack.c.l.b16 %v1118
    %v4685 = vunpack.c.h.b16 %v1118
    %v4686 = vunpack.c.l.b16 %v1119
    %v4687 = vunpack.c.h.b16 %v1119
    %v4688 = vunpack.c.l.b16 %v1120
    %v4689 = vunpack.c.h.b16 %v1120
    %v4690 = vunpack.c.l.b16 %v1121
    %v4691 = vunpack.c.h.b16 %v1121
    %v4692 = vunpack.c.l.b16 %v1122
    %v4693 = vunpack.c.h.b16 %v1122
    %v4694 = vunpack.c.l.b16 %v1123
    %v4695 = vunpack.c.h.b16 %v1123
    %v4696 = vunpack.c.l.b16 %v1124
    %v4697 = vunpack.c.h.b16 %v1124
    %v4698 = vunpack.c.l.b16 %v1125
    %v4699 = vunpack.c.h.b16 %v1125
    %v4700 = vunpack.c.l.b16 %v1126
    %v4701 = vunpack.c.h.b16 %v1126
    %v4702 = vunpack.c.l.b16 %v1127
    %v4703 = vunpack.c.h.b16 %v1127
    %v4704 = vunpack.c.l.b16 %v1128
    %v4705 = vunpack.c.h.b16 %v1128
    %v4706 = vunpack.c.l.b16 %v1129
    %v4707 = vunpack.c.h.b16 %v1129
    %v4708 = vunpack.c.l.b16 %v1130
    %v4709 = vunpack.c.h.b16 %v1130
    %v4710 = vunpack.c.l.b16 %v1131
    %v4711 = vunpack.c.h.b16 %v1131
    %v4712 = vunpack.c.l.b16 %v1132
    %v4713 = vunpack.c.h.b16 %v1132
    %v4714 = vunpack.c.l.b16 %v1133
    %v4715 = vunpack.c.h.b16 %v1133
    %v4716 = vunpack.c.l.b16 %v1134
    %v4717 = vunpack.c.h.b16 %v1134
    %v4718 = vunpack.c.l.b16 %v1135
    %v4719 = vunpack.c.h.b16 %v1135
    %v4720 = vunpack.c.l.b16 %v1136
    %v4721 = vunpack.c.h.b16 %v1136
    %v4722 = vunpack.c.l.b16 %v1137
    %v4723 = vunpack.c.h.b16 %v1137
    %v4724 = vunpack.c.l.b16 %v1138
    %v4725 = vunpack.c.h.b16 %v1138
    %v4726 = vunpack.c.l.b16 %v1139
    %v4727 = vunpack.c.h.b16 %v1139
    %v4728 = vunpack.c.l.b16 %v1140
    %v4729 = vunpack.c.h.b16 %v1140
    %v4730 = vunpack.c.l.b16 %v1141
    %v4731 = vunpack.c.h.b16 %v1141
    %v4732 = vunpack.c.l.b16 %v1142
    %v4733 = vunpack.c.h.b16 %v1142
    %v4734 = vunpack.c.l.b16 %v1143
    %v4735 = vunpack.c.h.b16 %v1143
    %v4736 = vunpack.c.l.b16 %v1144
    %v4737 = vunpack.c.h.b16 %v1144
    %v4738 = vunpack.c.l.b16 %v1145
    %v4739 = vunpack.c.h.b16 %v1145
    %v4740 = vunpack.c.l.b16 %v1146
    %v4741 = vunpack.c.h.b16 %v1146
    %v4742 = vunpack.c.l.b16 %v1147
    %v4743 = vunpack.c.h.b16 %v1147
    %v4744 = vunpack.c.l.b16 %v1148
    %v4745 = vunpack.c.h.b16 %v1148
    %v4746 = vunpack.c.l.b16 %v1149
    %v4747 = vunpack.c.h.b16 %v1149
    %v4748 = vunpack.c.l.b16 %v1150
    %v4749 = vunpack.c.h.b16 %v1150
    %v4750 = vunpack.c.l.b16 %v1151
    %v4751 = vunpack.c.h.b16 %v1151
    %v4752 = vunpack.c.l.b16 %v1152
    %v4753 = vunpack.c.h.b16 %v1152
    %v4754 = vunpack.c.l.b16 %v1153
    %v4755 = vunpack.c.h.b16 %v1153
    %v4756 = vunpack.c.l.b16 %v1154
    %v4757 = vunpack.c.h.b16 %v1154
    %v4758 = vunpack.c.l.b16 %v1155
    %v4759 = vunpack.c.h.b16 %v1155
    %v4760 = vunpack.c.l.b16 %v1156
    %v4761 = vunpack.c.h.b16 %v1156
    %v4762 = vunpack.c.l.b16 %v1157
    %v4763 = vunpack.c.h.b16 %v1157
    %v4764 = vunpack.c.l.b16 %v1158
    %v4765 = vunpack.c.h.b16 %v1158
    %v4766 = vunpack.c.l.b16 %v1159
    %v4767 = vunpack.c.h.b16 %v1159
    %v4768 = vunpack.c.l.b16 %v1160
    %v4769 = vunpack.c.h.b16 %v1160
    %v4770 = vunpack.c.l.b16 %v1161
    %v4771 = vunpack.c.h.b16 %v1161
    %v4772 = vunpack.c.l.b16 %v1162
    %v4773 = vunpack.c.h.b16 %v1162
    %v4774 = vunpack.c.l.b16 %v1163
    %v4775 = vunpack.c.h.b16 %v1163
    %v4776 = vunpack.c.l.b16 %v1164
    %v4777 = vunpack.c.h.b16 %v1164
    %v4778 = vunpack.c.l.b16 %v1165
    %v4779 = vunpack.c.h.b16 %v1165
    %v4780 = vunpack.c.l.b16 %v1166
    %v4781 = vunpack.c.h.b16 %v1166
    %v4782 = vunpack.c.l.b16 %v1167
    %v4783 = vunpack.c.h.b16 %v1167
    %v4784 = vunpack.c.l.b16 %v1168
    %v4785 = vunpack.c.h.b16 %v1168
    %v4786 = vunpack.c.l.b16 %v1169
    %v4787 = vunpack.c.h.b16 %v1169
    %v4788 = vunpack.c.l.b16 %v1170
    %v4789 = vunpack.c.h.b16 %v1170
    %v4790 = vunpack.c.l.b16 %v1171
    %v4791 = vunpack.c.h.b16 %v1171
    %v4792 = vunpack.c.l.b16 %v1172
    %v4793 = vunpack.c.h.b16 %v1172
    %v4794 = vunpack.c.l.b16 %v1173
    %v4795 = vunpack.c.h.b16 %v1173
    %v4796 = vunpack.c.l.b16 %v1174
    %v4797 = vunpack.c.h.b16 %v1174
    %v4798 = vunpack.c.l.b16 %v1175
    %v4799 = vunpack.c.h.b16 %v1175
    %v4800 = vunpack.c.l.b16 %v1176
    %v4801 = vunpack.c.h.b16 %v1176
    %v4802 = vunpack.c.l.b16 %v1177
    %v4803 = vunpack.c.h.b16 %v1177
    %v4804 = vunpack.c.l.b16 %v1178
    %v4805 = vunpack.c.h.b16 %v1178
    %v4806 = vunpack.c.l.b16 %v1179
    %v4807 = vunpack.c.h.b16 %v1179
    %v4808 = vunpack.c.l.b16 %v1180
    %v4809 = vunpack.c.h.b16 %v1180
    %v4810 = vunpack.c.l.b16 %v1181
    %v4811 = vunpack.c.h.b16 %v1181
    %v4812 = vunpack.c.l.b16 %v1182
    %v4813 = vunpack.c.h.b16 %v1182
    %v4814 = vunpack.c.l.b16 %v1183
    %v4815 = vunpack.c.h.b16 %v1183
    %v4816 = vunpack.c.l.b16 %v1184
    %v4817 = vunpack.c.h.b16 %v1184
    %v4818 = vunpack.c.l.b16 %v1185
    %v4819 = vunpack.c.h.b16 %v1185
    %v4820 = vunpack.c.l.b16 %v1186
    %v4821 = vunpack.c.h.b16 %v1186
    %v4822 = vunpack.c.l.b16 %v1187
    %v4823 = vunpack.c.h.b16 %v1187
    %v4824 = vunpack.c.l.b16 %v1188
    %v4825 = vunpack.c.h.b16 %v1188
    %v4826 = vunpack.c.l.b16 %v1189
    %v4827 = vunpack.c.h.b16 %v1189
    %v4828 = vunpack.c.l.b16 %v1190
    %v4829 = vunpack.c.h.b16 %v1190
    %v4830 = vunpack.c.l.b16 %v1191
    %v4831 = vunpack.c.h.b16 %v1191
    %v4832 = vunpack.c.l.b16 %v1192
    %v4833 = vunpack.c.h.b16 %v1192
    %v4834 = vunpack.c.l.b16 %v1193
    %v4835 = vunpack.c.h.b16 %v1193
    %v4836 = vunpack.c.l.b16 %v1194
    %v4837 = vunpack.c.h.b16 %v1194
    %v4838 = vunpack.c.l.b16 %v1195
    %v4839 = vunpack.c.h.b16 %v1195
    %v4840 = vunpack.c.l.b16 %v1196
    %v4841 = vunpack.c.h.b16 %v1196
    %v4842 = vunpack.c.l.b16 %v1197
    %v4843 = vunpack.c.h.b16 %v1197
    %v4844 = vunpack.c.l.b16 %v1198
    %v4845 = vunpack.c.h.b16 %v1198
    %v4846 = vunpack.c.l.b16 %v1199
    %v4847 = vunpack.c.h.b16 %v1199
    %v4848 = vunpack.c.l.b16 %v1200
    %v4849 = vunpack.c.h.b16 %v1200
    %v4850 = vunpack.c.l.b16 %v1201
    %v4851 = vunpack.c.h.b16 %v1201
    %v4852 = vunpack.c.l.b16 %v1202
    %v4853 = vunpack.c.h.b16 %v1202
    %v4854 = vunpack.c.l.b16 %v1203
    %v4855 = vunpack.c.h.b16 %v1203
    %v4856 = vunpack.c.l.b16 %v1204
    %v4857 = vunpack.c.h.b16 %v1204
    %v4858 = vunpack.c.l.b16 %v1205
    %v4859 = vunpack.c.h.b16 %v1205
    %v4860 = vunpack.c.l.b16 %v1206
    %v4861 = vunpack.c.h.b16 %v1206
    %v4862 = vunpack.c.l.b16 %v1207
    %v4863 = vunpack.c.h.b16 %v1207
    %v4864 = vunpack.c.l.b16 %v1208
    %v4865 = vunpack.c.h.b16 %v1208
    %v4866 = vunpack.c.l.b16 %v1209
    %v4867 = vunpack.c.h.b16 %v1209
    %v4868 = vunpack.c.l.b16 %v1210
    %v4869 = vunpack.c.h.b16 %v1210
    %v4870 = vunpack.c.l.b16 %v1211
    %v4871 = vunpack.c.h.b16 %v1211
    %v4872 = vunpack.c.l.b16 %v1212
    %v4873 = vunpack.c.h.b16 %v1212
    %v4874 = vunpack.c.l.b16 %v1213
    %v4875 = vunpack.c.h.b16 %v1213
    %v4876 = vunpack.c.l.b16 %v1214
    %v4877 = vunpack.c.h.b16 %v1214
    %v4878 = vunpack.c.l.b16 %v1215
    %v4879 = vunpack.c.h.b16 %v1215
    %v4880 = vunpack.c.l.b16 %v1216
    %v4881 = vunpack.c.h.b16 %v1216
    %v4882 = vunpack.c.l.b16 %v1217
    %v4883 = vunpack.c.h.b16 %v1217
    %v4884 = vunpack.c.l.b16 %v1218
    %v4885 = vunpack.c.h.b16 %v1218
    %v4886 = vpack.c.b16 %v2736, %v2650
    %v4887 = vpack.c.b16 %v2737, %v2651
    %v4888 = vpack.c.b16 %v2738, %v2652
    %v4889 = vpack.c.b16 %v2739, %v2653
    %v4890 = vpack.c.b16 %v2740, %v2654
    %v4891 = vpack.c.b16 %v2741, %v2655
    %v4892 = vpack.c.b16 %v2742, %v2656
    %v4893 = vpack.c.b16 %v2743, %v2657
    %v4894 = vpack.c.b16 %v2744, %v2658
    %v4895 = vpack.c.b16 %v2745, %v2659
    %v4896 = vpack.c.b16 %v2746, %v2660
    %v4897 = vpack.c.b16 %v2747, %v2661
    %v4898 = vpack.c.b16 %v2748, %v2662
    %v4899 = vpack.c.b16 %v2749, %v2663
    %v4900 = vpack.c.b16 %v2750, %v2664
    %v4901 = vpack.c.b16 %v2751, %v2665
    %v4902 = vpack.c.b16 %v2752, %v2666
    %v4903 = vpack.c.b16 %v2753, %v2667
    %v4904 = vpack.c.b16 %v2754, %v2668
    %v4905 = vpack.c.b16 %v2755, %v2669
    %v4906 = vpack.c.b16 %v2756, %v2670
    %v4907 = vpack.c.b16 %v2757, %v2671
    %v4908 = vpack.c.b16 %v2758, %v2672
    %v4909 = vpack.c.b16 %v2759, %v2673
    %v4910 = vpack.c.b16 %v2760, %v2674
    %v4911 = vpack.c.b16 %v2761, %v2675
    %v4912 = vpack.c.b16 %v2762, %v2676
    %v4913 = vpack.c.b16 %v2763, %v2677
    %v4914 = vpack.c.b16 %v2764, %v2678
    %v4915 = vpack.c.b16 %v2765, %v2679
    %v4916 = vpack.c.b16 %v2766, %v2680
    %v4917 = vpack.c.b16 %v2767, %v2681
    %v4918 = vpack.c.b16 %v2768, %v2682
    %v4919 = vpack.c.b16 %v2769, %v2683
    %v4920 = vpack.c.b16 %v2770, %v2684
    %v4921 = vpack.c.b16 %v2771, %v2685
    %v4922 = vpack.c.b16 %v2772, %v2686
    %v4923 = vpack.c.b16 %v2773, %v2687
    %v4924 = vpack.c.b16 %v2774, %v2688
    %v4925 = vpack.c.b16 %v2775, %v2689
    %v4926 = vpack.c.b16 %v2776, %v2690
    %v4927 = vpack.c.b16 %v2777, %v2691
    %v4928 = vpack.c.b16 %v2778, %v2692
    %v4929 = vpack.c.b16 %v2779, %v2693
    %v4930 = vpack.c.b16 %v2780, %v2694
    %v4931 = vpack.c.b16 %v2781, %v2695
    %v4932 = vpack.c.b16 %v2782, %v2696
    %v4933 = vpack.c.b16 %v2783, %v2697
    %v4934 = vpack.c.b16 %v2784, %v2698
    %v4935 = vpack.c.b16 %v2785, %v2699
    %v4936 = vpack.c.b16 %v2786, %v2700
    %v4937 = vpack.c.b16 %v2787, %v2701
    %v4938 = vpack.c.b16 %v2788, %v2702
    %v4939 = vpack.c.b16 %v2789, %v2703
    %v4940 = vpack.c.b16 %v2790, %v2704
    %v4941 = vpack.c.b16 %v2791, %v2705
    %v4942 = vpack.c.b16 %v2792, %v2706
    %v4943 = vpack.c.b16 %v2793, %v2707
    %v4944 = vpack.c.b16 %v2794, %v2708
    %v4945 = vpack.c.b16 %v2795, %v2709
    %v4946 = vpack.c.b16 %v2796, %v2710
    %v4947 = vpack.c.b16 %v2797, %v2711
    %v4948 = vpack.c.b16 %v2798, %v2712
    %v4949 = vpack.c.b16 %v2799, %v2713
    %v4950 = vpack.c.b16 %v2800, %v2714
    %v4951 = vpack.c.b16 %v2801, %v2715
    %v4952 = vpack.c.b16 %v2802, %v2716
    %v4953 = vpack.c.b16 %v2803, %v2717
    %v4954 = vpack.c.b16 %v2804, %v2718
    %v4955 = vpack.c.b16 %v2805, %v2719
    %v4956 = vpack.c.b16 %v2806, %v2720
    %v4957 = vpack.c.b16 %v2807, %v2721
    %v4958 = vpack.c.b16 %v2808, %v2722
    %v4959 = vpack.c.b16 %v2809, %v2723
    %v4960 = vpack.c.b16 %v2810, %v2724
    %v4961 = vpack.c.b16 %v2811, %v2725
    %v4962 = vpack.c.b16 %v2812, %v2726
    %v4963 = vpack.c.b16 %v2813, %v2727
    %v4964 = vpack.c.b16 %v2814, %v2728
    %v4965 = vpack.c.b16 %v2815, %v2729
    %v4966 = vpack.c.b16 %v2816, %v2730
    %v4967 = vpack.c.b16 %v2817, %v2731
    %v4968 = vpack.c.b16 %v2818, %v2732
    %v4969 = vpack.c.b16 %v2819, %v2733
    %v4970 = vpack.c.b16 %v2820, %v2734
    %v4971 = vpack.c.b16 %v2821, %v2735
    %v4972 = vpack.c.b16 %v2908, %v2822
    %v4973 = vpack.c.b16 %v2909, %v2823
    %v4974 = vpack.c.b16 %v2910, %v2824
    %v4975 = vpack.c.b16 %v2911, %v2825
    %v4976 = vpack.c.b16 %v2912, %v2826
    %v4977 = vpack.c.b16 %v2913, %v2827
    %v4978 = vpack.c.b16 %v2914, %v2828
    %v4979 = vpack.c.b16 %v2915, %v2829
    %v4980 = vpack.c.b16 %v2916, %v2830
    %v4981 = vpack.c.b16 %v2917, %v2831
    %v4982 = vpack.c.b16 %v2918, %v2832
    %v4983 = vpack.c.b16 %v2919, %v2833
    %v4984 = vpack.c.b16 %v2920, %v2834
    %v4985 = vpack.c.b16 %v2921, %v2835
    %v4986 = vpack.c.b16 %v2922, %v2836
    %v4987 = vpack.c.b16 %v2923, %v2837
    %v4988 = vpack.c.b16 %v2924, %v2838
    %v4989 = vpack.c.b16 %v2925, %v2839
    %v4990 = vpack.c.b16 %v2926, %v2840
    %v4991 = vpack.c.b16 %v2927, %v2841
    %v4992 = vpack.c.b16 %v2928, %v2842
    %v4993 = vpack.c.b16 %v2929, %v2843
    %v4994 = vpack.c.b16 %v2930, %v2844
    %v4995 = vpack.c.b16 %v2931, %v2845
    %v4996 = vpack.c.b16 %v2932, %v2846
    %v4997 = vpack.c.b16 %v2933, %v2847
    %v4998 = vpack.c.b16 %v2934, %v2848
    %v4999 = vpack.c.b16 %v2935, %v2849
    %v5000 = vpack.c.b16 %v2936, %v2850
    %v5001 = vpack.c.b16 %v2937, %v2851
    %v5002 = vpack.c.b16 %v2938, %v2852
    %v5003 = vpack.c.b16 %v2939, %v2853
    %v5004 = vpack.c.b16 %v2940, %v2854
    %v5005 = vpack.c.b16 %v2941, %v2855
    %v5006 = vpack.c.b16 %v2942, %v2856
    %v5007 = vpack.c.b16 %v2943, %v2857
    %v5008 = vpack.c.b16 %v2944, %v2858
    %v5009 = vpack.c.b16 %v2945, %v2859
    %v5010 = vpack.c.b16 %v2946, %v2860
    %v5011 = vpack.c.b16 %v2947, %v2861
    %v5012 = vpack.c.b16 %v2948, %v2862
    %v5013 = vpack.c.b16 %v2949, %v2863
    %v5014 = vpack.c.b16 %v2950, %v2864
    %v5015 = vpack.c.b16 %v2951, %v2865
    %v5016 = vpack.c.b16 %v2952, %v2866
    %v5017 = vpack.c.b16 %v2953, %v2867
    %v5018 = vpack.c.b16 %v2954, %v2868
    %v5019 = vpack.c.b16 %v2955, %v2869
    %v5020 = vpack.c.b16 %v2956, %v2870
    %v5021 = vpack.c.b16 %v2957, %v2871
    %v5022 = vpack.c.b16 %v2958, %v2872
    %v5023 = vpack.c.b16 %v2959, %v2873
    %v5024 = vpack.c.b16 %v2960, %v2874
    %v5025 = vpack.c.b16 %v2961, %v2875
    %v5026 = vpack.c.b16 %v2962, %v2876
    %v5027 = vpack.c.b16 %v2963, %v2877
    %v5028 = vpack.c.b16 %v2964, %v2878
    %v5029 = vpack.c.b16 %v2965, %v2879
    %v5030 = vpack.c.b16 %v2966, %v2880
    %v5031 = vpack.c.b16 %v2967, %v2881
    %v5032 = vpack.c.b16 %v2968, %v2882
    %v5033 = vpack.c.b16 %v2969, %v2883
    %v5034 = vpack.c.b16 %v2970, %v2884
    %v5035 = vpack.c.b16 %v2971, %v2885
    %v5036 = vpack.c.b16 %v2972, %v2886
    %v5037 = vpack.c.b16 %v2973, %v2887
    %v5038 = vpack.c.b16 %v2974, %v2888
    %v5039 = vpack.c.b16 %v2975, %v2889
    %v5040 = vpack.c.b16 %v2976, %v2890
    %v5041 = vpack.c.b16 %v2977, %v2891
    %v5042 = vpack.c.b16 %v2978, %v2892
    %v5043 = vpack.c.b16 %v2979, %v2893
    %v5044 = vpack.c.b16 %v2980, %v2894
    %v5045 = vpack.c.b16 %v2981, %v2895
    %v5046 = vpack.c.b16 %v2982, %v2896
    %v5047 = vpack.c.b16 %v2983, %v2897
    %v5048 = vpack.c.b16 %v2984, %v2898
    %v5049 = vpack.c.b16 %v2985, %v2899
    %v5050 = vpack.c.b16 %v2986, %v2900
    %v5051 = vpack.c.b16 %v2987, %v2901
    %v5052 = vpack.c.b16 %v2988, %v2902
    %v5053 = vpack.c.b16 %v2989, %v2903
    %v5054 = vpack.c.b16 %v2990, %v2904
    %v5055 = vpack.c.b16 %v2991, %v2905
    %v5056 = vpack.c.b16 %v2992, %v2906
    %v5057 = vpack.c.b16 %v2993, %v2907
    %v5058 = vpack.c.b16 %v3080, %v2994
    %v5059 = vpack.c.b16 %v3081, %v2995
    %v5060 = vpack.c.b16 %v3082, %v2996
    %v5061 = vpack.c.b16 %v3083, %v2997
    %v5062 = vpack.c.b16 %v3084, %v2998
    %v5063 = vpack.c.b16 %v3085, %v2999
    %v5064 = vpack.c.b16 %v3086, %v3000
    %v5065 = vpack.c.b16 %v3087, %v3001
    %v5066 = vpack.c.b16 %v3088, %v3002
    %v5067 = vpack.c.b16 %v3089, %v3003
    %v5068 = vpack.c.b16 %v3090, %v3004
    %v5069 = vpack.c.b16 %v3091, %v3005
    %v5070 = vpack.c.b16 %v3092, %v3006
    %v5071 = vpack.c.b16 %v3093, %v3007
    %v5072 = vpack.c.b16 %v3094, %v3008
    %v5073 = vpack.c.b16 %v3095, %v3009
    %v5074 = vpack.c.b16 %v3096, %v3010
    %v5075 = vpack.c.b16 %v3097, %v3011
    %v5076 = vpack.c.b16 %v3098, %v3012
    %v5077 = vpack.c.b16 %v3099, %v3013
    %v5078 = vpack.c.b16 %v3100, %v3014
    %v5079 = vpack.c.b16 %v3101, %v3015
    %v5080 = vpack.c.b16 %v3102, %v3016
    %v5081 = vpack.c.b16 %v3103, %v3017
    %v5082 = vpack.c.b16 %v3104, %v3018
    %v5083 = vpack.c.b16 %v3105, %v3019
    %v5084 = vpack.c.b16 %v3106, %v3020
    %v5085 = vpack.c.b16 %v3107, %v3021
    %v5086 = vpack.c.b16 %v3108, %v3022
    %v5087 = vpack.c.b16 %v3109, %v3023
    %v5088 = vpack.c.b16 %v3110, %v3024
    %v5089 = vpack.c.b16 %v3111, %v3025
    %v5090 = vpack.c.b16 %v3112, %v3026
    %v5091 = vpack.c.b16 %v3113, %v3027
    %v5092 = vpack.c.b16 %v3114, %v3028
    %v5093 = vpack.c.b16 %v3115, %v3029
    %v5094 = vpack.c.b16 %v3116, %v3030
    %v5095 = vpack.c.b16 %v3117, %v3031
    %v5096 = vpack.c.b16 %v3118, %v3032
    %v5097 = vpack.c.b16 %v3119, %v3033
    %v5098 = vpack.c.b16 %v3120, %v3034
    %v5099 = vpack.c.b16 %v3121, %v3035
    %v5100 = vpack.c.b16 %v3122, %v3036
    %v5101 = vpack.c.b16 %v3123, %v3037
    %v5102 = vpack.c.b16 %v3124, %v3038
    %v5103 = vpack.c.b16 %v3125, %v3039
    %v5104 = vpack.c.b16 %v3126, %v3040
    %v5105 = vpack.c.b16 %v3127, %v3041
    %v5106 = vpack.c.b16 %v3128, %v3042
    %v5107 = vpack.c.b16 %v3129, %v3043
    %v5108 = vpack.c.b16 %v3130, %v3044
    %v5109 = vpack.c.b16 %v3131, %v3045
    %v5110 = vpack.c.b16 %v3132, %v3046
    %v5111 = vpack.c.b16 %v3133, %v3047
    %v5112 = vpack.c.b16 %v3134, %v3048
    %v5113 = vpack.c.b16 %v3135, %v3049
    %v5114 = vpack.c.b16 %v3136, %v3050
    %v5115 = vpack.c.b16 %v3137, %v3051
    %v5116 = vpack.c.b16 %v3138, %v3052
    %v5117 = vpack.c.b16 %v3139, %v3053
    %v5118 = vpack.c.b16 %v3140, %v3054
    %v5119 = vpack.c.b16 %v3141, %v3055
    %v5120 = vpack.c.b16 %v3142, %v3056
    %v5121 = vpack.c.b16 %v3143, %v3057
    %v5122 = vpack.c.b16 %v3144, %v3058
    %v5123 = vpack.c.b16 %v3145, %v3059
    %v5124 = vpack.c.b16 %v3146, %v3060
    %v5125 = vpack.c.b16 %v3147, %v3061
    %v5126 = vpack.c.b16 %v3148, %v3062
    %v5127 = vpack.c.b16 %v3149, %v3063
    %v5128 = vpack.c.b16 %v3150, %v3064
    %v5129 = vpack.c.b16 %v3151, %v3065
    %v5130 = vpack.c.b16 %v3152, %v3066
    %v5131 = vpack.c.b16 %v3153, %v3067
    %v5132 = vpack.c.b16 %v3154, %v3068
    %v5133 = vpack.c.b16 %v3155, %v3069
    %v5134 = vpack.c.b16 %v3156, %v3070
    %v5135 = vpack.c.b16 %v3157, %v3071
    %v5136 = vpack.c.b16 %v3158, %v3072
    %v5137 = vpack.c.b16 %v3159, %v3073
    %v5138 = vpack.c.b16 %v3160, %v3074
    %v5139 = vpack.c.b16 %v3161, %v3075
    %v5140 = vpack.c.b16 %v3162, %v3076
    %v5141 = vpack.c.b16 %v3163, %v3077
    %v5142 = vpack.c.b16 %v3164, %v3078
    %v5143 = vpack.c.b16 %v3165, %v3079
    %v5144 = vpack.c.b16 %v3252, %v3166
    %v5145 = vpack.c.b16 %v3253, %v3167
    %v5146 = vpack.c.b16 %v3254, %v3168
    %v5147 = vpack.c.b16 %v3255, %v3169
    %v5148 = vpack.c.b16 %v3256, %v3170
    %v5149 = vpack.c.b16 %v3257, %v3171
    %v5150 = vpack.c.b16 %v3258, %v3172
    %v5151 = vpack.c.b16 %v3259, %v3173
    %v5152 = vpack.c.b16 %v3260, %v3174
    %v5153 = vpack.c.b16 %v3261, %v3175
    %v5154 = vpack.c.b16 %v3262, %v3176
    %v5155 = vpack.c.b16 %v3263, %v3177
    %v5156 = vpack.c.b16 %v3264, %v3178
    %v5157 = vpack.c.b16 %v3265, %v3179
    %v5158 = vpack.c.b16 %v3266, %v3180
    %v5159 = vpack.c.b16 %v3267, %v3181
    %v5160 = vpack.c.b16 %v3268, %v3182
    %v5161 = vpack.c.b16 %v3269, %v3183
    %v5162 = vpack.c.b16 %v3270, %v3184
    %v5163 = vpack.c.b16 %v3271, %v3185
    %v5164 = vpack.c.b16 %v3272, %v3186
    %v5165 = vpack.c.b16 %v3273, %v3187
    %v5166 = vpack.c.b16 %v3274, %v3188
    %v5167 = vpack.c.b16 %v3275, %v3189
    %v5168 = vpack.c.b16 %v3276, %v3190
    %v5169 = vpack.c.b16 %v3277, %v3191
    %v5170 = vpack.c.b16 %v3278, %v3192
    %v5171 = vpack.c.b16 %v3279, %v3193
    %v5172 = vpack.c.b16 %v3280, %v3194
    %v5173 = vpack.c.b16 %v3281, %v3195
    %v5174 = vpack.c.b16 %v3282, %v3196
    %v5175 = vpack.c.b16 %v3283, %v3197
    %v5176 = vpack.c.b16 %v3284, %v3198
    %v5177 = vpack.c.b16 %v3285, %v3199
    %v5178 = vpack.c.b16 %v3286, %v3200
    %v5179 = vpack.c.b16 %v3287, %v3201
    %v5180 = vpack.c.b16 %v3288, %v3202
    %v5181 = vpack.c.b16 %v3289, %v3203
    %v5182 = vpack.c.b16 %v3290, %v3204
    %v5183 = vpack.c.b16 %v3291, %v3205
    %v5184 = vpack.c.b16 %v3292, %v3206
    %v5185 = vpack.c.b16 %v3293, %v3207
    %v5186 = vpack.c.b16 %v3294, %v3208
    %v5187 = vpack.c.b16 %v3295, %v3209
    %v5188 = vpack.c.b16 %v3296, %v3210
    %v5189 = vpack.c.b16 %v3297, %v3211
    %v5190 = vpack.c.b16 %v3298, %v3212
    %v5191 = vpack.c.b16 %v3299, %v3213
    %v5192 = vpack.c.b16 %v3300, %v3214
    %v5193 = vpack.c.b16 %v3301, %v3215
    %v5194 = vpack.c.b16 %v3302, %v3216
    %v5195 = vpack.c.b16 %v3303, %v3217
    %v5196 = vpack.c.b16 %v3304, %v3218
    %v5197 = vpack.c.b16 %v3305, %v3219
    %v5198 = vpack.c.b16 %v3306, %v3220
    %v5199 = vpack.c.b16 %v3307, %v3221
    %v5200 = vpack.c.b16 %v3308, %v3222
    %v5201 = vpack.c.b16 %v3309, %v3223
    %v5202 = vpack.c.b16 %v3310, %v3224
    %v5203 = vpack.c.b16 %v3311, %v3225
    %v5204 = vpack.c.b16 %v3312, %v3226
    %v5205 = vpack.c.b16 %v3313, %v3227
    %v5206 = vpack.c.b16 %v3314, %v3228
    %v5207 = vpack.c.b16 %v3315, %v3229
    %v5208 = vpack.c.b16 %v3316, %v3230
    %v5209 = vpack.c.b16 %v3317, %v3231
    %v5210 = vpack.c.b16 %v3318, %v3232
    %v5211 = vpack.c.b16 %v3319, %v3233
    %v5212 = vpack.c.b16 %v3320, %v3234
    %v5213 = vpack.c.b16 %v3321, %v3235
    %v5214 = vpack.c.b16 %v3322, %v3236
    %v5215 = vpack.c.b16 %v3323, %v3237
    %v5216 = vpack.c.b16 %v3324, %v3238
    %v5217 = vpack.c.b16 %v3325, %v3239
    %v5218 = vpack.c.b16 %v3326, %v3240
    %v5219 = vpack.c.b16 %v3327, %v3241
    %v5220 = vpack.c.b16 %v3328, %v3242
    %v5221 = vpack.c.b16 %v3329, %v3243
    %v5222 = vpack.c.b16 %v3330, %v3244
    %v5223 = vpack.c.b16 %v3331, %v3245
    %v5224 = vpack.c.b16 %v3332, %v3246
    %v5225 = vpack.c.b16 %v3333, %v3247
    %v5226 = vpack.c.b16 %v3334, %v3248
    %v5227 = vpack.c.b16 %v3335, %v3249
    %v5228 = vpack.c.b16 %v3336, %v3250
    %v5229 = vpack.c.b16 %v3337, %v3251
    %v5230 = vpack.c.b16 %v3424, %v3338
    %v5231 = vpack.c.b16 %v3425, %v3339
    %v5232 = vpack.c.b16 %v3426, %v3340
    %v5233 = vpack.c.b16 %v3427, %v3341
    %v5234 = vpack.c.b16 %v3428, %v3342
    %v5235 = vpack.c.b16 %v3429, %v3343
    %v5236 = vpack.c.b16 %v3430, %v3344
    %v5237 = vpack.c.b16 %v3431, %v3345
    %v5238 = vpack.c.b16 %v3432, %v3346
    %v5239 = vpack.c.b16 %v3433, %v3347
    %v5240 = vpack.c.b16 %v3434, %v3348
    %v5241 = vpack.c.b16 %v3435, %v3349
    %v5242 = vpack.c.b16 %v3436, %v3350
    %v5243 = vpack.c.b16 %v3437, %v3351
    %v5244 = vpack.c.b16 %v3438, %v3352
    %v5245 = vpack.c.b16 %v3439, %v3353
    %v5246 = vpack.c.b16 %v3440, %v3354
    %v5247 = vpack.c.b16 %v3441, %v3355
    %v5248 = vpack.c.b16 %v3442, %v3356
    %v5249 = vpack.c.b16 %v3443, %v3357
    %v5250 = vpack.c.b16 %v3444, %v3358
    %v5251 = vpack.c.b16 %v3445, %v3359
    %v5252 = vpack.c.b16 %v3446, %v3360
    %v5253 = vpack.c.b16 %v3447, %v3361
    %v5254 = vpack.c.b16 %v3448, %v3362
    %v5255 = vpack.c.b16 %v3449, %v3363
    %v5256 = vpack.c.b16 %v3450, %v3364
    %v5257 = vpack.c.b16 %v3451, %v3365
    %v5258 = vpack.c.b16 %v3452, %v3366
    %v5259 = vpack.c.b16 %v3453, %v3367
    %v5260 = vpack.c.b16 %v3454, %v3368
    %v5261 = vpack.c.b16 %v3455, %v3369
    %v5262 = vpack.c.b16 %v3456, %v3370
    %v5263 = vpack.c.b16 %v3457, %v3371
    %v5264 = vpack.c.b16 %v3458, %v3372
    %v5265 = vpack.c.b16 %v3459, %v3373
    %v5266 = vpack.c.b16 %v3460, %v3374
    %v5267 = vpack.c.b16 %v3461, %v3375
    %v5268 = vpack.c.b16 %v3462, %v3376
    %v5269 = vpack.c.b16 %v3463, %v3377
    %v5270 = vpack.c.b16 %v3464, %v3378
    %v5271 = vpack.c.b16 %v3465, %v3379
    %v5272 = vpack.c.b16 %v3466, %v3380
    %v5273 = vpack.c.b16 %v3467, %v3381
    %v5274 = vpack.c.b16 %v3468, %v3382
    %v5275 = vpack.c.b16 %v3469, %v3383
    %v5276 = vpack.c.b16 %v3470, %v3384
    %v5277 = vpack.c.b16 %v3471, %v3385
    %v5278 = vpack.c.b16 %v3472, %v3386
    %v5279 = vpack.c.b16 %v3473, %v3387
    %v5280 = vpack.c.b16 %v3474, %v3388
    %v5281 = vpack.c.b16 %v3475, %v3389
    %v5282 = vpack.c.b16 %v3476, %v3390
    %v5283 = vpack.c.b16 %v3477, %v3391
    %v5284 = vpack.c.b16 %v3478, %v3392
    %v5285 = vpack.c.b16 %v3479, %v3393
    %v5286 = vpack.c.b16 %v3480, %v3394
    %v5287 = vpack.c.b16 %v3481, %v3395
    %v5288 = vpack.c.b16 %v3482, %v3396
    %v5289 = vpack.c.b16 %v3483, %v3397
    %v5290 = vpack.c.b16 %v3484, %v3398
    %v5291 = vpack.c.b16 %v3485, %v3399
    %v5292 = vpack.c.b16 %v3486, %v3400
    %v5293 = vpack.c.b16 %v3487, %v3401
    %v5294 = vpack.c.b16 %v3488, %v3402
    %v5295 = vpack.c.b16 %v3489, %v3403
    %v5296 = vpack.c.b16 %v3490, %v3404
    %v5297 = vpack.c.b16 %v3491, %v3405
    %v5298 = vpack.c.b16 %v3492, %v3406
    %v5299 = vpack.c.b16 %v3493, %v3407
    %v5300 = vpack.c.b16 %v3494, %v3408
    %v5301 = vpack.c.b16 %v3495, %v3409
    %v5302 = vpack.c.b16 %v3496, %v3410
    %v5303 = vpack.c.b16 %v3497, %v3411
    %v5304 = vpack.c.b16 %v3498, %v3412
    %v5305 = vpack.c.b16 %v3499, %v3413
    %v5306 = vpack.c.b16 %v3500, %v3414
    %v5307 = vpack.c.b16 %v3501, %v3415
    %v5308 = vpack.c.b16 %v3502, %v3416
    %v5309 = vpack.c.b16 %v3503, %v3417
    %v5310 = vpack.c.b16 %v3504, %v3418
    %v5311 = vpack.c.b16 %v3505, %v3419
    %v5312 = vpack.c.b16 %v3506, %v3420
    %v5313 = vpack.c.b16 %v3507, %v3421
    %v5314 = vpack.c.b16 %v3508, %v3422
    %v5315 = vpack.c.b16 %v3509, %v3423
    %v5316 = vpack.c.b16 %v3596, %v3510
    %v5317 = vpack.c.b16 %v3597, %v3511
    %v5318 = vpack.c.b16 %v3598, %v3512
    %v5319 = vpack.c.b16 %v3599, %v3513
    %v5320 = vpack.c.b16 %v3600, %v3514
    %v5321 = vpack.c.b16 %v3601, %v3515
    %v5322 = vpack.c.b16 %v3602, %v3516
    %v5323 = vpack.c.b16 %v3603, %v3517
    %v5324 = vpack.c.b16 %v3604, %v3518
    %v5325 = vpack.c.b16 %v3605, %v3519
    %v5326 = vpack.c.b16 %v3606, %v3520
    %v5327 = vpack.c.b16 %v3607, %v3521
    %v5328 = vpack.c.b16 %v3608, %v3522
    %v5329 = vpack.c.b16 %v3609, %v3523
    %v5330 = vpack.c.b16 %v3610, %v3524
    %v5331 = vpack.c.b16 %v3611, %v3525
    %v5332 = vpack.c.b16 %v3612, %v3526
    %v5333 = vpack.c.b16 %v3613, %v3527
    %v5334 = vpack.c.b16 %v3614, %v3528
    %v5335 = vpack.c.b16 %v3615, %v3529
    %v5336 = vpack.c.b16 %v3616, %v3530
    %v5337 = vpack.c.b16 %v3617, %v3531
    %v5338 = vpack.c.b16 %v3618, %v3532
    %v5339 = vpack.c.b16 %v3619, %v3533
    %v5340 = vpack.c.b16 %v3620, %v3534
    %v5341 = vpack.c.b16 %v3621, %v3535
    %v5342 = vpack.c.b16 %v3622, %v3536
    %v5343 = vpack.c.b16 %v3623, %v3537
    %v5344 = vpack.c.b16 %v3624, %v3538
    %v5345 = vpack.c.b16 %v3625, %v3539
    %v5346 = vpack.c.b16 %v3626, %v3540
    %v5347 = vpack.c.b16 %v3627, %v3541
    %v5348 = vpack.c.b16 %v3628, %v3542
    %v5349 = vpack.c.b16 %v3629, %v3543
    %v5350 = vpack.c.b16 %v3630, %v3544
    %v5351 = vpack.c.b16 %v3631, %v3545
    %v5352 = vpack.c.b16 %v3632, %v3546
    %v5353 = vpack.c.b16 %v3633, %v3547
    %v5354 = vpack.c.b16 %v3634, %v3548
    %v5355 = vpack.c.b16 %v3635, %v3549
    %v5356 = vpack.c.b16 %v3636, %v3550
    %v5357 = vpack.c.b16 %v3637, %v3551
    %v5358 = vpack.c.b16 %v3638, %v3552
    %v5359 = vpack.c.b16 %v3639, %v3553
    %v5360 = vpack.c.b16 %v3640, %v3554
    %v5361 = vpack.c.b16 %v3641, %v3555
    %v5362 = vpack.c.b16 %v3642, %v3556
    %v5363 = vpack.c.b16 %v3643, %v3557
    %v5364 = vpack.c.b16 %v3644, %v3558
    %v5365 = vpack.c.b16 %v3645, %v3559
    %v5366 = vpack.c.b16 %v3646, %v3560
    %v5367 = vpack.c.b16 %v3647, %v3561
    %v5368 = vpack.c.b16 %v3648, %v3562
    %v5369 = vpack.c.b16 %v3649, %v3563
    %v5370 = vpack.c.b16 %v3650, %v3564
    %v5371 = vpack.c.b16 %v3651, %v3565
    %v5372 = vpack.c.b16 %v3652, %v3566
    %v5373 = vpack.c.b16 %v3653, %v3567
    %v5374 = vpack.c.b16 %v3654, %v3568
    %v5375 = vpack.c.b16 %v3655, %v3569
    %v5376 = vpack.c.b16 %v3656, %v3570
    %v5377 = vpack.c.b16 %v3657, %v3571
    %v5378 = vpack.c.b16 %v3658, %v3572
    %v5379 = vpack.c.b16 %v3659, %v3573
    %v5380 = vpack.c.b16 %v3660, %v3574
    %v5381 = vpack.c.b16 %v3661, %v3575
    %v5382 = vpack.c.b16 %v3662, %v3576
    %v5383 = vpack.c.b16 %v3663, %v3577
    %v5384 = vpack.c.b16 %v3664, %v3578
    %v5385 = vpack.c.b16 %v3665, %v3579
    %v5386 = vpack.c.b16 %v3666, %v3580
    %v5387 = vpack.c.b16 %v3667, %v3581
    %v5388 = vpack.c.b16 %v3668, %v3582
    %v5389 = vpack.c.b16 %v3669, %v3583
    %v5390 = vpack.c.b16 %v3670, %v3584
    %v5391 = vpack.c.b16 %v3671, %v3585
    %v5392 = vpack.c.b16 %v3672, %v3586
    %v5393 = vpack.c.b16 %v3673, %v3587
    %v5394 = vpack.c.b16 %v3674, %v3588
    %v5395 = vpack.c.b16 %v3675, %v3589
    %v5396 = vpack.c.b16 %v3676, %v3590
    %v5397 = vpack.c.b16 %v3677, %v3591
    %v5398 = vpack.c.b16 %v3678, %v3592
    %v5399 = vpack.c.b16 %v3679, %v3593
    %v5400 = vpack.c.b16 %v3680, %v3594
    %v5401 = vpack.c.b16 %v3681, %v3595
    %v5402 = vpack.c.b16 %v3768, %v3682
    %v5403 = vpack.c.b16 %v3769, %v3683
    %v5404 = vpack.c.b16 %v3770, %v3684
    %v5405 = vpack.c.b16 %v3771, %v3685
    %v5406 = vpack.c.b16 %v3772, %v3686
    %v5407 = vpack.c.b16 %v3773, %v3687
    %v5408 = vpack.c.b16 %v3774, %v3688
    %v5409 = vpack.c.b16 %v3775, %v3689
    %v5410 = vpack.c.b16 %v3776, %v3690
    %v5411 = vpack.c.b16 %v3777, %v3691
    %v5412 = vpack.c.b16 %v3778, %v3692
    %v5413 = vpack.c.b16 %v3779, %v3693
    %v5414 = vpack.c.b16 %v3780, %v3694
    %v5415 = vpack.c.b16 %v3781, %v3695
    %v5416 = vpack.c.b16 %v3782, %v3696
    %v5417 = vpack.c.b16 %v3783, %v3697
    %v5418 = vpack.c.b16 %v3784, %v3698
    %v5419 = vpack.c.b16 %v3785, %v3699
    %v5420 = vpack.c.b16 %v3786, %v3700
    %v5421 = vpack.c.b16 %v3787, %v3701
    %v5422 = vpack.c.b16 %v3788, %v3702
    %v5423 = vpack.c.b16 %v3789, %v3703
    %v5424 = vpack.c.b16 %v3790, %v3704
    %v5425 = vpack.c.b16 %v3791, %v3705
    %v5426 = vpack.c.b16 %v3792, %v3706
    %v5427 = vpack.c.b16 %v3793, %v3707
    %v5428 = vpack.c.b16 %v3794, %v3708
    %v5429 = vpack.c.b16 %v3795, %v3709
    %v5430 = vpack.c.b16 %v3796, %v3710
    %v5431 = vpack.c.b16 %v3797, %v3711
    %v5432 = vpack.c.b16 %v3798, %v3712
    %v5433 = vpack.c.b16 %v3799, %v3713
    %v5434 = vpack.c.b16 %v3800, %v3714
    %v5435 = vpack.c.b16 %v3801, %v3715
    %v5436 = vpack.c.b16 %v3802, %v3716
    %v5437 = vpack.c.b16 %v3803, %v3717
    %v5438 = vpack.c.b16 %v3804, %v3718
    %v5439 = vpack.c.b16 %v3805, %v3719
    %v5440 = vpack.c.b16 %v3806, %v3720
    %v5441 = vpack.c.b16 %v3807, %v3721
    %v5442 = vpack.c.b16 %v3808, %v3722
    %v5443 = vpack.c.b16 %v3809, %v3723
    %v5444 = vpack.c.b16 %v3810, %v3724
    %v5445 = vpack.c.b16 %v3811, %v3725
    %v5446 = vpack.c.b16 %v3812, %v3726
    %v5447 = vpack.c.b16 %v3813, %v3727
    %v5448 = vpack.c.b16 %v3814, %v3728
    %v5449 = vpack.c.b16 %v3815, %v3729
    %v5450 = vpack.c.b16 %v3816, %v3730
    %v5451 = vpack.c.b16 %v3817, %v3731
    %v5452 = vpack.c.b16 %v3818, %v3732
    %v5453 = vpack.c.b16 %v3819, %v3733
    %v5454 = vpack.c.b16 %v3820, %v3734
    %v5455 = vpack.c.b16 %v3821, %v3735
    %v5456 = vpack.c.b16 %v3822, %v3736
    %v5457 = vpack.c.b16 %v3823, %v3737
    %v5458 = vpack.c.b16 %v3824, %v3738
    %v5459 = vpack.c.b16 %v3825, %v3739
    %v5460 = vpack.c.b16 %v3826, %v3740
    %v5461 = vpack.c.b16 %v3827, %v3741
    %v5462 = vpack.c.b16 %v3828, %v3742
    %v5463 = vpack.c.b16 %v3829, %v3743
    %v5464 = vpack.c.b16 %v3830, %v3744
    %v5465 = vpack.c.b16 %v3831, %v3745
    %v5466 = vpack.c.b16 %v3832, %v3746
    %v5467 = vpack.c.b16 %v3833, %v3747
    %v5468 = vpack.c.b16 %v3834, %v3748
    %v5469 = vpack.c.b16 %v3835, %v3749
    %v5470 = vpack.c.b16 %v3836, %v3750
    %v5471 = vpack.c.b16 %v3837, %v3751
    %v5472 = vpack.c.b16 %v3838, %v3752
    %v5473 = vpack.c.b16 %v3839, %v3753
    %v5474 = vpack.c.b16 %v3840, %v3754
    %v5475 = vpack.c.b16 %v3841, %v3755
    %v5476 = vpack.c.b16 %v3842, %v3756
    %v5477 = vpack.c.b16 %v3843, %v3757
    %v5478 = vpack.c.b16 %v3844, %v3758
    %v5479 = vpack.c.b16 %v3845, %v3759
    %v5480 = vpack.c.b16 %v3846, %v3760
    %v5481 = vpack.c.b16 %v3847, %v3761
    %v5482 = vpack.c.b16 %v3848, %v3762
    %v5483 = vpack.c.b16 %v3849, %v3763
    %v5484 = vpack.c.b16 %v3850, %v3764
    %v5485 = vpack.c.b16 %v3851, %v3765
    %v5486 = vpack.c.b16 %v3852, %v3766
    %v5487 = vpack.c.b16 %v3853, %v3767
    %v5488 = vpack.c.b16 %v3940, %v3854
    %v5489 = vpack.c.b16 %v3941, %v3855
    %v5490 = vpack.c.b16 %v3942, %v3856
    %v5491 = vpack.c.b16 %v3943, %v3857
    %v5492 = vpack.c.b16 %v3944, %v3858
    %v5493 = vpack.c.b16 %v3945, %v3859
    %v5494 = vpack.c.b16 %v3946, %v3860
    %v5495 = vpack.c.b16 %v3947, %v3861
    %v5496 = vpack.c.b16 %v3948, %v3862
    %v5497 = vpack.c.b16 %v3949, %v3863
    %v5498 = vpack.c.b16 %v3950, %v3864
    %v5499 = vpack.c.b16 %v3951, %v3865
    %v5500 = vpack.c.b16 %v3952, %v3866
    %v5501 = vpack.c.b16 %v3953, %v3867
    %v5502 = vpack.c.b16 %v3954, %v3868
    %v5503 = vpack.c.b16 %v3955, %v3869
    %v5504 = vpack.c.b16 %v3956, %v3870
    %v5505 = vpack.c.b16 %v3957, %v3871
    %v5506 = vpack.c.b16 %v3958, %v3872
    %v5507 = vpack.c.b16 %v3959, %v3873
    %v5508 = vpack.c.b16 %v3960, %v3874
    %v5509 = vpack.c.b16 %v3961, %v3875
    %v5510 = vpack.c.b16 %v3962, %v3876
    %v5511 = vpack.c.b16 %v3963, %v3877
    %v5512 = vpack.c.b16 %v3964, %v3878
    %v5513 = vpack.c.b16 %v3965, %v3879
    %v5514 = vpack.c.b16 %v3966, %v3880
    %v5515 = vpack.c.b16 %v3967, %v3881
    %v5516 = vpack.c.b16 %v3968, %v3882
    %v5517 = vpack.c.b16 %v3969, %v3883
    %v5518 = vpack.c.b16 %v3970, %v3884
    %v5519 = vpack.c.b16 %v3971, %v3885
    %v5520 = vpack.c.b16 %v3972, %v3886
    %v5521 = vpack.c.b16 %v3973, %v3887
    %v5522 = vpack.c.b16 %v3974, %v3888
    %v5523 = vpack.c.b16 %v3975, %v3889
    %v5524 = vpack.c.b16 %v3976, %v3890
    %v5525 = vpack.c.b16 %v3977, %v3891
    %v5526 = vpack.c.b16 %v3978, %v3892
    %v5527 = vpack.c.b16 %v3979, %v3893
    %v5528 = vpack.c.b16 %v3980, %v3894
    %v5529 = vpack.c.b16 %v3981, %v3895
    %v5530 = vpack.c.b16 %v3982, %v3896
    %v5531 = vpack.c.b16 %v3983, %v3897
    %v5532 = vpack.c.b16 %v3984, %v3898
    %v5533 = vpack.c.b16 %v3985, %v3899
    %v5534 = vpack.c.b16 %v3986, %v3900
    %v5535 = vpack.c.b16 %v3987, %v3901
    %v5536 = vpack.c.b16 %v3988, %v3902
    %v5537 = vpack.c.b16 %v3989, %v3903
    %v5538 = vpack.c.b16 %v3990, %v3904
    %v5539 = vpack.c.b16 %v3991, %v3905
    %v5540 = vpack.c.b16 %v3992, %v3906
    %v5541 = vpack.c.b16 %v3993, %v3907
    %v5542 = vpack.c.b16 %v3994, %v3908
    %v5543 = vpack.c.b16 %v3995, %v3909
    %v5544 = vpack.c.b16 %v3996, %v3910
    %v5545 = vpack.c.b16 %v3997, %v3911
    %v5546 = vpack.c.b16 %v3998, %v3912
    %v5547 = vpack.c.b16 %v3999, %v3913
    %v5548 = vpack.c.b16 %v4000, %v3914
    %v5549 = vpack.c.b16 %v4001, %v3915
    %v5550 = vpack.c.b16 %v4002, %v3916
    %v5551 = vpack.c.b16 %v4003, %v3917
    %v5552 = vpack.c.b16 %v4004, %v3918
    %v5553 = vpack.c.b16 %v4005, %v3919
    %v5554 = vpack.c.b16 %v4006, %v3920
    %v5555 = vpack.c.b16 %v4007, %v3921
    %v5556 = vpack.c.b16 %v4008, %v3922
    %v5557 = vpack.c.b16 %v4009, %v3923
    %v5558 = vpack.c.b16 %v4010, %v3924
    %v5559 = vpack.c.b16 %v4011, %v3925
    %v5560 = vpack.c.b16 %v4012, %v3926
    %v5561 = vpack.c.b16 %v4013, %v3927
    %v5562 = vpack.c.b16 %v4014, %v3928
    %v5563 = vpack.c.b16 %v4015, %v3929
    %v5564 = vpack.c.b16 %v4016, %v3930
    %v5565 = vpack.c.b16 %v4017, %v3931
    %v5566 = vpack.c.b16 %v4018, %v3932
    %v5567 = vpack.c.b16 %v4019, %v3933
    %v5568 = vpack.c.b16 %v4020, %v3934
    %v5569 = vpack.c.b16 %v4021, %v3935
    %v5570 = vpack.c.b16 %v4022, %v3936
    %v5571 = vpack.c.b16 %v4023, %v3937
    %v5572 = vpack.c.b16 %v4024, %v3938
    %v5573 = vpack.c.b16 %v4025, %v3939
    %v5574 = vpack.c.b16 %v4112, %v4026
    %v5575 = vpack.c.b16 %v4113, %v4027
    %v5576 = vpack.c.b16 %v4114, %v4028
    %v5577 = vpack.c.b16 %v4115, %v4029
    %v5578 = vpack.c.b16 %v4116, %v4030
    %v5579 = vpack.c.b16 %v4117, %v4031
    %v5580 = vpack.c.b16 %v4118, %v4032
    %v5581 = vpack.c.b16 %v4119, %v4033
    %v5582 = vpack.c.b16 %v4120, %v4034
    %v5583 = vpack.c.b16 %v4121, %v4035
    %v5584 = vpack.c.b16 %v4122, %v4036
    %v5585 = vpack.c.b16 %v4123, %v4037
    %v5586 = vpack.c.b16 %v4124, %v4038
    %v5587 = vpack.c.b16 %v4125, %v4039
    %v5588 = vpack.c.b16 %v4126, %v4040
    %v5589 = vpack.c.b16 %v4127, %v4041
    %v5590 = vpack.c.b16 %v4128, %v4042
    %v5591 = vpack.c.b16 %v4129, %v4043
    %v5592 = vpack.c.b16 %v4130, %v4044
    %v5593 = vpack.c.b16 %v4131, %v4045
    %v5594 = vpack.c.b16 %v4132, %v4046
    %v5595 = vpack.c.b16 %v4133, %v4047
    %v5596 = vpack.c.b16 %v4134, %v4048
    %v5597 = vpack.c.b16 %v4135, %v4049
    %v5598 = vpack.c.b16 %v4136, %v4050
    %v5599 = vpack.c.b16 %v4137, %v4051
    %v5600 = vpack.c.b16 %v4138, %v4052
    %v5601 = vpack.c.b16 %v4139, %v4053
    %v5602 = vpack.c.b16 %v4140, %v4054
    %v5603 = vpack.c.b16 %v4141, %v4055
    %v5604 = vpack.c.b16 %v4142, %v4056
    %v5605 = vpack.c.b16 %v4143, %v4057
    %v5606 = vpack.c.b16 %v4144, %v4058
    %v5607 = vpack.c.b16 %v4145, %v4059
    %v5608 = vpack.c.b16 %v4146, %v4060
    %v5609 = vpack.c.b16 %v4147, %v4061
    %v5610 = vpack.c.b16 %v4148, %v4062
    %v5611 = vpack.c.b16 %v4149, %v4063
    %v5612 = vpack.c.b16 %v4150, %v4064
    %v5613 = vpack.c.b16 %v4151, %v4065
    %v5614 = vpack.c.b16 %v4152, %v4066
    %v5615 = vpack.c.b16 %v4153, %v4067
    %v5616 = vpack.c.b16 %v4154, %v4068
    %v5617 = vpack.c.b16 %v4155, %v4069
    %v5618 = vpack.c.b16 %v4156, %v4070
    %v5619 = vpack.c.b16 %v4157, %v4071
    %v5620 = vpack.c.b16 %v4158, %v4072
    %v5621 = vpack.c.b16 %v4159, %v4073
    %v5622 = vpack.c.b16 %v4160, %v4074
    %v5623 = vpack.c.b16 %v4161, %v4075
    %v5624 = vpack.c.b16 %v4162, %v4076
    %v5625 = vpack.c.b16 %v4163, %v4077
    %v5626 = vpack.c.b16 %v4164, %v4078
    %v5627 = vpack.c.b16 %v4165, %v4079
    %v5628 = vpack.c.b16 %v4166, %v4080
    %v5629 = vpack.c.b16 %v4167, %v4081
    %v5630 = vpack.c.b16 %v4168, %v4082
    %v5631 = vpack.c.b16 %v4169, %v4083
    %v5632 = vpack.c.b16 %v4170, %v4084
    %v5633 = vpack.c.b16 %v4171, %v4085
    %v5634 = vpack.c.b16 %v4172, %v4086
    %v5635 = vpack.c.b16 %v4173, %v4087
    %v5636 = vpack.c.b16 %v4174, %v4088
    %v5637 = vpack.c.b16 %v4175, %v4089
    %v5638 = vpack.c.b16 %v4176, %v4090
    %v5639 = vpack.c.b16 %v4177, %v4091
    %v5640 = vpack.c.b16 %v4178, %v4092
    %v5641 = vpack.c.b16 %v4179, %v4093
    %v5642 = vpack.c.b16 %v4180, %v4094
    %v5643 = vpack.c.b16 %v4181, %v4095
    %v5644 = vpack.c.b16 %v4182, %v4096
    %v5645 = vpack.c.b16 %v4183, %v4097
    %v5646 = vpack.c.b16 %v4184, %v4098
    %v5647 = vpack.c.b16 %v4185, %v4099
    %v5648 = vpack.c.b16 %v4186, %v4100
    %v5649 = vpack.c.b16 %v4187, %v4101
    %v5650 = vpack.c.b16 %v4188, %v4102
    %v5651 = vpack.c.b16 %v4189, %v4103
    %v5652 = vpack.c.b16 %v4190, %v4104
    %v5653 = vpack.c.b16 %v4191, %v4105
    %v5654 = vpack.c.b16 %v4192, %v4106
    %v5655 = vpack.c.b16 %v4193, %v4107
    %v5656 = vpack.c.b16 %v4194, %v4108
    %v5657 = vpack.c.b16 %v4195, %v4109
    %v5658 = vpack.c.b16 %v4196, %v4110
    %v5659 = vpack.c.b16 %v4197, %v4111
    %v5660 = vpack.c.b16 %v4284, %v4198
    %v5661 = vpack.c.b16 %v4285, %v4199
    %v5662 = vpack.c.b16 %v4286, %v4200
    %v5663 = vpack.c.b16 %v4287, %v4201
    %v5664 = vpack.c.b16 %v4288, %v4202
    %v5665 = vpack.c.b16 %v4289, %v4203
    %v5666 = vpack.c.b16 %v4290, %v4204
    %v5667 = vpack.c.b16 %v4291, %v4205
    %v5668 = vpack.c.b16 %v4292, %v4206
    %v5669 = vpack.c.b16 %v4293, %v4207
    %v5670 = vpack.c.b16 %v4294, %v4208
    %v5671 = vpack.c.b16 %v4295, %v4209
    %v5672 = vpack.c.b16 %v4296, %v4210
    %v5673 = vpack.c.b16 %v4297, %v4211
    %v5674 = vpack.c.b16 %v4298, %v4212
    %v5675 = vpack.c.b16 %v4299, %v4213
    %v5676 = vpack.c.b16 %v4300, %v4214
    %v5677 = vpack.c.b16 %v4301, %v4215
    %v5678 = vpack.c.b16 %v4302, %v4216
    %v5679 = vpack.c.b16 %v4303, %v4217
    %v5680 = vpack.c.b16 %v4304, %v4218
    %v5681 = vpack.c.b16 %v4305, %v4219
    %v5682 = vpack.c.b16 %v4306, %v4220
    %v5683 = vpack.c.b16 %v4307, %v4221
    %v5684 = vpack.c.b16 %v4308, %v4222
    %v5685 = vpack.c.b16 %v4309, %v4223
    %v5686 = vpack.c.b16 %v4310, %v4224
    %v5687 = vpack.c.b16 %v4311, %v4225
    %v5688 = vpack.c.b16 %v4312, %v4226
    %v5689 = vpack.c.b16 %v4313, %v4227
    %v5690 = vpack.c.b16 %v4314, %v4228
    %v5691 = vpack.c.b16 %v4315, %v4229
    %v5692 = vpack.c.b16 %v4316, %v4230
    %v5693 = vpack.c.b16 %v4317, %v4231
    %v5694 = vpack.c.b16 %v4318, %v4232
    %v5695 = vpack.c.b16 %v4319, %v4233
    %v5696 = vpack.c.b16 %v4320, %v4234
    %v5697 = vpack.c.b16 %v4321, %v4235
    %v5698 = vpack.c.b16 %v4322, %v4236
    %v5699 = vpack.c.b16 %v4323, %v4237
    %v5700 = vpack.c.b16 %v4324, %v4238
    %v5701 = vpack.c.b16 %v4325, %v4239
    %v5702 = vpack.c.b16 %v4326, %v4240
    %v5703 = vpack.c.b16 %v4327, %v4241
    %v5704 = vpack.c.b16 %v4328, %v4242
    %v5705 = vpack.c.b16 %v4329, %v4243
    %v5706 = vpack.c.b16 %v4330, %v4244
    %v5707 = vpack.c.b16 %v4331, %v4245
    %v5708 = vpack.c.b16 %v4332, %v4246
    %v5709 = vpack.c.b16 %v4333, %v4247
    %v5710 = vpack.c.b16 %v4334, %v4248
    %v5711 = vpack.c.b16 %v4335, %v4249
    %v5712 = vpack.c.b16 %v4336, %v4250
    %v5713 = vpack.c.b16 %v4337, %v4251
    %v5714 = vpack.c.b16 %v4338, %v4252
    %v5715 = vpack.c.b16 %v4339, %v4253
    %v5716 = vpack.c.b16 %v4340, %v4254
    %v5717 = vpack.c.b16 %v4341, %v4255
    %v5718 = vpack.c.b16 %v4342, %v4256
    %v5719 = vpack.c.b16 %v4343, %v4257
    %v5720 = vpack.c.b16 %v4344, %v4258
    %v5721 = vpack.c.b16 %v4345, %v4259
    %v5722 = vpack.c.b16 %v4346, %v4260
    %v5723 = vpack.c.b16 %v4347, %v4261
    %v5724 = vpack.c.b16 %v4348, %v4262
    %v5725 = vpack.c.b16 %v4349, %v4263
    %v5726 = vpack.c.b16 %v4350, %v4264
    %v5727 = vpack.c.b16 %v4351, %v4265
    %v5728 = vpack.c.b16 %v4352, %v4266
    %v5729 = vpack.c.b16 %v4353, %v4267
    %v5730 = vpack.c.b16 %v4354, %v4268
    %v5731 = vpack.c.b16 %v4355, %v4269
    %v5732 = vpack.c.b16 %v4356, %v4270
    %v5733 = vpack.c.b16 %v4357, %v4271
    %v5734 = vpack.c.b16 %v4358, %v4272
    %v5735 = vpack.c.b16 %v4359, %v4273
    %v5736 = vpack.c.b16 %v4360, %v4274
    %v5737 = vpack.c.b16 %v4361, %v4275
    %v5738 = vpack.c.b16 %v4362, %v4276
    %v5739 = vpack.c.b16 %v4363, %v4277
    %v5740 = vpack.c.b16 %v4364, %v4278
    %v5741 = vpack.c.b16 %v4365, %v4279
    %v5742 = vpack.c.b16 %v4366, %v4280
    %v5743 = vpack.c.b16 %v4367, %v4281
    %v5744 = vpack.c.b16 %v4368, %v4282
    %v5745 = vpack.c.b16 %v4369, %v4283
    %v5746 = vpack.c.b16 %v4456, %v4370
    %v5747 = vpack.c.b16 %v4457, %v4371
    %v5748 = vpack.c.b16 %v4458, %v4372
    %v5749 = vpack.c.b16 %v4459, %v4373
    %v5750 = vpack.c.b16 %v4460, %v4374
    %v5751 = vpack.c.b16 %v4461, %v4375
    %v5752 = vpack.c.b16 %v4462, %v4376
    %v5753 = vpack.c.b16 %v4463, %v4377
    %v5754 = vpack.c.b16 %v4464, %v4378
    %v5755 = vpack.c.b16 %v4465, %v4379
    %v5756 = vpack.c.b16 %v4466, %v4380
    %v5757 = vpack.c.b16 %v4467, %v4381
    %v5758 = vpack.c.b16 %v4468, %v4382
    %v5759 = vpack.c.b16 %v4469, %v4383
    %v5760 = vpack.c.b16 %v4470, %v4384
    %v5761 = vpack.c.b16 %v4471, %v4385
    %v5762 = vpack.c.b16 %v4472, %v4386
    %v5763 = vpack.c.b16 %v4473, %v4387
    %v5764 = vpack.c.b16 %v4474, %v4388
    %v5765 = vpack.c.b16 %v4475, %v4389
    %v5766 = vpack.c.b16 %v4476, %v4390
    %v5767 = vpack.c.b16 %v4477, %v4391
    %v5768 = vpack.c.b16 %v4478, %v4392
    %v5769 = vpack.c.b16 %v4479, %v4393
    %v5770 = vpack.c.b16 %v4480, %v4394
    %v5771 = vpack.c.b16 %v4481, %v4395
    %v5772 = vpack.c.b16 %v4482, %v4396
    %v5773 = vpack.c.b16 %v4483, %v4397
    %v5774 = vpack.c.b16 %v4484, %v4398
    %v5775 = vpack.c.b16 %v4485, %v4399
    %v5776 = vpack.c.b16 %v4486, %v4400
    %v5777 = vpack.c.b16 %v4487, %v4401
    %v5778 = vpack.c.b16 %v4488, %v4402
    %v5779 = vpack.c.b16 %v4489, %v4403
    %v5780 = vpack.c.b16 %v4490, %v4404
    %v5781 = vpack.c.b16 %v4491, %v4405
    %v5782 = vpack.c.b16 %v4492, %v4406
    %v5783 = vpack.c.b16 %v4493, %v4407
    %v5784 = vpack.c.b16 %v4494, %v4408
    %v5785 = vpack.c.b16 %v4495, %v4409
    %v5786 = vpack.c.b16 %v4496, %v4410
    %v5787 = vpack.c.b16 %v4497, %v4411
    %v5788 = vpack.c.b16 %v4498, %v4412
    %v5789 = vpack.c.b16 %v4499, %v4413
    %v5790 = vpack.c.b16 %v4500, %v4414
    %v5791 = vpack.c.b16 %v4501, %v4415
    %v5792 = vpack.c.b16 %v4502, %v4416
    %v5793 = vpack.c.b16 %v4503, %v4417
    %v5794 = vpack.c.b16 %v4504, %v4418
    %v5795 = vpack.c.b16 %v4505, %v4419
    %v5796 = vpack.c.b16 %v4506, %v4420
    %v5797 = vpack.c.b16 %v4507, %v4421
    %v5798 = vpack.c.b16 %v4508, %v4422
    %v5799 = vpack.c.b16 %v4509, %v4423
    %v5800 = vpack.c.b16 %v4510, %v4424
    %v5801 = vpack.c.b16 %v4511, %v4425
    %v5802 = vpack.c.b16 %v4512, %v4426
    %v5803 = vpack.c.b16 %v4513, %v4427
    %v5804 = vpack.c.b16 %v4514, %v4428
    %v5805 = vpack.c.b16 %v4515, %v4429
    %v5806 = vpack.c.b16 %v4516, %v4430
    %v5807 = vpack.c.b16 %v4517, %v4431
    %v5808 = vpack.c.b16 %v4518, %v4432
    %v5809 = vpack.c.b16 %v4519, %v4433
    %v5810 = vpack.c.b16 %v4520, %v4434
    %v5811 = vpack.c.b16 %v4521, %v4435
    %v5812 = vpack.c.b16 %v4522, %v4436
    %v5813 = vpack.c.b16 %v4523, %v4437
    %v5814 = vpack.c.b16 %v4524, %v4438
    %v5815 = vpack.c.b16 %v4525, %v4439
    %v5816 = vpack.c.b16 %v4526, %v4440
    %v5817 = vpack.c.b16 %v4527, %v4441
    %v5818 = vpack.c.b16 %v4528, %v4442
    %v5819 = vpack.c.b16 %v4529, %v4443
    %v5820 = vpack.c.b16 %v4530, %v4444
    %v5821 = vpack.c.b16 %v4531, %v4445
    %v5822 = vpack.c.b16 %v4532, %v4446
    %v5823 = vpack.c.b16 %v4533, %v4447
    %v5824 = vpack.c.b16 %v4534, %v4448
    %v5825 = vpack.c.b16 %v4535, %v4449
    %v5826 = vpack.c.b16 %v4536, %v4450
    %v5827 = vpack.c.b16 %v4537, %v4451
    %v5828 = vpack.c.b16 %v4538, %v4452
    %v5829 = vpack.c.b16 %v4539, %v4453
    %v5830 = vpack.c.b16 %v4540, %v4454
    %v5831 = vpack.c.b16 %v4541, %v4455
    %v5832 = vpack.c.b16 %v4628, %v4542
    %v5833 = vpack.c.b16 %v4629, %v4543
    %v5834 = vpack.c.b16 %v4630, %v4544
    %v5835 = vpack.c.b16 %v4631, %v4545
    %v5836 = vpack.c.b16 %v4632, %v4546
    %v5837 = vpack.c.b16 %v4633, %v4547
    %v5838 = vpack.c.b16 %v4634, %v4548
    %v5839 = vpack.c.b16 %v4635, %v4549
    %v5840 = vpack.c.b16 %v4636, %v4550
    %v5841 = vpack.c.b16 %v4637, %v4551
    %v5842 = vpack.c.b16 %v4638, %v4552
    %v5843 = vpack.c.b16 %v4639, %v4553
    %v5844 = vpack.c.b16 %v4640, %v4554
    %v5845 = vpack.c.b16 %v4641, %v4555
    %v5846 = vpack.c.b16 %v4642, %v4556
    %v5847 = vpack.c.b16 %v4643, %v4557
    %v5848 = vpack.c.b16 %v4644, %v4558
    %v5849 = vpack.c.b16 %v4645, %v4559
    %v5850 = vpack.c.b16 %v4646, %v4560
    %v5851 = vpack.c.b16 %v4647, %v4561
    %v5852 = vpack.c.b16 %v4648, %v4562
    %v5853 = vpack.c.b16 %v4649, %v4563
    %v5854 = vpack.c.b16 %v4650, %v4564
    %v5855 = vpack.c.b16 %v4651, %v4565
    %v5856 = vpack.c.b16 %v4652, %v4566
    %v5857 = vpack.c.b16 %v4653, %v4567
    %v5858 = vpack.c.b16 %v4654, %v4568
    %v5859 = vpack.c.b16 %v4655, %v4569
    %v5860 = vpack.c.b16 %v4656, %v4570
    %v5861 = vpack.c.b16 %v4657, %v4571
    %v5862 = vpack.c.b16 %v4658, %v4572
    %v5863 = vpack.c.b16 %v4659, %v4573
    %v5864 = vpack.c.b16 %v4660, %v4574
    %v5865 = vpack.c.b16 %v4661, %v4575
    %v5866 = vpack.c.b16 %v4662, %v4576
    %v5867 = vpack.c.b16 %v4663, %v4577
    %v5868 = vpack.c.b16 %v4664, %v4578
    %v5869 = vpack.c.b16 %v4665, %v4579
    %v5870 = vpack.c.b16 %v4666, %v4580
    %v5871 = vpack.c.b16 %v4667, %v4581
    %v5872 = vpack.c.b16 %v4668, %v4582
    %v5873 = vpack.c.b16 %v4669, %v4583
    %v5874 = vpack.c.b16 %v4670, %v4584
    %v5875 = vpack.c.b16 %v4671, %v4585
    %v5876 = vpack.c.b16 %v4672, %v4586
    %v5877 = vpack.c.b16 %v4673, %v4587
    %v5878 = vpack.c.b16 %v4674, %v4588
    %v5879 = vpack.c.b16 %v4675, %v4589
    %v5880 = vpack.c.b16 %v4676, %v4590
    %v5881 = vpack.c.b16 %v4677, %v4591
    %v5882 = vpack.c.b16 %v4678, %v4592
    %v5883 = vpack.c.b16 %v4679, %v4593
    %v5884 = vpack.c.b16 %v4680, %v4594
    %v5885 = vpack.c.b16 %v4681, %v4595
    %v5886 = vpack.c.b16 %v4682, %v4596
    %v5887 = vpack.c.b16 %v4683, %v4597
    %v5888 = vpack.c.b16 %v4684, %v4598
    %v5889 = vpack.c.b16 %v4685, %v4599
    %v5890 = vpack.c.b16 %v4686, %v4600
    %v5891 = vpack.c.b16 %v4687, %v4601
    %v5892 = vpack.c.b16 %v4688, %v4602
    %v5893 = vpack.c.b16 %v4689, %v4603
    %v5894 = vpack.c.b16 %v4690, %v4604
    %v5895 = vpack.c.b16 %v4691, %v4605
    %v5896 = vpack.c.b16 %v4692, %v4606
    %v5897 = vpack.c.b16 %v4693, %v4607
    %v5898 = vpack.c.b16 %v4694, %v4608
    %v5899 = vpack.c.b16 %v4695, %v4609
    %v5900 = vpack.c.b16 %v4696, %v4610
    %v5901 = vpack.c.b16 %v4697, %v4611
    %v5902 = vpack.c.b16 %v4698, %v4612
    %v5903 = vpack.c.b16 %v4699, %v4613
    %v5904 = vpack.c.b16 %v4700, %v4614
    %v5905 = vpack.c.b16 %v4701, %v4615
    %v5906 = vpack.c.b16 %v4702, %v4616
    %v5907 = vpack.c.b16 %v4703, %v4617
    %v5908 = vpack.c.b16 %v4704, %v4618
    %v5909 = vpack.c.b16 %v4705, %v4619
    %v5910 = vpack.c.b16 %v4706, %v4620
    %v5911 = vpack.c.b16 %v4707, %v4621
    %v5912 = vpack.c.b16 %v4708, %v4622
    %v5913 = vpack.c.b16 %v4709, %v4623
    %v5914 = vpack.c.b16 %v4710, %v4624
    %v5915 = vpack.c.b16 %v4711, %v4625
    %v5916 = vpack.c.b16 %v4712, %v4626
    %v5917 = vpack.c.b16 %v4713, %v4627
    %v5918 = vpack.c.b16 %v4800, %v4714
    %v5919 = vpack.c.b16 %v4801, %v4715
    %v5920 = vpack.c.b16 %v4802, %v4716
    %v5921 = vpack.c.b16 %v4803, %v4717
    %v5922 = vpack.c.b16 %v4804, %v4718
    %v5923 = vpack.c.b16 %v4805, %v4719
    %v5924 = vpack.c.b16 %v4806, %v4720
    %v5925 = vpack.c.b16 %v4807, %v4721
    %v5926 = vpack.c.b16 %v4808, %v4722
    %v5927 = vpack.c.b16 %v4809, %v4723
    %v5928 = vpack.c.b16 %v4810, %v4724
    %v5929 = vpack.c.b16 %v4811, %v4725
    %v5930 = vpack.c.b16 %v4812, %v4726
    %v5931 = vpack.c.b16 %v4813, %v4727
    %v5932 = vpack.c.b16 %v4814, %v4728
    %v5933 = vpack.c.b16 %v4815, %v4729
    %v5934 = vpack.c.b16 %v4816, %v4730
    %v5935 = vpack.c.b16 %v4817, %v4731
    %v5936 = vpack.c.b16 %v4818, %v4732
    %v5937 = vpack.c.b16 %v4819, %v4733
    %v5938 = vpack.c.b16 %v4820, %v4734
    %v5939 = vpack.c.b16 %v4821, %v4735
    %v5940 = vpack.c.b16 %v4822, %v4736
    %v5941 = vpack.c.b16 %v4823, %v4737
    %v5942 = vpack.c.b16 %v4824, %v4738
    %v5943 = vpack.c.b16 %v4825, %v4739
    %v5944 = vpack.c.b16 %v4826, %v4740
    %v5945 = vpack.c.b16 %v4827, %v4741
    %v5946 = vpack.c.b16 %v4828, %v4742
    %v5947 = vpack.c.b16 %v4829, %v4743
    %v5948 = vpack.c.b16 %v4830, %v4744
    %v5949 = vpack.c.b16 %v4831, %v4745
    %v5950 = vpack.c.b16 %v4832, %v4746
    %v5951 = vpack.c.b16 %v4833, %v4747
    %v5952 = vpack.c.b16 %v4834, %v4748
    %v5953 = vpack.c.b16 %v4835, %v4749
    %v5954 = vpack.c.b16 %v4836, %v4750
    %v5955 = vpack.c.b16 %v4837, %v4751
    %v5956 = vpack.c.b16 %v4838, %v4752
    %v5957 = vpack.c.b16 %v4839, %v4753
    %v5958 = vpack.c.b16 %v4840, %v4754
    %v5959 = vpack.c.b16 %v4841, %v4755
    %v5960 = vpack.c.b16 %v4842, %v4756
    %v5961 = vpack.c.b16 %v4843, %v4757
    %v5962 = vpack.c.b16 %v4844, %v4758
    %v5963 = vpack.c.b16 %v4845, %v4759
    %v5964 = vpack.c.b16 %v4846, %v4760
    %v5965 = vpack.c.b16 %v4847, %v4761
    %v5966 = vpack.c.b16 %v4848, %v4762
    %v5967 = vpack.c.b16 %v4849, %v4763
    %v5968 = vpack.c.b16 %v4850, %v4764
    %v5969 = vpack.c.b16 %v4851, %v4765
    %v5970 = vpack.c.b16 %v4852, %v4766
    %v5971 = vpack.c.b16 %v4853, %v4767
    %v5972 = vpack.c.b16 %v4854, %v4768
    %v5973 = vpack.c.b16 %v4855, %v4769
    %v5974 = vpack.c.b16 %v4856, %v4770
    %v5975 = vpack.c.b16 %v4857, %v4771
    %v5976 = vpack.c.b16 %v4858, %v4772
    %v5977 = vpack.c.b16 %v4859, %v4773
    %v5978 = vpack.c.b16 %v4860, %v4774
    %v5979 = vpack.c.b16 %v4861, %v4775
    %v5980 = vpack.c.b16 %v4862, %v4776
    %v5981 = vpack.c.b16 %v4863, %v4777
    %v5982 = vpack.c.b16 %v4864, %v4778
    %v5983 = vpack.c.b16 %v4865, %v4779
    %v5984 = vpack.c.b16 %v4866, %v4780
    %v5985 = vpack.c.b16 %v4867, %v4781
    %v5986 = vpack.c.b16 %v4868, %v4782
    %v5987 = vpack.c.b16 %v4869, %v4783
    %v5988 = vpack.c.b16 %v4870, %v4784
    %v5989 = vpack.c.b16 %v4871, %v4785
    %v5990 = vpack.c.b16 %v4872, %v4786
    %v5991 = vpack.c.b16 %v4873, %v4787
    %v5992 = vpack.c.b16 %v4874, %v4788
    %v5993 = vpack.c.b16 %v4875, %v4789
    %v5994 = vpack.c.b16 %v4876, %v4790
    %v5995 = vpack.c.b16 %v4877, %v4791
    %v5996 = vpack.c.b16 %v4878, %v4792
    %v5997 = vpack.c.b16 %v4879, %v4793
    %v5998 = vpack.c.b16 %v4880, %v4794
    %v5999 = vpack.c.b16 %v4881, %v4795
    %v6000 = vpack.c.b16 %v4882, %v4796
    %v6001 = vpack.c.b16 %v4883, %v4797
    %v6002 = vpack.c.b16 %v4884, %v4798
    %v6003 = vpack.c.b16 %v4885, %v4799
    %7122 = vmatprep.subr.bf16.mxu0 %v5489
    %7123 = vmatpush1.bf16.xpose.msra.mxu0 %v5488
    %7124 = vmatprep.subr.bf16.mxu0 %v5403
    %7125 = vmatpush1.bf16.xpose.msra.mxu0 %v5402
    %7126 = vmatprep.subr.bf16.mxu0 %v5317
    %7127 = vmatpush1.bf16.xpose.msra.mxu0 %v5316
    %7128 = vmatprep.subr.bf16.mxu0 %v5231
    %7129 = vmatpush1.bf16.xpose.msra.mxu0 %v5230
    %7130 = vmatprep.subr.bf16.mxu0 %v5145
    %7131 = vmatpush1.bf16.xpose.msra.mxu0 %v5144
    %7132 = vmatprep.subr.bf16.mxu0 %v5059
    %7133 = vmatpush1.bf16.xpose.msra.mxu0 %v5058
    %7134 = vmatprep.subr.bf16.mxu0 %v4973
    %7135 = vmatpush1.bf16.xpose.msra.mxu0 %v4972
    %7136 = vmatprep.subr.bf16.mxu0 %v4887
    %7137 = vmatpush1.bf16.xpose.msra.mxu0 %v4886
    %7138 = vmatprep.subr.bf16.mxu0 0
    %7139 = vmatpush2.bf16.xpose.msra.mxu0 0
    %7140 = vmatprep.subr.bf16.mxu0 0
    %7141 = vmatpush2.bf16.xpose.msra.mxu0 0
    %7142 = vmatprep.subr.bf16.mxu0 0
    %7143 = vmatpush2.bf16.xpose.msra.mxu0 0
    %7144 = vmatprep.subr.bf16.mxu0 %v5919
    %7145 = vmatpush2.bf16.xpose.msra.mxu0 %v5918
    %7146 = vmatprep.subr.bf16.mxu0 %v5833
    %7147 = vmatpush2.bf16.xpose.msra.mxu0 %v5832
    %7148 = vmatprep.subr.bf16.mxu0 %v5747
    %7149 = vmatpush2.bf16.xpose.msra.mxu0 %v5746
    %7150 = vmatprep.subr.bf16.mxu0 %v5661
    %7151 = vmatpush2.bf16.xpose.msra.mxu0 %v5660
    %7152 = vmatprep.subr.bf16.mxu0 %v5575
    %7153 = vmatpush2.bf16.xpose.msra.mxu0 %v5574
    %7154 = vmatprep.mubr.bf16.mxu0 %v1361
    %7155 = vmatmul.mubr.bf16.gmra.mxu0 %v1360
    %v7156 = vpop.f32.mrf.mxu0
    %v7157 = vadd.f32 %v1224, %v7156
    %v7158 = vpop.f32.mrf.mxu0
    %v7159 = vadd.f32 %v1228, %v7158
    %v7160 = vpop.f32.mrf.mxu0
    %v7161 = vpop.f32.mrf.mxu0
    %7162 = vdwg.mxu0
    %7163 = vmatprep.subr.bf16.mxu0 %v5491
    %7164 = vmatpush1.bf16.xpose.msra.mxu0 %v5490
    %7165 = vmatprep.subr.bf16.mxu0 %v5405
    %7166 = vmatpush1.bf16.xpose.msra.mxu0 %v5404
    %7167 = vmatprep.subr.bf16.mxu0 %v5319
    %7168 = vmatpush1.bf16.xpose.msra.mxu0 %v5318
    %7169 = vmatprep.subr.bf16.mxu0 %v5233
    %7170 = vmatpush1.bf16.xpose.msra.mxu0 %v5232
    %7171 = vmatprep.subr.bf16.mxu0 %v5147
    %7172 = vmatpush1.bf16.xpose.msra.mxu0 %v5146
    %7173 = vmatprep.subr.bf16.mxu0 %v5061
    %7174 = vmatpush1.bf16.xpose.msra.mxu0 %v5060
    %7175 = vmatprep.subr.bf16.mxu0 %v4975
    %7176 = vmatpush1.bf16.xpose.msra.mxu0 %v4974
    %7177 = vmatprep.subr.bf16.mxu0 %v4889
    %7178 = vmatpush1.bf16.xpose.msra.mxu0 %v4888
    %7179 = vmatprep.subr.bf16.mxu0 0
    %7180 = vmatpush2.bf16.xpose.msra.mxu0 0
    %7181 = vmatprep.subr.bf16.mxu0 0
    %7182 = vmatpush2.bf16.xpose.msra.mxu0 0
    %7183 = vmatprep.subr.bf16.mxu0 0
    %7184 = vmatpush2.bf16.xpose.msra.mxu0 0
    %7185 = vmatprep.subr.bf16.mxu0 %v5921
    %7186 = vmatpush2.bf16.xpose.msra.mxu0 %v5920
    %7187 = vmatprep.subr.bf16.mxu0 %v5835
    %7188 = vmatpush2.bf16.xpose.msra.mxu0 %v5834
    %7189 = vmatprep.subr.bf16.mxu0 %v5749
    %7190 = vmatpush2.bf16.xpose.msra.mxu0 %v5748
    %7191 = vmatprep.subr.bf16.mxu0 %v5663
    %7192 = vmatpush2.bf16.xpose.msra.mxu0 %v5662
    %7193 = vmatprep.subr.bf16.mxu0 %v5577
    %7194 = vmatpush2.bf16.xpose.msra.mxu0 %v5576
    %7195 = vmatprep.mubr.bf16.mxu0 %v1363
    %7196 = vmatmul.mubr.bf16.gmra.mxu0 %v1362
    %v7197 = vpop.f32.mrf.mxu0
    %v7198 = vadd.f32 %v7157, %v7197
    %v7199 = vpop.f32.mrf.mxu0
    %v7200 = vadd.f32 %v7159, %v7199
    %v7201 = vpop.f32.mrf.mxu0
    %v7202 = vpop.f32.mrf.mxu0
    %7203 = vdwg.mxu0
    %7204 = vmatprep.subr.bf16.mxu0 %v5493
    %7205 = vmatpush1.bf16.xpose.msra.mxu0 %v5492
    %7206 = vmatprep.subr.bf16.mxu0 %v5407
    %7207 = vmatpush1.bf16.xpose.msra.mxu0 %v5406
    %7208 = vmatprep.subr.bf16.mxu0 %v5321
    %7209 = vmatpush1.bf16.xpose.msra.mxu0 %v5320
    %7210 = vmatprep.subr.bf16.mxu0 %v5235
    %7211 = vmatpush1.bf16.xpose.msra.mxu0 %v5234
    %7212 = vmatprep.subr.bf16.mxu0 %v5149
    %7213 = vmatpush1.bf16.xpose.msra.mxu0 %v5148
    %7214 = vmatprep.subr.bf16.mxu0 %v5063
    %7215 = vmatpush1.bf16.xpose.msra.mxu0 %v5062
    %7216 = vmatprep.subr.bf16.mxu0 %v4977
    %7217 = vmatpush1.bf16.xpose.msra.mxu0 %v4976
    %7218 = vmatprep.subr.bf16.mxu0 %v4891
    %7219 = vmatpush1.bf16.xpose.msra.mxu0 %v4890
    %7220 = vmatprep.subr.bf16.mxu0 0
    %7221 = vmatpush2.bf16.xpose.msra.mxu0 0
    %7222 = vmatprep.subr.bf16.mxu0 0
    %7223 = vmatpush2.bf16.xpose.msra.mxu0 0
    %7224 = vmatprep.subr.bf16.mxu0 0
    %7225 = vmatpush2.bf16.xpose.msra.mxu0 0
    %7226 = vmatprep.subr.bf16.mxu0 %v5923
    %7227 = vmatpush2.bf16.xpose.msra.mxu0 %v5922
    %7228 = vmatprep.subr.bf16.mxu0 %v5837
    %7229 = vmatpush2.bf16.xpose.msra.mxu0 %v5836
    %7230 = vmatprep.subr.bf16.mxu0 %v5751
    %7231 = vmatpush2.bf16.xpose.msra.mxu0 %v5750
    %7232 = vmatprep.subr.bf16.mxu0 %v5665
    %7233 = vmatpush2.bf16.xpose.msra.mxu0 %v5664
    %7234 = vmatprep.subr.bf16.mxu0 %v5579
    %7235 = vmatpush2.bf16.xpose.msra.mxu0 %v5578
    %7236 = vmatprep.mubr.bf16.mxu0 %v1365
    %7237 = vmatmul.mubr.bf16.gmra.mxu0 %v1364
    %v7238 = vpop.f32.mrf.mxu0
    %v7239 = vadd.f32 %v7198, %v7238
    %v7240 = vpop.f32.mrf.mxu0
    %v7241 = vadd.f32 %v7200, %v7240
    %v7242 = vpop.f32.mrf.mxu0
    %v7243 = vpop.f32.mrf.mxu0
    %7244 = vdwg.mxu0
    %7245 = vmatprep.subr.bf16.mxu0 %v5495
    %7246 = vmatpush1.bf16.xpose.msra.mxu0 %v5494
    %7247 = vmatprep.subr.bf16.mxu0 %v5409
    %7248 = vmatpush1.bf16.xpose.msra.mxu0 %v5408
    %7249 = vmatprep.subr.bf16.mxu0 %v5323
    %7250 = vmatpush1.bf16.xpose.msra.mxu0 %v5322
    %7251 = vmatprep.subr.bf16.mxu0 %v5237
    %7252 = vmatpush1.bf16.xpose.msra.mxu0 %v5236
    %7253 = vmatprep.subr.bf16.mxu0 %v5151
    %7254 = vmatpush1.bf16.xpose.msra.mxu0 %v5150
    %7255 = vmatprep.subr.bf16.mxu0 %v5065
    %7256 = vmatpush1.bf16.xpose.msra.mxu0 %v5064
    %7257 = vmatprep.subr.bf16.mxu0 %v4979
    %7258 = vmatpush1.bf16.xpose.msra.mxu0 %v4978
    %7259 = vmatprep.subr.bf16.mxu0 %v4893
    %7260 = vmatpush1.bf16.xpose.msra.mxu0 %v4892
    %7261 = vmatprep.subr.bf16.mxu0 0
    %7262 = vmatpush2.bf16.xpose.msra.mxu0 0
    %7263 = vmatprep.subr.bf16.mxu0 0
    %7264 = vmatpush2.bf16.xpose.msra.mxu0 0
    %7265 = vmatprep.subr.bf16.mxu0 0
    %7266 = vmatpush2.bf16.xpose.msra.mxu0 0
    %7267 = vmatprep.subr.bf16.mxu0 %v5925
    %7268 = vmatpush2.bf16.xpose.msra.mxu0 %v5924
    %7269 = vmatprep.subr.bf16.mxu0 %v5839
    %7270 = vmatpush2.bf16.xpose.msra.mxu0 %v5838
    %7271 = vmatprep.subr.bf16.mxu0 %v5753
    %7272 = vmatpush2.bf16.xpose.msra.mxu0 %v5752
    %7273 = vmatprep.subr.bf16.mxu0 %v5667
    %7274 = vmatpush2.bf16.xpose.msra.mxu0 %v5666
    %7275 = vmatprep.subr.bf16.mxu0 %v5581
    %7276 = vmatpush2.bf16.xpose.msra.mxu0 %v5580
    %7277 = vmatprep.mubr.bf16.mxu0 %v1367
    %7278 = vmatmul.mubr.bf16.gmra.mxu0 %v1366
    %v7279 = vpop.f32.mrf.mxu0
    %v7280 = vadd.f32 %v7239, %v7279
    %v7281 = vpop.f32.mrf.mxu0
    %v7282 = vadd.f32 %v7241, %v7281
    %v7283 = vpop.f32.mrf.mxu0
    %v7284 = vpop.f32.mrf.mxu0
    %7285 = vdwg.mxu0
    %7286 = vmatprep.subr.bf16.mxu0 %v5497
    %7287 = vmatpush1.bf16.xpose.msra.mxu0 %v5496
    %7288 = vmatprep.subr.bf16.mxu0 %v5411
    %7289 = vmatpush1.bf16.xpose.msra.mxu0 %v5410
    %7290 = vmatprep.subr.bf16.mxu0 %v5325
    %7291 = vmatpush1.bf16.xpose.msra.mxu0 %v5324
    %7292 = vmatprep.subr.bf16.mxu0 %v5239
    %7293 = vmatpush1.bf16.xpose.msra.mxu0 %v5238
    %7294 = vmatprep.subr.bf16.mxu0 %v5153
    %7295 = vmatpush1.bf16.xpose.msra.mxu0 %v5152
    %7296 = vmatprep.subr.bf16.mxu0 %v5067
    %7297 = vmatpush1.bf16.xpose.msra.mxu0 %v5066
    %7298 = vmatprep.subr.bf16.mxu0 %v4981
    %7299 = vmatpush1.bf16.xpose.msra.mxu0 %v4980
    %7300 = vmatprep.subr.bf16.mxu0 %v4895
    %7301 = vmatpush1.bf16.xpose.msra.mxu0 %v4894
    %7302 = vmatprep.subr.bf16.mxu0 0
    %7303 = vmatpush2.bf16.xpose.msra.mxu0 0
    %7304 = vmatprep.subr.bf16.mxu0 0
    %7305 = vmatpush2.bf16.xpose.msra.mxu0 0
    %7306 = vmatprep.subr.bf16.mxu0 0
    %7307 = vmatpush2.bf16.xpose.msra.mxu0 0
    %7308 = vmatprep.subr.bf16.mxu0 %v5927
    %7309 = vmatpush2.bf16.xpose.msra.mxu0 %v5926
    %7310 = vmatprep.subr.bf16.mxu0 %v5841
    %7311 = vmatpush2.bf16.xpose.msra.mxu0 %v5840
    %7312 = vmatprep.subr.bf16.mxu0 %v5755
    %7313 = vmatpush2.bf16.xpose.msra.mxu0 %v5754
    %7314 = vmatprep.subr.bf16.mxu0 %v5669
    %7315 = vmatpush2.bf16.xpose.msra.mxu0 %v5668
    %7316 = vmatprep.subr.bf16.mxu0 %v5583
    %7317 = vmatpush2.bf16.xpose.msra.mxu0 %v5582
    %7318 = vmatprep.mubr.bf16.mxu0 %v1369
    %7319 = vmatmul.mubr.bf16.gmra.mxu0 %v1368
    %v7320 = vpop.f32.mrf.mxu0
    %v7321 = vadd.f32 %v7280, %v7320
    %v7322 = vpop.f32.mrf.mxu0
    %v7323 = vadd.f32 %v7282, %v7322
    %v7324 = vpop.f32.mrf.mxu0
    %v7325 = vpop.f32.mrf.mxu0
    %7326 = vdwg.mxu0
    %7327 = vmatprep.subr.bf16.mxu0 %v5499
    %7328 = vmatpush1.bf16.xpose.msra.mxu0 %v5498
    %7329 = vmatprep.subr.bf16.mxu0 %v5413
    %7330 = vmatpush1.bf16.xpose.msra.mxu0 %v5412
    %7331 = vmatprep.subr.bf16.mxu0 %v5327
    %7332 = vmatpush1.bf16.xpose.msra.mxu0 %v5326
    %7333 = vmatprep.subr.bf16.mxu0 %v5241
    %7334 = vmatpush1.bf16.xpose.msra.mxu0 %v5240
    %7335 = vmatprep.subr.bf16.mxu0 %v5155
    %7336 = vmatpush1.bf16.xpose.msra.mxu0 %v5154
    %7337 = vmatprep.subr.bf16.mxu0 %v5069
    %7338 = vmatpush1.bf16.xpose.msra.mxu0 %v5068
    %7339 = vmatprep.subr.bf16.mxu0 %v4983
    %7340 = vmatpush1.bf16.xpose.msra.mxu0 %v4982
    %7341 = vmatprep.subr.bf16.mxu0 %v4897
    %7342 = vmatpush1.bf16.xpose.msra.mxu0 %v4896
    %7343 = vmatprep.subr.bf16.mxu0 0
    %7344 = vmatpush2.bf16.xpose.msra.mxu0 0
    %7345 = vmatprep.subr.bf16.mxu0 0
    %7346 = vmatpush2.bf16.xpose.msra.mxu0 0
    %7347 = vmatprep.subr.bf16.mxu0 0
    %7348 = vmatpush2.bf16.xpose.msra.mxu0 0
    %7349 = vmatprep.subr.bf16.mxu0 %v5929
    %7350 = vmatpush2.bf16.xpose.msra.mxu0 %v5928
    %7351 = vmatprep.subr.bf16.mxu0 %v5843
    %7352 = vmatpush2.bf16.xpose.msra.mxu0 %v5842
    %7353 = vmatprep.subr.bf16.mxu0 %v5757
    %7354 = vmatpush2.bf16.xpose.msra.mxu0 %v5756
    %7355 = vmatprep.subr.bf16.mxu0 %v5671
    %7356 = vmatpush2.bf16.xpose.msra.mxu0 %v5670
    %7357 = vmatprep.subr.bf16.mxu0 %v5585
    %7358 = vmatpush2.bf16.xpose.msra.mxu0 %v5584
    %7359 = vmatprep.mubr.bf16.mxu0 %v1371
    %7360 = vmatmul.mubr.bf16.gmra.mxu0 %v1370
    %v7361 = vpop.f32.mrf.mxu0
    %v7362 = vadd.f32 %v7321, %v7361
    %v7363 = vpop.f32.mrf.mxu0
    %v7364 = vadd.f32 %v7323, %v7363
    %v7365 = vpop.f32.mrf.mxu0
    %v7366 = vpop.f32.mrf.mxu0
    %7367 = vdwg.mxu0
    %7368 = vmatprep.subr.bf16.mxu0 %v5501
    %7369 = vmatpush1.bf16.xpose.msra.mxu0 %v5500
    %7370 = vmatprep.subr.bf16.mxu0 %v5415
    %7371 = vmatpush1.bf16.xpose.msra.mxu0 %v5414
    %7372 = vmatprep.subr.bf16.mxu0 %v5329
    %7373 = vmatpush1.bf16.xpose.msra.mxu0 %v5328
    %7374 = vmatprep.subr.bf16.mxu0 %v5243
    %7375 = vmatpush1.bf16.xpose.msra.mxu0 %v5242
    %7376 = vmatprep.subr.bf16.mxu0 %v5157
    %7377 = vmatpush1.bf16.xpose.msra.mxu0 %v5156
    %7378 = vmatprep.subr.bf16.mxu0 %v5071
    %7379 = vmatpush1.bf16.xpose.msra.mxu0 %v5070
    %7380 = vmatprep.subr.bf16.mxu0 %v4985
    %7381 = vmatpush1.bf16.xpose.msra.mxu0 %v4984
    %7382 = vmatprep.subr.bf16.mxu0 %v4899
    %7383 = vmatpush1.bf16.xpose.msra.mxu0 %v4898
    %7384 = vmatprep.subr.bf16.mxu0 0
    %7385 = vmatpush2.bf16.xpose.msra.mxu0 0
    %7386 = vmatprep.subr.bf16.mxu0 0
    %7387 = vmatpush2.bf16.xpose.msra.mxu0 0
    %7388 = vmatprep.subr.bf16.mxu0 0
    %7389 = vmatpush2.bf16.xpose.msra.mxu0 0
    %7390 = vmatprep.subr.bf16.mxu0 %v5931
    %7391 = vmatpush2.bf16.xpose.msra.mxu0 %v5930
    %7392 = vmatprep.subr.bf16.mxu0 %v5845
    %7393 = vmatpush2.bf16.xpose.msra.mxu0 %v5844
    %7394 = vmatprep.subr.bf16.mxu0 %v5759
    %7395 = vmatpush2.bf16.xpose.msra.mxu0 %v5758
    %7396 = vmatprep.subr.bf16.mxu0 %v5673
    %7397 = vmatpush2.bf16.xpose.msra.mxu0 %v5672
    %7398 = vmatprep.subr.bf16.mxu0 %v5587
    %7399 = vmatpush2.bf16.xpose.msra.mxu0 %v5586
    %7400 = vmatprep.mubr.bf16.mxu0 %v1373
    %7401 = vmatmul.mubr.bf16.gmra.mxu0 %v1372
    %v7402 = vpop.f32.mrf.mxu0
    %v7403 = vadd.f32 %v7362, %v7402
    %v7404 = vpop.f32.mrf.mxu0
    %v7405 = vadd.f32 %v7364, %v7404
    %v7406 = vpop.f32.mrf.mxu0
    %v7407 = vpop.f32.mrf.mxu0
    %7408 = vdwg.mxu0
    %7409 = vmatprep.subr.bf16.mxu0 %v5503
    %7410 = vmatpush1.bf16.xpose.msra.mxu0 %v5502
    %7411 = vmatprep.subr.bf16.mxu0 %v5417
    %7412 = vmatpush1.bf16.xpose.msra.mxu0 %v5416
    %7413 = vmatprep.subr.bf16.mxu0 %v5331
    %7414 = vmatpush1.bf16.xpose.msra.mxu0 %v5330
    %7415 = vmatprep.subr.bf16.mxu0 %v5245
    %7416 = vmatpush1.bf16.xpose.msra.mxu0 %v5244
    %7417 = vmatprep.subr.bf16.mxu0 %v5159
    %7418 = vmatpush1.bf16.xpose.msra.mxu0 %v5158
    %7419 = vmatprep.subr.bf16.mxu0 %v5073
    %7420 = vmatpush1.bf16.xpose.msra.mxu0 %v5072
    %7421 = vmatprep.subr.bf16.mxu0 %v4987
    %7422 = vmatpush1.bf16.xpose.msra.mxu0 %v4986
    %7423 = vmatprep.subr.bf16.mxu0 %v4901
    %7424 = vmatpush1.bf16.xpose.msra.mxu0 %v4900
    %7425 = vmatprep.subr.bf16.mxu0 0
    %7426 = vmatpush2.bf16.xpose.msra.mxu0 0
    %7427 = vmatprep.subr.bf16.mxu0 0
    %7428 = vmatpush2.bf16.xpose.msra.mxu0 0
    %7429 = vmatprep.subr.bf16.mxu0 0
    %7430 = vmatpush2.bf16.xpose.msra.mxu0 0
    %7431 = vmatprep.subr.bf16.mxu0 %v5933
    %7432 = vmatpush2.bf16.xpose.msra.mxu0 %v5932
    %7433 = vmatprep.subr.bf16.mxu0 %v5847
    %7434 = vmatpush2.bf16.xpose.msra.mxu0 %v5846
    %7435 = vmatprep.subr.bf16.mxu0 %v5761
    %7436 = vmatpush2.bf16.xpose.msra.mxu0 %v5760
    %7437 = vmatprep.subr.bf16.mxu0 %v5675
    %7438 = vmatpush2.bf16.xpose.msra.mxu0 %v5674
    %7439 = vmatprep.subr.bf16.mxu0 %v5589
    %7440 = vmatpush2.bf16.xpose.msra.mxu0 %v5588
    %7441 = vmatprep.mubr.bf16.mxu0 %v1375
    %7442 = vmatmul.mubr.bf16.gmra.mxu0 %v1374
    %v7443 = vpop.f32.mrf.mxu0
    %v7444 = vadd.f32 %v7403, %v7443
    %v7445 = vpop.f32.mrf.mxu0
    %v7446 = vadd.f32 %v7405, %v7445
    %v7447 = vpop.f32.mrf.mxu0
    %v7448 = vpop.f32.mrf.mxu0
    %7449 = vdwg.mxu0
    %7450 = vmatprep.subr.bf16.mxu0 %v5505
    %7451 = vmatpush1.bf16.xpose.msra.mxu0 %v5504
    %7452 = vmatprep.subr.bf16.mxu0 %v5419
    %7453 = vmatpush1.bf16.xpose.msra.mxu0 %v5418
    %7454 = vmatprep.subr.bf16.mxu0 %v5333
    %7455 = vmatpush1.bf16.xpose.msra.mxu0 %v5332
    %7456 = vmatprep.subr.bf16.mxu0 %v5247
    %7457 = vmatpush1.bf16.xpose.msra.mxu0 %v5246
    %7458 = vmatprep.subr.bf16.mxu0 %v5161
    %7459 = vmatpush1.bf16.xpose.msra.mxu0 %v5160
    %7460 = vmatprep.subr.bf16.mxu0 %v5075
    %7461 = vmatpush1.bf16.xpose.msra.mxu0 %v5074
    %7462 = vmatprep.subr.bf16.mxu0 %v4989
    %7463 = vmatpush1.bf16.xpose.msra.mxu0 %v4988
    %7464 = vmatprep.subr.bf16.mxu0 %v4903
    %7465 = vmatpush1.bf16.xpose.msra.mxu0 %v4902
    %7466 = vmatprep.subr.bf16.mxu0 0
    %7467 = vmatpush2.bf16.xpose.msra.mxu0 0
    %7468 = vmatprep.subr.bf16.mxu0 0
    %7469 = vmatpush2.bf16.xpose.msra.mxu0 0
    %7470 = vmatprep.subr.bf16.mxu0 0
    %7471 = vmatpush2.bf16.xpose.msra.mxu0 0
    %7472 = vmatprep.subr.bf16.mxu0 %v5935
    %7473 = vmatpush2.bf16.xpose.msra.mxu0 %v5934
    %7474 = vmatprep.subr.bf16.mxu0 %v5849
    %7475 = vmatpush2.bf16.xpose.msra.mxu0 %v5848
    %7476 = vmatprep.subr.bf16.mxu0 %v5763
    %7477 = vmatpush2.bf16.xpose.msra.mxu0 %v5762
    %7478 = vmatprep.subr.bf16.mxu0 %v5677
    %7479 = vmatpush2.bf16.xpose.msra.mxu0 %v5676
    %7480 = vmatprep.subr.bf16.mxu0 %v5591
    %7481 = vmatpush2.bf16.xpose.msra.mxu0 %v5590
    %7482 = vmatprep.mubr.bf16.mxu0 %v1377
    %7483 = vmatmul.mubr.bf16.gmra.mxu0 %v1376
    %v7484 = vpop.f32.mrf.mxu0
    %v7485 = vadd.f32 %v7444, %v7484
    %v7486 = vpop.f32.mrf.mxu0
    %v7487 = vadd.f32 %v7446, %v7486
    %v7488 = vpop.f32.mrf.mxu0
    %v7489 = vpop.f32.mrf.mxu0
    %7490 = vdwg.mxu0
    %7491 = vmatprep.subr.bf16.mxu0 %v5507
    %7492 = vmatpush1.bf16.xpose.msra.mxu0 %v5506
    %7493 = vmatprep.subr.bf16.mxu0 %v5421
    %7494 = vmatpush1.bf16.xpose.msra.mxu0 %v5420
    %7495 = vmatprep.subr.bf16.mxu0 %v5335
    %7496 = vmatpush1.bf16.xpose.msra.mxu0 %v5334
    %7497 = vmatprep.subr.bf16.mxu0 %v5249
    %7498 = vmatpush1.bf16.xpose.msra.mxu0 %v5248
    %7499 = vmatprep.subr.bf16.mxu0 %v5163
    %7500 = vmatpush1.bf16.xpose.msra.mxu0 %v5162
    %7501 = vmatprep.subr.bf16.mxu0 %v5077
    %7502 = vmatpush1.bf16.xpose.msra.mxu0 %v5076
    %7503 = vmatprep.subr.bf16.mxu0 %v4991
    %7504 = vmatpush1.bf16.xpose.msra.mxu0 %v4990
    %7505 = vmatprep.subr.bf16.mxu0 %v4905
    %7506 = vmatpush1.bf16.xpose.msra.mxu0 %v4904
    %7507 = vmatprep.subr.bf16.mxu0 0
    %7508 = vmatpush2.bf16.xpose.msra.mxu0 0
    %7509 = vmatprep.subr.bf16.mxu0 0
    %7510 = vmatpush2.bf16.xpose.msra.mxu0 0
    %7511 = vmatprep.subr.bf16.mxu0 0
    %7512 = vmatpush2.bf16.xpose.msra.mxu0 0
    %7513 = vmatprep.subr.bf16.mxu0 %v5937
    %7514 = vmatpush2.bf16.xpose.msra.mxu0 %v5936
    %7515 = vmatprep.subr.bf16.mxu0 %v5851
    %7516 = vmatpush2.bf16.xpose.msra.mxu0 %v5850
    %7517 = vmatprep.subr.bf16.mxu0 %v5765
    %7518 = vmatpush2.bf16.xpose.msra.mxu0 %v5764
    %7519 = vmatprep.subr.bf16.mxu0 %v5679
    %7520 = vmatpush2.bf16.xpose.msra.mxu0 %v5678
    %7521 = vmatprep.subr.bf16.mxu0 %v5593
    %7522 = vmatpush2.bf16.xpose.msra.mxu0 %v5592
    %7523 = vmatprep.mubr.bf16.mxu0 %v1379
    %7524 = vmatmul.mubr.bf16.gmra.mxu0 %v1378
    %v7525 = vpop.f32.mrf.mxu0
    %v7526 = vadd.f32 %v7485, %v7525
    %v7527 = vpop.f32.mrf.mxu0
    %v7528 = vadd.f32 %v7487, %v7527
    %v7529 = vpop.f32.mrf.mxu0
    %v7530 = vpop.f32.mrf.mxu0
    %7531 = vdwg.mxu0
    %7532 = vmatprep.subr.bf16.mxu0 %v5509
    %7533 = vmatpush1.bf16.xpose.msra.mxu0 %v5508
    %7534 = vmatprep.subr.bf16.mxu0 %v5423
    %7535 = vmatpush1.bf16.xpose.msra.mxu0 %v5422
    %7536 = vmatprep.subr.bf16.mxu0 %v5337
    %7537 = vmatpush1.bf16.xpose.msra.mxu0 %v5336
    %7538 = vmatprep.subr.bf16.mxu0 %v5251
    %7539 = vmatpush1.bf16.xpose.msra.mxu0 %v5250
    %7540 = vmatprep.subr.bf16.mxu0 %v5165
    %7541 = vmatpush1.bf16.xpose.msra.mxu0 %v5164
    %7542 = vmatprep.subr.bf16.mxu0 %v5079
    %7543 = vmatpush1.bf16.xpose.msra.mxu0 %v5078
    %7544 = vmatprep.subr.bf16.mxu0 %v4993
    %7545 = vmatpush1.bf16.xpose.msra.mxu0 %v4992
    %7546 = vmatprep.subr.bf16.mxu0 %v4907
    %7547 = vmatpush1.bf16.xpose.msra.mxu0 %v4906
    %7548 = vmatprep.subr.bf16.mxu0 0
    %7549 = vmatpush2.bf16.xpose.msra.mxu0 0
    %7550 = vmatprep.subr.bf16.mxu0 0
    %7551 = vmatpush2.bf16.xpose.msra.mxu0 0
    %7552 = vmatprep.subr.bf16.mxu0 0
    %7553 = vmatpush2.bf16.xpose.msra.mxu0 0
    %7554 = vmatprep.subr.bf16.mxu0 %v5939
    %7555 = vmatpush2.bf16.xpose.msra.mxu0 %v5938
    %7556 = vmatprep.subr.bf16.mxu0 %v5853
    %7557 = vmatpush2.bf16.xpose.msra.mxu0 %v5852
    %7558 = vmatprep.subr.bf16.mxu0 %v5767
    %7559 = vmatpush2.bf16.xpose.msra.mxu0 %v5766
    %7560 = vmatprep.subr.bf16.mxu0 %v5681
    %7561 = vmatpush2.bf16.xpose.msra.mxu0 %v5680
    %7562 = vmatprep.subr.bf16.mxu0 %v5595
    %7563 = vmatpush2.bf16.xpose.msra.mxu0 %v5594
    %7564 = vmatprep.mubr.bf16.mxu0 %v1381
    %7565 = vmatmul.mubr.bf16.gmra.mxu0 %v1380
    %v7566 = vpop.f32.mrf.mxu0
    %v7567 = vadd.f32 %v7526, %v7566
    %v7568 = vpop.f32.mrf.mxu0
    %v7569 = vadd.f32 %v7528, %v7568
    %v7570 = vpop.f32.mrf.mxu0
    %v7571 = vpop.f32.mrf.mxu0
    %7572 = vdwg.mxu0
    %7573 = vmatprep.subr.bf16.mxu0 %v5511
    %7574 = vmatpush1.bf16.xpose.msra.mxu0 %v5510
    %7575 = vmatprep.subr.bf16.mxu0 %v5425
    %7576 = vmatpush1.bf16.xpose.msra.mxu0 %v5424
    %7577 = vmatprep.subr.bf16.mxu0 %v5339
    %7578 = vmatpush1.bf16.xpose.msra.mxu0 %v5338
    %7579 = vmatprep.subr.bf16.mxu0 %v5253
    %7580 = vmatpush1.bf16.xpose.msra.mxu0 %v5252
    %7581 = vmatprep.subr.bf16.mxu0 %v5167
    %7582 = vmatpush1.bf16.xpose.msra.mxu0 %v5166
    %7583 = vmatprep.subr.bf16.mxu0 %v5081
    %7584 = vmatpush1.bf16.xpose.msra.mxu0 %v5080
    %7585 = vmatprep.subr.bf16.mxu0 %v4995
    %7586 = vmatpush1.bf16.xpose.msra.mxu0 %v4994
    %7587 = vmatprep.subr.bf16.mxu0 %v4909
    %7588 = vmatpush1.bf16.xpose.msra.mxu0 %v4908
    %7589 = vmatprep.subr.bf16.mxu0 0
    %7590 = vmatpush2.bf16.xpose.msra.mxu0 0
    %7591 = vmatprep.subr.bf16.mxu0 0
    %7592 = vmatpush2.bf16.xpose.msra.mxu0 0
    %7593 = vmatprep.subr.bf16.mxu0 0
    %7594 = vmatpush2.bf16.xpose.msra.mxu0 0
    %7595 = vmatprep.subr.bf16.mxu0 %v5941
    %7596 = vmatpush2.bf16.xpose.msra.mxu0 %v5940
    %7597 = vmatprep.subr.bf16.mxu0 %v5855
    %7598 = vmatpush2.bf16.xpose.msra.mxu0 %v5854
    %7599 = vmatprep.subr.bf16.mxu0 %v5769
    %7600 = vmatpush2.bf16.xpose.msra.mxu0 %v5768
    %7601 = vmatprep.subr.bf16.mxu0 %v5683
    %7602 = vmatpush2.bf16.xpose.msra.mxu0 %v5682
    %7603 = vmatprep.subr.bf16.mxu0 %v5597
    %7604 = vmatpush2.bf16.xpose.msra.mxu0 %v5596
    %7605 = vmatprep.mubr.bf16.mxu0 %v1383
    %7606 = vmatmul.mubr.bf16.gmra.mxu0 %v1382
    %v7607 = vpop.f32.mrf.mxu0
    %v7608 = vadd.f32 %v7567, %v7607
    %v7609 = vpop.f32.mrf.mxu0
    %v7610 = vadd.f32 %v7569, %v7609
    %v7611 = vpop.f32.mrf.mxu0
    %v7612 = vpop.f32.mrf.mxu0
    %7613 = vdwg.mxu0
    %7614 = vmatprep.subr.bf16.mxu0 %v5513
    %7615 = vmatpush1.bf16.xpose.msra.mxu0 %v5512
    %7616 = vmatprep.subr.bf16.mxu0 %v5427
    %7617 = vmatpush1.bf16.xpose.msra.mxu0 %v5426
    %7618 = vmatprep.subr.bf16.mxu0 %v5341
    %7619 = vmatpush1.bf16.xpose.msra.mxu0 %v5340
    %7620 = vmatprep.subr.bf16.mxu0 %v5255
    %7621 = vmatpush1.bf16.xpose.msra.mxu0 %v5254
    %7622 = vmatprep.subr.bf16.mxu0 %v5169
    %7623 = vmatpush1.bf16.xpose.msra.mxu0 %v5168
    %7624 = vmatprep.subr.bf16.mxu0 %v5083
    %7625 = vmatpush1.bf16.xpose.msra.mxu0 %v5082
    %7626 = vmatprep.subr.bf16.mxu0 %v4997
    %7627 = vmatpush1.bf16.xpose.msra.mxu0 %v4996
    %7628 = vmatprep.subr.bf16.mxu0 %v4911
    %7629 = vmatpush1.bf16.xpose.msra.mxu0 %v4910
    %7630 = vmatprep.subr.bf16.mxu0 0
    %7631 = vmatpush2.bf16.xpose.msra.mxu0 0
    %7632 = vmatprep.subr.bf16.mxu0 0
    %7633 = vmatpush2.bf16.xpose.msra.mxu0 0
    %7634 = vmatprep.subr.bf16.mxu0 0
    %7635 = vmatpush2.bf16.xpose.msra.mxu0 0
    %7636 = vmatprep.subr.bf16.mxu0 %v5943
    %7637 = vmatpush2.bf16.xpose.msra.mxu0 %v5942
    %7638 = vmatprep.subr.bf16.mxu0 %v5857
    %7639 = vmatpush2.bf16.xpose.msra.mxu0 %v5856
    %7640 = vmatprep.subr.bf16.mxu0 %v5771
    %7641 = vmatpush2.bf16.xpose.msra.mxu0 %v5770
    %7642 = vmatprep.subr.bf16.mxu0 %v5685
    %7643 = vmatpush2.bf16.xpose.msra.mxu0 %v5684
    %7644 = vmatprep.subr.bf16.mxu0 %v5599
    %7645 = vmatpush2.bf16.xpose.msra.mxu0 %v5598
    %7646 = vmatprep.mubr.bf16.mxu0 %v1385
    %7647 = vmatmul.mubr.bf16.gmra.mxu0 %v1384
    %v7648 = vpop.f32.mrf.mxu0
    %v7649 = vadd.f32 %v7608, %v7648
    %v7650 = vpop.f32.mrf.mxu0
    %v7651 = vadd.f32 %v7610, %v7650
    %v7652 = vpop.f32.mrf.mxu0
    %v7653 = vpop.f32.mrf.mxu0
    %7654 = vdwg.mxu0
    %7655 = vmatprep.subr.bf16.mxu0 %v5515
    %7656 = vmatpush1.bf16.xpose.msra.mxu0 %v5514
    %7657 = vmatprep.subr.bf16.mxu0 %v5429
    %7658 = vmatpush1.bf16.xpose.msra.mxu0 %v5428
    %7659 = vmatprep.subr.bf16.mxu0 %v5343
    %7660 = vmatpush1.bf16.xpose.msra.mxu0 %v5342
    %7661 = vmatprep.subr.bf16.mxu0 %v5257
    %7662 = vmatpush1.bf16.xpose.msra.mxu0 %v5256
    %7663 = vmatprep.subr.bf16.mxu0 %v5171
    %7664 = vmatpush1.bf16.xpose.msra.mxu0 %v5170
    %7665 = vmatprep.subr.bf16.mxu0 %v5085
    %7666 = vmatpush1.bf16.xpose.msra.mxu0 %v5084
    %7667 = vmatprep.subr.bf16.mxu0 %v4999
    %7668 = vmatpush1.bf16.xpose.msra.mxu0 %v4998
    %7669 = vmatprep.subr.bf16.mxu0 %v4913
    %7670 = vmatpush1.bf16.xpose.msra.mxu0 %v4912
    %7671 = vmatprep.subr.bf16.mxu0 0
    %7672 = vmatpush2.bf16.xpose.msra.mxu0 0
    %7673 = vmatprep.subr.bf16.mxu0 0
    %7674 = vmatpush2.bf16.xpose.msra.mxu0 0
    %7675 = vmatprep.subr.bf16.mxu0 0
    %7676 = vmatpush2.bf16.xpose.msra.mxu0 0
    %7677 = vmatprep.subr.bf16.mxu0 %v5945
    %7678 = vmatpush2.bf16.xpose.msra.mxu0 %v5944
    %7679 = vmatprep.subr.bf16.mxu0 %v5859
    %7680 = vmatpush2.bf16.xpose.msra.mxu0 %v5858
    %7681 = vmatprep.subr.bf16.mxu0 %v5773
    %7682 = vmatpush2.bf16.xpose.msra.mxu0 %v5772
    %7683 = vmatprep.subr.bf16.mxu0 %v5687
    %7684 = vmatpush2.bf16.xpose.msra.mxu0 %v5686
    %7685 = vmatprep.subr.bf16.mxu0 %v5601
    %7686 = vmatpush2.bf16.xpose.msra.mxu0 %v5600
    %7687 = vmatprep.mubr.bf16.mxu0 %v1387
    %7688 = vmatmul.mubr.bf16.gmra.mxu0 %v1386
    %v7689 = vpop.f32.mrf.mxu0
    %v7690 = vadd.f32 %v7649, %v7689
    %v7691 = vpop.f32.mrf.mxu0
    %v7692 = vadd.f32 %v7651, %v7691
    %v7693 = vpop.f32.mrf.mxu0
    %v7694 = vpop.f32.mrf.mxu0
    %7695 = vdwg.mxu0
    %7696 = vmatprep.subr.bf16.mxu0 %v5517
    %7697 = vmatpush1.bf16.xpose.msra.mxu0 %v5516
    %7698 = vmatprep.subr.bf16.mxu0 %v5431
    %7699 = vmatpush1.bf16.xpose.msra.mxu0 %v5430
    %7700 = vmatprep.subr.bf16.mxu0 %v5345
    %7701 = vmatpush1.bf16.xpose.msra.mxu0 %v5344
    %7702 = vmatprep.subr.bf16.mxu0 %v5259
    %7703 = vmatpush1.bf16.xpose.msra.mxu0 %v5258
    %7704 = vmatprep.subr.bf16.mxu0 %v5173
    %7705 = vmatpush1.bf16.xpose.msra.mxu0 %v5172
    %7706 = vmatprep.subr.bf16.mxu0 %v5087
    %7707 = vmatpush1.bf16.xpose.msra.mxu0 %v5086
    %7708 = vmatprep.subr.bf16.mxu0 %v5001
    %7709 = vmatpush1.bf16.xpose.msra.mxu0 %v5000
    %7710 = vmatprep.subr.bf16.mxu0 %v4915
    %7711 = vmatpush1.bf16.xpose.msra.mxu0 %v4914
    %7712 = vmatprep.subr.bf16.mxu0 0
    %7713 = vmatpush2.bf16.xpose.msra.mxu0 0
    %7714 = vmatprep.subr.bf16.mxu0 0
    %7715 = vmatpush2.bf16.xpose.msra.mxu0 0
    %7716 = vmatprep.subr.bf16.mxu0 0
    %7717 = vmatpush2.bf16.xpose.msra.mxu0 0
    %7718 = vmatprep.subr.bf16.mxu0 %v5947
    %7719 = vmatpush2.bf16.xpose.msra.mxu0 %v5946
    %7720 = vmatprep.subr.bf16.mxu0 %v5861
    %7721 = vmatpush2.bf16.xpose.msra.mxu0 %v5860
    %7722 = vmatprep.subr.bf16.mxu0 %v5775
    %7723 = vmatpush2.bf16.xpose.msra.mxu0 %v5774
    %7724 = vmatprep.subr.bf16.mxu0 %v5689
    %7725 = vmatpush2.bf16.xpose.msra.mxu0 %v5688
    %7726 = vmatprep.subr.bf16.mxu0 %v5603
    %7727 = vmatpush2.bf16.xpose.msra.mxu0 %v5602
    %7728 = vmatprep.mubr.bf16.mxu0 %v1389
    %7729 = vmatmul.mubr.bf16.gmra.mxu0 %v1388
    %v7730 = vpop.f32.mrf.mxu0
    %v7731 = vadd.f32 %v7690, %v7730
    %v7732 = vpop.f32.mrf.mxu0
    %v7733 = vadd.f32 %v7692, %v7732
    %v7734 = vpop.f32.mrf.mxu0
    %v7735 = vpop.f32.mrf.mxu0
    %7736 = vdwg.mxu0
    %7737 = vmatprep.subr.bf16.mxu0 %v5519
    %7738 = vmatpush1.bf16.xpose.msra.mxu0 %v5518
    %7739 = vmatprep.subr.bf16.mxu0 %v5433
    %7740 = vmatpush1.bf16.xpose.msra.mxu0 %v5432
    %7741 = vmatprep.subr.bf16.mxu0 %v5347
    %7742 = vmatpush1.bf16.xpose.msra.mxu0 %v5346
    %7743 = vmatprep.subr.bf16.mxu0 %v5261
    %7744 = vmatpush1.bf16.xpose.msra.mxu0 %v5260
    %7745 = vmatprep.subr.bf16.mxu0 %v5175
    %7746 = vmatpush1.bf16.xpose.msra.mxu0 %v5174
    %7747 = vmatprep.subr.bf16.mxu0 %v5089
    %7748 = vmatpush1.bf16.xpose.msra.mxu0 %v5088
    %7749 = vmatprep.subr.bf16.mxu0 %v5003
    %7750 = vmatpush1.bf16.xpose.msra.mxu0 %v5002
    %7751 = vmatprep.subr.bf16.mxu0 %v4917
    %7752 = vmatpush1.bf16.xpose.msra.mxu0 %v4916
    %7753 = vmatprep.subr.bf16.mxu0 0
    %7754 = vmatpush2.bf16.xpose.msra.mxu0 0
    %7755 = vmatprep.subr.bf16.mxu0 0
    %7756 = vmatpush2.bf16.xpose.msra.mxu0 0
    %7757 = vmatprep.subr.bf16.mxu0 0
    %7758 = vmatpush2.bf16.xpose.msra.mxu0 0
    %7759 = vmatprep.subr.bf16.mxu0 %v5949
    %7760 = vmatpush2.bf16.xpose.msra.mxu0 %v5948
    %7761 = vmatprep.subr.bf16.mxu0 %v5863
    %7762 = vmatpush2.bf16.xpose.msra.mxu0 %v5862
    %7763 = vmatprep.subr.bf16.mxu0 %v5777
    %7764 = vmatpush2.bf16.xpose.msra.mxu0 %v5776
    %7765 = vmatprep.subr.bf16.mxu0 %v5691
    %7766 = vmatpush2.bf16.xpose.msra.mxu0 %v5690
    %7767 = vmatprep.subr.bf16.mxu0 %v5605
    %7768 = vmatpush2.bf16.xpose.msra.mxu0 %v5604
    %7769 = vmatprep.mubr.bf16.mxu0 %v1391
    %7770 = vmatmul.mubr.bf16.gmra.mxu0 %v1390
    %v7771 = vpop.f32.mrf.mxu0
    %v7772 = vadd.f32 %v7731, %v7771
    %v7773 = vpop.f32.mrf.mxu0
    %v7774 = vadd.f32 %v7733, %v7773
    %v7775 = vpop.f32.mrf.mxu0
    %v7776 = vpop.f32.mrf.mxu0
    %7777 = vdwg.mxu0
    %7778 = vmatprep.subr.bf16.mxu0 %v5521
    %7779 = vmatpush1.bf16.xpose.msra.mxu0 %v5520
    %7780 = vmatprep.subr.bf16.mxu0 %v5435
    %7781 = vmatpush1.bf16.xpose.msra.mxu0 %v5434
    %7782 = vmatprep.subr.bf16.mxu0 %v5349
    %7783 = vmatpush1.bf16.xpose.msra.mxu0 %v5348
    %7784 = vmatprep.subr.bf16.mxu0 %v5263
    %7785 = vmatpush1.bf16.xpose.msra.mxu0 %v5262
    %7786 = vmatprep.subr.bf16.mxu0 %v5177
    %7787 = vmatpush1.bf16.xpose.msra.mxu0 %v5176
    %7788 = vmatprep.subr.bf16.mxu0 %v5091
    %7789 = vmatpush1.bf16.xpose.msra.mxu0 %v5090
    %7790 = vmatprep.subr.bf16.mxu0 %v5005
    %7791 = vmatpush1.bf16.xpose.msra.mxu0 %v5004
    %7792 = vmatprep.subr.bf16.mxu0 %v4919
    %7793 = vmatpush1.bf16.xpose.msra.mxu0 %v4918
    %7794 = vmatprep.subr.bf16.mxu0 0
    %7795 = vmatpush2.bf16.xpose.msra.mxu0 0
    %7796 = vmatprep.subr.bf16.mxu0 0
    %7797 = vmatpush2.bf16.xpose.msra.mxu0 0
    %7798 = vmatprep.subr.bf16.mxu0 0
    %7799 = vmatpush2.bf16.xpose.msra.mxu0 0
    %7800 = vmatprep.subr.bf16.mxu0 %v5951
    %7801 = vmatpush2.bf16.xpose.msra.mxu0 %v5950
    %7802 = vmatprep.subr.bf16.mxu0 %v5865
    %7803 = vmatpush2.bf16.xpose.msra.mxu0 %v5864
    %7804 = vmatprep.subr.bf16.mxu0 %v5779
    %7805 = vmatpush2.bf16.xpose.msra.mxu0 %v5778
    %7806 = vmatprep.subr.bf16.mxu0 %v5693
    %7807 = vmatpush2.bf16.xpose.msra.mxu0 %v5692
    %7808 = vmatprep.subr.bf16.mxu0 %v5607
    %7809 = vmatpush2.bf16.xpose.msra.mxu0 %v5606
    %7810 = vmatprep.mubr.bf16.mxu0 %v1393
    %7811 = vmatmul.mubr.bf16.gmra.mxu0 %v1392
    %v7812 = vpop.f32.mrf.mxu0
    %v7813 = vadd.f32 %v7772, %v7812
    %v7814 = vpop.f32.mrf.mxu0
    %v7815 = vadd.f32 %v7774, %v7814
    %v7816 = vpop.f32.mrf.mxu0
    %v7817 = vpop.f32.mrf.mxu0
    %7818 = vdwg.mxu0
    %7819 = vmatprep.subr.bf16.mxu0 %v5523
    %7820 = vmatpush1.bf16.xpose.msra.mxu0 %v5522
    %7821 = vmatprep.subr.bf16.mxu0 %v5437
    %7822 = vmatpush1.bf16.xpose.msra.mxu0 %v5436
    %7823 = vmatprep.subr.bf16.mxu0 %v5351
    %7824 = vmatpush1.bf16.xpose.msra.mxu0 %v5350
    %7825 = vmatprep.subr.bf16.mxu0 %v5265
    %7826 = vmatpush1.bf16.xpose.msra.mxu0 %v5264
    %7827 = vmatprep.subr.bf16.mxu0 %v5179
    %7828 = vmatpush1.bf16.xpose.msra.mxu0 %v5178
    %7829 = vmatprep.subr.bf16.mxu0 %v5093
    %7830 = vmatpush1.bf16.xpose.msra.mxu0 %v5092
    %7831 = vmatprep.subr.bf16.mxu0 %v5007
    %7832 = vmatpush1.bf16.xpose.msra.mxu0 %v5006
    %7833 = vmatprep.subr.bf16.mxu0 %v4921
    %7834 = vmatpush1.bf16.xpose.msra.mxu0 %v4920
    %7835 = vmatprep.subr.bf16.mxu0 0
    %7836 = vmatpush2.bf16.xpose.msra.mxu0 0
    %7837 = vmatprep.subr.bf16.mxu0 0
    %7838 = vmatpush2.bf16.xpose.msra.mxu0 0
    %7839 = vmatprep.subr.bf16.mxu0 0
    %7840 = vmatpush2.bf16.xpose.msra.mxu0 0
    %7841 = vmatprep.subr.bf16.mxu0 %v5953
    %7842 = vmatpush2.bf16.xpose.msra.mxu0 %v5952
    %7843 = vmatprep.subr.bf16.mxu0 %v5867
    %7844 = vmatpush2.bf16.xpose.msra.mxu0 %v5866
    %7845 = vmatprep.subr.bf16.mxu0 %v5781
    %7846 = vmatpush2.bf16.xpose.msra.mxu0 %v5780
    %7847 = vmatprep.subr.bf16.mxu0 %v5695
    %7848 = vmatpush2.bf16.xpose.msra.mxu0 %v5694
    %7849 = vmatprep.subr.bf16.mxu0 %v5609
    %7850 = vmatpush2.bf16.xpose.msra.mxu0 %v5608
    %7851 = vmatprep.mubr.bf16.mxu0 %v1395
    %7852 = vmatmul.mubr.bf16.gmra.mxu0 %v1394
    %v7853 = vpop.f32.mrf.mxu0
    %v7854 = vadd.f32 %v7813, %v7853
    %v7855 = vpop.f32.mrf.mxu0
    %v7856 = vadd.f32 %v7815, %v7855
    %v7857 = vpop.f32.mrf.mxu0
    %v7858 = vpop.f32.mrf.mxu0
    %7859 = vdwg.mxu0
    %7860 = vmatprep.subr.bf16.mxu0 %v5525
    %7861 = vmatpush1.bf16.xpose.msra.mxu0 %v5524
    %7862 = vmatprep.subr.bf16.mxu0 %v5439
    %7863 = vmatpush1.bf16.xpose.msra.mxu0 %v5438
    %7864 = vmatprep.subr.bf16.mxu0 %v5353
    %7865 = vmatpush1.bf16.xpose.msra.mxu0 %v5352
    %7866 = vmatprep.subr.bf16.mxu0 %v5267
    %7867 = vmatpush1.bf16.xpose.msra.mxu0 %v5266
    %7868 = vmatprep.subr.bf16.mxu0 %v5181
    %7869 = vmatpush1.bf16.xpose.msra.mxu0 %v5180
    %7870 = vmatprep.subr.bf16.mxu0 %v5095
    %7871 = vmatpush1.bf16.xpose.msra.mxu0 %v5094
    %7872 = vmatprep.subr.bf16.mxu0 %v5009
    %7873 = vmatpush1.bf16.xpose.msra.mxu0 %v5008
    %7874 = vmatprep.subr.bf16.mxu0 %v4923
    %7875 = vmatpush1.bf16.xpose.msra.mxu0 %v4922
    %7876 = vmatprep.subr.bf16.mxu0 0
    %7877 = vmatpush2.bf16.xpose.msra.mxu0 0
    %7878 = vmatprep.subr.bf16.mxu0 0
    %7879 = vmatpush2.bf16.xpose.msra.mxu0 0
    %7880 = vmatprep.subr.bf16.mxu0 0
    %7881 = vmatpush2.bf16.xpose.msra.mxu0 0
    %7882 = vmatprep.subr.bf16.mxu0 %v5955
    %7883 = vmatpush2.bf16.xpose.msra.mxu0 %v5954
    %7884 = vmatprep.subr.bf16.mxu0 %v5869
    %7885 = vmatpush2.bf16.xpose.msra.mxu0 %v5868
    %7886 = vmatprep.subr.bf16.mxu0 %v5783
    %7887 = vmatpush2.bf16.xpose.msra.mxu0 %v5782
    %7888 = vmatprep.subr.bf16.mxu0 %v5697
    %7889 = vmatpush2.bf16.xpose.msra.mxu0 %v5696
    %7890 = vmatprep.subr.bf16.mxu0 %v5611
    %7891 = vmatpush2.bf16.xpose.msra.mxu0 %v5610
    %7892 = vmatprep.mubr.bf16.mxu0 %v1397
    %7893 = vmatmul.mubr.bf16.gmra.mxu0 %v1396
    %v7894 = vpop.f32.mrf.mxu0
    %v7895 = vadd.f32 %v7854, %v7894
    %v7896 = vpop.f32.mrf.mxu0
    %v7897 = vadd.f32 %v7856, %v7896
    %v7898 = vpop.f32.mrf.mxu0
    %v7899 = vpop.f32.mrf.mxu0
    %7900 = vdwg.mxu0
    %7901 = vmatprep.subr.bf16.mxu0 %v5527
    %7902 = vmatpush1.bf16.xpose.msra.mxu0 %v5526
    %7903 = vmatprep.subr.bf16.mxu0 %v5441
    %7904 = vmatpush1.bf16.xpose.msra.mxu0 %v5440
    %7905 = vmatprep.subr.bf16.mxu0 %v5355
    %7906 = vmatpush1.bf16.xpose.msra.mxu0 %v5354
    %7907 = vmatprep.subr.bf16.mxu0 %v5269
    %7908 = vmatpush1.bf16.xpose.msra.mxu0 %v5268
    %7909 = vmatprep.subr.bf16.mxu0 %v5183
    %7910 = vmatpush1.bf16.xpose.msra.mxu0 %v5182
    %7911 = vmatprep.subr.bf16.mxu0 %v5097
    %7912 = vmatpush1.bf16.xpose.msra.mxu0 %v5096
    %7913 = vmatprep.subr.bf16.mxu0 %v5011
    %7914 = vmatpush1.bf16.xpose.msra.mxu0 %v5010
    %7915 = vmatprep.subr.bf16.mxu0 %v4925
    %7916 = vmatpush1.bf16.xpose.msra.mxu0 %v4924
    %7917 = vmatprep.subr.bf16.mxu0 0
    %7918 = vmatpush2.bf16.xpose.msra.mxu0 0
    %7919 = vmatprep.subr.bf16.mxu0 0
    %7920 = vmatpush2.bf16.xpose.msra.mxu0 0
    %7921 = vmatprep.subr.bf16.mxu0 0
    %7922 = vmatpush2.bf16.xpose.msra.mxu0 0
    %7923 = vmatprep.subr.bf16.mxu0 %v5957
    %7924 = vmatpush2.bf16.xpose.msra.mxu0 %v5956
    %7925 = vmatprep.subr.bf16.mxu0 %v5871
    %7926 = vmatpush2.bf16.xpose.msra.mxu0 %v5870
    %7927 = vmatprep.subr.bf16.mxu0 %v5785
    %7928 = vmatpush2.bf16.xpose.msra.mxu0 %v5784
    %7929 = vmatprep.subr.bf16.mxu0 %v5699
    %7930 = vmatpush2.bf16.xpose.msra.mxu0 %v5698
    %7931 = vmatprep.subr.bf16.mxu0 %v5613
    %7932 = vmatpush2.bf16.xpose.msra.mxu0 %v5612
    %7933 = vmatprep.mubr.bf16.mxu0 %v1399
    %7934 = vmatmul.mubr.bf16.gmra.mxu0 %v1398
    %v7935 = vpop.f32.mrf.mxu0
    %v7936 = vadd.f32 %v7895, %v7935
    %v7937 = vpop.f32.mrf.mxu0
    %v7938 = vadd.f32 %v7897, %v7937
    %v7939 = vpop.f32.mrf.mxu0
    %v7940 = vpop.f32.mrf.mxu0
    %7941 = vdwg.mxu0
    %7942 = vmatprep.subr.bf16.mxu0 %v5529
    %7943 = vmatpush1.bf16.xpose.msra.mxu0 %v5528
    %7944 = vmatprep.subr.bf16.mxu0 %v5443
    %7945 = vmatpush1.bf16.xpose.msra.mxu0 %v5442
    %7946 = vmatprep.subr.bf16.mxu0 %v5357
    %7947 = vmatpush1.bf16.xpose.msra.mxu0 %v5356
    %7948 = vmatprep.subr.bf16.mxu0 %v5271
    %7949 = vmatpush1.bf16.xpose.msra.mxu0 %v5270
    %7950 = vmatprep.subr.bf16.mxu0 %v5185
    %7951 = vmatpush1.bf16.xpose.msra.mxu0 %v5184
    %7952 = vmatprep.subr.bf16.mxu0 %v5099
    %7953 = vmatpush1.bf16.xpose.msra.mxu0 %v5098
    %7954 = vmatprep.subr.bf16.mxu0 %v5013
    %7955 = vmatpush1.bf16.xpose.msra.mxu0 %v5012
    %7956 = vmatprep.subr.bf16.mxu0 %v4927
    %7957 = vmatpush1.bf16.xpose.msra.mxu0 %v4926
    %7958 = vmatprep.subr.bf16.mxu0 0
    %7959 = vmatpush2.bf16.xpose.msra.mxu0 0
    %7960 = vmatprep.subr.bf16.mxu0 0
    %7961 = vmatpush2.bf16.xpose.msra.mxu0 0
    %7962 = vmatprep.subr.bf16.mxu0 0
    %7963 = vmatpush2.bf16.xpose.msra.mxu0 0
    %7964 = vmatprep.subr.bf16.mxu0 %v5959
    %7965 = vmatpush2.bf16.xpose.msra.mxu0 %v5958
    %7966 = vmatprep.subr.bf16.mxu0 %v5873
    %7967 = vmatpush2.bf16.xpose.msra.mxu0 %v5872
    %7968 = vmatprep.subr.bf16.mxu0 %v5787
    %7969 = vmatpush2.bf16.xpose.msra.mxu0 %v5786
    %7970 = vmatprep.subr.bf16.mxu0 %v5701
    %7971 = vmatpush2.bf16.xpose.msra.mxu0 %v5700
    %7972 = vmatprep.subr.bf16.mxu0 %v5615
    %7973 = vmatpush2.bf16.xpose.msra.mxu0 %v5614
    %7974 = vmatprep.mubr.bf16.mxu0 %v1401
    %7975 = vmatmul.mubr.bf16.gmra.mxu0 %v1400
    %v7976 = vpop.f32.mrf.mxu0
    %v7977 = vadd.f32 %v7936, %v7976
    %v7978 = vpop.f32.mrf.mxu0
    %v7979 = vadd.f32 %v7938, %v7978
    %v7980 = vpop.f32.mrf.mxu0
    %v7981 = vpop.f32.mrf.mxu0
    %7982 = vdwg.mxu0
    %7983 = vmatprep.subr.bf16.mxu0 %v5531
    %7984 = vmatpush1.bf16.xpose.msra.mxu0 %v5530
    %7985 = vmatprep.subr.bf16.mxu0 %v5445
    %7986 = vmatpush1.bf16.xpose.msra.mxu0 %v5444
    %7987 = vmatprep.subr.bf16.mxu0 %v5359
    %7988 = vmatpush1.bf16.xpose.msra.mxu0 %v5358
    %7989 = vmatprep.subr.bf16.mxu0 %v5273
    %7990 = vmatpush1.bf16.xpose.msra.mxu0 %v5272
    %7991 = vmatprep.subr.bf16.mxu0 %v5187
    %7992 = vmatpush1.bf16.xpose.msra.mxu0 %v5186
    %7993 = vmatprep.subr.bf16.mxu0 %v5101
    %7994 = vmatpush1.bf16.xpose.msra.mxu0 %v5100
    %7995 = vmatprep.subr.bf16.mxu0 %v5015
    %7996 = vmatpush1.bf16.xpose.msra.mxu0 %v5014
    %7997 = vmatprep.subr.bf16.mxu0 %v4929
    %7998 = vmatpush1.bf16.xpose.msra.mxu0 %v4928
    %7999 = vmatprep.subr.bf16.mxu0 0
    %8000 = vmatpush2.bf16.xpose.msra.mxu0 0
    %8001 = vmatprep.subr.bf16.mxu0 0
    %8002 = vmatpush2.bf16.xpose.msra.mxu0 0
    %8003 = vmatprep.subr.bf16.mxu0 0
    %8004 = vmatpush2.bf16.xpose.msra.mxu0 0
    %8005 = vmatprep.subr.bf16.mxu0 %v5961
    %8006 = vmatpush2.bf16.xpose.msra.mxu0 %v5960
    %8007 = vmatprep.subr.bf16.mxu0 %v5875
    %8008 = vmatpush2.bf16.xpose.msra.mxu0 %v5874
    %8009 = vmatprep.subr.bf16.mxu0 %v5789
    %8010 = vmatpush2.bf16.xpose.msra.mxu0 %v5788
    %8011 = vmatprep.subr.bf16.mxu0 %v5703
    %8012 = vmatpush2.bf16.xpose.msra.mxu0 %v5702
    %8013 = vmatprep.subr.bf16.mxu0 %v5617
    %8014 = vmatpush2.bf16.xpose.msra.mxu0 %v5616
    %8015 = vmatprep.mubr.bf16.mxu0 %v1403
    %8016 = vmatmul.mubr.bf16.gmra.mxu0 %v1402
    %v8017 = vpop.f32.mrf.mxu0
    %v8018 = vadd.f32 %v7977, %v8017
    %v8019 = vpop.f32.mrf.mxu0
    %v8020 = vadd.f32 %v7979, %v8019
    %v8021 = vpop.f32.mrf.mxu0
    %v8022 = vpop.f32.mrf.mxu0
    %8023 = vdwg.mxu0
    %8024 = vmatprep.subr.bf16.mxu0 %v5533
    %8025 = vmatpush1.bf16.xpose.msra.mxu0 %v5532
    %8026 = vmatprep.subr.bf16.mxu0 %v5447
    %8027 = vmatpush1.bf16.xpose.msra.mxu0 %v5446
    %8028 = vmatprep.subr.bf16.mxu0 %v5361
    %8029 = vmatpush1.bf16.xpose.msra.mxu0 %v5360
    %8030 = vmatprep.subr.bf16.mxu0 %v5275
    %8031 = vmatpush1.bf16.xpose.msra.mxu0 %v5274
    %8032 = vmatprep.subr.bf16.mxu0 %v5189
    %8033 = vmatpush1.bf16.xpose.msra.mxu0 %v5188
    %8034 = vmatprep.subr.bf16.mxu0 %v5103
    %8035 = vmatpush1.bf16.xpose.msra.mxu0 %v5102
    %8036 = vmatprep.subr.bf16.mxu0 %v5017
    %8037 = vmatpush1.bf16.xpose.msra.mxu0 %v5016
    %8038 = vmatprep.subr.bf16.mxu0 %v4931
    %8039 = vmatpush1.bf16.xpose.msra.mxu0 %v4930
    %8040 = vmatprep.subr.bf16.mxu0 0
    %8041 = vmatpush2.bf16.xpose.msra.mxu0 0
    %8042 = vmatprep.subr.bf16.mxu0 0
    %8043 = vmatpush2.bf16.xpose.msra.mxu0 0
    %8044 = vmatprep.subr.bf16.mxu0 0
    %8045 = vmatpush2.bf16.xpose.msra.mxu0 0
    %8046 = vmatprep.subr.bf16.mxu0 %v5963
    %8047 = vmatpush2.bf16.xpose.msra.mxu0 %v5962
    %8048 = vmatprep.subr.bf16.mxu0 %v5877
    %8049 = vmatpush2.bf16.xpose.msra.mxu0 %v5876
    %8050 = vmatprep.subr.bf16.mxu0 %v5791
    %8051 = vmatpush2.bf16.xpose.msra.mxu0 %v5790
    %8052 = vmatprep.subr.bf16.mxu0 %v5705
    %8053 = vmatpush2.bf16.xpose.msra.mxu0 %v5704
    %8054 = vmatprep.subr.bf16.mxu0 %v5619
    %8055 = vmatpush2.bf16.xpose.msra.mxu0 %v5618
    %8056 = vmatprep.mubr.bf16.mxu0 %v1405
    %8057 = vmatmul.mubr.bf16.gmra.mxu0 %v1404
    %v8058 = vpop.f32.mrf.mxu0
    %v8059 = vadd.f32 %v8018, %v8058
    %v8060 = vpop.f32.mrf.mxu0
    %v8061 = vadd.f32 %v8020, %v8060
    %v8062 = vpop.f32.mrf.mxu0
    %v8063 = vpop.f32.mrf.mxu0
    %8064 = vdwg.mxu0
    %8065 = vmatprep.subr.bf16.mxu0 %v5535
    %8066 = vmatpush1.bf16.xpose.msra.mxu0 %v5534
    %8067 = vmatprep.subr.bf16.mxu0 %v5449
    %8068 = vmatpush1.bf16.xpose.msra.mxu0 %v5448
    %8069 = vmatprep.subr.bf16.mxu0 %v5363
    %8070 = vmatpush1.bf16.xpose.msra.mxu0 %v5362
    %8071 = vmatprep.subr.bf16.mxu0 %v5277
    %8072 = vmatpush1.bf16.xpose.msra.mxu0 %v5276
    %8073 = vmatprep.subr.bf16.mxu0 %v5191
    %8074 = vmatpush1.bf16.xpose.msra.mxu0 %v5190
    %8075 = vmatprep.subr.bf16.mxu0 %v5105
    %8076 = vmatpush1.bf16.xpose.msra.mxu0 %v5104
    %8077 = vmatprep.subr.bf16.mxu0 %v5019
    %8078 = vmatpush1.bf16.xpose.msra.mxu0 %v5018
    %8079 = vmatprep.subr.bf16.mxu0 %v4933
    %8080 = vmatpush1.bf16.xpose.msra.mxu0 %v4932
    %8081 = vmatprep.subr.bf16.mxu0 0
    %8082 = vmatpush2.bf16.xpose.msra.mxu0 0
    %8083 = vmatprep.subr.bf16.mxu0 0
    %8084 = vmatpush2.bf16.xpose.msra.mxu0 0
    %8085 = vmatprep.subr.bf16.mxu0 0
    %8086 = vmatpush2.bf16.xpose.msra.mxu0 0
    %8087 = vmatprep.subr.bf16.mxu0 %v5965
    %8088 = vmatpush2.bf16.xpose.msra.mxu0 %v5964
    %8089 = vmatprep.subr.bf16.mxu0 %v5879
    %8090 = vmatpush2.bf16.xpose.msra.mxu0 %v5878
    %8091 = vmatprep.subr.bf16.mxu0 %v5793
    %8092 = vmatpush2.bf16.xpose.msra.mxu0 %v5792
    %8093 = vmatprep.subr.bf16.mxu0 %v5707
    %8094 = vmatpush2.bf16.xpose.msra.mxu0 %v5706
    %8095 = vmatprep.subr.bf16.mxu0 %v5621
    %8096 = vmatpush2.bf16.xpose.msra.mxu0 %v5620
    %8097 = vmatprep.mubr.bf16.mxu0 %v1407
    %8098 = vmatmul.mubr.bf16.gmra.mxu0 %v1406
    %v8099 = vpop.f32.mrf.mxu0
    %v8100 = vadd.f32 %v8059, %v8099
    %v8101 = vpop.f32.mrf.mxu0
    %v8102 = vadd.f32 %v8061, %v8101
    %v8103 = vpop.f32.mrf.mxu0
    %v8104 = vpop.f32.mrf.mxu0
    %8105 = vdwg.mxu0
    %8106 = vmatprep.subr.bf16.mxu0 %v5537
    %8107 = vmatpush1.bf16.xpose.msra.mxu0 %v5536
    %8108 = vmatprep.subr.bf16.mxu0 %v5451
    %8109 = vmatpush1.bf16.xpose.msra.mxu0 %v5450
    %8110 = vmatprep.subr.bf16.mxu0 %v5365
    %8111 = vmatpush1.bf16.xpose.msra.mxu0 %v5364
    %8112 = vmatprep.subr.bf16.mxu0 %v5279
    %8113 = vmatpush1.bf16.xpose.msra.mxu0 %v5278
    %8114 = vmatprep.subr.bf16.mxu0 %v5193
    %8115 = vmatpush1.bf16.xpose.msra.mxu0 %v5192
    %8116 = vmatprep.subr.bf16.mxu0 %v5107
    %8117 = vmatpush1.bf16.xpose.msra.mxu0 %v5106
    %8118 = vmatprep.subr.bf16.mxu0 %v5021
    %8119 = vmatpush1.bf16.xpose.msra.mxu0 %v5020
    %8120 = vmatprep.subr.bf16.mxu0 %v4935
    %8121 = vmatpush1.bf16.xpose.msra.mxu0 %v4934
    %8122 = vmatprep.subr.bf16.mxu0 0
    %8123 = vmatpush2.bf16.xpose.msra.mxu0 0
    %8124 = vmatprep.subr.bf16.mxu0 0
    %8125 = vmatpush2.bf16.xpose.msra.mxu0 0
    %8126 = vmatprep.subr.bf16.mxu0 0
    %8127 = vmatpush2.bf16.xpose.msra.mxu0 0
    %8128 = vmatprep.subr.bf16.mxu0 %v5967
    %8129 = vmatpush2.bf16.xpose.msra.mxu0 %v5966
    %8130 = vmatprep.subr.bf16.mxu0 %v5881
    %8131 = vmatpush2.bf16.xpose.msra.mxu0 %v5880
    %8132 = vmatprep.subr.bf16.mxu0 %v5795
    %8133 = vmatpush2.bf16.xpose.msra.mxu0 %v5794
    %8134 = vmatprep.subr.bf16.mxu0 %v5709
    %8135 = vmatpush2.bf16.xpose.msra.mxu0 %v5708
    %8136 = vmatprep.subr.bf16.mxu0 %v5623
    %8137 = vmatpush2.bf16.xpose.msra.mxu0 %v5622
    %8138 = vmatprep.mubr.bf16.mxu0 %v1409
    %8139 = vmatmul.mubr.bf16.gmra.mxu0 %v1408
    %v8140 = vpop.f32.mrf.mxu0
    %v8141 = vadd.f32 %v8100, %v8140
    %v8142 = vpop.f32.mrf.mxu0
    %v8143 = vadd.f32 %v8102, %v8142
    %v8144 = vpop.f32.mrf.mxu0
    %v8145 = vpop.f32.mrf.mxu0
    %8146 = vdwg.mxu0
    %8147 = vmatprep.subr.bf16.mxu0 %v5539
    %8148 = vmatpush1.bf16.xpose.msra.mxu0 %v5538
    %8149 = vmatprep.subr.bf16.mxu0 %v5453
    %8150 = vmatpush1.bf16.xpose.msra.mxu0 %v5452
    %8151 = vmatprep.subr.bf16.mxu0 %v5367
    %8152 = vmatpush1.bf16.xpose.msra.mxu0 %v5366
    %8153 = vmatprep.subr.bf16.mxu0 %v5281
    %8154 = vmatpush1.bf16.xpose.msra.mxu0 %v5280
    %8155 = vmatprep.subr.bf16.mxu0 %v5195
    %8156 = vmatpush1.bf16.xpose.msra.mxu0 %v5194
    %8157 = vmatprep.subr.bf16.mxu0 %v5109
    %8158 = vmatpush1.bf16.xpose.msra.mxu0 %v5108
    %8159 = vmatprep.subr.bf16.mxu0 %v5023
    %8160 = vmatpush1.bf16.xpose.msra.mxu0 %v5022
    %8161 = vmatprep.subr.bf16.mxu0 %v4937
    %8162 = vmatpush1.bf16.xpose.msra.mxu0 %v4936
    %8163 = vmatprep.subr.bf16.mxu0 0
    %8164 = vmatpush2.bf16.xpose.msra.mxu0 0
    %8165 = vmatprep.subr.bf16.mxu0 0
    %8166 = vmatpush2.bf16.xpose.msra.mxu0 0
    %8167 = vmatprep.subr.bf16.mxu0 0
    %8168 = vmatpush2.bf16.xpose.msra.mxu0 0
    %8169 = vmatprep.subr.bf16.mxu0 %v5969
    %8170 = vmatpush2.bf16.xpose.msra.mxu0 %v5968
    %8171 = vmatprep.subr.bf16.mxu0 %v5883
    %8172 = vmatpush2.bf16.xpose.msra.mxu0 %v5882
    %8173 = vmatprep.subr.bf16.mxu0 %v5797
    %8174 = vmatpush2.bf16.xpose.msra.mxu0 %v5796
    %8175 = vmatprep.subr.bf16.mxu0 %v5711
    %8176 = vmatpush2.bf16.xpose.msra.mxu0 %v5710
    %8177 = vmatprep.subr.bf16.mxu0 %v5625
    %8178 = vmatpush2.bf16.xpose.msra.mxu0 %v5624
    %8179 = vmatprep.mubr.bf16.mxu0 %v1411
    %8180 = vmatmul.mubr.bf16.gmra.mxu0 %v1410
    %v8181 = vpop.f32.mrf.mxu0
    %v8182 = vadd.f32 %v8141, %v8181
    %v8183 = vpop.f32.mrf.mxu0
    %v8184 = vadd.f32 %v8143, %v8183
    %v8185 = vpop.f32.mrf.mxu0
    %v8186 = vpop.f32.mrf.mxu0
    %8187 = vdwg.mxu0
    %8188 = vmatprep.subr.bf16.mxu0 %v5541
    %8189 = vmatpush1.bf16.xpose.msra.mxu0 %v5540
    %8190 = vmatprep.subr.bf16.mxu0 %v5455
    %8191 = vmatpush1.bf16.xpose.msra.mxu0 %v5454
    %8192 = vmatprep.subr.bf16.mxu0 %v5369
    %8193 = vmatpush1.bf16.xpose.msra.mxu0 %v5368
    %8194 = vmatprep.subr.bf16.mxu0 %v5283
    %8195 = vmatpush1.bf16.xpose.msra.mxu0 %v5282
    %8196 = vmatprep.subr.bf16.mxu0 %v5197
    %8197 = vmatpush1.bf16.xpose.msra.mxu0 %v5196
    %8198 = vmatprep.subr.bf16.mxu0 %v5111
    %8199 = vmatpush1.bf16.xpose.msra.mxu0 %v5110
    %8200 = vmatprep.subr.bf16.mxu0 %v5025
    %8201 = vmatpush1.bf16.xpose.msra.mxu0 %v5024
    %8202 = vmatprep.subr.bf16.mxu0 %v4939
    %8203 = vmatpush1.bf16.xpose.msra.mxu0 %v4938
    %8204 = vmatprep.subr.bf16.mxu0 0
    %8205 = vmatpush2.bf16.xpose.msra.mxu0 0
    %8206 = vmatprep.subr.bf16.mxu0 0
    %8207 = vmatpush2.bf16.xpose.msra.mxu0 0
    %8208 = vmatprep.subr.bf16.mxu0 0
    %8209 = vmatpush2.bf16.xpose.msra.mxu0 0
    %8210 = vmatprep.subr.bf16.mxu0 %v5971
    %8211 = vmatpush2.bf16.xpose.msra.mxu0 %v5970
    %8212 = vmatprep.subr.bf16.mxu0 %v5885
    %8213 = vmatpush2.bf16.xpose.msra.mxu0 %v5884
    %8214 = vmatprep.subr.bf16.mxu0 %v5799
    %8215 = vmatpush2.bf16.xpose.msra.mxu0 %v5798
    %8216 = vmatprep.subr.bf16.mxu0 %v5713
    %8217 = vmatpush2.bf16.xpose.msra.mxu0 %v5712
    %8218 = vmatprep.subr.bf16.mxu0 %v5627
    %8219 = vmatpush2.bf16.xpose.msra.mxu0 %v5626
    %8220 = vmatprep.mubr.bf16.mxu0 %v1413
    %8221 = vmatmul.mubr.bf16.gmra.mxu0 %v1412
    %v8222 = vpop.f32.mrf.mxu0
    %v8223 = vadd.f32 %v8182, %v8222
    %v8224 = vpop.f32.mrf.mxu0
    %v8225 = vadd.f32 %v8184, %v8224
    %v8226 = vpop.f32.mrf.mxu0
    %v8227 = vpop.f32.mrf.mxu0
    %8228 = vdwg.mxu0
    %8229 = vmatprep.subr.bf16.mxu0 %v5543
    %8230 = vmatpush1.bf16.xpose.msra.mxu0 %v5542
    %8231 = vmatprep.subr.bf16.mxu0 %v5457
    %8232 = vmatpush1.bf16.xpose.msra.mxu0 %v5456
    %8233 = vmatprep.subr.bf16.mxu0 %v5371
    %8234 = vmatpush1.bf16.xpose.msra.mxu0 %v5370
    %8235 = vmatprep.subr.bf16.mxu0 %v5285
    %8236 = vmatpush1.bf16.xpose.msra.mxu0 %v5284
    %8237 = vmatprep.subr.bf16.mxu0 %v5199
    %8238 = vmatpush1.bf16.xpose.msra.mxu0 %v5198
    %8239 = vmatprep.subr.bf16.mxu0 %v5113
    %8240 = vmatpush1.bf16.xpose.msra.mxu0 %v5112
    %8241 = vmatprep.subr.bf16.mxu0 %v5027
    %8242 = vmatpush1.bf16.xpose.msra.mxu0 %v5026
    %8243 = vmatprep.subr.bf16.mxu0 %v4941
    %8244 = vmatpush1.bf16.xpose.msra.mxu0 %v4940
    %8245 = vmatprep.subr.bf16.mxu0 0
    %8246 = vmatpush2.bf16.xpose.msra.mxu0 0
    %8247 = vmatprep.subr.bf16.mxu0 0
    %8248 = vmatpush2.bf16.xpose.msra.mxu0 0
    %8249 = vmatprep.subr.bf16.mxu0 0
    %8250 = vmatpush2.bf16.xpose.msra.mxu0 0
    %8251 = vmatprep.subr.bf16.mxu0 %v5973
    %8252 = vmatpush2.bf16.xpose.msra.mxu0 %v5972
    %8253 = vmatprep.subr.bf16.mxu0 %v5887
    %8254 = vmatpush2.bf16.xpose.msra.mxu0 %v5886
    %8255 = vmatprep.subr.bf16.mxu0 %v5801
    %8256 = vmatpush2.bf16.xpose.msra.mxu0 %v5800
    %8257 = vmatprep.subr.bf16.mxu0 %v5715
    %8258 = vmatpush2.bf16.xpose.msra.mxu0 %v5714
    %8259 = vmatprep.subr.bf16.mxu0 %v5629
    %8260 = vmatpush2.bf16.xpose.msra.mxu0 %v5628
    %8261 = vmatprep.mubr.bf16.mxu0 %v1415
    %8262 = vmatmul.mubr.bf16.gmra.mxu0 %v1414
    %v8263 = vpop.f32.mrf.mxu0
    %v8264 = vadd.f32 %v8223, %v8263
    %v8265 = vpop.f32.mrf.mxu0
    %v8266 = vadd.f32 %v8225, %v8265
    %v8267 = vpop.f32.mrf.mxu0
    %v8268 = vpop.f32.mrf.mxu0
    %8269 = vdwg.mxu0
    %8270 = vmatprep.subr.bf16.mxu0 %v5545
    %8271 = vmatpush1.bf16.xpose.msra.mxu0 %v5544
    %8272 = vmatprep.subr.bf16.mxu0 %v5459
    %8273 = vmatpush1.bf16.xpose.msra.mxu0 %v5458
    %8274 = vmatprep.subr.bf16.mxu0 %v5373
    %8275 = vmatpush1.bf16.xpose.msra.mxu0 %v5372
    %8276 = vmatprep.subr.bf16.mxu0 %v5287
    %8277 = vmatpush1.bf16.xpose.msra.mxu0 %v5286
    %8278 = vmatprep.subr.bf16.mxu0 %v5201
    %8279 = vmatpush1.bf16.xpose.msra.mxu0 %v5200
    %8280 = vmatprep.subr.bf16.mxu0 %v5115
    %8281 = vmatpush1.bf16.xpose.msra.mxu0 %v5114
    %8282 = vmatprep.subr.bf16.mxu0 %v5029
    %8283 = vmatpush1.bf16.xpose.msra.mxu0 %v5028
    %8284 = vmatprep.subr.bf16.mxu0 %v4943
    %8285 = vmatpush1.bf16.xpose.msra.mxu0 %v4942
    %8286 = vmatprep.subr.bf16.mxu0 0
    %8287 = vmatpush2.bf16.xpose.msra.mxu0 0
    %8288 = vmatprep.subr.bf16.mxu0 0
    %8289 = vmatpush2.bf16.xpose.msra.mxu0 0
    %8290 = vmatprep.subr.bf16.mxu0 0
    %8291 = vmatpush2.bf16.xpose.msra.mxu0 0
    %8292 = vmatprep.subr.bf16.mxu0 %v5975
    %8293 = vmatpush2.bf16.xpose.msra.mxu0 %v5974
    %8294 = vmatprep.subr.bf16.mxu0 %v5889
    %8295 = vmatpush2.bf16.xpose.msra.mxu0 %v5888
    %8296 = vmatprep.subr.bf16.mxu0 %v5803
    %8297 = vmatpush2.bf16.xpose.msra.mxu0 %v5802
    %8298 = vmatprep.subr.bf16.mxu0 %v5717
    %8299 = vmatpush2.bf16.xpose.msra.mxu0 %v5716
    %8300 = vmatprep.subr.bf16.mxu0 %v5631
    %8301 = vmatpush2.bf16.xpose.msra.mxu0 %v5630
    %8302 = vmatprep.mubr.bf16.mxu0 %v1417
    %8303 = vmatmul.mubr.bf16.gmra.mxu0 %v1416
    %v8304 = vpop.f32.mrf.mxu0
    %v8305 = vadd.f32 %v8264, %v8304
    %v8306 = vpop.f32.mrf.mxu0
    %v8307 = vadd.f32 %v8266, %v8306
    %v8308 = vpop.f32.mrf.mxu0
    %v8309 = vpop.f32.mrf.mxu0
    %8310 = vdwg.mxu0
    %8311 = vmatprep.subr.bf16.mxu0 %v5547
    %8312 = vmatpush1.bf16.xpose.msra.mxu0 %v5546
    %8313 = vmatprep.subr.bf16.mxu0 %v5461
    %8314 = vmatpush1.bf16.xpose.msra.mxu0 %v5460
    %8315 = vmatprep.subr.bf16.mxu0 %v5375
    %8316 = vmatpush1.bf16.xpose.msra.mxu0 %v5374
    %8317 = vmatprep.subr.bf16.mxu0 %v5289
    %8318 = vmatpush1.bf16.xpose.msra.mxu0 %v5288
    %8319 = vmatprep.subr.bf16.mxu0 %v5203
    %8320 = vmatpush1.bf16.xpose.msra.mxu0 %v5202
    %8321 = vmatprep.subr.bf16.mxu0 %v5117
    %8322 = vmatpush1.bf16.xpose.msra.mxu0 %v5116
    %8323 = vmatprep.subr.bf16.mxu0 %v5031
    %8324 = vmatpush1.bf16.xpose.msra.mxu0 %v5030
    %8325 = vmatprep.subr.bf16.mxu0 %v4945
    %8326 = vmatpush1.bf16.xpose.msra.mxu0 %v4944
    %8327 = vmatprep.subr.bf16.mxu0 0
    %8328 = vmatpush2.bf16.xpose.msra.mxu0 0
    %8329 = vmatprep.subr.bf16.mxu0 0
    %8330 = vmatpush2.bf16.xpose.msra.mxu0 0
    %8331 = vmatprep.subr.bf16.mxu0 0
    %8332 = vmatpush2.bf16.xpose.msra.mxu0 0
    %8333 = vmatprep.subr.bf16.mxu0 %v5977
    %8334 = vmatpush2.bf16.xpose.msra.mxu0 %v5976
    %8335 = vmatprep.subr.bf16.mxu0 %v5891
    %8336 = vmatpush2.bf16.xpose.msra.mxu0 %v5890
    %8337 = vmatprep.subr.bf16.mxu0 %v5805
    %8338 = vmatpush2.bf16.xpose.msra.mxu0 %v5804
    %8339 = vmatprep.subr.bf16.mxu0 %v5719
    %8340 = vmatpush2.bf16.xpose.msra.mxu0 %v5718
    %8341 = vmatprep.subr.bf16.mxu0 %v5633
    %8342 = vmatpush2.bf16.xpose.msra.mxu0 %v5632
    %8343 = vmatprep.mubr.bf16.mxu0 %v1419
    %8344 = vmatmul.mubr.bf16.gmra.mxu0 %v1418
    %v8345 = vpop.f32.mrf.mxu0
    %v8346 = vadd.f32 %v8305, %v8345
    %v8347 = vpop.f32.mrf.mxu0
    %v8348 = vadd.f32 %v8307, %v8347
    %v8349 = vpop.f32.mrf.mxu0
    %v8350 = vpop.f32.mrf.mxu0
    %8351 = vdwg.mxu0
    %8352 = vmatprep.subr.bf16.mxu0 %v5549
    %8353 = vmatpush1.bf16.xpose.msra.mxu0 %v5548
    %8354 = vmatprep.subr.bf16.mxu0 %v5463
    %8355 = vmatpush1.bf16.xpose.msra.mxu0 %v5462
    %8356 = vmatprep.subr.bf16.mxu0 %v5377
    %8357 = vmatpush1.bf16.xpose.msra.mxu0 %v5376
    %8358 = vmatprep.subr.bf16.mxu0 %v5291
    %8359 = vmatpush1.bf16.xpose.msra.mxu0 %v5290
    %8360 = vmatprep.subr.bf16.mxu0 %v5205
    %8361 = vmatpush1.bf16.xpose.msra.mxu0 %v5204
    %8362 = vmatprep.subr.bf16.mxu0 %v5119
    %8363 = vmatpush1.bf16.xpose.msra.mxu0 %v5118
    %8364 = vmatprep.subr.bf16.mxu0 %v5033
    %8365 = vmatpush1.bf16.xpose.msra.mxu0 %v5032
    %8366 = vmatprep.subr.bf16.mxu0 %v4947
    %8367 = vmatpush1.bf16.xpose.msra.mxu0 %v4946
    %8368 = vmatprep.subr.bf16.mxu0 0
    %8369 = vmatpush2.bf16.xpose.msra.mxu0 0
    %8370 = vmatprep.subr.bf16.mxu0 0
    %8371 = vmatpush2.bf16.xpose.msra.mxu0 0
    %8372 = vmatprep.subr.bf16.mxu0 0
    %8373 = vmatpush2.bf16.xpose.msra.mxu0 0
    %8374 = vmatprep.subr.bf16.mxu0 %v5979
    %8375 = vmatpush2.bf16.xpose.msra.mxu0 %v5978
    %8376 = vmatprep.subr.bf16.mxu0 %v5893
    %8377 = vmatpush2.bf16.xpose.msra.mxu0 %v5892
    %8378 = vmatprep.subr.bf16.mxu0 %v5807
    %8379 = vmatpush2.bf16.xpose.msra.mxu0 %v5806
    %8380 = vmatprep.subr.bf16.mxu0 %v5721
    %8381 = vmatpush2.bf16.xpose.msra.mxu0 %v5720
    %8382 = vmatprep.subr.bf16.mxu0 %v5635
    %8383 = vmatpush2.bf16.xpose.msra.mxu0 %v5634
    %8384 = vmatprep.mubr.bf16.mxu0 %v1421
    %8385 = vmatmul.mubr.bf16.gmra.mxu0 %v1420
    %v8386 = vpop.f32.mrf.mxu0
    %v8387 = vadd.f32 %v8346, %v8386
    %v8388 = vpop.f32.mrf.mxu0
    %v8389 = vadd.f32 %v8348, %v8388
    %v8390 = vpop.f32.mrf.mxu0
    %v8391 = vpop.f32.mrf.mxu0
    %8392 = vdwg.mxu0
    %8393 = vmatprep.subr.bf16.mxu0 %v5551
    %8394 = vmatpush1.bf16.xpose.msra.mxu0 %v5550
    %8395 = vmatprep.subr.bf16.mxu0 %v5465
    %8396 = vmatpush1.bf16.xpose.msra.mxu0 %v5464
    %8397 = vmatprep.subr.bf16.mxu0 %v5379
    %8398 = vmatpush1.bf16.xpose.msra.mxu0 %v5378
    %8399 = vmatprep.subr.bf16.mxu0 %v5293
    %8400 = vmatpush1.bf16.xpose.msra.mxu0 %v5292
    %8401 = vmatprep.subr.bf16.mxu0 %v5207
    %8402 = vmatpush1.bf16.xpose.msra.mxu0 %v5206
    %8403 = vmatprep.subr.bf16.mxu0 %v5121
    %8404 = vmatpush1.bf16.xpose.msra.mxu0 %v5120
    %8405 = vmatprep.subr.bf16.mxu0 %v5035
    %8406 = vmatpush1.bf16.xpose.msra.mxu0 %v5034
    %8407 = vmatprep.subr.bf16.mxu0 %v4949
    %8408 = vmatpush1.bf16.xpose.msra.mxu0 %v4948
    %8409 = vmatprep.subr.bf16.mxu0 0
    %8410 = vmatpush2.bf16.xpose.msra.mxu0 0
    %8411 = vmatprep.subr.bf16.mxu0 0
    %8412 = vmatpush2.bf16.xpose.msra.mxu0 0
    %8413 = vmatprep.subr.bf16.mxu0 0
    %8414 = vmatpush2.bf16.xpose.msra.mxu0 0
    %8415 = vmatprep.subr.bf16.mxu0 %v5981
    %8416 = vmatpush2.bf16.xpose.msra.mxu0 %v5980
    %8417 = vmatprep.subr.bf16.mxu0 %v5895
    %8418 = vmatpush2.bf16.xpose.msra.mxu0 %v5894
    %8419 = vmatprep.subr.bf16.mxu0 %v5809
    %8420 = vmatpush2.bf16.xpose.msra.mxu0 %v5808
    %8421 = vmatprep.subr.bf16.mxu0 %v5723
    %8422 = vmatpush2.bf16.xpose.msra.mxu0 %v5722
    %8423 = vmatprep.subr.bf16.mxu0 %v5637
    %8424 = vmatpush2.bf16.xpose.msra.mxu0 %v5636
    %8425 = vmatprep.mubr.bf16.mxu0 %v1423
    %8426 = vmatmul.mubr.bf16.gmra.mxu0 %v1422
    %v8427 = vpop.f32.mrf.mxu0
    %v8428 = vadd.f32 %v8387, %v8427
    %v8429 = vpop.f32.mrf.mxu0
    %v8430 = vadd.f32 %v8389, %v8429
    %v8431 = vpop.f32.mrf.mxu0
    %v8432 = vpop.f32.mrf.mxu0
    %8433 = vdwg.mxu0
    %8434 = vmatprep.subr.bf16.mxu0 %v5553
    %8435 = vmatpush1.bf16.xpose.msra.mxu0 %v5552
    %8436 = vmatprep.subr.bf16.mxu0 %v5467
    %8437 = vmatpush1.bf16.xpose.msra.mxu0 %v5466
    %8438 = vmatprep.subr.bf16.mxu0 %v5381
    %8439 = vmatpush1.bf16.xpose.msra.mxu0 %v5380
    %8440 = vmatprep.subr.bf16.mxu0 %v5295
    %8441 = vmatpush1.bf16.xpose.msra.mxu0 %v5294
    %8442 = vmatprep.subr.bf16.mxu0 %v5209
    %8443 = vmatpush1.bf16.xpose.msra.mxu0 %v5208
    %8444 = vmatprep.subr.bf16.mxu0 %v5123
    %8445 = vmatpush1.bf16.xpose.msra.mxu0 %v5122
    %8446 = vmatprep.subr.bf16.mxu0 %v5037
    %8447 = vmatpush1.bf16.xpose.msra.mxu0 %v5036
    %8448 = vmatprep.subr.bf16.mxu0 %v4951
    %8449 = vmatpush1.bf16.xpose.msra.mxu0 %v4950
    %8450 = vmatprep.subr.bf16.mxu0 0
    %8451 = vmatpush2.bf16.xpose.msra.mxu0 0
    %8452 = vmatprep.subr.bf16.mxu0 0
    %8453 = vmatpush2.bf16.xpose.msra.mxu0 0
    %8454 = vmatprep.subr.bf16.mxu0 0
    %8455 = vmatpush2.bf16.xpose.msra.mxu0 0
    %8456 = vmatprep.subr.bf16.mxu0 %v5983
    %8457 = vmatpush2.bf16.xpose.msra.mxu0 %v5982
    %8458 = vmatprep.subr.bf16.mxu0 %v5897
    %8459 = vmatpush2.bf16.xpose.msra.mxu0 %v5896
    %8460 = vmatprep.subr.bf16.mxu0 %v5811
    %8461 = vmatpush2.bf16.xpose.msra.mxu0 %v5810
    %8462 = vmatprep.subr.bf16.mxu0 %v5725
    %8463 = vmatpush2.bf16.xpose.msra.mxu0 %v5724
    %8464 = vmatprep.subr.bf16.mxu0 %v5639
    %8465 = vmatpush2.bf16.xpose.msra.mxu0 %v5638
    %8466 = vmatprep.mubr.bf16.mxu0 %v1425
    %8467 = vmatmul.mubr.bf16.gmra.mxu0 %v1424
    %v8468 = vpop.f32.mrf.mxu0
    %v8469 = vadd.f32 %v8428, %v8468
    %v8470 = vpop.f32.mrf.mxu0
    %v8471 = vadd.f32 %v8430, %v8470
    %v8472 = vpop.f32.mrf.mxu0
    %v8473 = vpop.f32.mrf.mxu0
    %8474 = vdwg.mxu0
    %8475 = vmatprep.subr.bf16.mxu0 %v5555
    %8476 = vmatpush1.bf16.xpose.msra.mxu0 %v5554
    %8477 = vmatprep.subr.bf16.mxu0 %v5469
    %8478 = vmatpush1.bf16.xpose.msra.mxu0 %v5468
    %8479 = vmatprep.subr.bf16.mxu0 %v5383
    %8480 = vmatpush1.bf16.xpose.msra.mxu0 %v5382
    %8481 = vmatprep.subr.bf16.mxu0 %v5297
    %8482 = vmatpush1.bf16.xpose.msra.mxu0 %v5296
    %8483 = vmatprep.subr.bf16.mxu0 %v5211
    %8484 = vmatpush1.bf16.xpose.msra.mxu0 %v5210
    %8485 = vmatprep.subr.bf16.mxu0 %v5125
    %8486 = vmatpush1.bf16.xpose.msra.mxu0 %v5124
    %8487 = vmatprep.subr.bf16.mxu0 %v5039
    %8488 = vmatpush1.bf16.xpose.msra.mxu0 %v5038
    %8489 = vmatprep.subr.bf16.mxu0 %v4953
    %8490 = vmatpush1.bf16.xpose.msra.mxu0 %v4952
    %8491 = vmatprep.subr.bf16.mxu0 0
    %8492 = vmatpush2.bf16.xpose.msra.mxu0 0
    %8493 = vmatprep.subr.bf16.mxu0 0
    %8494 = vmatpush2.bf16.xpose.msra.mxu0 0
    %8495 = vmatprep.subr.bf16.mxu0 0
    %8496 = vmatpush2.bf16.xpose.msra.mxu0 0
    %8497 = vmatprep.subr.bf16.mxu0 %v5985
    %8498 = vmatpush2.bf16.xpose.msra.mxu0 %v5984
    %8499 = vmatprep.subr.bf16.mxu0 %v5899
    %8500 = vmatpush2.bf16.xpose.msra.mxu0 %v5898
    %8501 = vmatprep.subr.bf16.mxu0 %v5813
    %8502 = vmatpush2.bf16.xpose.msra.mxu0 %v5812
    %8503 = vmatprep.subr.bf16.mxu0 %v5727
    %8504 = vmatpush2.bf16.xpose.msra.mxu0 %v5726
    %8505 = vmatprep.subr.bf16.mxu0 %v5641
    %8506 = vmatpush2.bf16.xpose.msra.mxu0 %v5640
    %8507 = vmatprep.mubr.bf16.mxu0 %v1427
    %8508 = vmatmul.mubr.bf16.gmra.mxu0 %v1426
    %v8509 = vpop.f32.mrf.mxu0
    %v8510 = vadd.f32 %v8469, %v8509
    %v8511 = vpop.f32.mrf.mxu0
    %v8512 = vadd.f32 %v8471, %v8511
    %v8513 = vpop.f32.mrf.mxu0
    %v8514 = vpop.f32.mrf.mxu0
    %8515 = vdwg.mxu0
    %8516 = vmatprep.subr.bf16.mxu0 %v5557
    %8517 = vmatpush1.bf16.xpose.msra.mxu0 %v5556
    %8518 = vmatprep.subr.bf16.mxu0 %v5471
    %8519 = vmatpush1.bf16.xpose.msra.mxu0 %v5470
    %8520 = vmatprep.subr.bf16.mxu0 %v5385
    %8521 = vmatpush1.bf16.xpose.msra.mxu0 %v5384
    %8522 = vmatprep.subr.bf16.mxu0 %v5299
    %8523 = vmatpush1.bf16.xpose.msra.mxu0 %v5298
    %8524 = vmatprep.subr.bf16.mxu0 %v5213
    %8525 = vmatpush1.bf16.xpose.msra.mxu0 %v5212
    %8526 = vmatprep.subr.bf16.mxu0 %v5127
    %8527 = vmatpush1.bf16.xpose.msra.mxu0 %v5126
    %8528 = vmatprep.subr.bf16.mxu0 %v5041
    %8529 = vmatpush1.bf16.xpose.msra.mxu0 %v5040
    %8530 = vmatprep.subr.bf16.mxu0 %v4955
    %8531 = vmatpush1.bf16.xpose.msra.mxu0 %v4954
    %8532 = vmatprep.subr.bf16.mxu0 0
    %8533 = vmatpush2.bf16.xpose.msra.mxu0 0
    %8534 = vmatprep.subr.bf16.mxu0 0
    %8535 = vmatpush2.bf16.xpose.msra.mxu0 0
    %8536 = vmatprep.subr.bf16.mxu0 0
    %8537 = vmatpush2.bf16.xpose.msra.mxu0 0
    %8538 = vmatprep.subr.bf16.mxu0 %v5987
    %8539 = vmatpush2.bf16.xpose.msra.mxu0 %v5986
    %8540 = vmatprep.subr.bf16.mxu0 %v5901
    %8541 = vmatpush2.bf16.xpose.msra.mxu0 %v5900
    %8542 = vmatprep.subr.bf16.mxu0 %v5815
    %8543 = vmatpush2.bf16.xpose.msra.mxu0 %v5814
    %8544 = vmatprep.subr.bf16.mxu0 %v5729
    %8545 = vmatpush2.bf16.xpose.msra.mxu0 %v5728
    %8546 = vmatprep.subr.bf16.mxu0 %v5643
    %8547 = vmatpush2.bf16.xpose.msra.mxu0 %v5642
    %8548 = vmatprep.mubr.bf16.mxu0 %v1429
    %8549 = vmatmul.mubr.bf16.gmra.mxu0 %v1428
    %v8550 = vpop.f32.mrf.mxu0
    %v8551 = vadd.f32 %v8510, %v8550
    %v8552 = vpop.f32.mrf.mxu0
    %v8553 = vadd.f32 %v8512, %v8552
    %v8554 = vpop.f32.mrf.mxu0
    %v8555 = vpop.f32.mrf.mxu0
    %8556 = vdwg.mxu0
    %8557 = vmatprep.subr.bf16.mxu0 %v5559
    %8558 = vmatpush1.bf16.xpose.msra.mxu0 %v5558
    %8559 = vmatprep.subr.bf16.mxu0 %v5473
    %8560 = vmatpush1.bf16.xpose.msra.mxu0 %v5472
    %8561 = vmatprep.subr.bf16.mxu0 %v5387
    %8562 = vmatpush1.bf16.xpose.msra.mxu0 %v5386
    %8563 = vmatprep.subr.bf16.mxu0 %v5301
    %8564 = vmatpush1.bf16.xpose.msra.mxu0 %v5300
    %8565 = vmatprep.subr.bf16.mxu0 %v5215
    %8566 = vmatpush1.bf16.xpose.msra.mxu0 %v5214
    %8567 = vmatprep.subr.bf16.mxu0 %v5129
    %8568 = vmatpush1.bf16.xpose.msra.mxu0 %v5128
    %8569 = vmatprep.subr.bf16.mxu0 %v5043
    %8570 = vmatpush1.bf16.xpose.msra.mxu0 %v5042
    %8571 = vmatprep.subr.bf16.mxu0 %v4957
    %8572 = vmatpush1.bf16.xpose.msra.mxu0 %v4956
    %8573 = vmatprep.subr.bf16.mxu0 0
    %8574 = vmatpush2.bf16.xpose.msra.mxu0 0
    %8575 = vmatprep.subr.bf16.mxu0 0
    %8576 = vmatpush2.bf16.xpose.msra.mxu0 0
    %8577 = vmatprep.subr.bf16.mxu0 0
    %8578 = vmatpush2.bf16.xpose.msra.mxu0 0
    %8579 = vmatprep.subr.bf16.mxu0 %v5989
    %8580 = vmatpush2.bf16.xpose.msra.mxu0 %v5988
    %8581 = vmatprep.subr.bf16.mxu0 %v5903
    %8582 = vmatpush2.bf16.xpose.msra.mxu0 %v5902
    %8583 = vmatprep.subr.bf16.mxu0 %v5817
    %8584 = vmatpush2.bf16.xpose.msra.mxu0 %v5816
    %8585 = vmatprep.subr.bf16.mxu0 %v5731
    %8586 = vmatpush2.bf16.xpose.msra.mxu0 %v5730
    %8587 = vmatprep.subr.bf16.mxu0 %v5645
    %8588 = vmatpush2.bf16.xpose.msra.mxu0 %v5644
    %8589 = vmatprep.mubr.bf16.mxu0 %v1431
    %8590 = vmatmul.mubr.bf16.gmra.mxu0 %v1430
    %v8591 = vpop.f32.mrf.mxu0
    %v8592 = vadd.f32 %v8551, %v8591
    %v8593 = vpop.f32.mrf.mxu0
    %v8594 = vadd.f32 %v8553, %v8593
    %v8595 = vpop.f32.mrf.mxu0
    %v8596 = vpop.f32.mrf.mxu0
    %8597 = vdwg.mxu0
    %8598 = vmatprep.subr.bf16.mxu0 %v5561
    %8599 = vmatpush1.bf16.xpose.msra.mxu0 %v5560
    %8600 = vmatprep.subr.bf16.mxu0 %v5475
    %8601 = vmatpush1.bf16.xpose.msra.mxu0 %v5474
    %8602 = vmatprep.subr.bf16.mxu0 %v5389
    %8603 = vmatpush1.bf16.xpose.msra.mxu0 %v5388
    %8604 = vmatprep.subr.bf16.mxu0 %v5303
    %8605 = vmatpush1.bf16.xpose.msra.mxu0 %v5302
    %8606 = vmatprep.subr.bf16.mxu0 %v5217
    %8607 = vmatpush1.bf16.xpose.msra.mxu0 %v5216
    %8608 = vmatprep.subr.bf16.mxu0 %v5131
    %8609 = vmatpush1.bf16.xpose.msra.mxu0 %v5130
    %8610 = vmatprep.subr.bf16.mxu0 %v5045
    %8611 = vmatpush1.bf16.xpose.msra.mxu0 %v5044
    %8612 = vmatprep.subr.bf16.mxu0 %v4959
    %8613 = vmatpush1.bf16.xpose.msra.mxu0 %v4958
    %8614 = vmatprep.subr.bf16.mxu0 0
    %8615 = vmatpush2.bf16.xpose.msra.mxu0 0
    %8616 = vmatprep.subr.bf16.mxu0 0
    %8617 = vmatpush2.bf16.xpose.msra.mxu0 0
    %8618 = vmatprep.subr.bf16.mxu0 0
    %8619 = vmatpush2.bf16.xpose.msra.mxu0 0
    %8620 = vmatprep.subr.bf16.mxu0 %v5991
    %8621 = vmatpush2.bf16.xpose.msra.mxu0 %v5990
    %8622 = vmatprep.subr.bf16.mxu0 %v5905
    %8623 = vmatpush2.bf16.xpose.msra.mxu0 %v5904
    %8624 = vmatprep.subr.bf16.mxu0 %v5819
    %8625 = vmatpush2.bf16.xpose.msra.mxu0 %v5818
    %8626 = vmatprep.subr.bf16.mxu0 %v5733
    %8627 = vmatpush2.bf16.xpose.msra.mxu0 %v5732
    %8628 = vmatprep.subr.bf16.mxu0 %v5647
    %8629 = vmatpush2.bf16.xpose.msra.mxu0 %v5646
    %8630 = vmatprep.mubr.bf16.mxu0 %v1433
    %8631 = vmatmul.mubr.bf16.gmra.mxu0 %v1432
    %v8632 = vpop.f32.mrf.mxu0
    %v8633 = vadd.f32 %v8592, %v8632
    %v8634 = vpop.f32.mrf.mxu0
    %v8635 = vadd.f32 %v8594, %v8634
    %v8636 = vpop.f32.mrf.mxu0
    %v8637 = vpop.f32.mrf.mxu0
    %8638 = vdwg.mxu0
    %8639 = vmatprep.subr.bf16.mxu0 %v5563
    %8640 = vmatpush1.bf16.xpose.msra.mxu0 %v5562
    %8641 = vmatprep.subr.bf16.mxu0 %v5477
    %8642 = vmatpush1.bf16.xpose.msra.mxu0 %v5476
    %8643 = vmatprep.subr.bf16.mxu0 %v5391
    %8644 = vmatpush1.bf16.xpose.msra.mxu0 %v5390
    %8645 = vmatprep.subr.bf16.mxu0 %v5305
    %8646 = vmatpush1.bf16.xpose.msra.mxu0 %v5304
    %8647 = vmatprep.subr.bf16.mxu0 %v5219
    %8648 = vmatpush1.bf16.xpose.msra.mxu0 %v5218
    %8649 = vmatprep.subr.bf16.mxu0 %v5133
    %8650 = vmatpush1.bf16.xpose.msra.mxu0 %v5132
    %8651 = vmatprep.subr.bf16.mxu0 %v5047
    %8652 = vmatpush1.bf16.xpose.msra.mxu0 %v5046
    %8653 = vmatprep.subr.bf16.mxu0 %v4961
    %8654 = vmatpush1.bf16.xpose.msra.mxu0 %v4960
    %8655 = vmatprep.subr.bf16.mxu0 0
    %8656 = vmatpush2.bf16.xpose.msra.mxu0 0
    %8657 = vmatprep.subr.bf16.mxu0 0
    %8658 = vmatpush2.bf16.xpose.msra.mxu0 0
    %8659 = vmatprep.subr.bf16.mxu0 0
    %8660 = vmatpush2.bf16.xpose.msra.mxu0 0
    %8661 = vmatprep.subr.bf16.mxu0 %v5993
    %8662 = vmatpush2.bf16.xpose.msra.mxu0 %v5992
    %8663 = vmatprep.subr.bf16.mxu0 %v5907
    %8664 = vmatpush2.bf16.xpose.msra.mxu0 %v5906
    %8665 = vmatprep.subr.bf16.mxu0 %v5821
    %8666 = vmatpush2.bf16.xpose.msra.mxu0 %v5820
    %8667 = vmatprep.subr.bf16.mxu0 %v5735
    %8668 = vmatpush2.bf16.xpose.msra.mxu0 %v5734
    %8669 = vmatprep.subr.bf16.mxu0 %v5649
    %8670 = vmatpush2.bf16.xpose.msra.mxu0 %v5648
    %8671 = vmatprep.mubr.bf16.mxu0 %v1435
    %8672 = vmatmul.mubr.bf16.gmra.mxu0 %v1434
    %v8673 = vpop.f32.mrf.mxu0
    %v8674 = vadd.f32 %v8633, %v8673
    %v8675 = vpop.f32.mrf.mxu0
    %v8676 = vadd.f32 %v8635, %v8675
    %v8677 = vpop.f32.mrf.mxu0
    %v8678 = vpop.f32.mrf.mxu0
    %8679 = vdwg.mxu0
    %8680 = vmatprep.subr.bf16.mxu0 %v5565
    %8681 = vmatpush1.bf16.xpose.msra.mxu0 %v5564
    %8682 = vmatprep.subr.bf16.mxu0 %v5479
    %8683 = vmatpush1.bf16.xpose.msra.mxu0 %v5478
    %8684 = vmatprep.subr.bf16.mxu0 %v5393
    %8685 = vmatpush1.bf16.xpose.msra.mxu0 %v5392
    %8686 = vmatprep.subr.bf16.mxu0 %v5307
    %8687 = vmatpush1.bf16.xpose.msra.mxu0 %v5306
    %8688 = vmatprep.subr.bf16.mxu0 %v5221
    %8689 = vmatpush1.bf16.xpose.msra.mxu0 %v5220
    %8690 = vmatprep.subr.bf16.mxu0 %v5135
    %8691 = vmatpush1.bf16.xpose.msra.mxu0 %v5134
    %8692 = vmatprep.subr.bf16.mxu0 %v5049
    %8693 = vmatpush1.bf16.xpose.msra.mxu0 %v5048
    %8694 = vmatprep.subr.bf16.mxu0 %v4963
    %8695 = vmatpush1.bf16.xpose.msra.mxu0 %v4962
    %8696 = vmatprep.subr.bf16.mxu0 0
    %8697 = vmatpush2.bf16.xpose.msra.mxu0 0
    %8698 = vmatprep.subr.bf16.mxu0 0
    %8699 = vmatpush2.bf16.xpose.msra.mxu0 0
    %8700 = vmatprep.subr.bf16.mxu0 0
    %8701 = vmatpush2.bf16.xpose.msra.mxu0 0
    %8702 = vmatprep.subr.bf16.mxu0 %v5995
    %8703 = vmatpush2.bf16.xpose.msra.mxu0 %v5994
    %8704 = vmatprep.subr.bf16.mxu0 %v5909
    %8705 = vmatpush2.bf16.xpose.msra.mxu0 %v5908
    %8706 = vmatprep.subr.bf16.mxu0 %v5823
    %8707 = vmatpush2.bf16.xpose.msra.mxu0 %v5822
    %8708 = vmatprep.subr.bf16.mxu0 %v5737
    %8709 = vmatpush2.bf16.xpose.msra.mxu0 %v5736
    %8710 = vmatprep.subr.bf16.mxu0 %v5651
    %8711 = vmatpush2.bf16.xpose.msra.mxu0 %v5650
    %8712 = vmatprep.mubr.bf16.mxu0 %v1437
    %8713 = vmatmul.mubr.bf16.gmra.mxu0 %v1436
    %v8714 = vpop.f32.mrf.mxu0
    %v8715 = vadd.f32 %v8674, %v8714
    %v8716 = vpop.f32.mrf.mxu0
    %v8717 = vadd.f32 %v8676, %v8716
    %v8718 = vpop.f32.mrf.mxu0
    %v8719 = vpop.f32.mrf.mxu0
    %8720 = vdwg.mxu0
    %8721 = vmatprep.subr.bf16.mxu0 %v5567
    %8722 = vmatpush1.bf16.xpose.msra.mxu0 %v5566
    %8723 = vmatprep.subr.bf16.mxu0 %v5481
    %8724 = vmatpush1.bf16.xpose.msra.mxu0 %v5480
    %8725 = vmatprep.subr.bf16.mxu0 %v5395
    %8726 = vmatpush1.bf16.xpose.msra.mxu0 %v5394
    %8727 = vmatprep.subr.bf16.mxu0 %v5309
    %8728 = vmatpush1.bf16.xpose.msra.mxu0 %v5308
    %8729 = vmatprep.subr.bf16.mxu0 %v5223
    %8730 = vmatpush1.bf16.xpose.msra.mxu0 %v5222
    %8731 = vmatprep.subr.bf16.mxu0 %v5137
    %8732 = vmatpush1.bf16.xpose.msra.mxu0 %v5136
    %8733 = vmatprep.subr.bf16.mxu0 %v5051
    %8734 = vmatpush1.bf16.xpose.msra.mxu0 %v5050
    %8735 = vmatprep.subr.bf16.mxu0 %v4965
    %8736 = vmatpush1.bf16.xpose.msra.mxu0 %v4964
    %8737 = vmatprep.subr.bf16.mxu0 0
    %8738 = vmatpush2.bf16.xpose.msra.mxu0 0
    %8739 = vmatprep.subr.bf16.mxu0 0
    %8740 = vmatpush2.bf16.xpose.msra.mxu0 0
    %8741 = vmatprep.subr.bf16.mxu0 0
    %8742 = vmatpush2.bf16.xpose.msra.mxu0 0
    %8743 = vmatprep.subr.bf16.mxu0 %v5997
    %8744 = vmatpush2.bf16.xpose.msra.mxu0 %v5996
    %8745 = vmatprep.subr.bf16.mxu0 %v5911
    %8746 = vmatpush2.bf16.xpose.msra.mxu0 %v5910
    %8747 = vmatprep.subr.bf16.mxu0 %v5825
    %8748 = vmatpush2.bf16.xpose.msra.mxu0 %v5824
    %8749 = vmatprep.subr.bf16.mxu0 %v5739
    %8750 = vmatpush2.bf16.xpose.msra.mxu0 %v5738
    %8751 = vmatprep.subr.bf16.mxu0 %v5653
    %8752 = vmatpush2.bf16.xpose.msra.mxu0 %v5652
    %8753 = vmatprep.mubr.bf16.mxu0 %v1439
    %8754 = vmatmul.mubr.bf16.gmra.mxu0 %v1438
    %v8755 = vpop.f32.mrf.mxu0
    %v8756 = vadd.f32 %v8715, %v8755
    %v8757 = vpop.f32.mrf.mxu0
    %v8758 = vadd.f32 %v8717, %v8757
    %v8759 = vpop.f32.mrf.mxu0
    %v8760 = vpop.f32.mrf.mxu0
    %8761 = vdwg.mxu0
    %8762 = vmatprep.subr.bf16.mxu0 %v5569
    %8763 = vmatpush1.bf16.xpose.msra.mxu0 %v5568
    %8764 = vmatprep.subr.bf16.mxu0 %v5483
    %8765 = vmatpush1.bf16.xpose.msra.mxu0 %v5482
    %8766 = vmatprep.subr.bf16.mxu0 %v5397
    %8767 = vmatpush1.bf16.xpose.msra.mxu0 %v5396
    %8768 = vmatprep.subr.bf16.mxu0 %v5311
    %8769 = vmatpush1.bf16.xpose.msra.mxu0 %v5310
    %8770 = vmatprep.subr.bf16.mxu0 %v5225
    %8771 = vmatpush1.bf16.xpose.msra.mxu0 %v5224
    %8772 = vmatprep.subr.bf16.mxu0 %v5139
    %8773 = vmatpush1.bf16.xpose.msra.mxu0 %v5138
    %8774 = vmatprep.subr.bf16.mxu0 %v5053
    %8775 = vmatpush1.bf16.xpose.msra.mxu0 %v5052
    %8776 = vmatprep.subr.bf16.mxu0 %v4967
    %8777 = vmatpush1.bf16.xpose.msra.mxu0 %v4966
    %8778 = vmatprep.subr.bf16.mxu0 0
    %8779 = vmatpush2.bf16.xpose.msra.mxu0 0
    %8780 = vmatprep.subr.bf16.mxu0 0
    %8781 = vmatpush2.bf16.xpose.msra.mxu0 0
    %8782 = vmatprep.subr.bf16.mxu0 0
    %8783 = vmatpush2.bf16.xpose.msra.mxu0 0
    %8784 = vmatprep.subr.bf16.mxu0 %v5999
    %8785 = vmatpush2.bf16.xpose.msra.mxu0 %v5998
    %8786 = vmatprep.subr.bf16.mxu0 %v5913
    %8787 = vmatpush2.bf16.xpose.msra.mxu0 %v5912
    %8788 = vmatprep.subr.bf16.mxu0 %v5827
    %8789 = vmatpush2.bf16.xpose.msra.mxu0 %v5826
    %8790 = vmatprep.subr.bf16.mxu0 %v5741
    %8791 = vmatpush2.bf16.xpose.msra.mxu0 %v5740
    %8792 = vmatprep.subr.bf16.mxu0 %v5655
    %8793 = vmatpush2.bf16.xpose.msra.mxu0 %v5654
    %8794 = vmatprep.mubr.bf16.mxu0 %v1441
    %8795 = vmatmul.mubr.bf16.gmra.mxu0 %v1440
    %v8796 = vpop.f32.mrf.mxu0
    %v8797 = vadd.f32 %v8756, %v8796
    %v8798 = vpop.f32.mrf.mxu0
    %v8799 = vadd.f32 %v8758, %v8798
    %v8800 = vpop.f32.mrf.mxu0
    %v8801 = vpop.f32.mrf.mxu0
    %8802 = vdwg.mxu0
    %8803 = vmatprep.subr.bf16.mxu0 %v5571
    %8804 = vmatpush1.bf16.xpose.msra.mxu0 %v5570
    %8805 = vmatprep.subr.bf16.mxu0 %v5485
    %8806 = vmatpush1.bf16.xpose.msra.mxu0 %v5484
    %8807 = vmatprep.subr.bf16.mxu0 %v5399
    %8808 = vmatpush1.bf16.xpose.msra.mxu0 %v5398
    %8809 = vmatprep.subr.bf16.mxu0 %v5313
    %8810 = vmatpush1.bf16.xpose.msra.mxu0 %v5312
    %8811 = vmatprep.subr.bf16.mxu0 %v5227
    %8812 = vmatpush1.bf16.xpose.msra.mxu0 %v5226
    %8813 = vmatprep.subr.bf16.mxu0 %v5141
    %8814 = vmatpush1.bf16.xpose.msra.mxu0 %v5140
    %8815 = vmatprep.subr.bf16.mxu0 %v5055
    %8816 = vmatpush1.bf16.xpose.msra.mxu0 %v5054
    %8817 = vmatprep.subr.bf16.mxu0 %v4969
    %8818 = vmatpush1.bf16.xpose.msra.mxu0 %v4968
    %8819 = vmatprep.subr.bf16.mxu0 0
    %8820 = vmatpush2.bf16.xpose.msra.mxu0 0
    %8821 = vmatprep.subr.bf16.mxu0 0
    %8822 = vmatpush2.bf16.xpose.msra.mxu0 0
    %8823 = vmatprep.subr.bf16.mxu0 0
    %8824 = vmatpush2.bf16.xpose.msra.mxu0 0
    %8825 = vmatprep.subr.bf16.mxu0 %v6001
    %8826 = vmatpush2.bf16.xpose.msra.mxu0 %v6000
    %8827 = vmatprep.subr.bf16.mxu0 %v5915
    %8828 = vmatpush2.bf16.xpose.msra.mxu0 %v5914
    %8829 = vmatprep.subr.bf16.mxu0 %v5829
    %8830 = vmatpush2.bf16.xpose.msra.mxu0 %v5828
    %8831 = vmatprep.subr.bf16.mxu0 %v5743
    %8832 = vmatpush2.bf16.xpose.msra.mxu0 %v5742
    %8833 = vmatprep.subr.bf16.mxu0 %v5657
    %8834 = vmatpush2.bf16.xpose.msra.mxu0 %v5656
    %8835 = vmatprep.mubr.bf16.mxu0 %v1443
    %8836 = vmatmul.mubr.bf16.gmra.mxu0 %v1442
    %v8837 = vpop.f32.mrf.mxu0
    %v8838 = vadd.f32 %v8797, %v8837
    %v8839 = vpop.f32.mrf.mxu0
    %v8840 = vadd.f32 %v8799, %v8839
    %v8841 = vpop.f32.mrf.mxu0
    %v8842 = vpop.f32.mrf.mxu0
    %8843 = vdwg.mxu0
    %8844 = vmatprep.subr.bf16.mxu0 %v5573
    %8845 = vmatpush1.bf16.xpose.msra.mxu0 %v5572
    %8846 = vmatprep.subr.bf16.mxu0 %v5487
    %8847 = vmatpush1.bf16.xpose.msra.mxu0 %v5486
    %8848 = vmatprep.subr.bf16.mxu0 %v5401
    %8849 = vmatpush1.bf16.xpose.msra.mxu0 %v5400
    %8850 = vmatprep.subr.bf16.mxu0 %v5315
    %8851 = vmatpush1.bf16.xpose.msra.mxu0 %v5314
    %8852 = vmatprep.subr.bf16.mxu0 %v5229
    %8853 = vmatpush1.bf16.xpose.msra.mxu0 %v5228
    %8854 = vmatprep.subr.bf16.mxu0 %v5143
    %8855 = vmatpush1.bf16.xpose.msra.mxu0 %v5142
    %8856 = vmatprep.subr.bf16.mxu0 %v5057
    %8857 = vmatpush1.bf16.xpose.msra.mxu0 %v5056
    %8858 = vmatprep.subr.bf16.mxu0 %v4971
    %8859 = vmatpush1.bf16.xpose.msra.mxu0 %v4970
    %8860 = vmatprep.subr.bf16.mxu0 0
    %8861 = vmatpush2.bf16.xpose.msra.mxu0 0
    %8862 = vmatprep.subr.bf16.mxu0 0
    %8863 = vmatpush2.bf16.xpose.msra.mxu0 0
    %8864 = vmatprep.subr.bf16.mxu0 0
    %8865 = vmatpush2.bf16.xpose.msra.mxu0 0
    %8866 = vmatprep.subr.bf16.mxu0 %v6003
    %8867 = vmatpush2.bf16.xpose.msra.mxu0 %v6002
    %8868 = vmatprep.subr.bf16.mxu0 %v5917
    %8869 = vmatpush2.bf16.xpose.msra.mxu0 %v5916
    %8870 = vmatprep.subr.bf16.mxu0 %v5831
    %8871 = vmatpush2.bf16.xpose.msra.mxu0 %v5830
    %8872 = vmatprep.subr.bf16.mxu0 %v5745
    %8873 = vmatpush2.bf16.xpose.msra.mxu0 %v5744
    %8874 = vmatprep.subr.bf16.mxu0 %v5659
    %8875 = vmatpush2.bf16.xpose.msra.mxu0 %v5658
    %8876 = vmatprep.mubr.bf16.mxu0 %v1445
    %8877 = vmatmul.mubr.bf16.gmra.mxu0 %v1444
    %v8878 = vpop.f32.mrf.mxu0
    %v8879 = vadd.f32 %v8838, %v8878
    %v8880 = vpop.f32.mrf.mxu0
    %v8881 = vadd.f32 %v8840, %v8880
    %v8882 = vpop.f32.mrf.mxu0
    %v8883 = vpop.f32.mrf.mxu0
    %8884 = vdwg.mxu0
    %v8885 = vmax.f32 %v8879, 0.0
    %v8886 = vmax.f32 %v8881, 0.0
    %v8887 = vld [vmem:[%s3] sm:$0xff]
    %v8888 = vld [vmem:[%s3 + $0x8] sm:$0xff]
    %v8889 = vld [vmem:[%s3 + $0x10] sm:$0xff]
    %v8890 = vld [vmem:[%s3 + $0x18] sm:$0xff]
    %v8891 = vld [vmem:[%s3 + $0x20] sm:$0xff]
    %v8892 = vld [vmem:[%s3 + $0x28] sm:$0xff]
    %v8893 = vld [vmem:[%s3 + $0x30] sm:$0xff]
    %v8894 = vld [vmem:[%s3 + $0x38] sm:$0xff]
    %v8895 = vld [vmem:[%s3 + $0x40] sm:$0xff]
    %v8896 = vld [vmem:[%s3 + $0x48] sm:$0xff]
    %v8897 = vld [vmem:[%s3 + $0x50] sm:$0xff]
    %v8898 = vld [vmem:[%s3 + $0x58] sm:$0xff]
    %v8899 = vld [vmem:[%s3 + $0x60] sm:$0xff]
    %v8900 = vld [vmem:[%s3 + $0x68] sm:$0xff]
    %v8901 = vld [vmem:[%s3 + $0x70] sm:$0xff]
    %v8902 = vld [vmem:[%s3 + $0x78] sm:$0xff]
    %v8903 = vld [vmem:[%s3 + $0x80] sm:$0xff]
    %v8904 = vld [vmem:[%s3 + $0x88] sm:$0xff]
    %v8905 = vld [vmem:[%s3 + $0x90] sm:$0xff]
    %v8906 = vld [vmem:[%s3 + $0x98] sm:$0xff]
    %v8907 = vld [vmem:[%s3 + $0xa0] sm:$0xff]
    %v8908 = vld [vmem:[%s3 + $0xa8] sm:$0xff]
    %v8909 = vld [vmem:[%s3 + $0xb0] sm:$0xff]
    %v8910 = vld [vmem:[%s3 + $0xb8] sm:$0xff]
    %v8911 = vld [vmem:[%s3 + $0xc0] sm:$0xff]
    %v8912 = vld [vmem:[%s3 + $0xc8] sm:$0xff]
    %v8913 = vld [vmem:[#allocation6] sm:$0x1]
    %v8915 = vlaneseq
    %v8916 = vshrl.u32 %v8915, 7
    %v8917 = vsub.s32 0, %v8916
    %v8918 = vrot.slane %v8913, %v8917
    %vm8920 = vcmask 654336
    %v8922 = vsel %vm8920, %v8886, 0
    %8924 = vmatprep.subr.mxu0 0.0
    %8925 = vmatpush1.msra.mxu0 %v8902
    %8926 = vmatprep.subr.mxu0 0.0
    %8927 = vmatpush1.msra.mxu0 %v8901
    %8928 = vmatprep.subr.mxu0 0.0
    %8929 = vmatpush1.msra.mxu0 %v8900
    %8930 = vmatprep.subr.mxu0 0.0
    %8931 = vmatpush1.msra.mxu0 %v8899
    %8932 = vmatprep.subr.mxu0 0.0
    %8933 = vmatpush1.msra.mxu0 %v8898
    %8934 = vmatprep.subr.mxu0 0.0
    %8935 = vmatpush1.msra.mxu0 %v8897
    %8936 = vmatprep.subr.mxu0 0.0
    %8937 = vmatpush1.msra.mxu0 %v8896
    %8938 = vmatprep.subr.mxu0 0.0
    %8939 = vmatpush1.msra.mxu0 %v8895
    %8940 = vmatprep.subr.mxu0 0.0
    %8941 = vmatpush1.msra.mxu0 %v8894
    %8942 = vmatprep.subr.mxu0 0.0
    %8943 = vmatpush1.msra.mxu0 %v8893
    %8944 = vmatprep.subr.mxu0 0.0
    %8945 = vmatpush1.msra.mxu0 %v8892
    %8946 = vmatprep.subr.mxu0 0.0
    %8947 = vmatpush1.msra.mxu0 %v8891
    %8948 = vmatprep.subr.mxu0 0.0
    %8949 = vmatpush1.msra.mxu0 %v8890
    %8950 = vmatprep.subr.mxu0 0.0
    %8951 = vmatpush1.msra.mxu0 %v8889
    %8952 = vmatprep.subr.mxu0 0.0
    %8953 = vmatpush1.msra.mxu0 %v8888
    %8954 = vmatprep.subr.mxu0 0.0
    %8955 = vmatpush1.msra.mxu0 %v8887
    %8956 = vmatprep.subr.mxu0 0.0
    %8957 = vmatpush2.msra.mxu0 0.0
    %8958 = vmatprep.subr.mxu0 0.0
    %8959 = vmatpush2.msra.mxu0 0.0
    %8960 = vmatprep.subr.mxu0 0.0
    %8961 = vmatpush2.msra.mxu0 0.0
    %8962 = vmatprep.subr.mxu0 0.0
    %8963 = vmatpush2.msra.mxu0 0.0
    %8964 = vmatprep.subr.mxu0 0.0
    %8965 = vmatpush2.msra.mxu0 0.0
    %8966 = vmatprep.subr.mxu0 0.0
    %8967 = vmatpush2.msra.mxu0 0.0
    %8968 = vmatprep.subr.mxu0 0.0
    %8969 = vmatpush2.msra.mxu0 %v8912
    %8970 = vmatprep.subr.mxu0 0.0
    %8971 = vmatpush2.msra.mxu0 %v8911
    %8972 = vmatprep.subr.mxu0 0.0
    %8973 = vmatpush2.msra.mxu0 %v8910
    %8974 = vmatprep.subr.mxu0 0.0
    %8975 = vmatpush2.msra.mxu0 %v8909
    %8976 = vmatprep.subr.mxu0 0.0
    %8977 = vmatpush2.msra.mxu0 %v8908
    %8978 = vmatprep.subr.mxu0 0.0
    %8979 = vmatpush2.msra.mxu0 %v8907
    %8980 = vmatprep.subr.mxu0 0.0
    %8981 = vmatpush2.msra.mxu0 %v8906
    %8982 = vmatprep.subr.mxu0 0.0
    %8983 = vmatpush2.msra.mxu0 %v8905
    %8984 = vmatprep.subr.mxu0 0.0
    %8985 = vmatpush2.msra.mxu0 %v8904
    %8986 = vmatprep.subr.mxu0 0.0
    %8987 = vmatpush2.msra.mxu0 %v8903
    %8988 = vmatprep.mubr.f32.mxu0 %v8922
    %8989 = vmatmul.mubr.f32.gmra.mxu0 %v8885
    %v8990 = vpop.f32.mrf.mxu0
    %v8991 = vadd.f32 %v8918, %v8990
    %v8992 = vpop.f32.mrf.mxu0
    %8993 = vdwg.mxu0
    %vm8994 = vcmask 31744
    %v8995 = vsel %vm8994, %v8991, -inf
    %8996 = vmax.xlane.f32.xlu0 %v8995
    %v8997 = vpop.xlane.xlu0 %8996
    %v8998 = vsub.f32 %v8991, %v8997
    %v8999 = vmul.f32 %v8998, 1.442695
    %v9000 = vpow.pop %v8999
    %v9001 = vsel %vm8994, %v9000, 0.0
    %9002 = vadd.xlane.f32.xlu0 %v9001
    %v9003 = vpop.xlane.xlu0 %9002
    %v9004 = vrcp.pop %v9003
    %v9005 = vmul.f32 %v9000, %v9004
    %9006 = vst.msk [vmem:[%s5] sm:$0xff] %vm8994, %v9005
    // Predicated region
    $region34: #{mlp_softmax.1} parent=1 // pred_check
      _
    $region35: #{mlp_softmax.1} parent=1 // pred_check_branch
      %9008 = sbr.rel (0) target = $region37
    $region36: #{mlp_softmax.1} parent=1 // pred_region
      _
    $region37: #{mlp_softmax.1} parent=1 // pred_fallthru
      _
    // Predicated region
    $region38: #{mlp_softmax.1} parent=1 // pred_check
      _
    $region39: #{mlp_softmax.1} parent=1 // pred_check_branch
      %9010 = sbr.rel (0) target = $region41
    $region40: #{mlp_softmax.1} parent=1 // pred_region
      _
    $region41: #{mlp_softmax.1} parent=1 // pred_fallthru
      _
    %9011 = vsyncpa [#allocation3], 1
    %9012 = vsyncpa [#allocation5], 1

</llo_original>
